<compile_context>
chip_gen: v7x
topology: tpu7x:2x2x1
jax: 0.10.0
libtpu: 0.0.40
codegen_flags: <defaults>
</compile_context>

<pallas_src>
import jax
import jax.numpy as jnp
from jax.experimental import pallas as pl
from jax.experimental.pallas import tpu as pltpu


def _device_kind() -> str:
    try:
        return jax.devices()[0].device_kind.lower()
    except Exception:
        return ""


def _tensorcores_per_chip() -> int:
    k = _device_kind()
    # v4 / v5p (megacore) and v7x expose 2 TensorCores that a "parallel" grid axis
    # can shard across; v5e / v6e have a single TensorCore (a >1 grid is a loop).
    if ("v4" in k) or ("v5p" in k) or ("v7" in k):
        return 2
    return 1


def _default_conv_split() -> int:
    k = _device_kind()
    # v5e's MXU is only 128 deep in the contracting dim: K = C = 128 already fills
    # it, so skip the big (M, 9C) im2col concat and accumulate 9 K=128 dots.
    if ("v5e" in k) or ("v5 lite" in k) or ("v5lite" in k):
        return 9
    # v6e / v7x (256-deep MXU): one fused (M, 9C) @ (9C, C) GEMM per conv.
    return 1


def _make_irblock_kernel(conv_split: int):
    assert conv_split in (1, 3, 9)

    def _irblock_kernel(x_ref, w1_ref, w2_ref,
                        s0_ref, b0_ref, s1_ref, b1_ref, s2_ref, b2_ref,
                        prelu_ref, se_prelu_ref,
                        fc1w_ref, fc1b_ref, fc2w_ref, fc2b_ref,
                        out_ref):
        IB, H, W, C = x_ref.shape
        M = IB * H * W

        x = x_ref[...]                          # (IB, H, W, C) f32 -- residual
        xf = x.reshape(M, C)                    # lane dim = C (dense for C = 128)

        a_slope = prelu_ref[0, 0]               # shared PReLU slope, loaded once

        # bn0 (eval-mode folded per-channel scale / shift)
        t = xf * s0_ref[...] + b0_ref[...]      # (1, C) broadcasts over (M, C)

        def conv3x3_same(inp_flat, w_ref):
            # Zero-padded 3x3 "same" conv via im2col.  The input is cast to the
            # MXU dtype BEFORE padding / tap extraction so all im2col vector
            # traffic moves at bf16 width on the fast path; accumulation is f32.
            md = w_ref.dtype
            v = inp_flat.astype(md).reshape(IB, H, W, C)
            zr = jnp.zeros((IB, 1, W, C), md)
            v = jnp.concatenate([zr, v, zr], axis=1)        # (IB, H+2, W, C)
            zc = jnp.zeros((IB, H + 2, 1, C), md)
            v = jnp.concatenate([zc, v, zc], axis=2)        # (IB, H+2, W+2, C)

            def tap(ky, kx):
                # TODO(synk): the kx shifts could move to pltpu.roll (XLU) + an
                # edge-column mask if vld/vst remains the binding slot.
                return v[:, ky:ky + H, kx:kx + W, :].reshape(M, C)

            if conv_split == 1:
                # Single fused (M, 9C) @ (9C, C) GEMM -- fills a 256-deep MXU.
                patches = jnp.concatenate(
                    [tap(ky, kx) for ky in range(3) for kx in range(3)], axis=1)
                return jnp.dot(patches, w_ref[...],
                               preferred_element_type=jnp.float32)

            if conv_split == 3:
                # 3 accumulating dots of K = 3C grouped by ky (no outer concat).
                acc = None
                for ky in range(3):
                    grp = jnp.concatenate([tap(ky, kx) for kx in range(3)], axis=1)
                    d = jnp.dot(grp, w_ref[3 * C * ky:3 * C * (ky + 1), :],
                                preferred_element_type=jnp.float32)
                    acc = d if acc is None else acc + d
                return acc

            # conv_split == 9: accumulate 9 dots of K = C (v5e MXU already full).
            acc = None
            for ky in range(3):
                for kx in range(3):
                    r0 = (ky * 3 + kx) * C
                    d = jnp.dot(tap(ky, kx), w_ref[r0:r0 + C, :],
                                preferred_element_type=jnp.float32)
                    acc = d if acc is None else acc + d
            return acc

        # conv1 -> bn1 -> PReLU
        out = conv3x3_same(t, w1_ref)
        out = out * s1_ref[...] + b1_ref[...]
        out = jnp.where(out >= 0, out, a_slope * out)

        # conv2 (stride=1) -> bn2
        out = conv3x3_same(out, w2_ref)
        out = out * s2_ref[...] + b2_ref[...]

        # SE block: global avg pool -> fc1 -> PReLU -> fc2 -> sigmoid -> gate
        out3 = out.reshape(IB, H * W, C)
        y = jnp.mean(out3, axis=1)                                        # (IB, C)
        h = jnp.dot(y, fc1w_ref[...],
                    preferred_element_type=jnp.float32) + fc1b_ref[...]
        h = jnp.where(h >= 0, h, se_prelu_ref[0, 0] * h)
        z = jnp.dot(h, fc2w_ref[...],
                    preferred_element_type=jnp.float32) + fc2b_ref[...]
        gate = jax.nn.sigmoid(z)                                          # (IB, C)

        out3 = out3 * gate[:, None, :]
        out3 = out3 + x.reshape(IB, H * W, C)       # residual (downsample is None)
        out3 = jnp.where(out3 >= 0, out3, a_slope * out3)

        out_ref[...] = out3.reshape(IB, H, W, C).astype(out_ref.dtype)

    return _irblock_kernel


def irblock_forward(x_nchw, p, *, conv_dtype=jnp.bfloat16,
                    images_per_block=None, conv_split=None):
    x = jnp.transpose(x_nchw, (0, 2, 3, 1)).astype(jnp.float32)     # NCHW -> NHWC
    B, H, W, C = x.shape
    Cr = p["fc1w"].shape[1]

    if conv_split is None:
        conv_split = _default_conv_split()

    if images_per_block is None:
        # One grid step per TensorCore.  Single-TC chips (v5e/v6e) get grid=(1,)
        # (bigger GEMM M, no extra per-step overhead); megacore/v7x chips split
        # the batch so both TensorCores get an image block.  IB always divides B.
        ntc = _tensorcores_per_chip()
        images_per_block = B // ntc if (ntc > 1 and B % ntc == 0) else B
    IB = images_per_block
    assert B % IB == 0, (B, IB)
    grid = (B // IB,)

    # MXU operands in bf16 (f32 accumulate); pass conv_dtype=float32 for checks.
    w1 = p["w1"].astype(conv_dtype)
    w2 = p["w2"].astype(conv_dtype)

    def full(arr):
        return pl.BlockSpec(arr.shape, lambda b, _n=arr.ndim: (0,) * _n)

    in_specs = [
        pl.BlockSpec((IB, H, W, C), lambda b: (b, 0, 0, 0)),   # per-step image block
        full(w1), full(w2),                                    # conv weights, VMEM-resident
        full(p["s0"]), full(p["b0"]),                          # bn0 scale / shift
        full(p["s1"]), full(p["b1"]),                          # bn1
        full(p["s2"]), full(p["b2"]),                          # bn2
        full(p["prelu"]), full(p["se_prelu"]),                 # PReLU slopes
        full(p["fc1w"]), full(p["fc1b"]),                      # SE fc1 (W.T, b)
        full(p["fc2w"]), full(p["fc2b"]),                      # SE fc2 (W.T, b)
    ]

    itemsize = jnp.dtype(conv_dtype).itemsize
    conv_flops = 2 * 2 * B * H * W * (9 * C) * C               # two im2col GEMMs
    se_flops = 2 * 2 * B * C * Cr
    ew_flops = 12 * B * H * W * C
    cost = pl.CostEstimate(
        flops=int(conv_flops + se_flops + ew_flops),
        transcendentals=int(2 * B * C),                        # sigmoid
        bytes_accessed=int(2 * B * H * W * C * 4 + 2 * 9 * C * C * itemsize
                           + (6 * C + 2 + 2 * C * Cr + Cr + C) * 4),
    )

    out = pl.pallas_call(
        _make_irblock_kernel(conv_split),
        out_shape=jax.ShapeDtypeStruct((B, H, W, C), jnp.float32),
        grid_spec=pltpu.PrefetchScalarGridSpec(
            num_scalar_prefetch=0,
            grid=grid,
            in_specs=in_specs,
            out_specs=pl.BlockSpec((IB, H, W, C), lambda b: (b, 0, 0, 0)),
        ),
        compiler_params=pltpu.CompilerParams(
            dimension_semantics=("parallel",),
            vmem_limit_bytes=32 * 1024 * 1024),
        cost_estimate=cost,
    )(x, w1, w2,
      p["s0"], p["b0"], p["s1"], p["b1"], p["s2"], p["b2"],
      p["prelu"], p["se_prelu"],
      p["fc1w"], p["fc1b"], p["fc2w"], p["fc2b"])

    return jnp.transpose(out, (0, 3, 1, 2))                    # NHWC -> NCHW


def init_params(key, C, reduction=16):
    Cr = C // reduction
    ks = jax.random.split(key, 9)

    def bn(k):
        kg, kb, km, kv = jax.random.split(k, 4)
        gamma = 1.0 + 0.1 * jax.random.normal(kg, (C,), jnp.float32)
        beta = 0.1 * jax.random.normal(kb, (C,), jnp.float32)
        mean = 0.1 * jax.random.normal(km, (C,), jnp.float32)
        var = 1.0 + 0.2 * jax.random.uniform(kv, (C,), jnp.float32)
        scale = gamma / jnp.sqrt(var + 1e-5)
        shift = beta - mean * scale
        return scale.reshape(1, C), shift.reshape(1, C)

    s0, b0 = bn(ks[0])
    s1, b1 = bn(ks[1])
    s2, b2 = bn(ks[2])
    w1_hwio = 0.1 * jax.random.normal(ks[3], (3, 3, C, C), jnp.float32)
    w2_hwio = 0.1 * jax.random.normal(ks[4], (3, 3, C, C), jnp.float32)
    fc1w = 0.3 * jax.random.normal(ks[5], (C, Cr), jnp.float32)     # == torch W1.T
    fc1b = 0.1 * jax.random.normal(ks[6], (1, Cr), jnp.float32)
    fc2w = 0.3 * jax.random.normal(ks[7], (Cr, C), jnp.float32)     # == torch W2.T
    fc2b = 0.1 * jax.random.normal(ks[8], (1, C), jnp.float32)
    prelu = jnp.full((1, 1), 0.25, jnp.float32)        # PyTorch PReLU default
    se_prelu = jnp.full((1, 1), 0.25, jnp.float32)
    # im2col weight layout: row index = (ky*3+kx)*C + cin, col = cout  (HWIO reshape)
    return dict(w1=w1_hwio.reshape(9 * C, C), w2=w2_hwio.reshape(9 * C, C),
                w1_hwio=w1_hwio, w2_hwio=w2_hwio,
                s0=s0, b0=b0, s1=s1, b1=b1, s2=s2, b2=b2,
                prelu=prelu, se_prelu=se_prelu,
                fc1w=fc1w, fc1b=fc1b, fc2w=fc2w, fc2b=fc2b)


def irblock_reference(x_nchw, p):
    # Pure-JAX reference (same eval-mode BN semantics) for verification.
    x = jnp.transpose(x_nchw, (0, 2, 3, 1)).astype(jnp.float32)
    hi = jax.lax.Precision.HIGHEST

    def conv(inp, w_hwio):
        return jax.lax.conv_general_dilated(
            inp, w_hwio, window_strides=(1, 1), padding="SAME",
            dimension_numbers=("NHWC", "HWIO", "NHWC"), precision=hi)

    def prelu(v, a):
        return jnp.where(v >= 0, v, a * v)

    out = x * p["s0"] + p["b0"]
    out = conv(out, p["w1_hwio"])
    out = out * p["s1"] + p["b1"]
    out = prelu(out, p["prelu"][0, 0])
    out = conv(out, p["w2_hwio"])
    out = out * p["s2"] + p["b2"]
    y = jnp.mean(out, axis=(1, 2))                                   # (B, C)
    h = prelu(jnp.dot(y, p["fc1w"], precision=hi) + p["fc1b"], p["se_prelu"][0, 0])
    g = jax.nn.sigmoid(jnp.dot(h, p["fc2w"], precision=hi) + p["fc2b"])
    out = out * g[:, None, None, :]
    out = prelu(out + x, p["prelu"][0, 0])
    return jnp.transpose(out, (0, 3, 1, 2))


if __name__ == "__main__":
    key = jax.random.PRNGKey(0)
    kx, kp = jax.random.split(key)
    # in_planes = planes = 128, stride = 1, reduction = 16 -> Cr = 8
    B, C, H, W = 4, 128, 16, 16
    x = jax.random.normal(kx, (B, C, H, W), jnp.float32)
    params = init_params(kp, C)

    ref = jax.block_until_ready(irblock_reference(x, params))

    # bf16-MXU fast path (device-tuned conv split / grid).
    out = jax.block_until_ready(irblock_forward(x, params))
    assert out.shape == (B, C, H, W)

    # f32-MXU path: tight check of the fused structure against the JAX reference.
    out_f32 = jax.block_until_ready(
        irblock_forward(x, params, conv_dtype=jnp.float32))
    assert jnp.allclose(out_f32, ref, rtol=2e-3, atol=2e-3), \
        float(jnp.max(jnp.abs(out_f32 - ref)))

    # bf16-MXU path: error bounded relative to the block's output scale
    # (bf16 operand rounding with f32 accumulation over K = 9*C = 1152).
    scale = float(jnp.max(jnp.abs(ref)))
    err = float(jnp.max(jnp.abs(out - ref)))
    assert err <= 2e-2 * scale, (err, scale)

    print("KERNEL_OK")
</pallas_src>

<mosaic_0001>
module attributes {stable_mosaic.version = 11 : i64} {
  func.func @_irblock_kernel(%arg0: i32, %arg1: memref<4x16x16x128xf32, #tpu.memory_space<vmem>>, %arg2: memref<1152x128xbf16, #tpu.memory_space<vmem>>, %arg3: memref<1152x128xbf16, #tpu.memory_space<vmem>>, %arg4: memref<1x128xf32, #tpu.memory_space<vmem>>, %arg5: memref<1x128xf32, #tpu.memory_space<vmem>>, %arg6: memref<1x128xf32, #tpu.memory_space<vmem>>, %arg7: memref<1x128xf32, #tpu.memory_space<vmem>>, %arg8: memref<1x128xf32, #tpu.memory_space<vmem>>, %arg9: memref<1x128xf32, #tpu.memory_space<vmem>>, %arg10: memref<1x1xf32, #tpu.memory_space<vmem>>, %arg11: memref<1x1xf32, #tpu.memory_space<vmem>>, %arg12: memref<128x8xf32, #tpu.memory_space<vmem>>, %arg13: memref<1x8xf32, #tpu.memory_space<vmem>>, %arg14: memref<8x128xf32, #tpu.memory_space<vmem>>, %arg15: memref<1x128xf32, #tpu.memory_space<vmem>>, %arg16: memref<4x16x16x128xf32, #tpu.memory_space<vmem>>) attributes {dimension_semantics = [#tpu.dimension_semantics<parallel>], iteration_bounds = array<i64: 1>, scalar_prefetch = 0 : i64, scratch_operands = 0 : i64, tpu.core_type = #tpu.core_type<tc>, window_params = [{transform_indices = @transform_0, window_bounds = array<i64: 4, 16, 16, 128>}, {pipeline_mode = #tpu.pipeline_mode<synchronous>, transform_indices = @transform_1, window_bounds = array<i64: 1152, 128>}, {pipeline_mode = #tpu.pipeline_mode<synchronous>, transform_indices = @transform_2, window_bounds = array<i64: 1152, 128>}, {pipeline_mode = #tpu.pipeline_mode<synchronous>, transform_indices = @transform_3, window_bounds = array<i64: 1, 128>}, {pipeline_mode = #tpu.pipeline_mode<synchronous>, transform_indices = @transform_4, window_bounds = array<i64: 1, 128>}, {pipeline_mode = #tpu.pipeline_mode<synchronous>, transform_indices = @transform_5, window_bounds = array<i64: 1, 128>}, {pipeline_mode = #tpu.pipeline_mode<synchronous>, transform_indices = @transform_6, window_bounds = array<i64: 1, 128>}, {pipeline_mode = #tpu.pipeline_mode<synchronous>, transform_indices = @transform_7, window_bounds = array<i64: 1, 128>}, {pipeline_mode = #tpu.pipeline_mode<synchronous>, transform_indices = @transform_8, window_bounds = array<i64: 1, 128>}, {pipeline_mode = #tpu.pipeline_mode<synchronous>, transform_indices = @transform_9, window_bounds = array<i64: 1, 1>}, {pipeline_mode = #tpu.pipeline_mode<synchronous>, transform_indices = @transform_10, window_bounds = array<i64: 1, 1>}, {pipeline_mode = #tpu.pipeline_mode<synchronous>, transform_indices = @transform_11, window_bounds = array<i64: 128, 8>}, {pipeline_mode = #tpu.pipeline_mode<synchronous>, transform_indices = @transform_12, window_bounds = array<i64: 1, 8>}, {pipeline_mode = #tpu.pipeline_mode<synchronous>, transform_indices = @transform_13, window_bounds = array<i64: 8, 128>}, {pipeline_mode = #tpu.pipeline_mode<synchronous>, transform_indices = @transform_14, window_bounds = array<i64: 1, 128>}, {transform_indices = @transform_15, window_bounds = array<i64: 4, 16, 16, 128>}]} {
    %c0 = arith.constant 0 : index
    %c0_0 = arith.constant 0 : index
    %c0_1 = arith.constant 0 : index
    %c0_2 = arith.constant 0 : index
    %0 = vector.load %arg1[%c0, %c0_0, %c0_1, %c0_2] : memref<4x16x16x128xf32, #tpu.memory_space<vmem>>, vector<4x16x16x128xf32>
    %1 = vector.shape_cast %0 : vector<4x16x16x128xf32> to vector<1024x128xf32>
    %c0_3 = arith.constant 0 : index
    %c0_4 = arith.constant 0 : index
    %2 = vector.load %arg10[%c0_3, %c0_4] : memref<1x1xf32, #tpu.memory_space<vmem>>, vector<1x1xf32>
    %3 = vector.extract %2[0, 0] : f32 from vector<1x1xf32>
    %c0_5 = arith.constant 0 : index
    %c0_6 = arith.constant 0 : index
    %4 = vector.load %arg4[%c0_5, %c0_6] : memref<1x128xf32, #tpu.memory_space<vmem>>, vector<1x128xf32>
    %5 = vector.broadcast %4 : vector<1x128xf32> to vector<1024x128xf32>
    %6 = arith.mulf %1, %5 : vector<1024x128xf32>
    %c0_7 = arith.constant 0 : index
    %c0_8 = arith.constant 0 : index
    %7 = vector.load %arg5[%c0_7, %c0_8] : memref<1x128xf32, #tpu.memory_space<vmem>>, vector<1x128xf32>
    %8 = vector.broadcast %7 : vector<1x128xf32> to vector<1024x128xf32>
    %9 = arith.addf %6, %8 : vector<1024x128xf32>
    %10 = arith.truncf %9 : vector<1024x128xf32> to vector<1024x128xbf16>
    %11 = vector.shape_cast %10 : vector<1024x128xbf16> to vector<4x16x16x128xbf16>
    %cst = arith.constant 0.000000e+00 : bf16
    %12 = vector.broadcast %cst : bf16 to vector<4x1x16x128xbf16>
    %13 = tpu.concatenate %12, %11, %12 in 1 : vector<4x1x16x128xbf16>, vector<4x16x16x128xbf16>, vector<4x1x16x128xbf16> -> vector<4x18x16x128xbf16>
    %cst_9 = arith.constant 0.000000e+00 : bf16
    %14 = vector.broadcast %cst_9 : bf16 to vector<4x18x1x128xbf16>
    %15 = tpu.concatenate %14, %13, %14 in 2 : vector<4x18x1x128xbf16>, vector<4x18x16x128xbf16>, vector<4x18x1x128xbf16> -> vector<4x18x18x128xbf16>
    %16 = vector.extract_strided_slice %15 {offsets = [0, 0, 0, 0], sizes = [4, 16, 16, 128], strides = [1, 1, 1, 1]} : vector<4x18x18x128xbf16> to vector<4x16x16x128xbf16>
    %17 = vector.shape_cast %16 : vector<4x16x16x128xbf16> to vector<1024x128xbf16>
    %18 = vector.extract_strided_slice %15 {offsets = [0, 0, 1, 0], sizes = [4, 16, 16, 128], strides = [1, 1, 1, 1]} : vector<4x18x18x128xbf16> to vector<4x16x16x128xbf16>
    %19 = vector.shape_cast %18 : vector<4x16x16x128xbf16> to vector<1024x128xbf16>
    %20 = vector.extract_strided_slice %15 {offsets = [0, 0, 2, 0], sizes = [4, 16, 16, 128], strides = [1, 1, 1, 1]} : vector<4x18x18x128xbf16> to vector<4x16x16x128xbf16>
    %21 = vector.shape_cast %20 : vector<4x16x16x128xbf16> to vector<1024x128xbf16>
    %22 = vector.extract_strided_slice %15 {offsets = [0, 1, 0, 0], sizes = [4, 16, 16, 128], strides = [1, 1, 1, 1]} : vector<4x18x18x128xbf16> to vector<4x16x16x128xbf16>
    %23 = vector.shape_cast %22 : vector<4x16x16x128xbf16> to vector<1024x128xbf16>
    %24 = vector.extract_strided_slice %15 {offsets = [0, 1, 1, 0], sizes = [4, 16, 16, 128], strides = [1, 1, 1, 1]} : vector<4x18x18x128xbf16> to vector<4x16x16x128xbf16>
    %25 = vector.shape_cast %24 : vector<4x16x16x128xbf16> to vector<1024x128xbf16>
    %26 = vector.extract_strided_slice %15 {offsets = [0, 1, 2, 0], sizes = [4, 16, 16, 128], strides = [1, 1, 1, 1]} : vector<4x18x18x128xbf16> to vector<4x16x16x128xbf16>
    %27 = vector.shape_cast %26 : vector<4x16x16x128xbf16> to vector<1024x128xbf16>
    %28 = vector.extract_strided_slice %15 {offsets = [0, 2, 0, 0], sizes = [4, 16, 16, 128], strides = [1, 1, 1, 1]} : vector<4x18x18x128xbf16> to vector<4x16x16x128xbf16>
    %29 = vector.shape_cast %28 : vector<4x16x16x128xbf16> to vector<1024x128xbf16>
    %30 = vector.extract_strided_slice %15 {offsets = [0, 2, 1, 0], sizes = [4, 16, 16, 128], strides = [1, 1, 1, 1]} : vector<4x18x18x128xbf16> to vector<4x16x16x128xbf16>
    %31 = vector.shape_cast %30 : vector<4x16x16x128xbf16> to vector<1024x128xbf16>
    %32 = vector.extract_strided_slice %15 {offsets = [0, 2, 2, 0], sizes = [4, 16, 16, 128], strides = [1, 1, 1, 1]} : vector<4x18x18x128xbf16> to vector<4x16x16x128xbf16>
    %33 = vector.shape_cast %32 : vector<4x16x16x128xbf16> to vector<1024x128xbf16>
    %34 = tpu.concatenate %17, %19, %21, %23, %25, %27, %29, %31, %33 in 1 : vector<1024x128xbf16>, vector<1024x128xbf16>, vector<1024x128xbf16>, vector<1024x128xbf16>, vector<1024x128xbf16>, vector<1024x128xbf16>, vector<1024x128xbf16>, vector<1024x128xbf16>, vector<1024x128xbf16> -> vector<1024x1152xbf16>
    %c0_10 = arith.constant 0 : index
    %c0_11 = arith.constant 0 : index
    %35 = vector.load %arg2[%c0_10, %c0_11] : memref<1152x128xbf16, #tpu.memory_space<vmem>>, vector<1152x128xbf16>
    %cst_12 = arith.constant dense<0.000000e+00> : vector<1024x128xf32>
    %36 = tpu.matmul %34, %35, %cst_12 {dimension_numbers = #tpu.dot_dimension_numbers<[1], [0], [0], [1], [0, 0, 1, 1], [], []>} : vector<1024x1152xbf16>, vector<1152x128xbf16>, vector<1024x128xf32> -> vector<1024x128xf32>
    %c0_13 = arith.constant 0 : index
    %c0_14 = arith.constant 0 : index
    %37 = vector.load %arg6[%c0_13, %c0_14] : memref<1x128xf32, #tpu.memory_space<vmem>>, vector<1x128xf32>
    %38 = vector.broadcast %37 : vector<1x128xf32> to vector<1024x128xf32>
    %39 = arith.mulf %36, %38 : vector<1024x128xf32>
    %c0_15 = arith.constant 0 : index
    %c0_16 = arith.constant 0 : index
    %40 = vector.load %arg7[%c0_15, %c0_16] : memref<1x128xf32, #tpu.memory_space<vmem>>, vector<1x128xf32>
    %41 = vector.broadcast %40 : vector<1x128xf32> to vector<1024x128xf32>
    %42 = arith.addf %39, %41 : vector<1024x128xf32>
    %cst_17 = arith.constant 0.000000e+00 : f32
    %43 = vector.broadcast %cst_17 : f32 to vector<1024x128xf32>
    %44 = arith.cmpf oge, %42, %43 : vector<1024x128xf32>
    %45 = vector.broadcast %3 : f32 to vector<1024x128xf32>
    %46 = arith.mulf %45, %42 : vector<1024x128xf32>
    %47 = arith.select %44, %42, %46 : vector<1024x128xi1>, vector<1024x128xf32>
    %48 = arith.truncf %47 : vector<1024x128xf32> to vector<1024x128xbf16>
    %49 = vector.shape_cast %48 : vector<1024x128xbf16> to vector<4x16x16x128xbf16>
    %cst_18 = arith.constant 0.000000e+00 : bf16
    %50 = vector.broadcast %cst_18 : bf16 to vector<4x1x16x128xbf16>
    %51 = tpu.concatenate %50, %49, %50 in 1 : vector<4x1x16x128xbf16>, vector<4x16x16x128xbf16>, vector<4x1x16x128xbf16> -> vector<4x18x16x128xbf16>
    %cst_19 = arith.constant 0.000000e+00 : bf16
    %52 = vector.broadcast %cst_19 : bf16 to vector<4x18x1x128xbf16>
    %53 = tpu.concatenate %52, %51, %52 in 2 : vector<4x18x1x128xbf16>, vector<4x18x16x128xbf16>, vector<4x18x1x128xbf16> -> vector<4x18x18x128xbf16>
    %54 = vector.extract_strided_slice %53 {offsets = [0, 0, 0, 0], sizes = [4, 16, 16, 128], strides = [1, 1, 1, 1]} : vector<4x18x18x128xbf16> to vector<4x16x16x128xbf16>
    %55 = vector.shape_cast %54 : vector<4x16x16x128xbf16> to vector<1024x128xbf16>
    %56 = vector.extract_strided_slice %53 {offsets = [0, 0, 1, 0], sizes = [4, 16, 16, 128], strides = [1, 1, 1, 1]} : vector<4x18x18x128xbf16> to vector<4x16x16x128xbf16>
    %57 = vector.shape_cast %56 : vector<4x16x16x128xbf16> to vector<1024x128xbf16>
    %58 = vector.extract_strided_slice %53 {offsets = [0, 0, 2, 0], sizes = [4, 16, 16, 128], strides = [1, 1, 1, 1]} : vector<4x18x18x128xbf16> to vector<4x16x16x128xbf16>
    %59 = vector.shape_cast %58 : vector<4x16x16x128xbf16> to vector<1024x128xbf16>
    %60 = vector.extract_strided_slice %53 {offsets = [0, 1, 0, 0], sizes = [4, 16, 16, 128], strides = [1, 1, 1, 1]} : vector<4x18x18x128xbf16> to vector<4x16x16x128xbf16>
    %61 = vector.shape_cast %60 : vector<4x16x16x128xbf16> to vector<1024x128xbf16>
    %62 = vector.extract_strided_slice %53 {offsets = [0, 1, 1, 0], sizes = [4, 16, 16, 128], strides = [1, 1, 1, 1]} : vector<4x18x18x128xbf16> to vector<4x16x16x128xbf16>
    %63 = vector.shape_cast %62 : vector<4x16x16x128xbf16> to vector<1024x128xbf16>
    %64 = vector.extract_strided_slice %53 {offsets = [0, 1, 2, 0], sizes = [4, 16, 16, 128], strides = [1, 1, 1, 1]} : vector<4x18x18x128xbf16> to vector<4x16x16x128xbf16>
    %65 = vector.shape_cast %64 : vector<4x16x16x128xbf16> to vector<1024x128xbf16>
    %66 = vector.extract_strided_slice %53 {offsets = [0, 2, 0, 0], sizes = [4, 16, 16, 128], strides = [1, 1, 1, 1]} : vector<4x18x18x128xbf16> to vector<4x16x16x128xbf16>
    %67 = vector.shape_cast %66 : vector<4x16x16x128xbf16> to vector<1024x128xbf16>
    %68 = vector.extract_strided_slice %53 {offsets = [0, 2, 1, 0], sizes = [4, 16, 16, 128], strides = [1, 1, 1, 1]} : vector<4x18x18x128xbf16> to vector<4x16x16x128xbf16>
    %69 = vector.shape_cast %68 : vector<4x16x16x128xbf16> to vector<1024x128xbf16>
    %70 = vector.extract_strided_slice %53 {offsets = [0, 2, 2, 0], sizes = [4, 16, 16, 128], strides = [1, 1, 1, 1]} : vector<4x18x18x128xbf16> to vector<4x16x16x128xbf16>
    %71 = vector.shape_cast %70 : vector<4x16x16x128xbf16> to vector<1024x128xbf16>
    %72 = tpu.concatenate %55, %57, %59, %61, %63, %65, %67, %69, %71 in 1 : vector<1024x128xbf16>, vector<1024x128xbf16>, vector<1024x128xbf16>, vector<1024x128xbf16>, vector<1024x128xbf16>, vector<1024x128xbf16>, vector<1024x128xbf16>, vector<1024x128xbf16>, vector<1024x128xbf16> -> vector<1024x1152xbf16>
    %c0_20 = arith.constant 0 : index
    %c0_21 = arith.constant 0 : index
    %73 = vector.load %arg3[%c0_20, %c0_21] : memref<1152x128xbf16, #tpu.memory_space<vmem>>, vector<1152x128xbf16>
    %cst_22 = arith.constant dense<0.000000e+00> : vector<1024x128xf32>
    %74 = tpu.matmul %72, %73, %cst_22 {dimension_numbers = #tpu.dot_dimension_numbers<[1], [0], [0], [1], [0, 0, 1, 1], [], []>} : vector<1024x1152xbf16>, vector<1152x128xbf16>, vector<1024x128xf32> -> vector<1024x128xf32>
    %c0_23 = arith.constant 0 : index
    %c0_24 = arith.constant 0 : index
    %75 = vector.load %arg8[%c0_23, %c0_24] : memref<1x128xf32, #tpu.memory_space<vmem>>, vector<1x128xf32>
    %76 = vector.broadcast %75 : vector<1x128xf32> to vector<1024x128xf32>
    %77 = arith.mulf %74, %76 : vector<1024x128xf32>
    %c0_25 = arith.constant 0 : index
    %c0_26 = arith.constant 0 : index
    %78 = vector.load %arg9[%c0_25, %c0_26] : memref<1x128xf32, #tpu.memory_space<vmem>>, vector<1x128xf32>
    %79 = vector.broadcast %78 : vector<1x128xf32> to vector<1024x128xf32>
    %80 = arith.addf %77, %79 : vector<1024x128xf32>
    %81 = vector.shape_cast %80 : vector<1024x128xf32> to vector<4x256x128xf32>
    %cst_27 = arith.constant dense<0.000000e+00> : vector<4x128xf32>
    %82 = vector.multi_reduction <add>, %81, %cst_27 [1] : vector<4x256x128xf32> to vector<4x128xf32>
    %cst_28 = arith.constant 2.560000e+02 : f32
    %83 = vector.broadcast %cst_28 : f32 to vector<4x128xf32>
    %84 = arith.divf %82, %83 : vector<4x128xf32>
    %c0_29 = arith.constant 0 : index
    %c0_30 = arith.constant 0 : index
    %85 = vector.load %arg12[%c0_29, %c0_30] : memref<128x8xf32, #tpu.memory_space<vmem>>, vector<128x8xf32>
    %cst_31 = arith.constant dense<0.000000e+00> : vector<4x8xf32>
    %86 = tpu.matmul %84, %85, %cst_31 {dimension_numbers = #tpu.dot_dimension_numbers<[1], [0], [0], [1], [0, 0, 1, 1], [], []>} : vector<4x128xf32>, vector<128x8xf32>, vector<4x8xf32> -> vector<4x8xf32>
    %c0_32 = arith.constant 0 : index
    %c0_33 = arith.constant 0 : index
    %87 = vector.load %arg13[%c0_32, %c0_33] : memref<1x8xf32, #tpu.memory_space<vmem>>, vector<1x8xf32>
    %88 = vector.broadcast %87 : vector<1x8xf32> to vector<4x8xf32>
    %89 = arith.addf %86, %88 : vector<4x8xf32>
    %cst_34 = arith.constant 0.000000e+00 : f32
    %90 = vector.broadcast %cst_34 : f32 to vector<4x8xf32>
    %91 = arith.cmpf oge, %89, %90 : vector<4x8xf32>
    %c0_35 = arith.constant 0 : index
    %c0_36 = arith.constant 0 : index
    %92 = vector.load %arg11[%c0_35, %c0_36] : memref<1x1xf32, #tpu.memory_space<vmem>>, vector<1x1xf32>
    %93 = vector.extract %92[0, 0] : f32 from vector<1x1xf32>
    %94 = vector.broadcast %93 : f32 to vector<4x8xf32>
    %95 = arith.mulf %94, %89 : vector<4x8xf32>
    %96 = arith.select %91, %89, %95 : vector<4x8xi1>, vector<4x8xf32>
    %c0_37 = arith.constant 0 : index
    %c0_38 = arith.constant 0 : index
    %97 = vector.load %arg14[%c0_37, %c0_38] : memref<8x128xf32, #tpu.memory_space<vmem>>, vector<8x128xf32>
    %cst_39 = arith.constant dense<0.000000e+00> : vector<4x128xf32>
    %98 = tpu.matmul %96, %97, %cst_39 {dimension_numbers = #tpu.dot_dimension_numbers<[1], [0], [0], [1], [0, 0, 1, 1], [], []>} : vector<4x8xf32>, vector<8x128xf32>, vector<4x128xf32> -> vector<4x128xf32>
    %c0_40 = arith.constant 0 : index
    %c0_41 = arith.constant 0 : index
    %99 = vector.load %arg15[%c0_40, %c0_41] : memref<1x128xf32, #tpu.memory_space<vmem>>, vector<1x128xf32>
    %100 = vector.broadcast %99 : vector<1x128xf32> to vector<4x128xf32>
    %101 = arith.addf %98, %100 : vector<4x128xf32>
    %102 = arith.negf %101 : vector<4x128xf32>
    %103 = math.exp %102 : vector<4x128xf32>
    %cst_42 = arith.constant 1.000000e+00 : f32
    %104 = vector.broadcast %cst_42 : f32 to vector<4x128xf32>
    %105 = arith.addf %104, %103 : vector<4x128xf32>
    %106 = arith.divf %104, %105 : vector<4x128xf32>
    %107 = vector.shape_cast %106 : vector<4x128xf32> to vector<4x1x128xf32>
    %108 = vector.broadcast %107 : vector<4x1x128xf32> to vector<4x256x128xf32>
    %109 = arith.mulf %81, %108 : vector<4x256x128xf32>
    %110 = vector.shape_cast %0 : vector<4x16x16x128xf32> to vector<4x256x128xf32>
    %111 = arith.addf %109, %110 : vector<4x256x128xf32>
    %cst_43 = arith.constant 0.000000e+00 : f32
    %112 = vector.broadcast %cst_43 : f32 to vector<4x256x128xf32>
    %113 = arith.cmpf oge, %111, %112 : vector<4x256x128xf32>
    %114 = vector.broadcast %3 : f32 to vector<4x256x128xf32>
    %115 = arith.mulf %114, %111 : vector<4x256x128xf32>
    %116 = arith.select %113, %111, %115 : vector<4x256x128xi1>, vector<4x256x128xf32>
    %117 = vector.shape_cast %116 : vector<4x256x128xf32> to vector<4x16x16x128xf32>
    %c0_44 = arith.constant 0 : index
    %c0_45 = arith.constant 0 : index
    %c0_46 = arith.constant 0 : index
    %c0_47 = arith.constant 0 : index
    %118 = vector.load %arg16[%c0_44, %c0_45, %c0_46, %c0_47] : memref<4x16x16x128xf32, #tpu.memory_space<vmem>>, vector<4x16x16x128xf32>
    tpu.vector_store %arg16[%c0_44, %c0_45, %c0_46, %c0_47], %117 {strides = array<i32>} : memref<4x16x16x128xf32, #tpu.memory_space<vmem>>, vector<4x16x16x128xf32>,
    return
  }
  func.func @transform_0(%arg0: i32) -> (i32, i32, i32, i32) {
    %c0_i32 = arith.constant 0 : i32
    %c0_i32_0 = arith.constant 0 : i32
    %c0_i32_1 = arith.constant 0 : i32
    %c0_i32_2 = arith.constant 0 : i32
    return %arg0, %c0_i32, %c0_i32_0, %c0_i32_1 : i32, i32, i32, i32
  }
  func.func @transform_1(%arg0: i32) -> (i32, i32) {
    %c0_i32 = arith.constant 0 : i32
    %c0_i32_0 = arith.constant 0 : i32
    %c0_i32_1 = arith.constant 0 : i32
    return %c0_i32, %c0_i32_0 : i32, i32
  }
  func.func @transform_2(%arg0: i32) -> (i32, i32) {
    %c0_i32 = arith.constant 0 : i32
    %c0_i32_0 = arith.constant 0 : i32
    %c0_i32_1 = arith.constant 0 : i32
    return %c0_i32, %c0_i32_0 : i32, i32
  }
  func.func @transform_3(%arg0: i32) -> (i32, i32) {
    %c0_i32 = arith.constant 0 : i32
    %c0_i32_0 = arith.constant 0 : i32
    %c0_i32_1 = arith.constant 0 : i32
    return %c0_i32, %c0_i32_0 : i32, i32
  }
  func.func @transform_4(%arg0: i32) -> (i32, i32) {
    %c0_i32 = arith.constant 0 : i32
    %c0_i32_0 = arith.constant 0 : i32
    %c0_i32_1 = arith.constant 0 : i32
    return %c0_i32, %c0_i32_0 : i32, i32
  }
  func.func @transform_5(%arg0: i32) -> (i32, i32) {
    %c0_i32 = arith.constant 0 : i32
    %c0_i32_0 = arith.constant 0 : i32
    %c0_i32_1 = arith.constant 0 : i32
    return %c0_i32, %c0_i32_0 : i32, i32
  }
  func.func @transform_6(%arg0: i32) -> (i32, i32) {
    %c0_i32 = arith.constant 0 : i32
    %c0_i32_0 = arith.constant 0 : i32
    %c0_i32_1 = arith.constant 0 : i32
    return %c0_i32, %c0_i32_0 : i32, i32
  }
  func.func @transform_7(%arg0: i32) -> (i32, i32) {
    %c0_i32 = arith.constant 0 : i32
    %c0_i32_0 = arith.constant 0 : i32
    %c0_i32_1 = arith.constant 0 : i32
    return %c0_i32, %c0_i32_0 : i32, i32
  }
  func.func @transform_8(%arg0: i32) -> (i32, i32) {
    %c0_i32 = arith.constant 0 : i32
    %c0_i32_0 = arith.constant 0 : i32
    %c0_i32_1 = arith.constant 0 : i32
    return %c0_i32, %c0_i32_0 : i32, i32
  }
  func.func @transform_9(%arg0: i32) -> (i32, i32) {
    %c0_i32 = arith.constant 0 : i32
    %c0_i32_0 = arith.constant 0 : i32
    %c0_i32_1 = arith.constant 0 : i32
    return %c0_i32, %c0_i32_0 : i32, i32
  }
  func.func @transform_10(%arg0: i32) -> (i32, i32) {
    %c0_i32 = arith.constant 0 : i32
    %c0_i32_0 = arith.constant 0 : i32
    %c0_i32_1 = arith.constant 0 : i32
    return %c0_i32, %c0_i32_0 : i32, i32
  }
  func.func @transform_11(%arg0: i32) -> (i32, i32) {
    %c0_i32 = arith.constant 0 : i32
    %c0_i32_0 = arith.constant 0 : i32
    %c0_i32_1 = arith.constant 0 : i32
    return %c0_i32, %c0_i32_0 : i32, i32
  }
  func.func @transform_12(%arg0: i32) -> (i32, i32) {
    %c0_i32 = arith.constant 0 : i32
    %c0_i32_0 = arith.constant 0 : i32
    %c0_i32_1 = arith.constant 0 : i32
    return %c0_i32, %c0_i32_0 : i32, i32
  }
  func.func @transform_13(%arg0: i32) -> (i32, i32) {
    %c0_i32 = arith.constant 0 : i32
    %c0_i32_0 = arith.constant 0 : i32
    %c0_i32_1 = arith.constant 0 : i32
    return %c0_i32, %c0_i32_0 : i32, i32
  }
  func.func @transform_14(%arg0: i32) -> (i32, i32) {
    %c0_i32 = arith.constant 0 : i32
    %c0_i32_0 = arith.constant 0 : i32
    %c0_i32_1 = arith.constant 0 : i32
    return %c0_i32, %c0_i32_0 : i32, i32
  }
  func.func @transform_15(%arg0: i32) -> (i32, i32, i32, i32) {
    %c0_i32 = arith.constant 0 : i32
    %c0_i32_0 = arith.constant 0 : i32
    %c0_i32_1 = arith.constant 0 : i32
    %c0_i32_2 = arith.constant 0 : i32
    return %arg0, %c0_i32, %c0_i32_0, %c0_i32_1 : i32, i32, i32, i32
  }
}

</mosaic_0001>

<llo_original>
// kernel: tpu_custom_call.1
$region0: #{tpu_custom_call.1}
  #allocation0 [shape = 'u32[]', space=smem, size = 0x4, offset = 0x4, fixed_abs, tag = 'smem constant byte address 0x4 - core index']
  #allocation1 [shape = 'u32[144,128]{1,0:T(1,128)}', space=vmem, size = 0x12000, scoped, tag = 'internal scratch']
  #allocation2 [shape = 'f32[1,1]{1,0:T(1,128)S(1)}', space=vmem, size = 0x200, scoped, tag = 'scoped memory for tpu_custom_call.1']
  #allocation3 [shape = 'f32[1,1]{1,0:T(1,128)S(1)}', space=vmem, size = 0x200, scoped, tag = 'scoped memory for tpu_custom_call.1']
  %s0 = inlined_call_operand.hbm [shape: f32[4,16,16,128], index: 0, kind: input, shape index: {}]
  %s1 = inlined_call_operand.hbm [shape: bf16[1152,128], index: 1, kind: input, shape index: {}]
  %s2 = inlined_call_operand.hbm [shape: bf16[1152,128], index: 2, kind: input, shape index: {}]
  %s3 = inlined_call_operand.vmem [shape: f32[1,128], index: 3, kind: input, shape index: {}]
  %s4 = inlined_call_operand.vmem [shape: f32[1,128], index: 4, kind: input, shape index: {}]
  %s5 = inlined_call_operand.vmem [shape: f32[1,128], index: 5, kind: input, shape index: {}]
  %s6 = inlined_call_operand.vmem [shape: f32[1,128], index: 6, kind: input, shape index: {}]
  %s7 = inlined_call_operand.vmem [shape: f32[1,128], index: 7, kind: input, shape index: {}]
  %s8 = inlined_call_operand.vmem [shape: f32[1,128], index: 8, kind: input, shape index: {}]
  %s9 = inlined_call_operand.<no memory space> [shape: f32[1,1], index: 9, kind: input, shape index: {}]
  %s10 = inlined_call_operand.<no memory space> [shape: f32[1,1], index: 10, kind: input, shape index: {}]
  %s11 = inlined_call_operand.vmem [shape: f32[128,8], index: 11, kind: input, shape index: {}]
  %s12 = inlined_call_operand.vmem [shape: f32[1,8], index: 12, kind: input, shape index: {}]
  %s13 = inlined_call_operand.vmem [shape: f32[8,128], index: 13, kind: input, shape index: {}]
  %s14 = inlined_call_operand.vmem [shape: f32[1,128], index: 14, kind: input, shape index: {}]
  %s15 = inlined_call_operand.hbm [shape: f32[4,16,16,128], index: 15, kind: output, shape index: {}]
  %s16 = sld [smem:[#allocation0]]
  $region82: #{tpu_custom_call.1} parent=0
    _
  %s18 = ssub.s32 1, %s16
  %s19 = scalar_select 0, %s18, %s16
  %v20 = vstv %s9
  %21 = vst [vmem:[#allocation2] sm:$0x1] %v20
  %v22 = vstv %s10
  %23 = vst [vmem:[#allocation3] sm:$0x1] %v22
  $region1: #{tpu_custom_call.1} parent=0
    #allocation4 [shape = 'u8[524288]{0}', space=vmem, size = 0x80000, scoped, tag = 'input window, operand 0, single buffered']
    #allocation5 [shape = 's32[1]{0}', space=sflag, size = 0x4, scoped, tag = 'scoped memory for tpu_custom_call.1']
    #allocation6 [shape = 's32[1]{0}', space=sflag, size = 0x4, scoped, tag = 'scoped memory for tpu_custom_call.1']
    #allocation7 [shape = 'u8[294912]{0}', space=vmem, size = 0x48000, scoped, tag = 'input window, operand 1, single buffered']
    #allocation8 [shape = 's32[1]{0}', space=sflag, size = 0x4, scoped, tag = 'scoped memory for tpu_custom_call.1']
    #allocation9 [shape = 'u8[294912]{0}', space=vmem, size = 0x48000, scoped, tag = 'input window, operand 2, single buffered']
    #allocation10 [shape = 'u8[524288]{0}', space=vmem, size = 0x80000, scoped, tag = 'output window, operand 0, single buffered']
    %24 = vsyncpa [#allocation5], 0
    %25 = vsyncpa [#allocation8], 0
    %26 = vsyncpa [#allocation6], 0
    // Predicated region
    $region2: #{tpu_custom_call.1} parent=1 // pred_check
      _
    $region3: #{tpu_custom_call.1} parent=1 // pred_check_branch
      %28 = sbr.rel (0) target = $region5
    $region4: #{tpu_custom_call.1} parent=1 // pred_region
      %s30 = ssub.s32 16384, 16384
      %31 = vsyncadd [#allocation5], %s30
      %s32 = sshll.u32 [#allocation4], 4
      %s33 = int_to_ptr.vmem [resolvable:$true] %s32
      %38 = dma.hbm_to_vmem [thread:$0]  %s0, 16384, %s33, [#allocation5], 128, 128, 8
    $region5: #{tpu_custom_call.1} parent=1 // pred_fallthru
      _
    // Predicated region
    $region6: #{tpu_custom_call.1} parent=1 // pred_check
      _
    $region7: #{tpu_custom_call.1} parent=1 // pred_check_branch
      %40 = sbr.rel (0) target = $region9
    $region8: #{tpu_custom_call.1} parent=1 // pred_region
      %s42 = ssub.s32 9216, 9216
      %43 = vsyncadd [#allocation8], %s42
      %s44 = sshll.u32 [#allocation7], 4
      %s45 = int_to_ptr.vmem [resolvable:$true] %s44
      %50 = dma.hbm_to_vmem [thread:$0]  %s1, 9216, %s45, [#allocation8], 64, 64, 4
    $region9: #{tpu_custom_call.1} parent=1 // pred_fallthru
      _
    // Predicated region
    $region10: #{tpu_custom_call.1} parent=1 // pred_check
      _
    $region11: #{tpu_custom_call.1} parent=1 // pred_check_branch
      %52 = sbr.rel (0) target = $region13
    $region12: #{tpu_custom_call.1} parent=1 // pred_region
      %s54 = ssub.s32 9216, 9216
      %55 = vsyncadd [#allocation8], %s54
      %s56 = sshll.u32 [#allocation9], 4
      %s57 = int_to_ptr.vmem [resolvable:$true] %s56
      %62 = dma.hbm_to_vmem [thread:$0]  %s2, 9216, %s57, [#allocation8], 64, 64, 4
    $region13: #{tpu_custom_call.1} parent=1 // pred_fallthru
      _
    // Predicated region
    $region14: #{tpu_custom_call.1} parent=1 // pred_check
      _
    $region15: #{tpu_custom_call.1} parent=1 // pred_check_branch
      %64 = sbr.rel (0) target = $region17
    $region16: #{tpu_custom_call.1} parent=1 // pred_region
      _
    $region17: #{tpu_custom_call.1} parent=1 // pred_fallthru
      _
    // Predicated region
    $region18: #{tpu_custom_call.1} parent=1 // pred_check
      _
    $region19: #{tpu_custom_call.1} parent=1 // pred_check_branch
      %66 = sbr.rel (0) target = $region21
    $region20: #{tpu_custom_call.1} parent=1 // pred_region
      _
    $region21: #{tpu_custom_call.1} parent=1 // pred_fallthru
      _
    // Predicated region
    $region22: #{tpu_custom_call.1} parent=1 // pred_check
      _
    $region23: #{tpu_custom_call.1} parent=1 // pred_check_branch
      %68 = sbr.rel (0) target = $region25
    $region24: #{tpu_custom_call.1} parent=1 // pred_region
      _
    $region25: #{tpu_custom_call.1} parent=1 // pred_fallthru
      _
    // Predicated region
    $region26: #{tpu_custom_call.1} parent=1 // pred_check
      _
    $region27: #{tpu_custom_call.1} parent=1 // pred_check_branch
      %70 = sbr.rel (0) target = $region29
    $region28: #{tpu_custom_call.1} parent=1 // pred_region
      _
    $region29: #{tpu_custom_call.1} parent=1 // pred_fallthru
      _
    // Predicated region
    $region30: #{tpu_custom_call.1} parent=1 // pred_check
      _
    $region31: #{tpu_custom_call.1} parent=1 // pred_check_branch
      %72 = sbr.rel (0) target = $region33
    $region32: #{tpu_custom_call.1} parent=1 // pred_region
      _
    $region33: #{tpu_custom_call.1} parent=1 // pred_fallthru
      _
    // Predicated region
    $region34: #{tpu_custom_call.1} parent=1 // pred_check
      _
    $region35: #{tpu_custom_call.1} parent=1 // pred_check_branch
      %74 = sbr.rel (0) target = $region37
    $region36: #{tpu_custom_call.1} parent=1 // pred_region
      _
    $region37: #{tpu_custom_call.1} parent=1 // pred_fallthru
      _
    // Predicated region
    $region38: #{tpu_custom_call.1} parent=1 // pred_check
      _
    $region39: #{tpu_custom_call.1} parent=1 // pred_check_branch
      %76 = sbr.rel (0) target = $region41
    $region40: #{tpu_custom_call.1} parent=1 // pred_region
      _
    $region41: #{tpu_custom_call.1} parent=1 // pred_fallthru
      _
    // Predicated region
    $region42: #{tpu_custom_call.1} parent=1 // pred_check
      _
    $region43: #{tpu_custom_call.1} parent=1 // pred_check_branch
      %78 = sbr.rel (0) target = $region45
    $region44: #{tpu_custom_call.1} parent=1 // pred_region
      _
    $region45: #{tpu_custom_call.1} parent=1 // pred_fallthru
      _
    // Predicated region
    $region46: #{tpu_custom_call.1} parent=1 // pred_check
      _
    $region47: #{tpu_custom_call.1} parent=1 // pred_check_branch
      %80 = sbr.rel (0) target = $region49
    $region48: #{tpu_custom_call.1} parent=1 // pred_region
      _
    $region49: #{tpu_custom_call.1} parent=1 // pred_fallthru
      _
    // Predicated region
    $region50: #{tpu_custom_call.1} parent=1 // pred_check
      _
    $region51: #{tpu_custom_call.1} parent=1 // pred_check_branch
      %82 = sbr.rel (0) target = $region53
    $region52: #{tpu_custom_call.1} parent=1 // pred_region
      _
    $region53: #{tpu_custom_call.1} parent=1 // pred_fallthru
      _
    // Predicated region
    $region54: #{tpu_custom_call.1} parent=1 // pred_check
      _
    $region55: #{tpu_custom_call.1} parent=1 // pred_check_branch
      %84 = sbr.rel (0) target = $region57
    $region56: #{tpu_custom_call.1} parent=1 // pred_region
      _
    $region57: #{tpu_custom_call.1} parent=1 // pred_fallthru
      _
    // Predicated region
    $region58: #{tpu_custom_call.1} parent=1 // pred_check
      _
    $region59: #{tpu_custom_call.1} parent=1 // pred_check_branch
      %86 = sbr.rel (0) target = $region61
    $region60: #{tpu_custom_call.1} parent=1 // pred_region
      _
    $region61: #{tpu_custom_call.1} parent=1 // pred_fallthru
      _
    // Predicated region
    $region62: #{tpu_custom_call.1} parent=1 // pred_check
      _
    $region63: #{tpu_custom_call.1} parent=1 // pred_check_branch
      %88 = sbr.rel (0) target = $region65
    $region64: #{tpu_custom_call.1} parent=1 // pred_region
      %89 = dma.done [#allocation5], 16384
    $region65: #{tpu_custom_call.1} parent=1 // pred_fallthru
      _
    // Predicated region
    $region66: #{tpu_custom_call.1} parent=1 // pred_check
      _
    $region67: #{tpu_custom_call.1} parent=1 // pred_check_branch
      %91 = sbr.rel (0) target = $region69
    $region68: #{tpu_custom_call.1} parent=1 // pred_region
      %92 = dma.done [#allocation8], 9216
    $region69: #{tpu_custom_call.1} parent=1 // pred_fallthru
      _
    // Predicated region
    $region70: #{tpu_custom_call.1} parent=1 // pred_check
      _
    $region71: #{tpu_custom_call.1} parent=1 // pred_check_branch
      %94 = sbr.rel (0) target = $region73
    $region72: #{tpu_custom_call.1} parent=1 // pred_region
      %95 = dma.done [#allocation8], 9216
    $region73: #{tpu_custom_call.1} parent=1 // pred_fallthru
      _
    %v97 = vld [vmem:[#allocation4] sm:$0xff]
    %v98 = vld [vmem:[#allocation4 + $0x8] sm:$0xff]
    %v99 = vld [vmem:[#allocation4 + $0x10] sm:$0xff]
    %v100 = vld [vmem:[#allocation4 + $0x18] sm:$0xff]
    %v101 = vld [vmem:[#allocation4 + $0x20] sm:$0xff]
    %v102 = vld [vmem:[#allocation4 + $0x28] sm:$0xff]
    %v103 = vld [vmem:[#allocation4 + $0x30] sm:$0xff]
    %v104 = vld [vmem:[#allocation4 + $0x38] sm:$0xff]
    %v105 = vld [vmem:[#allocation4 + $0x40] sm:$0xff]
    %v106 = vld [vmem:[#allocation4 + $0x48] sm:$0xff]
    %v107 = vld [vmem:[#allocation4 + $0x50] sm:$0xff]
    %v108 = vld [vmem:[#allocation4 + $0x58] sm:$0xff]
    %v109 = vld [vmem:[#allocation4 + $0x60] sm:$0xff]
    %v110 = vld [vmem:[#allocation4 + $0x68] sm:$0xff]
    %v111 = vld [vmem:[#allocation4 + $0x70] sm:$0xff]
    %v112 = vld [vmem:[#allocation4 + $0x78] sm:$0xff]
    %v113 = vld [vmem:[#allocation4 + $0x80] sm:$0xff]
    %v114 = vld [vmem:[#allocation4 + $0x88] sm:$0xff]
    %v115 = vld [vmem:[#allocation4 + $0x90] sm:$0xff]
    %v116 = vld [vmem:[#allocation4 + $0x98] sm:$0xff]
    %v117 = vld [vmem:[#allocation4 + $0xa0] sm:$0xff]
    %v118 = vld [vmem:[#allocation4 + $0xa8] sm:$0xff]
    %v119 = vld [vmem:[#allocation4 + $0xb0] sm:$0xff]
    %v120 = vld [vmem:[#allocation4 + $0xb8] sm:$0xff]
    %v121 = vld [vmem:[#allocation4 + $0xc0] sm:$0xff]
    %v122 = vld [vmem:[#allocation4 + $0xc8] sm:$0xff]
    %v123 = vld [vmem:[#allocation4 + $0xd0] sm:$0xff]
    %v124 = vld [vmem:[#allocation4 + $0xd8] sm:$0xff]
    %v125 = vld [vmem:[#allocation4 + $0xe0] sm:$0xff]
    %v126 = vld [vmem:[#allocation4 + $0xe8] sm:$0xff]
    %v127 = vld [vmem:[#allocation4 + $0xf0] sm:$0xff]
    %v128 = vld [vmem:[#allocation4 + $0xf8] sm:$0xff]
    %v129 = vld [vmem:[#allocation4 + $0x100] sm:$0xff]
    %v130 = vld [vmem:[#allocation4 + $0x108] sm:$0xff]
    %v131 = vld [vmem:[#allocation4 + $0x110] sm:$0xff]
    %v132 = vld [vmem:[#allocation4 + $0x118] sm:$0xff]
    %v133 = vld [vmem:[#allocation4 + $0x120] sm:$0xff]
    %v134 = vld [vmem:[#allocation4 + $0x128] sm:$0xff]
    %v135 = vld [vmem:[#allocation4 + $0x130] sm:$0xff]
    %v136 = vld [vmem:[#allocation4 + $0x138] sm:$0xff]
    %v137 = vld [vmem:[#allocation4 + $0x140] sm:$0xff]
    %v138 = vld [vmem:[#allocation4 + $0x148] sm:$0xff]
    %v139 = vld [vmem:[#allocation4 + $0x150] sm:$0xff]
    %v140 = vld [vmem:[#allocation4 + $0x158] sm:$0xff]
    %v141 = vld [vmem:[#allocation4 + $0x160] sm:$0xff]
    %v142 = vld [vmem:[#allocation4 + $0x168] sm:$0xff]
    %v143 = vld [vmem:[#allocation4 + $0x170] sm:$0xff]
    %v144 = vld [vmem:[#allocation4 + $0x178] sm:$0xff]
    %v145 = vld [vmem:[#allocation4 + $0x180] sm:$0xff]
    %v146 = vld [vmem:[#allocation4 + $0x188] sm:$0xff]
    %v147 = vld [vmem:[#allocation4 + $0x190] sm:$0xff]
    %v148 = vld [vmem:[#allocation4 + $0x198] sm:$0xff]
    %v149 = vld [vmem:[#allocation4 + $0x1a0] sm:$0xff]
    %v150 = vld [vmem:[#allocation4 + $0x1a8] sm:$0xff]
    %v151 = vld [vmem:[#allocation4 + $0x1b0] sm:$0xff]
    %v152 = vld [vmem:[#allocation4 + $0x1b8] sm:$0xff]
    %v153 = vld [vmem:[#allocation4 + $0x1c0] sm:$0xff]
    %v154 = vld [vmem:[#allocation4 + $0x1c8] sm:$0xff]
    %v155 = vld [vmem:[#allocation4 + $0x1d0] sm:$0xff]
    %v156 = vld [vmem:[#allocation4 + $0x1d8] sm:$0xff]
    %v157 = vld [vmem:[#allocation4 + $0x1e0] sm:$0xff]
    %v158 = vld [vmem:[#allocation4 + $0x1e8] sm:$0xff]
    %v159 = vld [vmem:[#allocation4 + $0x1f0] sm:$0xff]
    %v160 = vld [vmem:[#allocation4 + $0x1f8] sm:$0xff]
    %v161 = vld [vmem:[#allocation4 + $0x200] sm:$0xff]
    %v162 = vld [vmem:[#allocation4 + $0x208] sm:$0xff]
    %v163 = vld [vmem:[#allocation4 + $0x210] sm:$0xff]
    %v164 = vld [vmem:[#allocation4 + $0x218] sm:$0xff]
    %v165 = vld [vmem:[#allocation4 + $0x220] sm:$0xff]
    %v166 = vld [vmem:[#allocation4 + $0x228] sm:$0xff]
    %v167 = vld [vmem:[#allocation4 + $0x230] sm:$0xff]
    %v168 = vld [vmem:[#allocation4 + $0x238] sm:$0xff]
    %v169 = vld [vmem:[#allocation4 + $0x240] sm:$0xff]
    %v170 = vld [vmem:[#allocation4 + $0x248] sm:$0xff]
    %v171 = vld [vmem:[#allocation4 + $0x250] sm:$0xff]
    %v172 = vld [vmem:[#allocation4 + $0x258] sm:$0xff]
    %v173 = vld [vmem:[#allocation4 + $0x260] sm:$0xff]
    %v174 = vld [vmem:[#allocation4 + $0x268] sm:$0xff]
    %v175 = vld [vmem:[#allocation4 + $0x270] sm:$0xff]
    %v176 = vld [vmem:[#allocation4 + $0x278] sm:$0xff]
    %v177 = vld [vmem:[#allocation4 + $0x280] sm:$0xff]
    %v178 = vld [vmem:[#allocation4 + $0x288] sm:$0xff]
    %v179 = vld [vmem:[#allocation4 + $0x290] sm:$0xff]
    %v180 = vld [vmem:[#allocation4 + $0x298] sm:$0xff]
    %v181 = vld [vmem:[#allocation4 + $0x2a0] sm:$0xff]
    %v182 = vld [vmem:[#allocation4 + $0x2a8] sm:$0xff]
    %v183 = vld [vmem:[#allocation4 + $0x2b0] sm:$0xff]
    %v184 = vld [vmem:[#allocation4 + $0x2b8] sm:$0xff]
    %v185 = vld [vmem:[#allocation4 + $0x2c0] sm:$0xff]
    %v186 = vld [vmem:[#allocation4 + $0x2c8] sm:$0xff]
    %v187 = vld [vmem:[#allocation4 + $0x2d0] sm:$0xff]
    %v188 = vld [vmem:[#allocation4 + $0x2d8] sm:$0xff]
    %v189 = vld [vmem:[#allocation4 + $0x2e0] sm:$0xff]
    %v190 = vld [vmem:[#allocation4 + $0x2e8] sm:$0xff]
    %v191 = vld [vmem:[#allocation4 + $0x2f0] sm:$0xff]
    %v192 = vld [vmem:[#allocation4 + $0x2f8] sm:$0xff]
    %v193 = vld [vmem:[#allocation4 + $0x300] sm:$0xff]
    %v194 = vld [vmem:[#allocation4 + $0x308] sm:$0xff]
    %v195 = vld [vmem:[#allocation4 + $0x310] sm:$0xff]
    %v196 = vld [vmem:[#allocation4 + $0x318] sm:$0xff]
    %v197 = vld [vmem:[#allocation4 + $0x320] sm:$0xff]
    %v198 = vld [vmem:[#allocation4 + $0x328] sm:$0xff]
    %v199 = vld [vmem:[#allocation4 + $0x330] sm:$0xff]
    %v200 = vld [vmem:[#allocation4 + $0x338] sm:$0xff]
    %v201 = vld [vmem:[#allocation4 + $0x340] sm:$0xff]
    %v202 = vld [vmem:[#allocation4 + $0x348] sm:$0xff]
    %v203 = vld [vmem:[#allocation4 + $0x350] sm:$0xff]
    %v204 = vld [vmem:[#allocation4 + $0x358] sm:$0xff]
    %v205 = vld [vmem:[#allocation4 + $0x360] sm:$0xff]
    %v206 = vld [vmem:[#allocation4 + $0x368] sm:$0xff]
    %v207 = vld [vmem:[#allocation4 + $0x370] sm:$0xff]
    %v208 = vld [vmem:[#allocation4 + $0x378] sm:$0xff]
    %v209 = vld [vmem:[#allocation4 + $0x380] sm:$0xff]
    %v210 = vld [vmem:[#allocation4 + $0x388] sm:$0xff]
    %v211 = vld [vmem:[#allocation4 + $0x390] sm:$0xff]
    %v212 = vld [vmem:[#allocation4 + $0x398] sm:$0xff]
    %v213 = vld [vmem:[#allocation4 + $0x3a0] sm:$0xff]
    %v214 = vld [vmem:[#allocation4 + $0x3a8] sm:$0xff]
    %v215 = vld [vmem:[#allocation4 + $0x3b0] sm:$0xff]
    %v216 = vld [vmem:[#allocation4 + $0x3b8] sm:$0xff]
    %v217 = vld [vmem:[#allocation4 + $0x3c0] sm:$0xff]
    %v218 = vld [vmem:[#allocation4 + $0x3c8] sm:$0xff]
    %v219 = vld [vmem:[#allocation4 + $0x3d0] sm:$0xff]
    %v220 = vld [vmem:[#allocation4 + $0x3d8] sm:$0xff]
    %v221 = vld [vmem:[#allocation4 + $0x3e0] sm:$0xff]
    %v222 = vld [vmem:[#allocation4 + $0x3e8] sm:$0xff]
    %v223 = vld [vmem:[#allocation4 + $0x3f0] sm:$0xff]
    %v224 = vld [vmem:[#allocation4 + $0x3f8] sm:$0xff]
    %v225 = vld [vmem:[#allocation2] sm:$0x1]
    %s226 = vtos %v225
    %v227 = vld [vmem:[%s3] sm:$0x1]
    %v229 = vlaneseq
    %v230 = vshrl.u32 %v229, 7
    %v231 = vsub.s32 0, %v230
    %v232 = vrot.slane %v227, %v231
    %v234 = vmul.f32 %v97, %v232
    %v235 = vmul.f32 %v98, %v232
    %v236 = vmul.f32 %v99, %v232
    %v237 = vmul.f32 %v100, %v232
    %v238 = vmul.f32 %v101, %v232
    %v239 = vmul.f32 %v102, %v232
    %v240 = vmul.f32 %v103, %v232
    %v241 = vmul.f32 %v104, %v232
    %v242 = vmul.f32 %v105, %v232
    %v243 = vmul.f32 %v106, %v232
    %v244 = vmul.f32 %v107, %v232
    %v245 = vmul.f32 %v108, %v232
    %v246 = vmul.f32 %v109, %v232
    %v247 = vmul.f32 %v110, %v232
    %v248 = vmul.f32 %v111, %v232
    %v249 = vmul.f32 %v112, %v232
    %v250 = vmul.f32 %v113, %v232
    %v251 = vmul.f32 %v114, %v232
    %v252 = vmul.f32 %v115, %v232
    %v253 = vmul.f32 %v116, %v232
    %v254 = vmul.f32 %v117, %v232
    %v255 = vmul.f32 %v118, %v232
    %v256 = vmul.f32 %v119, %v232
    %v257 = vmul.f32 %v120, %v232
    %v258 = vmul.f32 %v121, %v232
    %v259 = vmul.f32 %v122, %v232
    %v260 = vmul.f32 %v123, %v232
    %v261 = vmul.f32 %v124, %v232
    %v262 = vmul.f32 %v125, %v232
    %v263 = vmul.f32 %v126, %v232
    %v264 = vmul.f32 %v127, %v232
    %v265 = vmul.f32 %v128, %v232
    %v266 = vmul.f32 %v129, %v232
    %v267 = vmul.f32 %v130, %v232
    %v268 = vmul.f32 %v131, %v232
    %v269 = vmul.f32 %v132, %v232
    %v270 = vmul.f32 %v133, %v232
    %v271 = vmul.f32 %v134, %v232
    %v272 = vmul.f32 %v135, %v232
    %v273 = vmul.f32 %v136, %v232
    %v274 = vmul.f32 %v137, %v232
    %v275 = vmul.f32 %v138, %v232
    %v276 = vmul.f32 %v139, %v232
    %v277 = vmul.f32 %v140, %v232
    %v278 = vmul.f32 %v141, %v232
    %v279 = vmul.f32 %v142, %v232
    %v280 = vmul.f32 %v143, %v232
    %v281 = vmul.f32 %v144, %v232
    %v282 = vmul.f32 %v145, %v232
    %v283 = vmul.f32 %v146, %v232
    %v284 = vmul.f32 %v147, %v232
    %v285 = vmul.f32 %v148, %v232
    %v286 = vmul.f32 %v149, %v232
    %v287 = vmul.f32 %v150, %v232
    %v288 = vmul.f32 %v151, %v232
    %v289 = vmul.f32 %v152, %v232
    %v290 = vmul.f32 %v153, %v232
    %v291 = vmul.f32 %v154, %v232
    %v292 = vmul.f32 %v155, %v232
    %v293 = vmul.f32 %v156, %v232
    %v294 = vmul.f32 %v157, %v232
    %v295 = vmul.f32 %v158, %v232
    %v296 = vmul.f32 %v159, %v232
    %v297 = vmul.f32 %v160, %v232
    %v298 = vmul.f32 %v161, %v232
    %v299 = vmul.f32 %v162, %v232
    %v300 = vmul.f32 %v163, %v232
    %v301 = vmul.f32 %v164, %v232
    %v302 = vmul.f32 %v165, %v232
    %v303 = vmul.f32 %v166, %v232
    %v304 = vmul.f32 %v167, %v232
    %v305 = vmul.f32 %v168, %v232
    %v306 = vmul.f32 %v169, %v232
    %v307 = vmul.f32 %v170, %v232
    %v308 = vmul.f32 %v171, %v232
    %v309 = vmul.f32 %v172, %v232
    %v310 = vmul.f32 %v173, %v232
    %v311 = vmul.f32 %v174, %v232
    %v312 = vmul.f32 %v175, %v232
    %v313 = vmul.f32 %v176, %v232
    %v314 = vmul.f32 %v177, %v232
    %v315 = vmul.f32 %v178, %v232
    %v316 = vmul.f32 %v179, %v232
    %v317 = vmul.f32 %v180, %v232
    %v318 = vmul.f32 %v181, %v232
    %v319 = vmul.f32 %v182, %v232
    %v320 = vmul.f32 %v183, %v232
    %v321 = vmul.f32 %v184, %v232
    %v322 = vmul.f32 %v185, %v232
    %v323 = vmul.f32 %v186, %v232
    %v324 = vmul.f32 %v187, %v232
    %v325 = vmul.f32 %v188, %v232
    %v326 = vmul.f32 %v189, %v232
    %v327 = vmul.f32 %v190, %v232
    %v328 = vmul.f32 %v191, %v232
    %v329 = vmul.f32 %v192, %v232
    %v330 = vmul.f32 %v193, %v232
    %v331 = vmul.f32 %v194, %v232
    %v332 = vmul.f32 %v195, %v232
    %v333 = vmul.f32 %v196, %v232
    %v334 = vmul.f32 %v197, %v232
    %v335 = vmul.f32 %v198, %v232
    %v336 = vmul.f32 %v199, %v232
    %v337 = vmul.f32 %v200, %v232
    %v338 = vmul.f32 %v201, %v232
    %v339 = vmul.f32 %v202, %v232
    %v340 = vmul.f32 %v203, %v232
    %v341 = vmul.f32 %v204, %v232
    %v342 = vmul.f32 %v205, %v232
    %v343 = vmul.f32 %v206, %v232
    %v344 = vmul.f32 %v207, %v232
    %v345 = vmul.f32 %v208, %v232
    %v346 = vmul.f32 %v209, %v232
    %v347 = vmul.f32 %v210, %v232
    %v348 = vmul.f32 %v211, %v232
    %v349 = vmul.f32 %v212, %v232
    %v350 = vmul.f32 %v213, %v232
    %v351 = vmul.f32 %v214, %v232
    %v352 = vmul.f32 %v215, %v232
    %v353 = vmul.f32 %v216, %v232
    %v354 = vmul.f32 %v217, %v232
    %v355 = vmul.f32 %v218, %v232
    %v356 = vmul.f32 %v219, %v232
    %v357 = vmul.f32 %v220, %v232
    %v358 = vmul.f32 %v221, %v232
    %v359 = vmul.f32 %v222, %v232
    %v360 = vmul.f32 %v223, %v232
    %v361 = vmul.f32 %v224, %v232
    %v362 = vld [vmem:[%s4] sm:$0x1]
    %v364 = vlaneseq
    %v365 = vshrl.u32 %v364, 7
    %v366 = vsub.s32 0, %v365
    %v367 = vrot.slane %v362, %v366
    %v369 = vadd.f32 %v234, %v367
    %v370 = vadd.f32 %v235, %v367
    %v371 = vadd.f32 %v236, %v367
    %v372 = vadd.f32 %v237, %v367
    %v373 = vadd.f32 %v238, %v367
    %v374 = vadd.f32 %v239, %v367
    %v375 = vadd.f32 %v240, %v367
    %v376 = vadd.f32 %v241, %v367
    %v377 = vadd.f32 %v242, %v367
    %v378 = vadd.f32 %v243, %v367
    %v379 = vadd.f32 %v244, %v367
    %v380 = vadd.f32 %v245, %v367
    %v381 = vadd.f32 %v246, %v367
    %v382 = vadd.f32 %v247, %v367
    %v383 = vadd.f32 %v248, %v367
    %v384 = vadd.f32 %v249, %v367
    %v385 = vadd.f32 %v250, %v367
    %v386 = vadd.f32 %v251, %v367
    %v387 = vadd.f32 %v252, %v367
    %v388 = vadd.f32 %v253, %v367
    %v389 = vadd.f32 %v254, %v367
    %v390 = vadd.f32 %v255, %v367
    %v391 = vadd.f32 %v256, %v367
    %v392 = vadd.f32 %v257, %v367
    %v393 = vadd.f32 %v258, %v367
    %v394 = vadd.f32 %v259, %v367
    %v395 = vadd.f32 %v260, %v367
    %v396 = vadd.f32 %v261, %v367
    %v397 = vadd.f32 %v262, %v367
    %v398 = vadd.f32 %v263, %v367
    %v399 = vadd.f32 %v264, %v367
    %v400 = vadd.f32 %v265, %v367
    %v401 = vadd.f32 %v266, %v367
    %v402 = vadd.f32 %v267, %v367
    %v403 = vadd.f32 %v268, %v367
    %v404 = vadd.f32 %v269, %v367
    %v405 = vadd.f32 %v270, %v367
    %v406 = vadd.f32 %v271, %v367
    %v407 = vadd.f32 %v272, %v367
    %v408 = vadd.f32 %v273, %v367
    %v409 = vadd.f32 %v274, %v367
    %v410 = vadd.f32 %v275, %v367
    %v411 = vadd.f32 %v276, %v367
    %v412 = vadd.f32 %v277, %v367
    %v413 = vadd.f32 %v278, %v367
    %v414 = vadd.f32 %v279, %v367
    %v415 = vadd.f32 %v280, %v367
    %v416 = vadd.f32 %v281, %v367
    %v417 = vadd.f32 %v282, %v367
    %v418 = vadd.f32 %v283, %v367
    %v419 = vadd.f32 %v284, %v367
    %v420 = vadd.f32 %v285, %v367
    %v421 = vadd.f32 %v286, %v367
    %v422 = vadd.f32 %v287, %v367
    %v423 = vadd.f32 %v288, %v367
    %v424 = vadd.f32 %v289, %v367
    %v425 = vadd.f32 %v290, %v367
    %v426 = vadd.f32 %v291, %v367
    %v427 = vadd.f32 %v292, %v367
    %v428 = vadd.f32 %v293, %v367
    %v429 = vadd.f32 %v294, %v367
    %v430 = vadd.f32 %v295, %v367
    %v431 = vadd.f32 %v296, %v367
    %v432 = vadd.f32 %v297, %v367
    %v433 = vadd.f32 %v298, %v367
    %v434 = vadd.f32 %v299, %v367
    %v435 = vadd.f32 %v300, %v367
    %v436 = vadd.f32 %v301, %v367
    %v437 = vadd.f32 %v302, %v367
    %v438 = vadd.f32 %v303, %v367
    %v439 = vadd.f32 %v304, %v367
    %v440 = vadd.f32 %v305, %v367
    %v441 = vadd.f32 %v306, %v367
    %v442 = vadd.f32 %v307, %v367
    %v443 = vadd.f32 %v308, %v367
    %v444 = vadd.f32 %v309, %v367
    %v445 = vadd.f32 %v310, %v367
    %v446 = vadd.f32 %v311, %v367
    %v447 = vadd.f32 %v312, %v367
    %v448 = vadd.f32 %v313, %v367
    %v449 = vadd.f32 %v314, %v367
    %v450 = vadd.f32 %v315, %v367
    %v451 = vadd.f32 %v316, %v367
    %v452 = vadd.f32 %v317, %v367
    %v453 = vadd.f32 %v318, %v367
    %v454 = vadd.f32 %v319, %v367
    %v455 = vadd.f32 %v320, %v367
    %v456 = vadd.f32 %v321, %v367
    %v457 = vadd.f32 %v322, %v367
    %v458 = vadd.f32 %v323, %v367
    %v459 = vadd.f32 %v324, %v367
    %v460 = vadd.f32 %v325, %v367
    %v461 = vadd.f32 %v326, %v367
    %v462 = vadd.f32 %v327, %v367
    %v463 = vadd.f32 %v328, %v367
    %v464 = vadd.f32 %v329, %v367
    %v465 = vadd.f32 %v330, %v367
    %v466 = vadd.f32 %v331, %v367
    %v467 = vadd.f32 %v332, %v367
    %v468 = vadd.f32 %v333, %v367
    %v469 = vadd.f32 %v334, %v367
    %v470 = vadd.f32 %v335, %v367
    %v471 = vadd.f32 %v336, %v367
    %v472 = vadd.f32 %v337, %v367
    %v473 = vadd.f32 %v338, %v367
    %v474 = vadd.f32 %v339, %v367
    %v475 = vadd.f32 %v340, %v367
    %v476 = vadd.f32 %v341, %v367
    %v477 = vadd.f32 %v342, %v367
    %v478 = vadd.f32 %v343, %v367
    %v479 = vadd.f32 %v344, %v367
    %v480 = vadd.f32 %v345, %v367
    %v481 = vadd.f32 %v346, %v367
    %v482 = vadd.f32 %v347, %v367
    %v483 = vadd.f32 %v348, %v367
    %v484 = vadd.f32 %v349, %v367
    %v485 = vadd.f32 %v350, %v367
    %v486 = vadd.f32 %v351, %v367
    %v487 = vadd.f32 %v352, %v367
    %v488 = vadd.f32 %v353, %v367
    %v489 = vadd.f32 %v354, %v367
    %v490 = vadd.f32 %v355, %v367
    %v491 = vadd.f32 %v356, %v367
    %v492 = vadd.f32 %v357, %v367
    %v493 = vadd.f32 %v358, %v367
    %v494 = vadd.f32 %v359, %v367
    %v495 = vadd.f32 %v360, %v367
    %v496 = vadd.f32 %v361, %v367
    %v497 = vpack.c.bf16 %v370, %v369
    %v498 = vpack.c.bf16 %v372, %v371
    %v499 = vpack.c.bf16 %v374, %v373
    %v500 = vpack.c.bf16 %v376, %v375
    %v501 = vpack.c.bf16 %v378, %v377
    %v502 = vpack.c.bf16 %v380, %v379
    %v503 = vpack.c.bf16 %v382, %v381
    %v504 = vpack.c.bf16 %v384, %v383
    %v505 = vpack.c.bf16 %v386, %v385
    %v506 = vpack.c.bf16 %v388, %v387
    %v507 = vpack.c.bf16 %v390, %v389
    %v508 = vpack.c.bf16 %v392, %v391
    %v509 = vpack.c.bf16 %v394, %v393
    %v510 = vpack.c.bf16 %v396, %v395
    %v511 = vpack.c.bf16 %v398, %v397
    %v512 = vpack.c.bf16 %v400, %v399
    %v513 = vpack.c.bf16 %v402, %v401
    %v514 = vpack.c.bf16 %v404, %v403
    %v515 = vpack.c.bf16 %v406, %v405
    %v516 = vpack.c.bf16 %v408, %v407
    %v517 = vpack.c.bf16 %v410, %v409
    %v518 = vpack.c.bf16 %v412, %v411
    %v519 = vpack.c.bf16 %v414, %v413
    %v520 = vpack.c.bf16 %v416, %v415
    %v521 = vpack.c.bf16 %v418, %v417
    %v522 = vpack.c.bf16 %v420, %v419
    %v523 = vpack.c.bf16 %v422, %v421
    %v524 = vpack.c.bf16 %v424, %v423
    %v525 = vpack.c.bf16 %v426, %v425
    %v526 = vpack.c.bf16 %v428, %v427
    %v527 = vpack.c.bf16 %v430, %v429
    %v528 = vpack.c.bf16 %v432, %v431
    %v529 = vpack.c.bf16 %v434, %v433
    %v530 = vpack.c.bf16 %v436, %v435
    %v531 = vpack.c.bf16 %v438, %v437
    %v532 = vpack.c.bf16 %v440, %v439
    %v533 = vpack.c.bf16 %v442, %v441
    %v534 = vpack.c.bf16 %v444, %v443
    %v535 = vpack.c.bf16 %v446, %v445
    %v536 = vpack.c.bf16 %v448, %v447
    %v537 = vpack.c.bf16 %v450, %v449
    %v538 = vpack.c.bf16 %v452, %v451
    %v539 = vpack.c.bf16 %v454, %v453
    %v540 = vpack.c.bf16 %v456, %v455
    %v541 = vpack.c.bf16 %v458, %v457
    %v542 = vpack.c.bf16 %v460, %v459
    %v543 = vpack.c.bf16 %v462, %v461
    %v544 = vpack.c.bf16 %v464, %v463
    %v545 = vpack.c.bf16 %v466, %v465
    %v546 = vpack.c.bf16 %v468, %v467
    %v547 = vpack.c.bf16 %v470, %v469
    %v548 = vpack.c.bf16 %v472, %v471
    %v549 = vpack.c.bf16 %v474, %v473
    %v550 = vpack.c.bf16 %v476, %v475
    %v551 = vpack.c.bf16 %v478, %v477
    %v552 = vpack.c.bf16 %v480, %v479
    %v553 = vpack.c.bf16 %v482, %v481
    %v554 = vpack.c.bf16 %v484, %v483
    %v555 = vpack.c.bf16 %v486, %v485
    %v556 = vpack.c.bf16 %v488, %v487
    %v557 = vpack.c.bf16 %v490, %v489
    %v558 = vpack.c.bf16 %v492, %v491
    %v559 = vpack.c.bf16 %v494, %v493
    %v560 = vpack.c.bf16 %v496, %v495
    %v562 = vshrl.u32 0, 16
    %v564 = vrot.slane %v562, 7
    %v565 = vshll.u32 0, 16
    %v567 = vor.u32 %v564, %v565
    %v569 = vshrl.u32 %v497, 16
    %v571 = vrot.slane %v569, 7
    %v572 = vshll.u32 %v497, 16
    %v574 = vor.u32 %v571, %v572
    %v576 = vshrl.u32 %v498, 16
    %v578 = vrot.slane %v576, 7
    %v579 = vshll.u32 %v498, 16
    %v581 = vor.u32 %v578, %v579
    %v583 = vshrl.u32 %v499, 16
    %v585 = vrot.slane %v583, 7
    %v586 = vshll.u32 %v499, 16
    %v588 = vor.u32 %v585, %v586
    %v590 = vshrl.u32 %v500, 16
    %v592 = vrot.slane %v590, 7
    %v593 = vshll.u32 %v500, 16
    %v595 = vor.u32 %v592, %v593
    %v597 = vshrl.u32 %v501, 16
    %v599 = vrot.slane %v597, 7
    %v600 = vshll.u32 %v501, 16
    %v602 = vor.u32 %v599, %v600
    %v604 = vshrl.u32 %v502, 16
    %v606 = vrot.slane %v604, 7
    %v607 = vshll.u32 %v502, 16
    %v609 = vor.u32 %v606, %v607
    %v611 = vshrl.u32 %v503, 16
    %v613 = vrot.slane %v611, 7
    %v614 = vshll.u32 %v503, 16
    %v616 = vor.u32 %v613, %v614
    %v618 = vshrl.u32 %v504, 16
    %v620 = vrot.slane %v618, 7
    %v621 = vshll.u32 %v504, 16
    %v623 = vor.u32 %v620, %v621
    %v625 = vshrl.u32 %v505, 16
    %v627 = vrot.slane %v625, 7
    %v628 = vshll.u32 %v505, 16
    %v630 = vor.u32 %v627, %v628
    %v632 = vshrl.u32 %v506, 16
    %v634 = vrot.slane %v632, 7
    %v635 = vshll.u32 %v506, 16
    %v637 = vor.u32 %v634, %v635
    %v639 = vshrl.u32 %v507, 16
    %v641 = vrot.slane %v639, 7
    %v642 = vshll.u32 %v507, 16
    %v644 = vor.u32 %v641, %v642
    %v646 = vshrl.u32 %v508, 16
    %v648 = vrot.slane %v646, 7
    %v649 = vshll.u32 %v508, 16
    %v651 = vor.u32 %v648, %v649
    %v653 = vshrl.u32 %v509, 16
    %v655 = vrot.slane %v653, 7
    %v656 = vshll.u32 %v509, 16
    %v658 = vor.u32 %v655, %v656
    %v660 = vshrl.u32 %v510, 16
    %v662 = vrot.slane %v660, 7
    %v663 = vshll.u32 %v510, 16
    %v665 = vor.u32 %v662, %v663
    %v667 = vshrl.u32 %v511, 16
    %v669 = vrot.slane %v667, 7
    %v670 = vshll.u32 %v511, 16
    %v672 = vor.u32 %v669, %v670
    %v674 = vshrl.u32 %v512, 16
    %v676 = vrot.slane %v674, 7
    %v677 = vshll.u32 %v512, 16
    %v679 = vor.u32 %v676, %v677
    %v681 = vshrl.u32 %v513, 16
    %v683 = vrot.slane %v681, 7
    %v684 = vshll.u32 %v513, 16
    %v686 = vor.u32 %v683, %v684
    %v688 = vshrl.u32 %v514, 16
    %v690 = vrot.slane %v688, 7
    %v691 = vshll.u32 %v514, 16
    %v693 = vor.u32 %v690, %v691
    %v695 = vshrl.u32 %v515, 16
    %v697 = vrot.slane %v695, 7
    %v698 = vshll.u32 %v515, 16
    %v700 = vor.u32 %v697, %v698
    %v702 = vshrl.u32 %v516, 16
    %v704 = vrot.slane %v702, 7
    %v705 = vshll.u32 %v516, 16
    %v707 = vor.u32 %v704, %v705
    %v709 = vshrl.u32 %v517, 16
    %v711 = vrot.slane %v709, 7
    %v712 = vshll.u32 %v517, 16
    %v714 = vor.u32 %v711, %v712
    %v716 = vshrl.u32 %v518, 16
    %v718 = vrot.slane %v716, 7
    %v719 = vshll.u32 %v518, 16
    %v721 = vor.u32 %v718, %v719
    %v723 = vshrl.u32 %v519, 16
    %v725 = vrot.slane %v723, 7
    %v726 = vshll.u32 %v519, 16
    %v728 = vor.u32 %v725, %v726
    %v730 = vshrl.u32 %v520, 16
    %v732 = vrot.slane %v730, 7
    %v733 = vshll.u32 %v520, 16
    %v735 = vor.u32 %v732, %v733
    %v737 = vshrl.u32 %v521, 16
    %v739 = vrot.slane %v737, 7
    %v740 = vshll.u32 %v521, 16
    %v742 = vor.u32 %v739, %v740
    %v744 = vshrl.u32 %v522, 16
    %v746 = vrot.slane %v744, 7
    %v747 = vshll.u32 %v522, 16
    %v749 = vor.u32 %v746, %v747
    %v751 = vshrl.u32 %v523, 16
    %v753 = vrot.slane %v751, 7
    %v754 = vshll.u32 %v523, 16
    %v756 = vor.u32 %v753, %v754
    %v758 = vshrl.u32 %v524, 16
    %v760 = vrot.slane %v758, 7
    %v761 = vshll.u32 %v524, 16
    %v763 = vor.u32 %v760, %v761
    %v765 = vshrl.u32 %v525, 16
    %v767 = vrot.slane %v765, 7
    %v768 = vshll.u32 %v525, 16
    %v770 = vor.u32 %v767, %v768
    %v772 = vshrl.u32 %v526, 16
    %v774 = vrot.slane %v772, 7
    %v775 = vshll.u32 %v526, 16
    %v777 = vor.u32 %v774, %v775
    %v779 = vshrl.u32 %v527, 16
    %v781 = vrot.slane %v779, 7
    %v782 = vshll.u32 %v527, 16
    %v784 = vor.u32 %v781, %v782
    %v786 = vshrl.u32 %v528, 16
    %v788 = vrot.slane %v786, 7
    %v789 = vshll.u32 %v528, 16
    %v791 = vor.u32 %v788, %v789
    %v793 = vshrl.u32 %v529, 16
    %v795 = vrot.slane %v793, 7
    %v796 = vshll.u32 %v529, 16
    %v798 = vor.u32 %v795, %v796
    %v800 = vshrl.u32 %v530, 16
    %v802 = vrot.slane %v800, 7
    %v803 = vshll.u32 %v530, 16
    %v805 = vor.u32 %v802, %v803
    %v807 = vshrl.u32 %v531, 16
    %v809 = vrot.slane %v807, 7
    %v810 = vshll.u32 %v531, 16
    %v812 = vor.u32 %v809, %v810
    %v814 = vshrl.u32 %v532, 16
    %v816 = vrot.slane %v814, 7
    %v817 = vshll.u32 %v532, 16
    %v819 = vor.u32 %v816, %v817
    %v821 = vshrl.u32 %v533, 16
    %v823 = vrot.slane %v821, 7
    %v824 = vshll.u32 %v533, 16
    %v826 = vor.u32 %v823, %v824
    %v828 = vshrl.u32 %v534, 16
    %v830 = vrot.slane %v828, 7
    %v831 = vshll.u32 %v534, 16
    %v833 = vor.u32 %v830, %v831
    %v835 = vshrl.u32 %v535, 16
    %v837 = vrot.slane %v835, 7
    %v838 = vshll.u32 %v535, 16
    %v840 = vor.u32 %v837, %v838
    %v842 = vshrl.u32 %v536, 16
    %v844 = vrot.slane %v842, 7
    %v845 = vshll.u32 %v536, 16
    %v847 = vor.u32 %v844, %v845
    %v849 = vshrl.u32 %v537, 16
    %v851 = vrot.slane %v849, 7
    %v852 = vshll.u32 %v537, 16
    %v854 = vor.u32 %v851, %v852
    %v856 = vshrl.u32 %v538, 16
    %v858 = vrot.slane %v856, 7
    %v859 = vshll.u32 %v538, 16
    %v861 = vor.u32 %v858, %v859
    %v863 = vshrl.u32 %v539, 16
    %v865 = vrot.slane %v863, 7
    %v866 = vshll.u32 %v539, 16
    %v868 = vor.u32 %v865, %v866
    %v870 = vshrl.u32 %v540, 16
    %v872 = vrot.slane %v870, 7
    %v873 = vshll.u32 %v540, 16
    %v875 = vor.u32 %v872, %v873
    %v877 = vshrl.u32 %v541, 16
    %v879 = vrot.slane %v877, 7
    %v880 = vshll.u32 %v541, 16
    %v882 = vor.u32 %v879, %v880
    %v884 = vshrl.u32 %v542, 16
    %v886 = vrot.slane %v884, 7
    %v887 = vshll.u32 %v542, 16
    %v889 = vor.u32 %v886, %v887
    %v891 = vshrl.u32 %v543, 16
    %v893 = vrot.slane %v891, 7
    %v894 = vshll.u32 %v543, 16
    %v896 = vor.u32 %v893, %v894
    %v898 = vshrl.u32 %v544, 16
    %v900 = vrot.slane %v898, 7
    %v901 = vshll.u32 %v544, 16
    %v903 = vor.u32 %v900, %v901
    %v905 = vshrl.u32 %v545, 16
    %v907 = vrot.slane %v905, 7
    %v908 = vshll.u32 %v545, 16
    %v910 = vor.u32 %v907, %v908
    %v912 = vshrl.u32 %v546, 16
    %v914 = vrot.slane %v912, 7
    %v915 = vshll.u32 %v546, 16
    %v917 = vor.u32 %v914, %v915
    %v919 = vshrl.u32 %v547, 16
    %v921 = vrot.slane %v919, 7
    %v922 = vshll.u32 %v547, 16
    %v924 = vor.u32 %v921, %v922
    %v926 = vshrl.u32 %v548, 16
    %v928 = vrot.slane %v926, 7
    %v929 = vshll.u32 %v548, 16
    %v931 = vor.u32 %v928, %v929
    %v933 = vshrl.u32 %v549, 16
    %v935 = vrot.slane %v933, 7
    %v936 = vshll.u32 %v549, 16
    %v938 = vor.u32 %v935, %v936
    %v940 = vshrl.u32 %v550, 16
    %v942 = vrot.slane %v940, 7
    %v943 = vshll.u32 %v550, 16
    %v945 = vor.u32 %v942, %v943
    %v947 = vshrl.u32 %v551, 16
    %v949 = vrot.slane %v947, 7
    %v950 = vshll.u32 %v551, 16
    %v952 = vor.u32 %v949, %v950
    %v954 = vshrl.u32 %v552, 16
    %v956 = vrot.slane %v954, 7
    %v957 = vshll.u32 %v552, 16
    %v959 = vor.u32 %v956, %v957
    %v961 = vshrl.u32 %v553, 16
    %v963 = vrot.slane %v961, 7
    %v964 = vshll.u32 %v553, 16
    %v966 = vor.u32 %v963, %v964
    %v968 = vshrl.u32 %v554, 16
    %v970 = vrot.slane %v968, 7
    %v971 = vshll.u32 %v554, 16
    %v973 = vor.u32 %v970, %v971
    %v975 = vshrl.u32 %v555, 16
    %v977 = vrot.slane %v975, 7
    %v978 = vshll.u32 %v555, 16
    %v980 = vor.u32 %v977, %v978
    %v982 = vshrl.u32 %v556, 16
    %v984 = vrot.slane %v982, 7
    %v985 = vshll.u32 %v556, 16
    %v987 = vor.u32 %v984, %v985
    %v989 = vshrl.u32 %v557, 16
    %v991 = vrot.slane %v989, 7
    %v992 = vshll.u32 %v557, 16
    %v994 = vor.u32 %v991, %v992
    %v996 = vshrl.u32 %v558, 16
    %v998 = vrot.slane %v996, 7
    %v999 = vshll.u32 %v558, 16
    %v1001 = vor.u32 %v998, %v999
    %v1003 = vshrl.u32 %v559, 16
    %v1005 = vrot.slane %v1003, 7
    %v1006 = vshll.u32 %v559, 16
    %v1008 = vor.u32 %v1005, %v1006
    %v1010 = vshrl.u32 %v560, 16
    %v1012 = vrot.slane %v1010, 7
    %v1013 = vshll.u32 %v560, 16
    %v1015 = vor.u32 %v1012, %v1013
    %vm1146 = vcmask 1040384
    %vm1147 = vsmask.f32 256
    %vm1148 = vmand %vm1146, %vm1147
    %v1149 = vsel %vm1148, 0, %v567
    %v1150 = vsel %vm1148, 0, %v574
    %v1151 = vsel %vm1148, 0, %v581
    %v1152 = vsel %vm1148, 0, %v588
    %v1153 = vsel %vm1148, 0, %v595
    %v1154 = vsel %vm1148, 0, %v602
    %v1155 = vsel %vm1148, 0, %v609
    %v1156 = vsel %vm1148, 0, %v616
    %v1157 = vsel %vm1148, 0, %v623
    %v1158 = vsel %vm1148, 0, %v630
    %v1159 = vsel %vm1148, 0, %v637
    %v1160 = vsel %vm1148, 0, %v644
    %v1161 = vsel %vm1148, 0, %v651
    %v1162 = vsel %vm1148, 0, %v658
    %v1163 = vsel %vm1148, 0, %v665
    %v1164 = vsel %vm1148, 0, %v672
    %v1165 = vsel %vm1148, 0, %v679
    %v1166 = vsel %vm1148, 0, %v686
    %v1167 = vsel %vm1148, 0, %v693
    %v1168 = vsel %vm1148, 0, %v700
    %v1169 = vsel %vm1148, 0, %v707
    %v1170 = vsel %vm1148, 0, %v714
    %v1171 = vsel %vm1148, 0, %v721
    %v1172 = vsel %vm1148, 0, %v728
    %v1173 = vsel %vm1148, 0, %v735
    %v1174 = vsel %vm1148, 0, %v742
    %v1175 = vsel %vm1148, 0, %v749
    %v1176 = vsel %vm1148, 0, %v756
    %v1177 = vsel %vm1148, 0, %v763
    %v1178 = vsel %vm1148, 0, %v770
    %v1179 = vsel %vm1148, 0, %v777
    %v1180 = vsel %vm1148, 0, %v784
    %v1181 = vsel %vm1148, 0, %v791
    %v1182 = vsel %vm1148, 0, %v798
    %v1183 = vsel %vm1148, 0, %v805
    %v1184 = vsel %vm1148, 0, %v812
    %v1185 = vsel %vm1148, 0, %v819
    %v1186 = vsel %vm1148, 0, %v826
    %v1187 = vsel %vm1148, 0, %v833
    %v1188 = vsel %vm1148, 0, %v840
    %v1189 = vsel %vm1148, 0, %v847
    %v1190 = vsel %vm1148, 0, %v854
    %v1191 = vsel %vm1148, 0, %v861
    %v1192 = vsel %vm1148, 0, %v868
    %v1193 = vsel %vm1148, 0, %v875
    %v1194 = vsel %vm1148, 0, %v882
    %v1195 = vsel %vm1148, 0, %v889
    %v1196 = vsel %vm1148, 0, %v896
    %v1197 = vsel %vm1148, 0, %v903
    %v1198 = vsel %vm1148, 0, %v910
    %v1199 = vsel %vm1148, 0, %v917
    %v1200 = vsel %vm1148, 0, %v924
    %v1201 = vsel %vm1148, 0, %v931
    %v1202 = vsel %vm1148, 0, %v938
    %v1203 = vsel %vm1148, 0, %v945
    %v1204 = vsel %vm1148, 0, %v952
    %v1205 = vsel %vm1148, 0, %v959
    %v1206 = vsel %vm1148, 0, %v966
    %v1207 = vsel %vm1148, 0, %v973
    %v1208 = vsel %vm1148, 0, %v980
    %v1209 = vsel %vm1148, 0, %v987
    %v1210 = vsel %vm1148, 0, %v994
    %v1211 = vsel %vm1148, 0, %v1001
    %v1212 = vsel %vm1148, 0, %v1008
    %v1213 = vsel %vm1148, 0, %v1015
    %v1214 = vsel %vm1148, %v564, 0
    %v1215 = vsel %vm1148, %v571, 0
    %v1216 = vsel %vm1148, %v578, 0
    %v1217 = vsel %vm1148, %v585, 0
    %v1218 = vsel %vm1148, %v592, 0
    %v1219 = vsel %vm1148, %v599, 0
    %v1220 = vsel %vm1148, %v606, 0
    %v1221 = vsel %vm1148, %v613, 0
    %v1222 = vsel %vm1148, %v620, 0
    %v1223 = vsel %vm1148, %v627, 0
    %v1224 = vsel %vm1148, %v634, 0
    %v1225 = vsel %vm1148, %v641, 0
    %v1226 = vsel %vm1148, %v648, 0
    %v1227 = vsel %vm1148, %v655, 0
    %v1228 = vsel %vm1148, %v662, 0
    %v1229 = vsel %vm1148, %v669, 0
    %v1230 = vsel %vm1148, %v676, 0
    %v1231 = vsel %vm1148, %v683, 0
    %v1232 = vsel %vm1148, %v690, 0
    %v1233 = vsel %vm1148, %v697, 0
    %v1234 = vsel %vm1148, %v704, 0
    %v1235 = vsel %vm1148, %v711, 0
    %v1236 = vsel %vm1148, %v718, 0
    %v1237 = vsel %vm1148, %v725, 0
    %v1238 = vsel %vm1148, %v732, 0
    %v1239 = vsel %vm1148, %v739, 0
    %v1240 = vsel %vm1148, %v746, 0
    %v1241 = vsel %vm1148, %v753, 0
    %v1242 = vsel %vm1148, %v760, 0
    %v1243 = vsel %vm1148, %v767, 0
    %v1244 = vsel %vm1148, %v774, 0
    %v1245 = vsel %vm1148, %v781, 0
    %v1246 = vsel %vm1148, %v788, 0
    %v1247 = vsel %vm1148, %v795, 0
    %v1248 = vsel %vm1148, %v802, 0
    %v1249 = vsel %vm1148, %v809, 0
    %v1250 = vsel %vm1148, %v816, 0
    %v1251 = vsel %vm1148, %v823, 0
    %v1252 = vsel %vm1148, %v830, 0
    %v1253 = vsel %vm1148, %v837, 0
    %v1254 = vsel %vm1148, %v844, 0
    %v1255 = vsel %vm1148, %v851, 0
    %v1256 = vsel %vm1148, %v858, 0
    %v1257 = vsel %vm1148, %v865, 0
    %v1258 = vsel %vm1148, %v872, 0
    %v1259 = vsel %vm1148, %v879, 0
    %v1260 = vsel %vm1148, %v886, 0
    %v1261 = vsel %vm1148, %v893, 0
    %v1262 = vsel %vm1148, %v900, 0
    %v1263 = vsel %vm1148, %v907, 0
    %v1264 = vsel %vm1148, %v914, 0
    %v1265 = vsel %vm1148, %v921, 0
    %v1266 = vsel %vm1148, %v928, 0
    %v1267 = vsel %vm1148, %v935, 0
    %v1268 = vsel %vm1148, %v942, 0
    %v1269 = vsel %vm1148, %v949, 0
    %v1270 = vsel %vm1148, %v956, 0
    %v1271 = vsel %vm1148, %v963, 0
    %v1272 = vsel %vm1148, %v970, 0
    %v1273 = vsel %vm1148, %v977, 0
    %v1274 = vsel %vm1148, %v984, 0
    %v1275 = vsel %vm1148, %v991, 0
    %v1276 = vsel %vm1148, %v998, 0
    %v1277 = vsel %vm1148, %v1005, 0
    %v1278 = vsel %vm1148, %v1012, 0
    %vm1279 = vsmask.f32 7424
    %v1281 = vshrl.u32 %v1149, 16
    %v1283 = vshll.u32 %v1149, 16
    %v1285 = vrot.slane %v1283, 1
    %v1286 = vor.u32 %v1281, %v1285
    %v1288 = vshll.u32 %v1214, 16
    %v1290 = vrot.slane %v1288, 1
    %v1291 = vsel %vm1279, %v1286, %v1290
    %v1293 = vshrl.u32 %v1150, 16
    %v1295 = vshll.u32 %v1150, 16
    %v1297 = vrot.slane %v1295, 1
    %v1298 = vor.u32 %v1293, %v1297
    %v1300 = vshll.u32 %v1215, 16
    %v1302 = vrot.slane %v1300, 1
    %v1303 = vsel %vm1279, %v1298, %v1302
    %v1305 = vshrl.u32 %v1151, 16
    %v1307 = vshll.u32 %v1151, 16
    %v1309 = vrot.slane %v1307, 1
    %v1310 = vor.u32 %v1305, %v1309
    %v1312 = vshll.u32 %v1216, 16
    %v1314 = vrot.slane %v1312, 1
    %v1315 = vsel %vm1279, %v1310, %v1314
    %v1317 = vshrl.u32 %v1152, 16
    %v1319 = vshll.u32 %v1152, 16
    %v1321 = vrot.slane %v1319, 1
    %v1322 = vor.u32 %v1317, %v1321
    %v1324 = vshll.u32 %v1217, 16
    %v1326 = vrot.slane %v1324, 1
    %v1327 = vsel %vm1279, %v1322, %v1326
    %v1329 = vshrl.u32 %v1153, 16
    %v1331 = vshll.u32 %v1153, 16
    %v1333 = vrot.slane %v1331, 1
    %v1334 = vor.u32 %v1329, %v1333
    %v1336 = vshll.u32 %v1218, 16
    %v1338 = vrot.slane %v1336, 1
    %v1339 = vsel %vm1279, %v1334, %v1338
    %v1341 = vshrl.u32 %v1154, 16
    %v1343 = vshll.u32 %v1154, 16
    %v1345 = vrot.slane %v1343, 1
    %v1346 = vor.u32 %v1341, %v1345
    %v1348 = vshll.u32 %v1219, 16
    %v1350 = vrot.slane %v1348, 1
    %v1351 = vsel %vm1279, %v1346, %v1350
    %v1353 = vshrl.u32 %v1155, 16
    %v1355 = vshll.u32 %v1155, 16
    %v1357 = vrot.slane %v1355, 1
    %v1358 = vor.u32 %v1353, %v1357
    %v1360 = vshll.u32 %v1220, 16
    %v1362 = vrot.slane %v1360, 1
    %v1363 = vsel %vm1279, %v1358, %v1362
    %v1365 = vshrl.u32 %v1156, 16
    %v1367 = vshll.u32 %v1156, 16
    %v1369 = vrot.slane %v1367, 1
    %v1370 = vor.u32 %v1365, %v1369
    %v1372 = vshll.u32 %v1221, 16
    %v1374 = vrot.slane %v1372, 1
    %v1375 = vsel %vm1279, %v1370, %v1374
    %v1377 = vshrl.u32 %v1157, 16
    %v1379 = vshll.u32 %v1157, 16
    %v1381 = vrot.slane %v1379, 1
    %v1382 = vor.u32 %v1377, %v1381
    %v1384 = vshll.u32 %v1222, 16
    %v1386 = vrot.slane %v1384, 1
    %v1387 = vsel %vm1279, %v1382, %v1386
    %v1389 = vshrl.u32 %v1158, 16
    %v1391 = vshll.u32 %v1158, 16
    %v1393 = vrot.slane %v1391, 1
    %v1394 = vor.u32 %v1389, %v1393
    %v1396 = vshll.u32 %v1223, 16
    %v1398 = vrot.slane %v1396, 1
    %v1399 = vsel %vm1279, %v1394, %v1398
    %v1401 = vshrl.u32 %v1159, 16
    %v1403 = vshll.u32 %v1159, 16
    %v1405 = vrot.slane %v1403, 1
    %v1406 = vor.u32 %v1401, %v1405
    %v1408 = vshll.u32 %v1224, 16
    %v1410 = vrot.slane %v1408, 1
    %v1411 = vsel %vm1279, %v1406, %v1410
    %v1413 = vshrl.u32 %v1160, 16
    %v1415 = vshll.u32 %v1160, 16
    %v1417 = vrot.slane %v1415, 1
    %v1418 = vor.u32 %v1413, %v1417
    %v1420 = vshll.u32 %v1225, 16
    %v1422 = vrot.slane %v1420, 1
    %v1423 = vsel %vm1279, %v1418, %v1422
    %v1425 = vshrl.u32 %v1161, 16
    %v1427 = vshll.u32 %v1161, 16
    %v1429 = vrot.slane %v1427, 1
    %v1430 = vor.u32 %v1425, %v1429
    %v1432 = vshll.u32 %v1226, 16
    %v1434 = vrot.slane %v1432, 1
    %v1435 = vsel %vm1279, %v1430, %v1434
    %v1437 = vshrl.u32 %v1162, 16
    %v1439 = vshll.u32 %v1162, 16
    %v1441 = vrot.slane %v1439, 1
    %v1442 = vor.u32 %v1437, %v1441
    %v1444 = vshll.u32 %v1227, 16
    %v1446 = vrot.slane %v1444, 1
    %v1447 = vsel %vm1279, %v1442, %v1446
    %v1449 = vshrl.u32 %v1163, 16
    %v1451 = vshll.u32 %v1163, 16
    %v1453 = vrot.slane %v1451, 1
    %v1454 = vor.u32 %v1449, %v1453
    %v1456 = vshll.u32 %v1228, 16
    %v1458 = vrot.slane %v1456, 1
    %v1459 = vsel %vm1279, %v1454, %v1458
    %v1461 = vshrl.u32 %v1164, 16
    %v1463 = vshll.u32 %v1164, 16
    %v1465 = vrot.slane %v1463, 1
    %v1466 = vor.u32 %v1461, %v1465
    %v1468 = vshll.u32 %v1229, 16
    %v1470 = vrot.slane %v1468, 1
    %v1471 = vsel %vm1279, %v1466, %v1470
    %v1473 = vshrl.u32 %v1166, 16
    %v1475 = vshll.u32 %v1166, 16
    %v1477 = vrot.slane %v1475, 1
    %v1478 = vor.u32 %v1473, %v1477
    %v1480 = vshll.u32 %v1231, 16
    %v1482 = vrot.slane %v1480, 1
    %v1483 = vsel %vm1279, %v1478, %v1482
    %v1485 = vshrl.u32 %v1167, 16
    %v1487 = vshll.u32 %v1167, 16
    %v1489 = vrot.slane %v1487, 1
    %v1490 = vor.u32 %v1485, %v1489
    %v1492 = vshll.u32 %v1232, 16
    %v1494 = vrot.slane %v1492, 1
    %v1495 = vsel %vm1279, %v1490, %v1494
    %v1497 = vshrl.u32 %v1168, 16
    %v1499 = vshll.u32 %v1168, 16
    %v1501 = vrot.slane %v1499, 1
    %v1502 = vor.u32 %v1497, %v1501
    %v1504 = vshll.u32 %v1233, 16
    %v1506 = vrot.slane %v1504, 1
    %v1507 = vsel %vm1279, %v1502, %v1506
    %v1509 = vshrl.u32 %v1169, 16
    %v1511 = vshll.u32 %v1169, 16
    %v1513 = vrot.slane %v1511, 1
    %v1514 = vor.u32 %v1509, %v1513
    %v1516 = vshll.u32 %v1234, 16
    %v1518 = vrot.slane %v1516, 1
    %v1519 = vsel %vm1279, %v1514, %v1518
    %v1521 = vshrl.u32 %v1170, 16
    %v1523 = vshll.u32 %v1170, 16
    %v1525 = vrot.slane %v1523, 1
    %v1526 = vor.u32 %v1521, %v1525
    %v1528 = vshll.u32 %v1235, 16
    %v1530 = vrot.slane %v1528, 1
    %v1531 = vsel %vm1279, %v1526, %v1530
    %v1533 = vshrl.u32 %v1171, 16
    %v1535 = vshll.u32 %v1171, 16
    %v1537 = vrot.slane %v1535, 1
    %v1538 = vor.u32 %v1533, %v1537
    %v1540 = vshll.u32 %v1236, 16
    %v1542 = vrot.slane %v1540, 1
    %v1543 = vsel %vm1279, %v1538, %v1542
    %v1545 = vshrl.u32 %v1172, 16
    %v1547 = vshll.u32 %v1172, 16
    %v1549 = vrot.slane %v1547, 1
    %v1550 = vor.u32 %v1545, %v1549
    %v1552 = vshll.u32 %v1237, 16
    %v1554 = vrot.slane %v1552, 1
    %v1555 = vsel %vm1279, %v1550, %v1554
    %v1557 = vshrl.u32 %v1173, 16
    %v1559 = vshll.u32 %v1173, 16
    %v1561 = vrot.slane %v1559, 1
    %v1562 = vor.u32 %v1557, %v1561
    %v1564 = vshll.u32 %v1238, 16
    %v1566 = vrot.slane %v1564, 1
    %v1567 = vsel %vm1279, %v1562, %v1566
    %v1569 = vshrl.u32 %v1174, 16
    %v1571 = vshll.u32 %v1174, 16
    %v1573 = vrot.slane %v1571, 1
    %v1574 = vor.u32 %v1569, %v1573
    %v1576 = vshll.u32 %v1239, 16
    %v1578 = vrot.slane %v1576, 1
    %v1579 = vsel %vm1279, %v1574, %v1578
    %v1581 = vshrl.u32 %v1175, 16
    %v1583 = vshll.u32 %v1175, 16
    %v1585 = vrot.slane %v1583, 1
    %v1586 = vor.u32 %v1581, %v1585
    %v1588 = vshll.u32 %v1240, 16
    %v1590 = vrot.slane %v1588, 1
    %v1591 = vsel %vm1279, %v1586, %v1590
    %v1593 = vshrl.u32 %v1176, 16
    %v1595 = vshll.u32 %v1176, 16
    %v1597 = vrot.slane %v1595, 1
    %v1598 = vor.u32 %v1593, %v1597
    %v1600 = vshll.u32 %v1241, 16
    %v1602 = vrot.slane %v1600, 1
    %v1603 = vsel %vm1279, %v1598, %v1602
    %v1605 = vshrl.u32 %v1177, 16
    %v1607 = vshll.u32 %v1177, 16
    %v1609 = vrot.slane %v1607, 1
    %v1610 = vor.u32 %v1605, %v1609
    %v1612 = vshll.u32 %v1242, 16
    %v1614 = vrot.slane %v1612, 1
    %v1615 = vsel %vm1279, %v1610, %v1614
    %v1617 = vshrl.u32 %v1178, 16
    %v1619 = vshll.u32 %v1178, 16
    %v1621 = vrot.slane %v1619, 1
    %v1622 = vor.u32 %v1617, %v1621
    %v1624 = vshll.u32 %v1243, 16
    %v1626 = vrot.slane %v1624, 1
    %v1627 = vsel %vm1279, %v1622, %v1626
    %v1629 = vshrl.u32 %v1179, 16
    %v1631 = vshll.u32 %v1179, 16
    %v1633 = vrot.slane %v1631, 1
    %v1634 = vor.u32 %v1629, %v1633
    %v1636 = vshll.u32 %v1244, 16
    %v1638 = vrot.slane %v1636, 1
    %v1639 = vsel %vm1279, %v1634, %v1638
    %v1641 = vshrl.u32 %v1180, 16
    %v1643 = vshll.u32 %v1180, 16
    %v1645 = vrot.slane %v1643, 1
    %v1646 = vor.u32 %v1641, %v1645
    %v1648 = vshll.u32 %v1245, 16
    %v1650 = vrot.slane %v1648, 1
    %v1651 = vsel %vm1279, %v1646, %v1650
    %v1653 = vshrl.u32 %v1182, 16
    %v1655 = vshll.u32 %v1182, 16
    %v1657 = vrot.slane %v1655, 1
    %v1658 = vor.u32 %v1653, %v1657
    %v1660 = vshll.u32 %v1247, 16
    %v1662 = vrot.slane %v1660, 1
    %v1663 = vsel %vm1279, %v1658, %v1662
    %v1665 = vshrl.u32 %v1183, 16
    %v1667 = vshll.u32 %v1183, 16
    %v1669 = vrot.slane %v1667, 1
    %v1670 = vor.u32 %v1665, %v1669
    %v1672 = vshll.u32 %v1248, 16
    %v1674 = vrot.slane %v1672, 1
    %v1675 = vsel %vm1279, %v1670, %v1674
    %v1677 = vshrl.u32 %v1184, 16
    %v1679 = vshll.u32 %v1184, 16
    %v1681 = vrot.slane %v1679, 1
    %v1682 = vor.u32 %v1677, %v1681
    %v1684 = vshll.u32 %v1249, 16
    %v1686 = vrot.slane %v1684, 1
    %v1687 = vsel %vm1279, %v1682, %v1686
    %v1689 = vshrl.u32 %v1185, 16
    %v1691 = vshll.u32 %v1185, 16
    %v1693 = vrot.slane %v1691, 1
    %v1694 = vor.u32 %v1689, %v1693
    %v1696 = vshll.u32 %v1250, 16
    %v1698 = vrot.slane %v1696, 1
    %v1699 = vsel %vm1279, %v1694, %v1698
    %v1701 = vshrl.u32 %v1186, 16
    %v1703 = vshll.u32 %v1186, 16
    %v1705 = vrot.slane %v1703, 1
    %v1706 = vor.u32 %v1701, %v1705
    %v1708 = vshll.u32 %v1251, 16
    %v1710 = vrot.slane %v1708, 1
    %v1711 = vsel %vm1279, %v1706, %v1710
    %v1713 = vshrl.u32 %v1187, 16
    %v1715 = vshll.u32 %v1187, 16
    %v1717 = vrot.slane %v1715, 1
    %v1718 = vor.u32 %v1713, %v1717
    %v1720 = vshll.u32 %v1252, 16
    %v1722 = vrot.slane %v1720, 1
    %v1723 = vsel %vm1279, %v1718, %v1722
    %v1725 = vshrl.u32 %v1188, 16
    %v1727 = vshll.u32 %v1188, 16
    %v1729 = vrot.slane %v1727, 1
    %v1730 = vor.u32 %v1725, %v1729
    %v1732 = vshll.u32 %v1253, 16
    %v1734 = vrot.slane %v1732, 1
    %v1735 = vsel %vm1279, %v1730, %v1734
    %v1737 = vshrl.u32 %v1189, 16
    %v1739 = vshll.u32 %v1189, 16
    %v1741 = vrot.slane %v1739, 1
    %v1742 = vor.u32 %v1737, %v1741
    %v1744 = vshll.u32 %v1254, 16
    %v1746 = vrot.slane %v1744, 1
    %v1747 = vsel %vm1279, %v1742, %v1746
    %v1749 = vshrl.u32 %v1190, 16
    %v1751 = vshll.u32 %v1190, 16
    %v1753 = vrot.slane %v1751, 1
    %v1754 = vor.u32 %v1749, %v1753
    %v1756 = vshll.u32 %v1255, 16
    %v1758 = vrot.slane %v1756, 1
    %v1759 = vsel %vm1279, %v1754, %v1758
    %v1761 = vshrl.u32 %v1191, 16
    %v1763 = vshll.u32 %v1191, 16
    %v1765 = vrot.slane %v1763, 1
    %v1766 = vor.u32 %v1761, %v1765
    %v1768 = vshll.u32 %v1256, 16
    %v1770 = vrot.slane %v1768, 1
    %v1771 = vsel %vm1279, %v1766, %v1770
    %v1773 = vshrl.u32 %v1192, 16
    %v1775 = vshll.u32 %v1192, 16
    %v1777 = vrot.slane %v1775, 1
    %v1778 = vor.u32 %v1773, %v1777
    %v1780 = vshll.u32 %v1257, 16
    %v1782 = vrot.slane %v1780, 1
    %v1783 = vsel %vm1279, %v1778, %v1782
    %v1785 = vshrl.u32 %v1193, 16
    %v1787 = vshll.u32 %v1193, 16
    %v1789 = vrot.slane %v1787, 1
    %v1790 = vor.u32 %v1785, %v1789
    %v1792 = vshll.u32 %v1258, 16
    %v1794 = vrot.slane %v1792, 1
    %v1795 = vsel %vm1279, %v1790, %v1794
    %v1797 = vshrl.u32 %v1194, 16
    %v1799 = vshll.u32 %v1194, 16
    %v1801 = vrot.slane %v1799, 1
    %v1802 = vor.u32 %v1797, %v1801
    %v1804 = vshll.u32 %v1259, 16
    %v1806 = vrot.slane %v1804, 1
    %v1807 = vsel %vm1279, %v1802, %v1806
    %v1809 = vshrl.u32 %v1195, 16
    %v1811 = vshll.u32 %v1195, 16
    %v1813 = vrot.slane %v1811, 1
    %v1814 = vor.u32 %v1809, %v1813
    %v1816 = vshll.u32 %v1260, 16
    %v1818 = vrot.slane %v1816, 1
    %v1819 = vsel %vm1279, %v1814, %v1818
    %v1821 = vshrl.u32 %v1196, 16
    %v1823 = vshll.u32 %v1196, 16
    %v1825 = vrot.slane %v1823, 1
    %v1826 = vor.u32 %v1821, %v1825
    %v1828 = vshll.u32 %v1261, 16
    %v1830 = vrot.slane %v1828, 1
    %v1831 = vsel %vm1279, %v1826, %v1830
    %v1833 = vshrl.u32 %v1198, 16
    %v1835 = vshll.u32 %v1198, 16
    %v1837 = vrot.slane %v1835, 1
    %v1838 = vor.u32 %v1833, %v1837
    %v1840 = vshll.u32 %v1263, 16
    %v1842 = vrot.slane %v1840, 1
    %v1843 = vsel %vm1279, %v1838, %v1842
    %v1845 = vshrl.u32 %v1199, 16
    %v1847 = vshll.u32 %v1199, 16
    %v1849 = vrot.slane %v1847, 1
    %v1850 = vor.u32 %v1845, %v1849
    %v1852 = vshll.u32 %v1264, 16
    %v1854 = vrot.slane %v1852, 1
    %v1855 = vsel %vm1279, %v1850, %v1854
    %v1857 = vshrl.u32 %v1200, 16
    %v1859 = vshll.u32 %v1200, 16
    %v1861 = vrot.slane %v1859, 1
    %v1862 = vor.u32 %v1857, %v1861
    %v1864 = vshll.u32 %v1265, 16
    %v1866 = vrot.slane %v1864, 1
    %v1867 = vsel %vm1279, %v1862, %v1866
    %v1869 = vshrl.u32 %v1201, 16
    %v1871 = vshll.u32 %v1201, 16
    %v1873 = vrot.slane %v1871, 1
    %v1874 = vor.u32 %v1869, %v1873
    %v1876 = vshll.u32 %v1266, 16
    %v1878 = vrot.slane %v1876, 1
    %v1879 = vsel %vm1279, %v1874, %v1878
    %v1881 = vshrl.u32 %v1202, 16
    %v1883 = vshll.u32 %v1202, 16
    %v1885 = vrot.slane %v1883, 1
    %v1886 = vor.u32 %v1881, %v1885
    %v1888 = vshll.u32 %v1267, 16
    %v1890 = vrot.slane %v1888, 1
    %v1891 = vsel %vm1279, %v1886, %v1890
    %v1893 = vshrl.u32 %v1203, 16
    %v1895 = vshll.u32 %v1203, 16
    %v1897 = vrot.slane %v1895, 1
    %v1898 = vor.u32 %v1893, %v1897
    %v1900 = vshll.u32 %v1268, 16
    %v1902 = vrot.slane %v1900, 1
    %v1903 = vsel %vm1279, %v1898, %v1902
    %v1905 = vshrl.u32 %v1204, 16
    %v1907 = vshll.u32 %v1204, 16
    %v1909 = vrot.slane %v1907, 1
    %v1910 = vor.u32 %v1905, %v1909
    %v1912 = vshll.u32 %v1269, 16
    %v1914 = vrot.slane %v1912, 1
    %v1915 = vsel %vm1279, %v1910, %v1914
    %v1917 = vshrl.u32 %v1205, 16
    %v1919 = vshll.u32 %v1205, 16
    %v1921 = vrot.slane %v1919, 1
    %v1922 = vor.u32 %v1917, %v1921
    %v1924 = vshll.u32 %v1270, 16
    %v1926 = vrot.slane %v1924, 1
    %v1927 = vsel %vm1279, %v1922, %v1926
    %v1929 = vshrl.u32 %v1206, 16
    %v1931 = vshll.u32 %v1206, 16
    %v1933 = vrot.slane %v1931, 1
    %v1934 = vor.u32 %v1929, %v1933
    %v1936 = vshll.u32 %v1271, 16
    %v1938 = vrot.slane %v1936, 1
    %v1939 = vsel %vm1279, %v1934, %v1938
    %v1941 = vshrl.u32 %v1207, 16
    %v1943 = vshll.u32 %v1207, 16
    %v1945 = vrot.slane %v1943, 1
    %v1946 = vor.u32 %v1941, %v1945
    %v1948 = vshll.u32 %v1272, 16
    %v1950 = vrot.slane %v1948, 1
    %v1951 = vsel %vm1279, %v1946, %v1950
    %v1953 = vshrl.u32 %v1208, 16
    %v1955 = vshll.u32 %v1208, 16
    %v1957 = vrot.slane %v1955, 1
    %v1958 = vor.u32 %v1953, %v1957
    %v1960 = vshll.u32 %v1273, 16
    %v1962 = vrot.slane %v1960, 1
    %v1963 = vsel %vm1279, %v1958, %v1962
    %v1965 = vshrl.u32 %v1209, 16
    %v1967 = vshll.u32 %v1209, 16
    %v1969 = vrot.slane %v1967, 1
    %v1970 = vor.u32 %v1965, %v1969
    %v1972 = vshll.u32 %v1274, 16
    %v1974 = vrot.slane %v1972, 1
    %v1975 = vsel %vm1279, %v1970, %v1974
    %v1977 = vshrl.u32 %v1210, 16
    %v1979 = vshll.u32 %v1210, 16
    %v1981 = vrot.slane %v1979, 1
    %v1982 = vor.u32 %v1977, %v1981
    %v1984 = vshll.u32 %v1275, 16
    %v1986 = vrot.slane %v1984, 1
    %v1987 = vsel %vm1279, %v1982, %v1986
    %v1989 = vshrl.u32 %v1211, 16
    %v1991 = vshll.u32 %v1211, 16
    %v1993 = vrot.slane %v1991, 1
    %v1994 = vor.u32 %v1989, %v1993
    %v1996 = vshll.u32 %v1276, 16
    %v1998 = vrot.slane %v1996, 1
    %v1999 = vsel %vm1279, %v1994, %v1998
    %v2001 = vshrl.u32 %v1212, 16
    %v2003 = vshll.u32 %v1212, 16
    %v2005 = vrot.slane %v2003, 1
    %v2006 = vor.u32 %v2001, %v2005
    %v2008 = vshll.u32 %v1277, 16
    %v2010 = vrot.slane %v2008, 1
    %v2011 = vsel %vm1279, %v2006, %v2010
    %vm2195 = vcmask 1046528
    %v2196 = vrot.slane %v1149, 1
    %v2197 = vrot.slane %v1214, 1
    %v2198 = vsel %vm2195, %v2196, %v2197
    %v2199 = vrot.slane %v1150, 1
    %v2200 = vrot.slane %v1215, 1
    %v2201 = vsel %vm2195, %v2199, %v2200
    %v2202 = vrot.slane %v1151, 1
    %v2203 = vrot.slane %v1216, 1
    %v2204 = vsel %vm2195, %v2202, %v2203
    %v2205 = vrot.slane %v1152, 1
    %v2206 = vrot.slane %v1217, 1
    %v2207 = vsel %vm2195, %v2205, %v2206
    %v2208 = vrot.slane %v1153, 1
    %v2209 = vrot.slane %v1218, 1
    %v2210 = vsel %vm2195, %v2208, %v2209
    %v2211 = vrot.slane %v1154, 1
    %v2212 = vrot.slane %v1219, 1
    %v2213 = vsel %vm2195, %v2211, %v2212
    %v2214 = vrot.slane %v1155, 1
    %v2215 = vrot.slane %v1220, 1
    %v2216 = vsel %vm2195, %v2214, %v2215
    %v2217 = vrot.slane %v1156, 1
    %v2218 = vrot.slane %v1221, 1
    %v2219 = vsel %vm2195, %v2217, %v2218
    %v2220 = vrot.slane %v1157, 1
    %v2221 = vrot.slane %v1222, 1
    %v2222 = vsel %vm2195, %v2220, %v2221
    %v2223 = vrot.slane %v1158, 1
    %v2224 = vrot.slane %v1223, 1
    %v2225 = vsel %vm2195, %v2223, %v2224
    %v2226 = vrot.slane %v1159, 1
    %v2227 = vrot.slane %v1224, 1
    %v2228 = vsel %vm2195, %v2226, %v2227
    %v2229 = vrot.slane %v1160, 1
    %v2230 = vrot.slane %v1225, 1
    %v2231 = vsel %vm2195, %v2229, %v2230
    %v2232 = vrot.slane %v1161, 1
    %v2233 = vrot.slane %v1226, 1
    %v2234 = vsel %vm2195, %v2232, %v2233
    %v2235 = vrot.slane %v1162, 1
    %v2236 = vrot.slane %v1227, 1
    %v2237 = vsel %vm2195, %v2235, %v2236
    %v2238 = vrot.slane %v1163, 1
    %v2239 = vrot.slane %v1228, 1
    %v2240 = vsel %vm2195, %v2238, %v2239
    %v2241 = vrot.slane %v1164, 1
    %v2242 = vrot.slane %v1229, 1
    %v2243 = vsel %vm2195, %v2241, %v2242
    %v2244 = vrot.slane %v1166, 1
    %v2245 = vrot.slane %v1231, 1
    %v2246 = vsel %vm2195, %v2244, %v2245
    %v2247 = vrot.slane %v1167, 1
    %v2248 = vrot.slane %v1232, 1
    %v2249 = vsel %vm2195, %v2247, %v2248
    %v2250 = vrot.slane %v1168, 1
    %v2251 = vrot.slane %v1233, 1
    %v2252 = vsel %vm2195, %v2250, %v2251
    %v2253 = vrot.slane %v1169, 1
    %v2254 = vrot.slane %v1234, 1
    %v2255 = vsel %vm2195, %v2253, %v2254
    %v2256 = vrot.slane %v1170, 1
    %v2257 = vrot.slane %v1235, 1
    %v2258 = vsel %vm2195, %v2256, %v2257
    %v2259 = vrot.slane %v1171, 1
    %v2260 = vrot.slane %v1236, 1
    %v2261 = vsel %vm2195, %v2259, %v2260
    %v2262 = vrot.slane %v1172, 1
    %v2263 = vrot.slane %v1237, 1
    %v2264 = vsel %vm2195, %v2262, %v2263
    %v2265 = vrot.slane %v1173, 1
    %v2266 = vrot.slane %v1238, 1
    %v2267 = vsel %vm2195, %v2265, %v2266
    %v2268 = vrot.slane %v1174, 1
    %v2269 = vrot.slane %v1239, 1
    %v2270 = vsel %vm2195, %v2268, %v2269
    %v2271 = vrot.slane %v1175, 1
    %v2272 = vrot.slane %v1240, 1
    %v2273 = vsel %vm2195, %v2271, %v2272
    %v2274 = vrot.slane %v1176, 1
    %v2275 = vrot.slane %v1241, 1
    %v2276 = vsel %vm2195, %v2274, %v2275
    %v2277 = vrot.slane %v1177, 1
    %v2278 = vrot.slane %v1242, 1
    %v2279 = vsel %vm2195, %v2277, %v2278
    %v2280 = vrot.slane %v1178, 1
    %v2281 = vrot.slane %v1243, 1
    %v2282 = vsel %vm2195, %v2280, %v2281
    %v2283 = vrot.slane %v1179, 1
    %v2284 = vrot.slane %v1244, 1
    %v2285 = vsel %vm2195, %v2283, %v2284
    %v2286 = vrot.slane %v1180, 1
    %v2287 = vrot.slane %v1245, 1
    %v2288 = vsel %vm2195, %v2286, %v2287
    %v2289 = vrot.slane %v1182, 1
    %v2290 = vrot.slane %v1247, 1
    %v2291 = vsel %vm2195, %v2289, %v2290
    %v2292 = vrot.slane %v1183, 1
    %v2293 = vrot.slane %v1248, 1
    %v2294 = vsel %vm2195, %v2292, %v2293
    %v2295 = vrot.slane %v1184, 1
    %v2296 = vrot.slane %v1249, 1
    %v2297 = vsel %vm2195, %v2295, %v2296
    %v2298 = vrot.slane %v1185, 1
    %v2299 = vrot.slane %v1250, 1
    %v2300 = vsel %vm2195, %v2298, %v2299
    %v2301 = vrot.slane %v1186, 1
    %v2302 = vrot.slane %v1251, 1
    %v2303 = vsel %vm2195, %v2301, %v2302
    %v2304 = vrot.slane %v1187, 1
    %v2305 = vrot.slane %v1252, 1
    %v2306 = vsel %vm2195, %v2304, %v2305
    %v2307 = vrot.slane %v1188, 1
    %v2308 = vrot.slane %v1253, 1
    %v2309 = vsel %vm2195, %v2307, %v2308
    %v2310 = vrot.slane %v1189, 1
    %v2311 = vrot.slane %v1254, 1
    %v2312 = vsel %vm2195, %v2310, %v2311
    %v2313 = vrot.slane %v1190, 1
    %v2314 = vrot.slane %v1255, 1
    %v2315 = vsel %vm2195, %v2313, %v2314
    %v2316 = vrot.slane %v1191, 1
    %v2317 = vrot.slane %v1256, 1
    %v2318 = vsel %vm2195, %v2316, %v2317
    %v2319 = vrot.slane %v1192, 1
    %v2320 = vrot.slane %v1257, 1
    %v2321 = vsel %vm2195, %v2319, %v2320
    %v2322 = vrot.slane %v1193, 1
    %v2323 = vrot.slane %v1258, 1
    %v2324 = vsel %vm2195, %v2322, %v2323
    %v2325 = vrot.slane %v1194, 1
    %v2326 = vrot.slane %v1259, 1
    %v2327 = vsel %vm2195, %v2325, %v2326
    %v2328 = vrot.slane %v1195, 1
    %v2329 = vrot.slane %v1260, 1
    %v2330 = vsel %vm2195, %v2328, %v2329
    %v2331 = vrot.slane %v1196, 1
    %v2332 = vrot.slane %v1261, 1
    %v2333 = vsel %vm2195, %v2331, %v2332
    %v2334 = vrot.slane %v1198, 1
    %v2335 = vrot.slane %v1263, 1
    %v2336 = vsel %vm2195, %v2334, %v2335
    %v2337 = vrot.slane %v1199, 1
    %v2338 = vrot.slane %v1264, 1
    %v2339 = vsel %vm2195, %v2337, %v2338
    %v2340 = vrot.slane %v1200, 1
    %v2341 = vrot.slane %v1265, 1
    %v2342 = vsel %vm2195, %v2340, %v2341
    %v2343 = vrot.slane %v1201, 1
    %v2344 = vrot.slane %v1266, 1
    %v2345 = vsel %vm2195, %v2343, %v2344
    %v2346 = vrot.slane %v1202, 1
    %v2347 = vrot.slane %v1267, 1
    %v2348 = vsel %vm2195, %v2346, %v2347
    %v2349 = vrot.slane %v1203, 1
    %v2350 = vrot.slane %v1268, 1
    %v2351 = vsel %vm2195, %v2349, %v2350
    %v2352 = vrot.slane %v1204, 1
    %v2353 = vrot.slane %v1269, 1
    %v2354 = vsel %vm2195, %v2352, %v2353
    %v2355 = vrot.slane %v1205, 1
    %v2356 = vrot.slane %v1270, 1
    %v2357 = vsel %vm2195, %v2355, %v2356
    %v2358 = vrot.slane %v1206, 1
    %v2359 = vrot.slane %v1271, 1
    %v2360 = vsel %vm2195, %v2358, %v2359
    %v2361 = vrot.slane %v1207, 1
    %v2362 = vrot.slane %v1272, 1
    %v2363 = vsel %vm2195, %v2361, %v2362
    %v2364 = vrot.slane %v1208, 1
    %v2365 = vrot.slane %v1273, 1
    %v2366 = vsel %vm2195, %v2364, %v2365
    %v2367 = vrot.slane %v1209, 1
    %v2368 = vrot.slane %v1274, 1
    %v2369 = vsel %vm2195, %v2367, %v2368
    %v2370 = vrot.slane %v1210, 1
    %v2371 = vrot.slane %v1275, 1
    %v2372 = vsel %vm2195, %v2370, %v2371
    %v2373 = vrot.slane %v1211, 1
    %v2374 = vrot.slane %v1276, 1
    %v2375 = vsel %vm2195, %v2373, %v2374
    %v2376 = vrot.slane %v1212, 1
    %v2377 = vrot.slane %v1277, 1
    %v2378 = vsel %vm2195, %v2376, %v2377
    %v2441 = vshrl.u32 %v1165, 16
    %v2443 = vshll.u32 %v1165, 16
    %v2445 = vrot.slane %v2443, 1
    %v2446 = vor.u32 %v2441, %v2445
    %v2448 = vshll.u32 %v1230, 16
    %v2450 = vrot.slane %v2448, 1
    %v2451 = vsel %vm1279, %v2446, %v2450
    %v2453 = vshrl.u32 %v1181, 16
    %v2455 = vshll.u32 %v1181, 16
    %v2457 = vrot.slane %v2455, 1
    %v2458 = vor.u32 %v2453, %v2457
    %v2460 = vshll.u32 %v1246, 16
    %v2462 = vrot.slane %v2460, 1
    %v2463 = vsel %vm1279, %v2458, %v2462
    %v2465 = vshrl.u32 %v1197, 16
    %v2467 = vshll.u32 %v1197, 16
    %v2469 = vrot.slane %v2467, 1
    %v2470 = vor.u32 %v2465, %v2469
    %v2472 = vshll.u32 %v1262, 16
    %v2474 = vrot.slane %v2472, 1
    %v2475 = vsel %vm1279, %v2470, %v2474
    %v2477 = vshrl.u32 %v1213, 16
    %v2479 = vshll.u32 %v1213, 16
    %v2481 = vrot.slane %v2479, 1
    %v2482 = vor.u32 %v2477, %v2481
    %v2484 = vshll.u32 %v1278, 16
    %v2486 = vrot.slane %v2484, 1
    %v2487 = vsel %vm1279, %v2482, %v2486
    %v2500 = vrot.slane %v1165, 1
    %v2501 = vrot.slane %v1230, 1
    %v2502 = vsel %vm2195, %v2500, %v2501
    %v2503 = vrot.slane %v1181, 1
    %v2504 = vrot.slane %v1246, 1
    %v2505 = vsel %vm2195, %v2503, %v2504
    %v2506 = vrot.slane %v1197, 1
    %v2507 = vrot.slane %v1262, 1
    %v2508 = vsel %vm2195, %v2506, %v2507
    %v2509 = vrot.slane %v1213, 1
    %v2510 = vrot.slane %v1278, 1
    %v2511 = vsel %vm2195, %v2509, %v2510
    %v2516 = vld [vmem:[#allocation7] sm:$0xf]
    %v2517 = vld [vmem:[#allocation7 + $0x4] sm:$0xf]
    %v2518 = vld [vmem:[#allocation7 + $0x8] sm:$0xf]
    %v2519 = vld [vmem:[#allocation7 + $0xc] sm:$0xf]
    %v2520 = vld [vmem:[#allocation7 + $0x10] sm:$0xf]
    %v2521 = vld [vmem:[#allocation7 + $0x14] sm:$0xf]
    %v2522 = vld [vmem:[#allocation7 + $0x18] sm:$0xf]
    %v2523 = vld [vmem:[#allocation7 + $0x1c] sm:$0xf]
    %v2524 = vld [vmem:[#allocation7 + $0x20] sm:$0xf]
    %v2525 = vld [vmem:[#allocation7 + $0x24] sm:$0xf]
    %v2526 = vld [vmem:[#allocation7 + $0x28] sm:$0xf]
    %v2527 = vld [vmem:[#allocation7 + $0x2c] sm:$0xf]
    %v2528 = vld [vmem:[#allocation7 + $0x30] sm:$0xf]
    %v2529 = vld [vmem:[#allocation7 + $0x34] sm:$0xf]
    %v2530 = vld [vmem:[#allocation7 + $0x38] sm:$0xf]
    %v2531 = vld [vmem:[#allocation7 + $0x3c] sm:$0xf]
    %v2532 = vld [vmem:[#allocation7 + $0x40] sm:$0xf]
    %v2533 = vld [vmem:[#allocation7 + $0x44] sm:$0xf]
    %v2534 = vld [vmem:[#allocation7 + $0x48] sm:$0xf]
    %v2535 = vld [vmem:[#allocation7 + $0x4c] sm:$0xf]
    %v2536 = vld [vmem:[#allocation7 + $0x50] sm:$0xf]
    %v2537 = vld [vmem:[#allocation7 + $0x54] sm:$0xf]
    %v2538 = vld [vmem:[#allocation7 + $0x58] sm:$0xf]
    %v2539 = vld [vmem:[#allocation7 + $0x5c] sm:$0xf]
    %v2540 = vld [vmem:[#allocation7 + $0x60] sm:$0xf]
    %v2541 = vld [vmem:[#allocation7 + $0x64] sm:$0xf]
    %v2542 = vld [vmem:[#allocation7 + $0x68] sm:$0xf]
    %v2543 = vld [vmem:[#allocation7 + $0x6c] sm:$0xf]
    %v2544 = vld [vmem:[#allocation7 + $0x70] sm:$0xf]
    %v2545 = vld [vmem:[#allocation7 + $0x74] sm:$0xf]
    %v2546 = vld [vmem:[#allocation7 + $0x78] sm:$0xf]
    %v2547 = vld [vmem:[#allocation7 + $0x7c] sm:$0xf]
    %v2548 = vld [vmem:[#allocation7 + $0x80] sm:$0xf]
    %v2549 = vld [vmem:[#allocation7 + $0x84] sm:$0xf]
    %v2550 = vld [vmem:[#allocation7 + $0x88] sm:$0xf]
    %v2551 = vld [vmem:[#allocation7 + $0x8c] sm:$0xf]
    %v2552 = vld [vmem:[#allocation7 + $0x90] sm:$0xf]
    %v2553 = vld [vmem:[#allocation7 + $0x94] sm:$0xf]
    %v2554 = vld [vmem:[#allocation7 + $0x98] sm:$0xf]
    %v2555 = vld [vmem:[#allocation7 + $0x9c] sm:$0xf]
    %v2556 = vld [vmem:[#allocation7 + $0xa0] sm:$0xf]
    %v2557 = vld [vmem:[#allocation7 + $0xa4] sm:$0xf]
    %v2558 = vld [vmem:[#allocation7 + $0xa8] sm:$0xf]
    %v2559 = vld [vmem:[#allocation7 + $0xac] sm:$0xf]
    %v2560 = vld [vmem:[#allocation7 + $0xb0] sm:$0xf]
    %v2561 = vld [vmem:[#allocation7 + $0xb4] sm:$0xf]
    %v2562 = vld [vmem:[#allocation7 + $0xb8] sm:$0xf]
    %v2563 = vld [vmem:[#allocation7 + $0xbc] sm:$0xf]
    %v2564 = vld [vmem:[#allocation7 + $0xc0] sm:$0xf]
    %v2565 = vld [vmem:[#allocation7 + $0xc4] sm:$0xf]
    %v2566 = vld [vmem:[#allocation7 + $0xc8] sm:$0xf]
    %v2567 = vld [vmem:[#allocation7 + $0xcc] sm:$0xf]
    %v2568 = vld [vmem:[#allocation7 + $0xd0] sm:$0xf]
    %v2569 = vld [vmem:[#allocation7 + $0xd4] sm:$0xf]
    %v2570 = vld [vmem:[#allocation7 + $0xd8] sm:$0xf]
    %v2571 = vld [vmem:[#allocation7 + $0xdc] sm:$0xf]
    %v2572 = vld [vmem:[#allocation7 + $0xe0] sm:$0xf]
    %v2573 = vld [vmem:[#allocation7 + $0xe4] sm:$0xf]
    %v2574 = vld [vmem:[#allocation7 + $0xe8] sm:$0xf]
    %v2575 = vld [vmem:[#allocation7 + $0xec] sm:$0xf]
    %v2576 = vld [vmem:[#allocation7 + $0xf0] sm:$0xf]
    %v2577 = vld [vmem:[#allocation7 + $0xf4] sm:$0xf]
    %v2578 = vld [vmem:[#allocation7 + $0xf8] sm:$0xf]
    %v2579 = vld [vmem:[#allocation7 + $0xfc] sm:$0xf]
    %v2580 = vld [vmem:[#allocation7 + $0x100] sm:$0xf]
    %v2581 = vld [vmem:[#allocation7 + $0x104] sm:$0xf]
    %v2582 = vld [vmem:[#allocation7 + $0x108] sm:$0xf]
    %v2583 = vld [vmem:[#allocation7 + $0x10c] sm:$0xf]
    %v2584 = vld [vmem:[#allocation7 + $0x110] sm:$0xf]
    %v2585 = vld [vmem:[#allocation7 + $0x114] sm:$0xf]
    %v2586 = vld [vmem:[#allocation7 + $0x118] sm:$0xf]
    %v2587 = vld [vmem:[#allocation7 + $0x11c] sm:$0xf]
    %v2588 = vld [vmem:[#allocation7 + $0x120] sm:$0xf]
    %v2589 = vld [vmem:[#allocation7 + $0x124] sm:$0xf]
    %v2590 = vld [vmem:[#allocation7 + $0x128] sm:$0xf]
    %v2591 = vld [vmem:[#allocation7 + $0x12c] sm:$0xf]
    %v2592 = vld [vmem:[#allocation7 + $0x130] sm:$0xf]
    %v2593 = vld [vmem:[#allocation7 + $0x134] sm:$0xf]
    %v2594 = vld [vmem:[#allocation7 + $0x138] sm:$0xf]
    %v2595 = vld [vmem:[#allocation7 + $0x13c] sm:$0xf]
    %v2596 = vld [vmem:[#allocation7 + $0x140] sm:$0xf]
    %v2597 = vld [vmem:[#allocation7 + $0x144] sm:$0xf]
    %v2598 = vld [vmem:[#allocation7 + $0x148] sm:$0xf]
    %v2599 = vld [vmem:[#allocation7 + $0x14c] sm:$0xf]
    %v2600 = vld [vmem:[#allocation7 + $0x150] sm:$0xf]
    %v2601 = vld [vmem:[#allocation7 + $0x154] sm:$0xf]
    %v2602 = vld [vmem:[#allocation7 + $0x158] sm:$0xf]
    %v2603 = vld [vmem:[#allocation7 + $0x15c] sm:$0xf]
    %v2604 = vld [vmem:[#allocation7 + $0x160] sm:$0xf]
    %v2605 = vld [vmem:[#allocation7 + $0x164] sm:$0xf]
    %v2606 = vld [vmem:[#allocation7 + $0x168] sm:$0xf]
    %v2607 = vld [vmem:[#allocation7 + $0x16c] sm:$0xf]
    %v2608 = vld [vmem:[#allocation7 + $0x170] sm:$0xf]
    %v2609 = vld [vmem:[#allocation7 + $0x174] sm:$0xf]
    %v2610 = vld [vmem:[#allocation7 + $0x178] sm:$0xf]
    %v2611 = vld [vmem:[#allocation7 + $0x17c] sm:$0xf]
    %v2612 = vld [vmem:[#allocation7 + $0x180] sm:$0xf]
    %v2613 = vld [vmem:[#allocation7 + $0x184] sm:$0xf]
    %v2614 = vld [vmem:[#allocation7 + $0x188] sm:$0xf]
    %v2615 = vld [vmem:[#allocation7 + $0x18c] sm:$0xf]
    %v2616 = vld [vmem:[#allocation7 + $0x190] sm:$0xf]
    %v2617 = vld [vmem:[#allocation7 + $0x194] sm:$0xf]
    %v2618 = vld [vmem:[#allocation7 + $0x198] sm:$0xf]
    %v2619 = vld [vmem:[#allocation7 + $0x19c] sm:$0xf]
    %v2620 = vld [vmem:[#allocation7 + $0x1a0] sm:$0xf]
    %v2621 = vld [vmem:[#allocation7 + $0x1a4] sm:$0xf]
    %v2622 = vld [vmem:[#allocation7 + $0x1a8] sm:$0xf]
    %v2623 = vld [vmem:[#allocation7 + $0x1ac] sm:$0xf]
    %v2624 = vld [vmem:[#allocation7 + $0x1b0] sm:$0xf]
    %v2625 = vld [vmem:[#allocation7 + $0x1b4] sm:$0xf]
    %v2626 = vld [vmem:[#allocation7 + $0x1b8] sm:$0xf]
    %v2627 = vld [vmem:[#allocation7 + $0x1bc] sm:$0xf]
    %v2628 = vld [vmem:[#allocation7 + $0x1c0] sm:$0xf]
    %v2629 = vld [vmem:[#allocation7 + $0x1c4] sm:$0xf]
    %v2630 = vld [vmem:[#allocation7 + $0x1c8] sm:$0xf]
    %v2631 = vld [vmem:[#allocation7 + $0x1cc] sm:$0xf]
    %v2632 = vld [vmem:[#allocation7 + $0x1d0] sm:$0xf]
    %v2633 = vld [vmem:[#allocation7 + $0x1d4] sm:$0xf]
    %v2634 = vld [vmem:[#allocation7 + $0x1d8] sm:$0xf]
    %v2635 = vld [vmem:[#allocation7 + $0x1dc] sm:$0xf]
    %v2636 = vld [vmem:[#allocation7 + $0x1e0] sm:$0xf]
    %v2637 = vld [vmem:[#allocation7 + $0x1e4] sm:$0xf]
    %v2638 = vld [vmem:[#allocation7 + $0x1e8] sm:$0xf]
    %v2639 = vld [vmem:[#allocation7 + $0x1ec] sm:$0xf]
    %v2640 = vld [vmem:[#allocation7 + $0x1f0] sm:$0xf]
    %v2641 = vld [vmem:[#allocation7 + $0x1f4] sm:$0xf]
    %v2642 = vld [vmem:[#allocation7 + $0x1f8] sm:$0xf]
    %v2643 = vld [vmem:[#allocation7 + $0x1fc] sm:$0xf]
    %v2644 = vld [vmem:[#allocation7 + $0x200] sm:$0xf]
    %v2645 = vld [vmem:[#allocation7 + $0x204] sm:$0xf]
    %v2646 = vld [vmem:[#allocation7 + $0x208] sm:$0xf]
    %v2647 = vld [vmem:[#allocation7 + $0x20c] sm:$0xf]
    %v2648 = vld [vmem:[#allocation7 + $0x210] sm:$0xf]
    %v2649 = vld [vmem:[#allocation7 + $0x214] sm:$0xf]
    %v2650 = vld [vmem:[#allocation7 + $0x218] sm:$0xf]
    %v2651 = vld [vmem:[#allocation7 + $0x21c] sm:$0xf]
    %v2652 = vld [vmem:[#allocation7 + $0x220] sm:$0xf]
    %v2653 = vld [vmem:[#allocation7 + $0x224] sm:$0xf]
    %v2654 = vld [vmem:[#allocation7 + $0x228] sm:$0xf]
    %v2655 = vld [vmem:[#allocation7 + $0x22c] sm:$0xf]
    %v2656 = vld [vmem:[#allocation7 + $0x230] sm:$0xf]
    %v2657 = vld [vmem:[#allocation7 + $0x234] sm:$0xf]
    %v2658 = vld [vmem:[#allocation7 + $0x238] sm:$0xf]
    %v2659 = vld [vmem:[#allocation7 + $0x23c] sm:$0xf]
    %v2804 = vunpack.c.l.b16 %v2516
    %v2805 = vunpack.c.l.b16 %v2517
    %v2806 = vunpack.c.l.b16 %v2518
    %v2807 = vunpack.c.l.b16 %v2519
    %v2808 = vunpack.c.l.b16 %v2520
    %v2809 = vunpack.c.l.b16 %v2521
    %v2810 = vunpack.c.l.b16 %v2522
    %v2811 = vunpack.c.l.b16 %v2523
    %v2812 = vunpack.c.l.b16 %v2524
    %v2813 = vunpack.c.l.b16 %v2525
    %v2814 = vunpack.c.l.b16 %v2526
    %v2815 = vunpack.c.l.b16 %v2527
    %v2816 = vunpack.c.l.b16 %v2528
    %v2817 = vunpack.c.l.b16 %v2529
    %v2818 = vunpack.c.l.b16 %v2530
    %v2819 = vunpack.c.l.b16 %v2531
    %v2820 = vunpack.c.l.b16 %v2532
    %v2821 = vunpack.c.l.b16 %v2533
    %v2822 = vunpack.c.l.b16 %v2534
    %v2823 = vunpack.c.l.b16 %v2535
    %v2824 = vunpack.c.l.b16 %v2536
    %v2825 = vunpack.c.l.b16 %v2537
    %v2826 = vunpack.c.l.b16 %v2538
    %v2827 = vunpack.c.l.b16 %v2539
    %v2828 = vunpack.c.l.b16 %v2540
    %v2829 = vunpack.c.l.b16 %v2541
    %v2830 = vunpack.c.l.b16 %v2542
    %v2831 = vunpack.c.l.b16 %v2543
    %v2832 = vunpack.c.l.b16 %v2544
    %v2833 = vunpack.c.l.b16 %v2545
    %v2834 = vunpack.c.l.b16 %v2546
    %v2835 = vunpack.c.l.b16 %v2547
    %v2836 = vunpack.c.l.b16 %v2548
    %v2837 = vunpack.c.l.b16 %v2549
    %v2838 = vunpack.c.l.b16 %v2550
    %v2839 = vunpack.c.l.b16 %v2551
    %v2840 = vunpack.c.l.b16 %v2552
    %v2841 = vunpack.c.l.b16 %v2553
    %v2842 = vunpack.c.l.b16 %v2554
    %v2843 = vunpack.c.l.b16 %v2555
    %v2844 = vunpack.c.l.b16 %v2556
    %v2845 = vunpack.c.l.b16 %v2557
    %v2846 = vunpack.c.l.b16 %v2558
    %v2847 = vunpack.c.l.b16 %v2559
    %v2848 = vunpack.c.l.b16 %v2560
    %v2849 = vunpack.c.l.b16 %v2561
    %v2850 = vunpack.c.l.b16 %v2562
    %v2851 = vunpack.c.l.b16 %v2563
    %v2852 = vunpack.c.l.b16 %v2564
    %v2853 = vunpack.c.l.b16 %v2565
    %v2854 = vunpack.c.l.b16 %v2566
    %v2855 = vunpack.c.l.b16 %v2567
    %v2856 = vunpack.c.l.b16 %v2568
    %v2857 = vunpack.c.l.b16 %v2569
    %v2858 = vunpack.c.l.b16 %v2570
    %v2859 = vunpack.c.l.b16 %v2571
    %v2860 = vunpack.c.l.b16 %v2572
    %v2861 = vunpack.c.l.b16 %v2573
    %v2862 = vunpack.c.l.b16 %v2574
    %v2863 = vunpack.c.l.b16 %v2575
    %v2864 = vunpack.c.l.b16 %v2576
    %v2865 = vunpack.c.l.b16 %v2577
    %v2866 = vunpack.c.l.b16 %v2578
    %v2867 = vunpack.c.l.b16 %v2579
    %v2868 = vunpack.c.l.b16 %v2580
    %v2869 = vunpack.c.l.b16 %v2581
    %v2870 = vunpack.c.l.b16 %v2582
    %v2871 = vunpack.c.l.b16 %v2583
    %v2872 = vunpack.c.l.b16 %v2584
    %v2873 = vunpack.c.l.b16 %v2585
    %v2874 = vunpack.c.l.b16 %v2586
    %v2875 = vunpack.c.l.b16 %v2587
    %v2876 = vunpack.c.l.b16 %v2588
    %v2877 = vunpack.c.l.b16 %v2589
    %v2878 = vunpack.c.l.b16 %v2590
    %v2879 = vunpack.c.l.b16 %v2591
    %v2880 = vunpack.c.l.b16 %v2592
    %v2881 = vunpack.c.l.b16 %v2593
    %v2882 = vunpack.c.l.b16 %v2594
    %v2883 = vunpack.c.l.b16 %v2595
    %v2884 = vunpack.c.l.b16 %v2596
    %v2885 = vunpack.c.l.b16 %v2597
    %v2886 = vunpack.c.l.b16 %v2598
    %v2887 = vunpack.c.l.b16 %v2599
    %v2888 = vunpack.c.l.b16 %v2600
    %v2889 = vunpack.c.l.b16 %v2601
    %v2890 = vunpack.c.l.b16 %v2602
    %v2891 = vunpack.c.l.b16 %v2603
    %v2892 = vunpack.c.l.b16 %v2604
    %v2893 = vunpack.c.l.b16 %v2605
    %v2894 = vunpack.c.l.b16 %v2606
    %v2895 = vunpack.c.l.b16 %v2607
    %v2896 = vunpack.c.l.b16 %v2608
    %v2897 = vunpack.c.l.b16 %v2609
    %v2898 = vunpack.c.l.b16 %v2610
    %v2899 = vunpack.c.l.b16 %v2611
    %v2900 = vunpack.c.l.b16 %v2612
    %v2901 = vunpack.c.l.b16 %v2613
    %v2902 = vunpack.c.l.b16 %v2614
    %v2903 = vunpack.c.l.b16 %v2615
    %v2904 = vunpack.c.l.b16 %v2616
    %v2905 = vunpack.c.l.b16 %v2617
    %v2906 = vunpack.c.l.b16 %v2618
    %v2907 = vunpack.c.l.b16 %v2619
    %v2908 = vunpack.c.l.b16 %v2620
    %v2909 = vunpack.c.l.b16 %v2621
    %v2910 = vunpack.c.l.b16 %v2622
    %v2911 = vunpack.c.l.b16 %v2623
    %v2912 = vunpack.c.l.b16 %v2624
    %v2913 = vunpack.c.l.b16 %v2625
    %v2914 = vunpack.c.l.b16 %v2626
    %v2915 = vunpack.c.l.b16 %v2627
    %v2916 = vunpack.c.l.b16 %v2628
    %v2917 = vunpack.c.l.b16 %v2629
    %v2918 = vunpack.c.l.b16 %v2630
    %v2919 = vunpack.c.l.b16 %v2631
    %v2920 = vunpack.c.l.b16 %v2632
    %v2921 = vunpack.c.l.b16 %v2633
    %v2922 = vunpack.c.l.b16 %v2634
    %v2923 = vunpack.c.l.b16 %v2635
    %v2924 = vunpack.c.l.b16 %v2636
    %v2925 = vunpack.c.l.b16 %v2637
    %v2926 = vunpack.c.l.b16 %v2638
    %v2927 = vunpack.c.l.b16 %v2639
    %v2928 = vunpack.c.l.b16 %v2640
    %v2929 = vunpack.c.l.b16 %v2641
    %v2930 = vunpack.c.l.b16 %v2642
    %v2931 = vunpack.c.l.b16 %v2643
    %v2932 = vunpack.c.l.b16 %v2644
    %v2933 = vunpack.c.l.b16 %v2645
    %v2934 = vunpack.c.l.b16 %v2646
    %v2935 = vunpack.c.l.b16 %v2647
    %v2936 = vunpack.c.l.b16 %v2648
    %v2937 = vunpack.c.l.b16 %v2649
    %v2938 = vunpack.c.l.b16 %v2650
    %v2939 = vunpack.c.l.b16 %v2651
    %v2940 = vunpack.c.l.b16 %v2652
    %v2941 = vunpack.c.l.b16 %v2653
    %v2942 = vunpack.c.l.b16 %v2654
    %v2943 = vunpack.c.l.b16 %v2655
    %v2944 = vunpack.c.l.b16 %v2656
    %v2945 = vunpack.c.l.b16 %v2657
    %v2946 = vunpack.c.l.b16 %v2658
    %v2947 = vunpack.c.l.b16 %v2659
    %v2948 = vpack.c.b16 %v2805, %v2804
    %v2949 = vpack.c.b16 %v2807, %v2806
    %v2950 = vpack.c.b16 %v2809, %v2808
    %v2951 = vpack.c.b16 %v2811, %v2810
    %v2952 = vpack.c.b16 %v2813, %v2812
    %v2953 = vpack.c.b16 %v2815, %v2814
    %v2954 = vpack.c.b16 %v2817, %v2816
    %v2955 = vpack.c.b16 %v2819, %v2818
    %v2956 = vpack.c.b16 %v2821, %v2820
    %v2957 = vpack.c.b16 %v2823, %v2822
    %v2958 = vpack.c.b16 %v2825, %v2824
    %v2959 = vpack.c.b16 %v2827, %v2826
    %v2960 = vpack.c.b16 %v2829, %v2828
    %v2961 = vpack.c.b16 %v2831, %v2830
    %v2962 = vpack.c.b16 %v2833, %v2832
    %v2963 = vpack.c.b16 %v2835, %v2834
    %v2964 = vpack.c.b16 %v2837, %v2836
    %v2965 = vpack.c.b16 %v2839, %v2838
    %v2966 = vpack.c.b16 %v2841, %v2840
    %v2967 = vpack.c.b16 %v2843, %v2842
    %v2968 = vpack.c.b16 %v2845, %v2844
    %v2969 = vpack.c.b16 %v2847, %v2846
    %v2970 = vpack.c.b16 %v2849, %v2848
    %v2971 = vpack.c.b16 %v2851, %v2850
    %v2972 = vpack.c.b16 %v2853, %v2852
    %v2973 = vpack.c.b16 %v2855, %v2854
    %v2974 = vpack.c.b16 %v2857, %v2856
    %v2975 = vpack.c.b16 %v2859, %v2858
    %v2976 = vpack.c.b16 %v2861, %v2860
    %v2977 = vpack.c.b16 %v2863, %v2862
    %v2978 = vpack.c.b16 %v2865, %v2864
    %v2979 = vpack.c.b16 %v2867, %v2866
    %v2980 = vpack.c.b16 %v2869, %v2868
    %v2981 = vpack.c.b16 %v2871, %v2870
    %v2982 = vpack.c.b16 %v2873, %v2872
    %v2983 = vpack.c.b16 %v2875, %v2874
    %v2984 = vpack.c.b16 %v2877, %v2876
    %v2985 = vpack.c.b16 %v2879, %v2878
    %v2986 = vpack.c.b16 %v2881, %v2880
    %v2987 = vpack.c.b16 %v2883, %v2882
    %v2988 = vpack.c.b16 %v2885, %v2884
    %v2989 = vpack.c.b16 %v2887, %v2886
    %v2990 = vpack.c.b16 %v2889, %v2888
    %v2991 = vpack.c.b16 %v2891, %v2890
    %v2992 = vpack.c.b16 %v2893, %v2892
    %v2993 = vpack.c.b16 %v2895, %v2894
    %v2994 = vpack.c.b16 %v2897, %v2896
    %v2995 = vpack.c.b16 %v2899, %v2898
    %v2996 = vpack.c.b16 %v2901, %v2900
    %v2997 = vpack.c.b16 %v2903, %v2902
    %v2998 = vpack.c.b16 %v2905, %v2904
    %v2999 = vpack.c.b16 %v2907, %v2906
    %v3000 = vpack.c.b16 %v2909, %v2908
    %v3001 = vpack.c.b16 %v2911, %v2910
    %v3002 = vpack.c.b16 %v2913, %v2912
    %v3003 = vpack.c.b16 %v2915, %v2914
    %v3004 = vpack.c.b16 %v2917, %v2916
    %v3005 = vpack.c.b16 %v2919, %v2918
    %v3006 = vpack.c.b16 %v2921, %v2920
    %v3007 = vpack.c.b16 %v2923, %v2922
    %v3008 = vpack.c.b16 %v2925, %v2924
    %v3009 = vpack.c.b16 %v2927, %v2926
    %v3010 = vpack.c.b16 %v2929, %v2928
    %v3011 = vpack.c.b16 %v2931, %v2930
    %v3012 = vpack.c.b16 %v2933, %v2932
    %v3013 = vpack.c.b16 %v2935, %v2934
    %v3014 = vpack.c.b16 %v2937, %v2936
    %v3015 = vpack.c.b16 %v2939, %v2938
    %v3016 = vpack.c.b16 %v2941, %v2940
    %v3017 = vpack.c.b16 %v2943, %v2942
    %v3018 = vpack.c.b16 %v2945, %v2944
    %v3019 = vpack.c.b16 %v2947, %v2946
    %3092 = vmatprep.subr.bf16.mxu0 0
    %3093 = vmatpush1.bf16.msra.mxu0 %v2948
    %3094 = vmatprep.subr.bf16.mxu0 0
    %3095 = vmatpush1.bf16.msra.mxu0 %v2949
    %3096 = vmatprep.subr.bf16.mxu0 0
    %3097 = vmatpush1.bf16.msra.mxu0 %v2950
    %3098 = vmatprep.subr.bf16.mxu0 0
    %3099 = vmatpush1.bf16.msra.mxu0 %v2951
    %3100 = vmatprep.subr.bf16.mxu0 0
    %3101 = vmatpush1.bf16.msra.mxu0 %v2952
    %3102 = vmatprep.subr.bf16.mxu0 0
    %3103 = vmatpush1.bf16.msra.mxu0 %v2953
    %3104 = vmatprep.subr.bf16.mxu0 0
    %3105 = vmatpush1.bf16.msra.mxu0 %v2954
    %3106 = vmatprep.subr.bf16.mxu0 0
    %3107 = vmatpush1.bf16.msra.mxu0 %v2955
    %3108 = vmatprep.subr.bf16.mxu0 0
    %3109 = vmatpush1.bf16.msra.mxu0 %v2956
    %3110 = vmatprep.subr.bf16.mxu0 0
    %3111 = vmatpush1.bf16.msra.mxu0 %v2957
    %3112 = vmatprep.subr.bf16.mxu0 0
    %3113 = vmatpush1.bf16.msra.mxu0 %v2958
    %3114 = vmatprep.subr.bf16.mxu0 0
    %3115 = vmatpush1.bf16.msra.mxu0 %v2959
    %3116 = vmatprep.subr.bf16.mxu0 0
    %3117 = vmatpush1.bf16.msra.mxu0 %v2960
    %3118 = vmatprep.subr.bf16.mxu0 0
    %3119 = vmatpush1.bf16.msra.mxu0 %v2961
    %3120 = vmatprep.subr.bf16.mxu0 0
    %3121 = vmatpush1.bf16.msra.mxu0 %v2962
    %3122 = vmatprep.subr.bf16.mxu0 0
    %3123 = vmatpush1.bf16.msra.mxu0 %v2963
    %3124 = vmatprep.mubr.bf16.mxu0 %v1291
    %3125 = vmatmul.mubr.bf16.gmra.mrb[0].mxu0 %v1149
    %v3126 = vpop.f32.mrb[0].mxu0
    %v3127 = vadd.f32 0.0, %v3126
    %v3128 = vpop.f32.mrb[0].mxu0
    %v3129 = vpop.f32.mrb[0].mxu0
    %v3130 = vadd.f32 0.0, %v3129
    %v3131 = vpop.f32.mrb[0].mxu0
    %3132 = vmatprep.mubr.bf16.mxu0 %v1303
    %3133 = vmatmul.mubr.bf16.gmra.mrb[0].mxu0 %v1150
    %v3134 = vpop.f32.mrb[0].mxu0
    %v3135 = vadd.f32 0.0, %v3134
    %v3136 = vpop.f32.mrb[0].mxu0
    %v3137 = vpop.f32.mrb[0].mxu0
    %v3138 = vadd.f32 0.0, %v3137
    %v3139 = vpop.f32.mrb[0].mxu0
    %3140 = vmatprep.mubr.bf16.mxu0 %v1315
    %3141 = vmatmul.mubr.bf16.gmra.mrb[0].mxu0 %v1151
    %v3142 = vpop.f32.mrb[0].mxu0
    %v3143 = vadd.f32 0.0, %v3142
    %v3144 = vpop.f32.mrb[0].mxu0
    %v3145 = vpop.f32.mrb[0].mxu0
    %v3146 = vadd.f32 0.0, %v3145
    %v3147 = vpop.f32.mrb[0].mxu0
    %3148 = vmatprep.mubr.bf16.mxu0 %v1327
    %3149 = vmatmul.mubr.bf16.gmra.mrb[0].mxu0 %v1152
    %v3150 = vpop.f32.mrb[0].mxu0
    %v3151 = vadd.f32 0.0, %v3150
    %v3152 = vpop.f32.mrb[0].mxu0
    %v3153 = vpop.f32.mrb[0].mxu0
    %v3154 = vadd.f32 0.0, %v3153
    %v3155 = vpop.f32.mrb[0].mxu0
    %3156 = vmatprep.mubr.bf16.mxu0 %v1339
    %3157 = vmatmul.mubr.bf16.gmra.mrb[0].mxu0 %v1153
    %v3158 = vpop.f32.mrb[0].mxu0
    %v3159 = vadd.f32 0.0, %v3158
    %v3160 = vpop.f32.mrb[0].mxu0
    %v3161 = vpop.f32.mrb[0].mxu0
    %v3162 = vadd.f32 0.0, %v3161
    %v3163 = vpop.f32.mrb[0].mxu0
    %3164 = vmatprep.mubr.bf16.mxu0 %v1351
    %3165 = vmatmul.mubr.bf16.gmra.mrb[0].mxu0 %v1154
    %v3166 = vpop.f32.mrb[0].mxu0
    %v3167 = vadd.f32 0.0, %v3166
    %v3168 = vpop.f32.mrb[0].mxu0
    %v3169 = vpop.f32.mrb[0].mxu0
    %v3170 = vadd.f32 0.0, %v3169
    %v3171 = vpop.f32.mrb[0].mxu0
    %3172 = vmatprep.mubr.bf16.mxu0 %v1363
    %3173 = vmatmul.mubr.bf16.gmra.mrb[0].mxu0 %v1155
    %v3174 = vpop.f32.mrb[0].mxu0
    %v3175 = vadd.f32 0.0, %v3174
    %v3176 = vpop.f32.mrb[0].mxu0
    %v3177 = vpop.f32.mrb[0].mxu0
    %v3178 = vadd.f32 0.0, %v3177
    %v3179 = vpop.f32.mrb[0].mxu0
    %3180 = vmatprep.mubr.bf16.mxu0 %v1375
    %3181 = vmatmul.mubr.bf16.gmra.mrb[0].mxu0 %v1156
    %v3182 = vpop.f32.mrb[0].mxu0
    %v3183 = vadd.f32 0.0, %v3182
    %v3184 = vpop.f32.mrb[0].mxu0
    %v3185 = vpop.f32.mrb[0].mxu0
    %v3186 = vadd.f32 0.0, %v3185
    %v3187 = vpop.f32.mrb[0].mxu0
    %3188 = vmatprep.mubr.bf16.mxu0 %v1387
    %3189 = vmatmul.mubr.bf16.gmra.mrb[0].mxu0 %v1157
    %v3190 = vpop.f32.mrb[0].mxu0
    %v3191 = vadd.f32 0.0, %v3190
    %v3192 = vpop.f32.mrb[0].mxu0
    %v3193 = vpop.f32.mrb[0].mxu0
    %v3194 = vadd.f32 0.0, %v3193
    %v3195 = vpop.f32.mrb[0].mxu0
    %3196 = vmatprep.mubr.bf16.mxu0 %v1399
    %3197 = vmatmul.mubr.bf16.gmra.mrb[0].mxu0 %v1158
    %v3198 = vpop.f32.mrb[0].mxu0
    %v3199 = vadd.f32 0.0, %v3198
    %v3200 = vpop.f32.mrb[0].mxu0
    %v3201 = vpop.f32.mrb[0].mxu0
    %v3202 = vadd.f32 0.0, %v3201
    %v3203 = vpop.f32.mrb[0].mxu0
    %3204 = vmatprep.mubr.bf16.mxu0 %v1411
    %3205 = vmatmul.mubr.bf16.gmra.mrb[0].mxu0 %v1159
    %v3206 = vpop.f32.mrb[0].mxu0
    %v3207 = vadd.f32 0.0, %v3206
    %v3208 = vpop.f32.mrb[0].mxu0
    %v3209 = vpop.f32.mrb[0].mxu0
    %v3210 = vadd.f32 0.0, %v3209
    %v3211 = vpop.f32.mrb[0].mxu0
    %3212 = vmatprep.mubr.bf16.mxu0 %v1423
    %3213 = vmatmul.mubr.bf16.gmra.mrb[0].mxu0 %v1160
    %v3214 = vpop.f32.mrb[0].mxu0
    %v3215 = vadd.f32 0.0, %v3214
    %v3216 = vpop.f32.mrb[0].mxu0
    %v3217 = vpop.f32.mrb[0].mxu0
    %v3218 = vadd.f32 0.0, %v3217
    %v3219 = vpop.f32.mrb[0].mxu0
    %3220 = vmatprep.mubr.bf16.mxu0 %v1435
    %3221 = vmatmul.mubr.bf16.gmra.mrb[0].mxu0 %v1161
    %v3222 = vpop.f32.mrb[0].mxu0
    %v3223 = vadd.f32 0.0, %v3222
    %v3224 = vpop.f32.mrb[0].mxu0
    %v3225 = vpop.f32.mrb[0].mxu0
    %v3226 = vadd.f32 0.0, %v3225
    %v3227 = vpop.f32.mrb[0].mxu0
    %3228 = vmatprep.mubr.bf16.mxu0 %v1447
    %3229 = vmatmul.mubr.bf16.gmra.mrb[0].mxu0 %v1162
    %v3230 = vpop.f32.mrb[0].mxu0
    %v3231 = vadd.f32 0.0, %v3230
    %v3232 = vpop.f32.mrb[0].mxu0
    %v3233 = vpop.f32.mrb[0].mxu0
    %v3234 = vadd.f32 0.0, %v3233
    %v3235 = vpop.f32.mrb[0].mxu0
    %3236 = vmatprep.mubr.bf16.mxu0 %v1459
    %3237 = vmatmul.mubr.bf16.gmra.mrb[0].mxu0 %v1163
    %v3238 = vpop.f32.mrb[0].mxu0
    %v3239 = vadd.f32 0.0, %v3238
    %v3240 = vpop.f32.mrb[0].mxu0
    %v3241 = vpop.f32.mrb[0].mxu0
    %v3242 = vadd.f32 0.0, %v3241
    %v3243 = vpop.f32.mrb[0].mxu0
    %3244 = vmatprep.mubr.bf16.mxu0 %v1471
    %3245 = vmatmul.mubr.bf16.gmra.mrb[0].mxu0 %v1164
    %v3246 = vpop.f32.mrb[0].mxu0
    %v3247 = vadd.f32 0.0, %v3246
    %v3248 = vpop.f32.mrb[0].mxu0
    %v3249 = vpop.f32.mrb[0].mxu0
    %v3250 = vadd.f32 0.0, %v3249
    %v3251 = vpop.f32.mrb[0].mxu0
    %3252 = vmatprep.mubr.bf16.mxu0 %v1291
    %3253 = vmatmul.mubr.bf16.gmra.mrb[0].mxu0 %v1149
    %v3254 = vpop.f32.mrb[0].mxu0
    %v3255 = vadd.f32 0.0, %v3254
    %v3256 = vpop.f32.mrb[0].mxu0
    %v3257 = vpop.f32.mrb[0].mxu0
    %v3258 = vadd.f32 0.0, %v3257
    %v3259 = vpop.f32.mrb[0].mxu0
    %3260 = vmatprep.mubr.bf16.mxu0 %v1483
    %3261 = vmatmul.mubr.bf16.gmra.mrb[0].mxu0 %v1166
    %v3262 = vpop.f32.mrb[0].mxu0
    %v3263 = vadd.f32 0.0, %v3262
    %v3264 = vpop.f32.mrb[0].mxu0
    %v3265 = vpop.f32.mrb[0].mxu0
    %v3266 = vadd.f32 0.0, %v3265
    %v3267 = vpop.f32.mrb[0].mxu0
    %3268 = vmatprep.mubr.bf16.mxu0 %v1495
    %3269 = vmatmul.mubr.bf16.gmra.mrb[0].mxu0 %v1167
    %v3270 = vpop.f32.mrb[0].mxu0
    %v3271 = vadd.f32 0.0, %v3270
    %v3272 = vpop.f32.mrb[0].mxu0
    %v3273 = vpop.f32.mrb[0].mxu0
    %v3274 = vadd.f32 0.0, %v3273
    %v3275 = vpop.f32.mrb[0].mxu0
    %3276 = vmatprep.mubr.bf16.mxu0 %v1507
    %3277 = vmatmul.mubr.bf16.gmra.mrb[0].mxu0 %v1168
    %v3278 = vpop.f32.mrb[0].mxu0
    %v3279 = vadd.f32 0.0, %v3278
    %v3280 = vpop.f32.mrb[0].mxu0
    %v3281 = vpop.f32.mrb[0].mxu0
    %v3282 = vadd.f32 0.0, %v3281
    %v3283 = vpop.f32.mrb[0].mxu0
    %3284 = vmatprep.mubr.bf16.mxu0 %v1519
    %3285 = vmatmul.mubr.bf16.gmra.mrb[0].mxu0 %v1169
    %v3286 = vpop.f32.mrb[0].mxu0
    %v3287 = vadd.f32 0.0, %v3286
    %v3288 = vpop.f32.mrb[0].mxu0
    %v3289 = vpop.f32.mrb[0].mxu0
    %v3290 = vadd.f32 0.0, %v3289
    %v3291 = vpop.f32.mrb[0].mxu0
    %3292 = vmatprep.mubr.bf16.mxu0 %v1531
    %3293 = vmatmul.mubr.bf16.gmra.mrb[0].mxu0 %v1170
    %v3294 = vpop.f32.mrb[0].mxu0
    %v3295 = vadd.f32 0.0, %v3294
    %v3296 = vpop.f32.mrb[0].mxu0
    %v3297 = vpop.f32.mrb[0].mxu0
    %v3298 = vadd.f32 0.0, %v3297
    %v3299 = vpop.f32.mrb[0].mxu0
    %3300 = vmatprep.mubr.bf16.mxu0 %v1543
    %3301 = vmatmul.mubr.bf16.gmra.mrb[0].mxu0 %v1171
    %v3302 = vpop.f32.mrb[0].mxu0
    %v3303 = vadd.f32 0.0, %v3302
    %v3304 = vpop.f32.mrb[0].mxu0
    %v3305 = vpop.f32.mrb[0].mxu0
    %v3306 = vadd.f32 0.0, %v3305
    %v3307 = vpop.f32.mrb[0].mxu0
    %3308 = vmatprep.mubr.bf16.mxu0 %v1555
    %3309 = vmatmul.mubr.bf16.gmra.mrb[0].mxu0 %v1172
    %v3310 = vpop.f32.mrb[0].mxu0
    %v3311 = vadd.f32 0.0, %v3310
    %v3312 = vpop.f32.mrb[0].mxu0
    %v3313 = vpop.f32.mrb[0].mxu0
    %v3314 = vadd.f32 0.0, %v3313
    %v3315 = vpop.f32.mrb[0].mxu0
    %3316 = vmatprep.mubr.bf16.mxu0 %v1567
    %3317 = vmatmul.mubr.bf16.gmra.mrb[0].mxu0 %v1173
    %v3318 = vpop.f32.mrb[0].mxu0
    %v3319 = vadd.f32 0.0, %v3318
    %v3320 = vpop.f32.mrb[0].mxu0
    %v3321 = vpop.f32.mrb[0].mxu0
    %v3322 = vadd.f32 0.0, %v3321
    %v3323 = vpop.f32.mrb[0].mxu0
    %3324 = vmatprep.mubr.bf16.mxu0 %v1579
    %3325 = vmatmul.mubr.bf16.gmra.mrb[0].mxu0 %v1174
    %v3326 = vpop.f32.mrb[0].mxu0
    %v3327 = vadd.f32 0.0, %v3326
    %v3328 = vpop.f32.mrb[0].mxu0
    %v3329 = vpop.f32.mrb[0].mxu0
    %v3330 = vadd.f32 0.0, %v3329
    %v3331 = vpop.f32.mrb[0].mxu0
    %3332 = vmatprep.mubr.bf16.mxu0 %v1591
    %3333 = vmatmul.mubr.bf16.gmra.mrb[0].mxu0 %v1175
    %v3334 = vpop.f32.mrb[0].mxu0
    %v3335 = vadd.f32 0.0, %v3334
    %v3336 = vpop.f32.mrb[0].mxu0
    %v3337 = vpop.f32.mrb[0].mxu0
    %v3338 = vadd.f32 0.0, %v3337
    %v3339 = vpop.f32.mrb[0].mxu0
    %3340 = vmatprep.mubr.bf16.mxu0 %v1603
    %3341 = vmatmul.mubr.bf16.gmra.mrb[0].mxu0 %v1176
    %v3342 = vpop.f32.mrb[0].mxu0
    %v3343 = vadd.f32 0.0, %v3342
    %v3344 = vpop.f32.mrb[0].mxu0
    %v3345 = vpop.f32.mrb[0].mxu0
    %v3346 = vadd.f32 0.0, %v3345
    %v3347 = vpop.f32.mrb[0].mxu0
    %3348 = vmatprep.mubr.bf16.mxu0 %v1615
    %3349 = vmatmul.mubr.bf16.gmra.mrb[0].mxu0 %v1177
    %v3350 = vpop.f32.mrb[0].mxu0
    %v3351 = vadd.f32 0.0, %v3350
    %v3352 = vpop.f32.mrb[0].mxu0
    %v3353 = vpop.f32.mrb[0].mxu0
    %v3354 = vadd.f32 0.0, %v3353
    %v3355 = vpop.f32.mrb[0].mxu0
    %3356 = vmatprep.mubr.bf16.mxu0 %v1627
    %3357 = vmatmul.mubr.bf16.gmra.mrb[0].mxu0 %v1178
    %v3358 = vpop.f32.mrb[0].mxu0
    %v3359 = vadd.f32 0.0, %v3358
    %v3360 = vpop.f32.mrb[0].mxu0
    %v3361 = vpop.f32.mrb[0].mxu0
    %v3362 = vadd.f32 0.0, %v3361
    %v3363 = vpop.f32.mrb[0].mxu0
    %3364 = vmatprep.mubr.bf16.mxu0 %v1639
    %3365 = vmatmul.mubr.bf16.gmra.mrb[0].mxu0 %v1179
    %v3366 = vpop.f32.mrb[0].mxu0
    %v3367 = vadd.f32 0.0, %v3366
    %v3368 = vpop.f32.mrb[0].mxu0
    %v3369 = vpop.f32.mrb[0].mxu0
    %v3370 = vadd.f32 0.0, %v3369
    %v3371 = vpop.f32.mrb[0].mxu0
    %3372 = vmatprep.mubr.bf16.mxu0 %v1651
    %3373 = vmatmul.mubr.bf16.gmra.mrb[0].mxu0 %v1180
    %v3374 = vpop.f32.mrb[0].mxu0
    %v3375 = vadd.f32 0.0, %v3374
    %v3376 = vpop.f32.mrb[0].mxu0
    %v3377 = vpop.f32.mrb[0].mxu0
    %v3378 = vadd.f32 0.0, %v3377
    %v3379 = vpop.f32.mrb[0].mxu0
    %3380 = vmatprep.mubr.bf16.mxu0 %v1291
    %3381 = vmatmul.mubr.bf16.gmra.mrb[0].mxu0 %v1149
    %v3382 = vpop.f32.mrb[0].mxu0
    %v3383 = vadd.f32 0.0, %v3382
    %v3384 = vpop.f32.mrb[0].mxu0
    %v3385 = vpop.f32.mrb[0].mxu0
    %v3386 = vadd.f32 0.0, %v3385
    %v3387 = vpop.f32.mrb[0].mxu0
    %3388 = vmatprep.mubr.bf16.mxu0 %v1663
    %3389 = vmatmul.mubr.bf16.gmra.mrb[0].mxu0 %v1182
    %v3390 = vpop.f32.mrb[0].mxu0
    %v3391 = vadd.f32 0.0, %v3390
    %v3392 = vpop.f32.mrb[0].mxu0
    %v3393 = vpop.f32.mrb[0].mxu0
    %v3394 = vadd.f32 0.0, %v3393
    %v3395 = vpop.f32.mrb[0].mxu0
    %3396 = vmatprep.mubr.bf16.mxu0 %v1675
    %3397 = vmatmul.mubr.bf16.gmra.mrb[0].mxu0 %v1183
    %v3398 = vpop.f32.mrb[0].mxu0
    %v3399 = vadd.f32 0.0, %v3398
    %v3400 = vpop.f32.mrb[0].mxu0
    %v3401 = vpop.f32.mrb[0].mxu0
    %v3402 = vadd.f32 0.0, %v3401
    %v3403 = vpop.f32.mrb[0].mxu0
    %3404 = vmatprep.mubr.bf16.mxu0 %v1687
    %3405 = vmatmul.mubr.bf16.gmra.mrb[0].mxu0 %v1184
    %v3406 = vpop.f32.mrb[0].mxu0
    %v3407 = vadd.f32 0.0, %v3406
    %v3408 = vpop.f32.mrb[0].mxu0
    %v3409 = vpop.f32.mrb[0].mxu0
    %v3410 = vadd.f32 0.0, %v3409
    %v3411 = vpop.f32.mrb[0].mxu0
    %3412 = vmatprep.mubr.bf16.mxu0 %v1699
    %3413 = vmatmul.mubr.bf16.gmra.mrb[0].mxu0 %v1185
    %v3414 = vpop.f32.mrb[0].mxu0
    %v3415 = vadd.f32 0.0, %v3414
    %v3416 = vpop.f32.mrb[0].mxu0
    %v3417 = vpop.f32.mrb[0].mxu0
    %v3418 = vadd.f32 0.0, %v3417
    %v3419 = vpop.f32.mrb[0].mxu0
    %3420 = vmatprep.mubr.bf16.mxu0 %v1711
    %3421 = vmatmul.mubr.bf16.gmra.mrb[0].mxu0 %v1186
    %v3422 = vpop.f32.mrb[0].mxu0
    %v3423 = vadd.f32 0.0, %v3422
    %v3424 = vpop.f32.mrb[0].mxu0
    %v3425 = vpop.f32.mrb[0].mxu0
    %v3426 = vadd.f32 0.0, %v3425
    %v3427 = vpop.f32.mrb[0].mxu0
    %3428 = vmatprep.mubr.bf16.mxu0 %v1723
    %3429 = vmatmul.mubr.bf16.gmra.mrb[0].mxu0 %v1187
    %v3430 = vpop.f32.mrb[0].mxu0
    %v3431 = vadd.f32 0.0, %v3430
    %v3432 = vpop.f32.mrb[0].mxu0
    %v3433 = vpop.f32.mrb[0].mxu0
    %v3434 = vadd.f32 0.0, %v3433
    %v3435 = vpop.f32.mrb[0].mxu0
    %3436 = vmatprep.mubr.bf16.mxu0 %v1735
    %3437 = vmatmul.mubr.bf16.gmra.mrb[0].mxu0 %v1188
    %v3438 = vpop.f32.mrb[0].mxu0
    %v3439 = vadd.f32 0.0, %v3438
    %v3440 = vpop.f32.mrb[0].mxu0
    %v3441 = vpop.f32.mrb[0].mxu0
    %v3442 = vadd.f32 0.0, %v3441
    %v3443 = vpop.f32.mrb[0].mxu0
    %3444 = vmatprep.mubr.bf16.mxu0 %v1747
    %3445 = vmatmul.mubr.bf16.gmra.mrb[0].mxu0 %v1189
    %v3446 = vpop.f32.mrb[0].mxu0
    %v3447 = vadd.f32 0.0, %v3446
    %v3448 = vpop.f32.mrb[0].mxu0
    %v3449 = vpop.f32.mrb[0].mxu0
    %v3450 = vadd.f32 0.0, %v3449
    %v3451 = vpop.f32.mrb[0].mxu0
    %3452 = vmatprep.mubr.bf16.mxu0 %v1759
    %3453 = vmatmul.mubr.bf16.gmra.mrb[0].mxu0 %v1190
    %v3454 = vpop.f32.mrb[0].mxu0
    %v3455 = vadd.f32 0.0, %v3454
    %v3456 = vpop.f32.mrb[0].mxu0
    %v3457 = vpop.f32.mrb[0].mxu0
    %v3458 = vadd.f32 0.0, %v3457
    %v3459 = vpop.f32.mrb[0].mxu0
    %3460 = vmatprep.mubr.bf16.mxu0 %v1771
    %3461 = vmatmul.mubr.bf16.gmra.mrb[0].mxu0 %v1191
    %v3462 = vpop.f32.mrb[0].mxu0
    %v3463 = vadd.f32 0.0, %v3462
    %v3464 = vpop.f32.mrb[0].mxu0
    %v3465 = vpop.f32.mrb[0].mxu0
    %v3466 = vadd.f32 0.0, %v3465
    %v3467 = vpop.f32.mrb[0].mxu0
    %3468 = vmatprep.mubr.bf16.mxu0 %v1783
    %3469 = vmatmul.mubr.bf16.gmra.mrb[0].mxu0 %v1192
    %v3470 = vpop.f32.mrb[0].mxu0
    %v3471 = vadd.f32 0.0, %v3470
    %v3472 = vpop.f32.mrb[0].mxu0
    %v3473 = vpop.f32.mrb[0].mxu0
    %v3474 = vadd.f32 0.0, %v3473
    %v3475 = vpop.f32.mrb[0].mxu0
    %3476 = vmatprep.mubr.bf16.mxu0 %v1795
    %3477 = vmatmul.mubr.bf16.gmra.mrb[0].mxu0 %v1193
    %v3478 = vpop.f32.mrb[0].mxu0
    %v3479 = vadd.f32 0.0, %v3478
    %v3480 = vpop.f32.mrb[0].mxu0
    %v3481 = vpop.f32.mrb[0].mxu0
    %v3482 = vadd.f32 0.0, %v3481
    %v3483 = vpop.f32.mrb[0].mxu0
    %3484 = vmatprep.mubr.bf16.mxu0 %v1807
    %3485 = vmatmul.mubr.bf16.gmra.mrb[0].mxu0 %v1194
    %v3486 = vpop.f32.mrb[0].mxu0
    %v3487 = vadd.f32 0.0, %v3486
    %v3488 = vpop.f32.mrb[0].mxu0
    %v3489 = vpop.f32.mrb[0].mxu0
    %v3490 = vadd.f32 0.0, %v3489
    %v3491 = vpop.f32.mrb[0].mxu0
    %3492 = vmatprep.mubr.bf16.mxu0 %v1819
    %3493 = vmatmul.mubr.bf16.gmra.mrb[0].mxu0 %v1195
    %v3494 = vpop.f32.mrb[0].mxu0
    %v3495 = vadd.f32 0.0, %v3494
    %v3496 = vpop.f32.mrb[0].mxu0
    %v3497 = vpop.f32.mrb[0].mxu0
    %v3498 = vadd.f32 0.0, %v3497
    %v3499 = vpop.f32.mrb[0].mxu0
    %3500 = vmatprep.mubr.bf16.mxu0 %v1831
    %3501 = vmatmul.mubr.bf16.gmra.mrb[0].mxu0 %v1196
    %v3502 = vpop.f32.mrb[0].mxu0
    %v3503 = vadd.f32 0.0, %v3502
    %v3504 = vpop.f32.mrb[0].mxu0
    %v3505 = vpop.f32.mrb[0].mxu0
    %v3506 = vadd.f32 0.0, %v3505
    %v3507 = vpop.f32.mrb[0].mxu0
    %3508 = vmatprep.mubr.bf16.mxu0 %v1291
    %3509 = vmatmul.mubr.bf16.gmra.mrb[0].mxu0 %v1149
    %v3510 = vpop.f32.mrb[0].mxu0
    %v3511 = vadd.f32 0.0, %v3510
    %v3512 = vpop.f32.mrb[0].mxu0
    %v3513 = vpop.f32.mrb[0].mxu0
    %v3514 = vadd.f32 0.0, %v3513
    %v3515 = vpop.f32.mrb[0].mxu0
    %3516 = vmatprep.mubr.bf16.mxu0 %v1843
    %3517 = vmatmul.mubr.bf16.gmra.mrb[0].mxu0 %v1198
    %v3518 = vpop.f32.mrb[0].mxu0
    %v3519 = vadd.f32 0.0, %v3518
    %v3520 = vpop.f32.mrb[0].mxu0
    %v3521 = vpop.f32.mrb[0].mxu0
    %v3522 = vadd.f32 0.0, %v3521
    %v3523 = vpop.f32.mrb[0].mxu0
    %3524 = vmatprep.mubr.bf16.mxu0 %v1855
    %3525 = vmatmul.mubr.bf16.gmra.mrb[0].mxu0 %v1199
    %v3526 = vpop.f32.mrb[0].mxu0
    %v3527 = vadd.f32 0.0, %v3526
    %v3528 = vpop.f32.mrb[0].mxu0
    %v3529 = vpop.f32.mrb[0].mxu0
    %v3530 = vadd.f32 0.0, %v3529
    %v3531 = vpop.f32.mrb[0].mxu0
    %3532 = vmatprep.mubr.bf16.mxu0 %v1867
    %3533 = vmatmul.mubr.bf16.gmra.mrb[0].mxu0 %v1200
    %v3534 = vpop.f32.mrb[0].mxu0
    %v3535 = vadd.f32 0.0, %v3534
    %v3536 = vpop.f32.mrb[0].mxu0
    %v3537 = vpop.f32.mrb[0].mxu0
    %v3538 = vadd.f32 0.0, %v3537
    %v3539 = vpop.f32.mrb[0].mxu0
    %3540 = vmatprep.mubr.bf16.mxu0 %v1879
    %3541 = vmatmul.mubr.bf16.gmra.mrb[0].mxu0 %v1201
    %v3542 = vpop.f32.mrb[0].mxu0
    %v3543 = vadd.f32 0.0, %v3542
    %v3544 = vpop.f32.mrb[0].mxu0
    %v3545 = vpop.f32.mrb[0].mxu0
    %v3546 = vadd.f32 0.0, %v3545
    %v3547 = vpop.f32.mrb[0].mxu0
    %3548 = vmatprep.mubr.bf16.mxu0 %v1891
    %3549 = vmatmul.mubr.bf16.gmra.mrb[0].mxu0 %v1202
    %v3550 = vpop.f32.mrb[0].mxu0
    %v3551 = vadd.f32 0.0, %v3550
    %v3552 = vpop.f32.mrb[0].mxu0
    %v3553 = vpop.f32.mrb[0].mxu0
    %v3554 = vadd.f32 0.0, %v3553
    %v3555 = vpop.f32.mrb[0].mxu0
    %3556 = vmatprep.mubr.bf16.mxu0 %v1903
    %3557 = vmatmul.mubr.bf16.gmra.mrb[0].mxu0 %v1203
    %v3558 = vpop.f32.mrb[0].mxu0
    %v3559 = vadd.f32 0.0, %v3558
    %v3560 = vpop.f32.mrb[0].mxu0
    %v3561 = vpop.f32.mrb[0].mxu0
    %v3562 = vadd.f32 0.0, %v3561
    %v3563 = vpop.f32.mrb[0].mxu0
    %3564 = vmatprep.mubr.bf16.mxu0 %v1915
    %3565 = vmatmul.mubr.bf16.gmra.mrb[0].mxu0 %v1204
    %v3566 = vpop.f32.mrb[0].mxu0
    %v3567 = vadd.f32 0.0, %v3566
    %v3568 = vpop.f32.mrb[0].mxu0
    %v3569 = vpop.f32.mrb[0].mxu0
    %v3570 = vadd.f32 0.0, %v3569
    %v3571 = vpop.f32.mrb[0].mxu0
    %3572 = vmatprep.mubr.bf16.mxu0 %v1927
    %3573 = vmatmul.mubr.bf16.gmra.mrb[0].mxu0 %v1205
    %v3574 = vpop.f32.mrb[0].mxu0
    %v3575 = vadd.f32 0.0, %v3574
    %v3576 = vpop.f32.mrb[0].mxu0
    %v3577 = vpop.f32.mrb[0].mxu0
    %v3578 = vadd.f32 0.0, %v3577
    %v3579 = vpop.f32.mrb[0].mxu0
    %3580 = vmatprep.mubr.bf16.mxu0 %v1939
    %3581 = vmatmul.mubr.bf16.gmra.mrb[0].mxu0 %v1206
    %v3582 = vpop.f32.mrb[0].mxu0
    %v3583 = vadd.f32 0.0, %v3582
    %v3584 = vpop.f32.mrb[0].mxu0
    %v3585 = vpop.f32.mrb[0].mxu0
    %v3586 = vadd.f32 0.0, %v3585
    %v3587 = vpop.f32.mrb[0].mxu0
    %3588 = vmatprep.mubr.bf16.mxu0 %v1951
    %3589 = vmatmul.mubr.bf16.gmra.mrb[0].mxu0 %v1207
    %v3590 = vpop.f32.mrb[0].mxu0
    %v3591 = vadd.f32 0.0, %v3590
    %v3592 = vpop.f32.mrb[0].mxu0
    %v3593 = vpop.f32.mrb[0].mxu0
    %v3594 = vadd.f32 0.0, %v3593
    %v3595 = vpop.f32.mrb[0].mxu0
    %3596 = vmatprep.mubr.bf16.mxu0 %v1963
    %3597 = vmatmul.mubr.bf16.gmra.mrb[0].mxu0 %v1208
    %v3598 = vpop.f32.mrb[0].mxu0
    %v3599 = vadd.f32 0.0, %v3598
    %v3600 = vpop.f32.mrb[0].mxu0
    %v3601 = vpop.f32.mrb[0].mxu0
    %v3602 = vadd.f32 0.0, %v3601
    %v3603 = vpop.f32.mrb[0].mxu0
    %3604 = vmatprep.mubr.bf16.mxu0 %v1975
    %3605 = vmatmul.mubr.bf16.gmra.mrb[0].mxu0 %v1209
    %v3606 = vpop.f32.mrb[0].mxu0
    %v3607 = vadd.f32 0.0, %v3606
    %v3608 = vpop.f32.mrb[0].mxu0
    %v3609 = vpop.f32.mrb[0].mxu0
    %v3610 = vadd.f32 0.0, %v3609
    %v3611 = vpop.f32.mrb[0].mxu0
    %3612 = vmatprep.mubr.bf16.mxu0 %v1987
    %3613 = vmatmul.mubr.bf16.gmra.mrb[0].mxu0 %v1210
    %v3614 = vpop.f32.mrb[0].mxu0
    %v3615 = vadd.f32 0.0, %v3614
    %v3616 = vpop.f32.mrb[0].mxu0
    %v3617 = vpop.f32.mrb[0].mxu0
    %v3618 = vadd.f32 0.0, %v3617
    %v3619 = vpop.f32.mrb[0].mxu0
    %3620 = vmatprep.mubr.bf16.mxu0 %v1999
    %3621 = vmatmul.mubr.bf16.gmra.mrb[0].mxu0 %v1211
    %v3622 = vpop.f32.mrb[0].mxu0
    %v3623 = vadd.f32 0.0, %v3622
    %v3624 = vpop.f32.mrb[0].mxu0
    %v3625 = vpop.f32.mrb[0].mxu0
    %v3626 = vadd.f32 0.0, %v3625
    %v3627 = vpop.f32.mrb[0].mxu0
    %3628 = vmatprep.mubr.bf16.mxu0 %v2011
    %3629 = vmatmul.mubr.bf16.gmra.mrb[0].mxu0 %v1212
    %v3630 = vpop.f32.mrb[0].mxu0
    %v3631 = vadd.f32 0.0, %v3630
    %v3632 = vpop.f32.mrb[0].mxu0
    %v3633 = vpop.f32.mrb[0].mxu0
    %v3634 = vadd.f32 0.0, %v3633
    %v3635 = vpop.f32.mrb[0].mxu0
    %3636 = vdwg.mxu0
    %3637 = vmatprep.subr.bf16.mxu0 0
    %3638 = vmatpush1.bf16.msra.mxu0 %v2964
    %3639 = vmatprep.subr.bf16.mxu0 0
    %3640 = vmatpush1.bf16.msra.mxu0 %v2965
    %3641 = vmatprep.subr.bf16.mxu0 0
    %3642 = vmatpush1.bf16.msra.mxu0 %v2966
    %3643 = vmatprep.subr.bf16.mxu0 0
    %3644 = vmatpush1.bf16.msra.mxu0 %v2967
    %3645 = vmatprep.subr.bf16.mxu0 0
    %3646 = vmatpush1.bf16.msra.mxu0 %v2968
    %3647 = vmatprep.subr.bf16.mxu0 0
    %3648 = vmatpush1.bf16.msra.mxu0 %v2969
    %3649 = vmatprep.subr.bf16.mxu0 0
    %3650 = vmatpush1.bf16.msra.mxu0 %v2970
    %3651 = vmatprep.subr.bf16.mxu0 0
    %3652 = vmatpush1.bf16.msra.mxu0 %v2971
    %3653 = vmatprep.subr.bf16.mxu0 0
    %3654 = vmatpush1.bf16.msra.mxu0 %v2972
    %3655 = vmatprep.subr.bf16.mxu0 0
    %3656 = vmatpush1.bf16.msra.mxu0 %v2973
    %3657 = vmatprep.subr.bf16.mxu0 0
    %3658 = vmatpush1.bf16.msra.mxu0 %v2974
    %3659 = vmatprep.subr.bf16.mxu0 0
    %3660 = vmatpush1.bf16.msra.mxu0 %v2975
    %3661 = vmatprep.subr.bf16.mxu0 0
    %3662 = vmatpush1.bf16.msra.mxu0 %v2976
    %3663 = vmatprep.subr.bf16.mxu0 0
    %3664 = vmatpush1.bf16.msra.mxu0 %v2977
    %3665 = vmatprep.subr.bf16.mxu0 0
    %3666 = vmatpush1.bf16.msra.mxu0 %v2978
    %3667 = vmatprep.subr.bf16.mxu0 0
    %3668 = vmatpush1.bf16.msra.mxu0 %v2979
    %3669 = vmatprep.mubr.bf16.mxu0 %v1150
    %3670 = vmatmul.mubr.bf16.gmra.mrb[0].mxu0 %v2198
    %v3671 = vpop.f32.mrb[0].mxu0
    %v3672 = vadd.f32 %v3127, %v3671
    %v3673 = vpop.f32.mrb[0].mxu0
    %v3674 = vpop.f32.mrb[0].mxu0
    %v3675 = vadd.f32 %v3130, %v3674
    %v3676 = vpop.f32.mrb[0].mxu0
    %3677 = vmatprep.mubr.bf16.mxu0 %v1151
    %3678 = vmatmul.mubr.bf16.gmra.mrb[0].mxu0 %v2201
    %v3679 = vpop.f32.mrb[0].mxu0
    %v3680 = vadd.f32 %v3135, %v3679
    %v3681 = vpop.f32.mrb[0].mxu0
    %v3682 = vpop.f32.mrb[0].mxu0
    %v3683 = vadd.f32 %v3138, %v3682
    %v3684 = vpop.f32.mrb[0].mxu0
    %3685 = vmatprep.mubr.bf16.mxu0 %v1152
    %3686 = vmatmul.mubr.bf16.gmra.mrb[0].mxu0 %v2204
    %v3687 = vpop.f32.mrb[0].mxu0
    %v3688 = vadd.f32 %v3143, %v3687
    %v3689 = vpop.f32.mrb[0].mxu0
    %v3690 = vpop.f32.mrb[0].mxu0
    %v3691 = vadd.f32 %v3146, %v3690
    %v3692 = vpop.f32.mrb[0].mxu0
    %3693 = vmatprep.mubr.bf16.mxu0 %v1153
    %3694 = vmatmul.mubr.bf16.gmra.mrb[0].mxu0 %v2207
    %v3695 = vpop.f32.mrb[0].mxu0
    %v3696 = vadd.f32 %v3151, %v3695
    %v3697 = vpop.f32.mrb[0].mxu0
    %v3698 = vpop.f32.mrb[0].mxu0
    %v3699 = vadd.f32 %v3154, %v3698
    %v3700 = vpop.f32.mrb[0].mxu0
    %3701 = vmatprep.mubr.bf16.mxu0 %v1154
    %3702 = vmatmul.mubr.bf16.gmra.mrb[0].mxu0 %v2210
    %v3703 = vpop.f32.mrb[0].mxu0
    %v3704 = vadd.f32 %v3159, %v3703
    %v3705 = vpop.f32.mrb[0].mxu0
    %v3706 = vpop.f32.mrb[0].mxu0
    %v3707 = vadd.f32 %v3162, %v3706
    %v3708 = vpop.f32.mrb[0].mxu0
    %3709 = vmatprep.mubr.bf16.mxu0 %v1155
    %3710 = vmatmul.mubr.bf16.gmra.mrb[0].mxu0 %v2213
    %v3711 = vpop.f32.mrb[0].mxu0
    %v3712 = vadd.f32 %v3167, %v3711
    %v3713 = vpop.f32.mrb[0].mxu0
    %v3714 = vpop.f32.mrb[0].mxu0
    %v3715 = vadd.f32 %v3170, %v3714
    %v3716 = vpop.f32.mrb[0].mxu0
    %3717 = vmatprep.mubr.bf16.mxu0 %v1156
    %3718 = vmatmul.mubr.bf16.gmra.mrb[0].mxu0 %v2216
    %v3719 = vpop.f32.mrb[0].mxu0
    %v3720 = vadd.f32 %v3175, %v3719
    %v3721 = vpop.f32.mrb[0].mxu0
    %v3722 = vpop.f32.mrb[0].mxu0
    %v3723 = vadd.f32 %v3178, %v3722
    %v3724 = vpop.f32.mrb[0].mxu0
    %3725 = vmatprep.mubr.bf16.mxu0 %v1157
    %3726 = vmatmul.mubr.bf16.gmra.mrb[0].mxu0 %v2219
    %v3727 = vpop.f32.mrb[0].mxu0
    %v3728 = vadd.f32 %v3183, %v3727
    %v3729 = vpop.f32.mrb[0].mxu0
    %v3730 = vpop.f32.mrb[0].mxu0
    %v3731 = vadd.f32 %v3186, %v3730
    %v3732 = vpop.f32.mrb[0].mxu0
    %3733 = vmatprep.mubr.bf16.mxu0 %v1158
    %3734 = vmatmul.mubr.bf16.gmra.mrb[0].mxu0 %v2222
    %v3735 = vpop.f32.mrb[0].mxu0
    %v3736 = vadd.f32 %v3191, %v3735
    %v3737 = vpop.f32.mrb[0].mxu0
    %v3738 = vpop.f32.mrb[0].mxu0
    %v3739 = vadd.f32 %v3194, %v3738
    %v3740 = vpop.f32.mrb[0].mxu0
    %3741 = vmatprep.mubr.bf16.mxu0 %v1159
    %3742 = vmatmul.mubr.bf16.gmra.mrb[0].mxu0 %v2225
    %v3743 = vpop.f32.mrb[0].mxu0
    %v3744 = vadd.f32 %v3199, %v3743
    %v3745 = vpop.f32.mrb[0].mxu0
    %v3746 = vpop.f32.mrb[0].mxu0
    %v3747 = vadd.f32 %v3202, %v3746
    %v3748 = vpop.f32.mrb[0].mxu0
    %3749 = vmatprep.mubr.bf16.mxu0 %v1160
    %3750 = vmatmul.mubr.bf16.gmra.mrb[0].mxu0 %v2228
    %v3751 = vpop.f32.mrb[0].mxu0
    %v3752 = vadd.f32 %v3207, %v3751
    %v3753 = vpop.f32.mrb[0].mxu0
    %v3754 = vpop.f32.mrb[0].mxu0
    %v3755 = vadd.f32 %v3210, %v3754
    %v3756 = vpop.f32.mrb[0].mxu0
    %3757 = vmatprep.mubr.bf16.mxu0 %v1161
    %3758 = vmatmul.mubr.bf16.gmra.mrb[0].mxu0 %v2231
    %v3759 = vpop.f32.mrb[0].mxu0
    %v3760 = vadd.f32 %v3215, %v3759
    %v3761 = vpop.f32.mrb[0].mxu0
    %v3762 = vpop.f32.mrb[0].mxu0
    %v3763 = vadd.f32 %v3218, %v3762
    %v3764 = vpop.f32.mrb[0].mxu0
    %3765 = vmatprep.mubr.bf16.mxu0 %v1162
    %3766 = vmatmul.mubr.bf16.gmra.mrb[0].mxu0 %v2234
    %v3767 = vpop.f32.mrb[0].mxu0
    %v3768 = vadd.f32 %v3223, %v3767
    %v3769 = vpop.f32.mrb[0].mxu0
    %v3770 = vpop.f32.mrb[0].mxu0
    %v3771 = vadd.f32 %v3226, %v3770
    %v3772 = vpop.f32.mrb[0].mxu0
    %3773 = vmatprep.mubr.bf16.mxu0 %v1163
    %3774 = vmatmul.mubr.bf16.gmra.mrb[0].mxu0 %v2237
    %v3775 = vpop.f32.mrb[0].mxu0
    %v3776 = vadd.f32 %v3231, %v3775
    %v3777 = vpop.f32.mrb[0].mxu0
    %v3778 = vpop.f32.mrb[0].mxu0
    %v3779 = vadd.f32 %v3234, %v3778
    %v3780 = vpop.f32.mrb[0].mxu0
    %3781 = vmatprep.mubr.bf16.mxu0 %v1164
    %3782 = vmatmul.mubr.bf16.gmra.mrb[0].mxu0 %v2240
    %v3783 = vpop.f32.mrb[0].mxu0
    %v3784 = vadd.f32 %v3239, %v3783
    %v3785 = vpop.f32.mrb[0].mxu0
    %v3786 = vpop.f32.mrb[0].mxu0
    %v3787 = vadd.f32 %v3242, %v3786
    %v3788 = vpop.f32.mrb[0].mxu0
    %3789 = vmatprep.mubr.bf16.mxu0 %v1165
    %3790 = vmatmul.mubr.bf16.gmra.mrb[0].mxu0 %v2243
    %v3791 = vpop.f32.mrb[0].mxu0
    %v3792 = vadd.f32 %v3247, %v3791
    %v3793 = vpop.f32.mrb[0].mxu0
    %v3794 = vpop.f32.mrb[0].mxu0
    %v3795 = vadd.f32 %v3250, %v3794
    %v3796 = vpop.f32.mrb[0].mxu0
    %3797 = vmatprep.mubr.bf16.mxu0 %v1166
    %3798 = vmatmul.mubr.bf16.gmra.mrb[0].mxu0 %v2198
    %v3799 = vpop.f32.mrb[0].mxu0
    %v3800 = vadd.f32 %v3255, %v3799
    %v3801 = vpop.f32.mrb[0].mxu0
    %v3802 = vpop.f32.mrb[0].mxu0
    %v3803 = vadd.f32 %v3258, %v3802
    %v3804 = vpop.f32.mrb[0].mxu0
    %3805 = vmatprep.mubr.bf16.mxu0 %v1167
    %3806 = vmatmul.mubr.bf16.gmra.mrb[0].mxu0 %v2246
    %v3807 = vpop.f32.mrb[0].mxu0
    %v3808 = vadd.f32 %v3263, %v3807
    %v3809 = vpop.f32.mrb[0].mxu0
    %v3810 = vpop.f32.mrb[0].mxu0
    %v3811 = vadd.f32 %v3266, %v3810
    %v3812 = vpop.f32.mrb[0].mxu0
    %3813 = vmatprep.mubr.bf16.mxu0 %v1168
    %3814 = vmatmul.mubr.bf16.gmra.mrb[0].mxu0 %v2249
    %v3815 = vpop.f32.mrb[0].mxu0
    %v3816 = vadd.f32 %v3271, %v3815
    %v3817 = vpop.f32.mrb[0].mxu0
    %v3818 = vpop.f32.mrb[0].mxu0
    %v3819 = vadd.f32 %v3274, %v3818
    %v3820 = vpop.f32.mrb[0].mxu0
    %3821 = vmatprep.mubr.bf16.mxu0 %v1169
    %3822 = vmatmul.mubr.bf16.gmra.mrb[0].mxu0 %v2252
    %v3823 = vpop.f32.mrb[0].mxu0
    %v3824 = vadd.f32 %v3279, %v3823
    %v3825 = vpop.f32.mrb[0].mxu0
    %v3826 = vpop.f32.mrb[0].mxu0
    %v3827 = vadd.f32 %v3282, %v3826
    %v3828 = vpop.f32.mrb[0].mxu0
    %3829 = vmatprep.mubr.bf16.mxu0 %v1170
    %3830 = vmatmul.mubr.bf16.gmra.mrb[0].mxu0 %v2255
    %v3831 = vpop.f32.mrb[0].mxu0
    %v3832 = vadd.f32 %v3287, %v3831
    %v3833 = vpop.f32.mrb[0].mxu0
    %v3834 = vpop.f32.mrb[0].mxu0
    %v3835 = vadd.f32 %v3290, %v3834
    %v3836 = vpop.f32.mrb[0].mxu0
    %3837 = vmatprep.mubr.bf16.mxu0 %v1171
    %3838 = vmatmul.mubr.bf16.gmra.mrb[0].mxu0 %v2258
    %v3839 = vpop.f32.mrb[0].mxu0
    %v3840 = vadd.f32 %v3295, %v3839
    %v3841 = vpop.f32.mrb[0].mxu0
    %v3842 = vpop.f32.mrb[0].mxu0
    %v3843 = vadd.f32 %v3298, %v3842
    %v3844 = vpop.f32.mrb[0].mxu0
    %3845 = vmatprep.mubr.bf16.mxu0 %v1172
    %3846 = vmatmul.mubr.bf16.gmra.mrb[0].mxu0 %v2261
    %v3847 = vpop.f32.mrb[0].mxu0
    %v3848 = vadd.f32 %v3303, %v3847
    %v3849 = vpop.f32.mrb[0].mxu0
    %v3850 = vpop.f32.mrb[0].mxu0
    %v3851 = vadd.f32 %v3306, %v3850
    %v3852 = vpop.f32.mrb[0].mxu0
    %3853 = vmatprep.mubr.bf16.mxu0 %v1173
    %3854 = vmatmul.mubr.bf16.gmra.mrb[0].mxu0 %v2264
    %v3855 = vpop.f32.mrb[0].mxu0
    %v3856 = vadd.f32 %v3311, %v3855
    %v3857 = vpop.f32.mrb[0].mxu0
    %v3858 = vpop.f32.mrb[0].mxu0
    %v3859 = vadd.f32 %v3314, %v3858
    %v3860 = vpop.f32.mrb[0].mxu0
    %3861 = vmatprep.mubr.bf16.mxu0 %v1174
    %3862 = vmatmul.mubr.bf16.gmra.mrb[0].mxu0 %v2267
    %v3863 = vpop.f32.mrb[0].mxu0
    %v3864 = vadd.f32 %v3319, %v3863
    %v3865 = vpop.f32.mrb[0].mxu0
    %v3866 = vpop.f32.mrb[0].mxu0
    %v3867 = vadd.f32 %v3322, %v3866
    %v3868 = vpop.f32.mrb[0].mxu0
    %3869 = vmatprep.mubr.bf16.mxu0 %v1175
    %3870 = vmatmul.mubr.bf16.gmra.mrb[0].mxu0 %v2270
    %v3871 = vpop.f32.mrb[0].mxu0
    %v3872 = vadd.f32 %v3327, %v3871
    %v3873 = vpop.f32.mrb[0].mxu0
    %v3874 = vpop.f32.mrb[0].mxu0
    %v3875 = vadd.f32 %v3330, %v3874
    %v3876 = vpop.f32.mrb[0].mxu0
    %3877 = vmatprep.mubr.bf16.mxu0 %v1176
    %3878 = vmatmul.mubr.bf16.gmra.mrb[0].mxu0 %v2273
    %v3879 = vpop.f32.mrb[0].mxu0
    %v3880 = vadd.f32 %v3335, %v3879
    %v3881 = vpop.f32.mrb[0].mxu0
    %v3882 = vpop.f32.mrb[0].mxu0
    %v3883 = vadd.f32 %v3338, %v3882
    %v3884 = vpop.f32.mrb[0].mxu0
    %3885 = vmatprep.mubr.bf16.mxu0 %v1177
    %3886 = vmatmul.mubr.bf16.gmra.mrb[0].mxu0 %v2276
    %v3887 = vpop.f32.mrb[0].mxu0
    %v3888 = vadd.f32 %v3343, %v3887
    %v3889 = vpop.f32.mrb[0].mxu0
    %v3890 = vpop.f32.mrb[0].mxu0
    %v3891 = vadd.f32 %v3346, %v3890
    %v3892 = vpop.f32.mrb[0].mxu0
    %3893 = vmatprep.mubr.bf16.mxu0 %v1178
    %3894 = vmatmul.mubr.bf16.gmra.mrb[0].mxu0 %v2279
    %v3895 = vpop.f32.mrb[0].mxu0
    %v3896 = vadd.f32 %v3351, %v3895
    %v3897 = vpop.f32.mrb[0].mxu0
    %v3898 = vpop.f32.mrb[0].mxu0
    %v3899 = vadd.f32 %v3354, %v3898
    %v3900 = vpop.f32.mrb[0].mxu0
    %3901 = vmatprep.mubr.bf16.mxu0 %v1179
    %3902 = vmatmul.mubr.bf16.gmra.mrb[0].mxu0 %v2282
    %v3903 = vpop.f32.mrb[0].mxu0
    %v3904 = vadd.f32 %v3359, %v3903
    %v3905 = vpop.f32.mrb[0].mxu0
    %v3906 = vpop.f32.mrb[0].mxu0
    %v3907 = vadd.f32 %v3362, %v3906
    %v3908 = vpop.f32.mrb[0].mxu0
    %3909 = vmatprep.mubr.bf16.mxu0 %v1180
    %3910 = vmatmul.mubr.bf16.gmra.mrb[0].mxu0 %v2285
    %v3911 = vpop.f32.mrb[0].mxu0
    %v3912 = vadd.f32 %v3367, %v3911
    %v3913 = vpop.f32.mrb[0].mxu0
    %v3914 = vpop.f32.mrb[0].mxu0
    %v3915 = vadd.f32 %v3370, %v3914
    %v3916 = vpop.f32.mrb[0].mxu0
    %3917 = vmatprep.mubr.bf16.mxu0 %v1181
    %3918 = vmatmul.mubr.bf16.gmra.mrb[0].mxu0 %v2288
    %v3919 = vpop.f32.mrb[0].mxu0
    %v3920 = vadd.f32 %v3375, %v3919
    %v3921 = vpop.f32.mrb[0].mxu0
    %v3922 = vpop.f32.mrb[0].mxu0
    %v3923 = vadd.f32 %v3378, %v3922
    %v3924 = vpop.f32.mrb[0].mxu0
    %3925 = vmatprep.mubr.bf16.mxu0 %v1182
    %3926 = vmatmul.mubr.bf16.gmra.mrb[0].mxu0 %v2198
    %v3927 = vpop.f32.mrb[0].mxu0
    %v3928 = vadd.f32 %v3383, %v3927
    %v3929 = vpop.f32.mrb[0].mxu0
    %v3930 = vpop.f32.mrb[0].mxu0
    %v3931 = vadd.f32 %v3386, %v3930
    %v3932 = vpop.f32.mrb[0].mxu0
    %3933 = vmatprep.mubr.bf16.mxu0 %v1183
    %3934 = vmatmul.mubr.bf16.gmra.mrb[0].mxu0 %v2291
    %v3935 = vpop.f32.mrb[0].mxu0
    %v3936 = vadd.f32 %v3391, %v3935
    %v3937 = vpop.f32.mrb[0].mxu0
    %v3938 = vpop.f32.mrb[0].mxu0
    %v3939 = vadd.f32 %v3394, %v3938
    %v3940 = vpop.f32.mrb[0].mxu0
    %3941 = vmatprep.mubr.bf16.mxu0 %v1184
    %3942 = vmatmul.mubr.bf16.gmra.mrb[0].mxu0 %v2294
    %v3943 = vpop.f32.mrb[0].mxu0
    %v3944 = vadd.f32 %v3399, %v3943
    %v3945 = vpop.f32.mrb[0].mxu0
    %v3946 = vpop.f32.mrb[0].mxu0
    %v3947 = vadd.f32 %v3402, %v3946
    %v3948 = vpop.f32.mrb[0].mxu0
    %3949 = vmatprep.mubr.bf16.mxu0 %v1185
    %3950 = vmatmul.mubr.bf16.gmra.mrb[0].mxu0 %v2297
    %v3951 = vpop.f32.mrb[0].mxu0
    %v3952 = vadd.f32 %v3407, %v3951
    %v3953 = vpop.f32.mrb[0].mxu0
    %v3954 = vpop.f32.mrb[0].mxu0
    %v3955 = vadd.f32 %v3410, %v3954
    %v3956 = vpop.f32.mrb[0].mxu0
    %3957 = vmatprep.mubr.bf16.mxu0 %v1186
    %3958 = vmatmul.mubr.bf16.gmra.mrb[0].mxu0 %v2300
    %v3959 = vpop.f32.mrb[0].mxu0
    %v3960 = vadd.f32 %v3415, %v3959
    %v3961 = vpop.f32.mrb[0].mxu0
    %v3962 = vpop.f32.mrb[0].mxu0
    %v3963 = vadd.f32 %v3418, %v3962
    %v3964 = vpop.f32.mrb[0].mxu0
    %3965 = vmatprep.mubr.bf16.mxu0 %v1187
    %3966 = vmatmul.mubr.bf16.gmra.mrb[0].mxu0 %v2303
    %v3967 = vpop.f32.mrb[0].mxu0
    %v3968 = vadd.f32 %v3423, %v3967
    %v3969 = vpop.f32.mrb[0].mxu0
    %v3970 = vpop.f32.mrb[0].mxu0
    %v3971 = vadd.f32 %v3426, %v3970
    %v3972 = vpop.f32.mrb[0].mxu0
    %3973 = vmatprep.mubr.bf16.mxu0 %v1188
    %3974 = vmatmul.mubr.bf16.gmra.mrb[0].mxu0 %v2306
    %v3975 = vpop.f32.mrb[0].mxu0
    %v3976 = vadd.f32 %v3431, %v3975
    %v3977 = vpop.f32.mrb[0].mxu0
    %v3978 = vpop.f32.mrb[0].mxu0
    %v3979 = vadd.f32 %v3434, %v3978
    %v3980 = vpop.f32.mrb[0].mxu0
    %3981 = vmatprep.mubr.bf16.mxu0 %v1189
    %3982 = vmatmul.mubr.bf16.gmra.mrb[0].mxu0 %v2309
    %v3983 = vpop.f32.mrb[0].mxu0
    %v3984 = vadd.f32 %v3439, %v3983
    %v3985 = vpop.f32.mrb[0].mxu0
    %v3986 = vpop.f32.mrb[0].mxu0
    %v3987 = vadd.f32 %v3442, %v3986
    %v3988 = vpop.f32.mrb[0].mxu0
    %3989 = vmatprep.mubr.bf16.mxu0 %v1190
    %3990 = vmatmul.mubr.bf16.gmra.mrb[0].mxu0 %v2312
    %v3991 = vpop.f32.mrb[0].mxu0
    %v3992 = vadd.f32 %v3447, %v3991
    %v3993 = vpop.f32.mrb[0].mxu0
    %v3994 = vpop.f32.mrb[0].mxu0
    %v3995 = vadd.f32 %v3450, %v3994
    %v3996 = vpop.f32.mrb[0].mxu0
    %3997 = vmatprep.mubr.bf16.mxu0 %v1191
    %3998 = vmatmul.mubr.bf16.gmra.mrb[0].mxu0 %v2315
    %v3999 = vpop.f32.mrb[0].mxu0
    %v4000 = vadd.f32 %v3455, %v3999
    %v4001 = vpop.f32.mrb[0].mxu0
    %v4002 = vpop.f32.mrb[0].mxu0
    %v4003 = vadd.f32 %v3458, %v4002
    %v4004 = vpop.f32.mrb[0].mxu0
    %4005 = vmatprep.mubr.bf16.mxu0 %v1192
    %4006 = vmatmul.mubr.bf16.gmra.mrb[0].mxu0 %v2318
    %v4007 = vpop.f32.mrb[0].mxu0
    %v4008 = vadd.f32 %v3463, %v4007
    %v4009 = vpop.f32.mrb[0].mxu0
    %v4010 = vpop.f32.mrb[0].mxu0
    %v4011 = vadd.f32 %v3466, %v4010
    %v4012 = vpop.f32.mrb[0].mxu0
    %4013 = vmatprep.mubr.bf16.mxu0 %v1193
    %4014 = vmatmul.mubr.bf16.gmra.mrb[0].mxu0 %v2321
    %v4015 = vpop.f32.mrb[0].mxu0
    %v4016 = vadd.f32 %v3471, %v4015
    %v4017 = vpop.f32.mrb[0].mxu0
    %v4018 = vpop.f32.mrb[0].mxu0
    %v4019 = vadd.f32 %v3474, %v4018
    %v4020 = vpop.f32.mrb[0].mxu0
    %4021 = vmatprep.mubr.bf16.mxu0 %v1194
    %4022 = vmatmul.mubr.bf16.gmra.mrb[0].mxu0 %v2324
    %v4023 = vpop.f32.mrb[0].mxu0
    %v4024 = vadd.f32 %v3479, %v4023
    %v4025 = vpop.f32.mrb[0].mxu0
    %v4026 = vpop.f32.mrb[0].mxu0
    %v4027 = vadd.f32 %v3482, %v4026
    %v4028 = vpop.f32.mrb[0].mxu0
    %4029 = vmatprep.mubr.bf16.mxu0 %v1195
    %4030 = vmatmul.mubr.bf16.gmra.mrb[0].mxu0 %v2327
    %v4031 = vpop.f32.mrb[0].mxu0
    %v4032 = vadd.f32 %v3487, %v4031
    %v4033 = vpop.f32.mrb[0].mxu0
    %v4034 = vpop.f32.mrb[0].mxu0
    %v4035 = vadd.f32 %v3490, %v4034
    %v4036 = vpop.f32.mrb[0].mxu0
    %4037 = vmatprep.mubr.bf16.mxu0 %v1196
    %4038 = vmatmul.mubr.bf16.gmra.mrb[0].mxu0 %v2330
    %v4039 = vpop.f32.mrb[0].mxu0
    %v4040 = vadd.f32 %v3495, %v4039
    %v4041 = vpop.f32.mrb[0].mxu0
    %v4042 = vpop.f32.mrb[0].mxu0
    %v4043 = vadd.f32 %v3498, %v4042
    %v4044 = vpop.f32.mrb[0].mxu0
    %4045 = vmatprep.mubr.bf16.mxu0 %v1197
    %4046 = vmatmul.mubr.bf16.gmra.mrb[0].mxu0 %v2333
    %v4047 = vpop.f32.mrb[0].mxu0
    %v4048 = vadd.f32 %v3503, %v4047
    %v4049 = vpop.f32.mrb[0].mxu0
    %v4050 = vpop.f32.mrb[0].mxu0
    %v4051 = vadd.f32 %v3506, %v4050
    %v4052 = vpop.f32.mrb[0].mxu0
    %4053 = vmatprep.mubr.bf16.mxu0 %v1198
    %4054 = vmatmul.mubr.bf16.gmra.mrb[0].mxu0 %v2198
    %v4055 = vpop.f32.mrb[0].mxu0
    %v4056 = vadd.f32 %v3511, %v4055
    %v4057 = vpop.f32.mrb[0].mxu0
    %v4058 = vpop.f32.mrb[0].mxu0
    %v4059 = vadd.f32 %v3514, %v4058
    %v4060 = vpop.f32.mrb[0].mxu0
    %4061 = vmatprep.mubr.bf16.mxu0 %v1199
    %4062 = vmatmul.mubr.bf16.gmra.mrb[0].mxu0 %v2336
    %v4063 = vpop.f32.mrb[0].mxu0
    %v4064 = vadd.f32 %v3519, %v4063
    %v4065 = vpop.f32.mrb[0].mxu0
    %v4066 = vpop.f32.mrb[0].mxu0
    %v4067 = vadd.f32 %v3522, %v4066
    %v4068 = vpop.f32.mrb[0].mxu0
    %4069 = vmatprep.mubr.bf16.mxu0 %v1200
    %4070 = vmatmul.mubr.bf16.gmra.mrb[0].mxu0 %v2339
    %v4071 = vpop.f32.mrb[0].mxu0
    %v4072 = vadd.f32 %v3527, %v4071
    %v4073 = vpop.f32.mrb[0].mxu0
    %v4074 = vpop.f32.mrb[0].mxu0
    %v4075 = vadd.f32 %v3530, %v4074
    %v4076 = vpop.f32.mrb[0].mxu0
    %4077 = vmatprep.mubr.bf16.mxu0 %v1201
    %4078 = vmatmul.mubr.bf16.gmra.mrb[0].mxu0 %v2342
    %v4079 = vpop.f32.mrb[0].mxu0
    %v4080 = vadd.f32 %v3535, %v4079
    %v4081 = vpop.f32.mrb[0].mxu0
    %v4082 = vpop.f32.mrb[0].mxu0
    %v4083 = vadd.f32 %v3538, %v4082
    %v4084 = vpop.f32.mrb[0].mxu0
    %4085 = vmatprep.mubr.bf16.mxu0 %v1202
    %4086 = vmatmul.mubr.bf16.gmra.mrb[0].mxu0 %v2345
    %v4087 = vpop.f32.mrb[0].mxu0
    %v4088 = vadd.f32 %v3543, %v4087
    %v4089 = vpop.f32.mrb[0].mxu0
    %v4090 = vpop.f32.mrb[0].mxu0
    %v4091 = vadd.f32 %v3546, %v4090
    %v4092 = vpop.f32.mrb[0].mxu0
    %4093 = vmatprep.mubr.bf16.mxu0 %v1203
    %4094 = vmatmul.mubr.bf16.gmra.mrb[0].mxu0 %v2348
    %v4095 = vpop.f32.mrb[0].mxu0
    %v4096 = vadd.f32 %v3551, %v4095
    %v4097 = vpop.f32.mrb[0].mxu0
    %v4098 = vpop.f32.mrb[0].mxu0
    %v4099 = vadd.f32 %v3554, %v4098
    %v4100 = vpop.f32.mrb[0].mxu0
    %4101 = vmatprep.mubr.bf16.mxu0 %v1204
    %4102 = vmatmul.mubr.bf16.gmra.mrb[0].mxu0 %v2351
    %v4103 = vpop.f32.mrb[0].mxu0
    %v4104 = vadd.f32 %v3559, %v4103
    %v4105 = vpop.f32.mrb[0].mxu0
    %v4106 = vpop.f32.mrb[0].mxu0
    %v4107 = vadd.f32 %v3562, %v4106
    %v4108 = vpop.f32.mrb[0].mxu0
    %4109 = vmatprep.mubr.bf16.mxu0 %v1205
    %4110 = vmatmul.mubr.bf16.gmra.mrb[0].mxu0 %v2354
    %v4111 = vpop.f32.mrb[0].mxu0
    %v4112 = vadd.f32 %v3567, %v4111
    %v4113 = vpop.f32.mrb[0].mxu0
    %v4114 = vpop.f32.mrb[0].mxu0
    %v4115 = vadd.f32 %v3570, %v4114
    %v4116 = vpop.f32.mrb[0].mxu0
    %4117 = vmatprep.mubr.bf16.mxu0 %v1206
    %4118 = vmatmul.mubr.bf16.gmra.mrb[0].mxu0 %v2357
    %v4119 = vpop.f32.mrb[0].mxu0
    %v4120 = vadd.f32 %v3575, %v4119
    %v4121 = vpop.f32.mrb[0].mxu0
    %v4122 = vpop.f32.mrb[0].mxu0
    %v4123 = vadd.f32 %v3578, %v4122
    %v4124 = vpop.f32.mrb[0].mxu0
    %4125 = vmatprep.mubr.bf16.mxu0 %v1207
    %4126 = vmatmul.mubr.bf16.gmra.mrb[0].mxu0 %v2360
    %v4127 = vpop.f32.mrb[0].mxu0
    %v4128 = vadd.f32 %v3583, %v4127
    %v4129 = vpop.f32.mrb[0].mxu0
    %v4130 = vpop.f32.mrb[0].mxu0
    %v4131 = vadd.f32 %v3586, %v4130
    %v4132 = vpop.f32.mrb[0].mxu0
    %4133 = vmatprep.mubr.bf16.mxu0 %v1208
    %4134 = vmatmul.mubr.bf16.gmra.mrb[0].mxu0 %v2363
    %v4135 = vpop.f32.mrb[0].mxu0
    %v4136 = vadd.f32 %v3591, %v4135
    %v4137 = vpop.f32.mrb[0].mxu0
    %v4138 = vpop.f32.mrb[0].mxu0
    %v4139 = vadd.f32 %v3594, %v4138
    %v4140 = vpop.f32.mrb[0].mxu0
    %4141 = vmatprep.mubr.bf16.mxu0 %v1209
    %4142 = vmatmul.mubr.bf16.gmra.mrb[0].mxu0 %v2366
    %v4143 = vpop.f32.mrb[0].mxu0
    %v4144 = vadd.f32 %v3599, %v4143
    %v4145 = vpop.f32.mrb[0].mxu0
    %v4146 = vpop.f32.mrb[0].mxu0
    %v4147 = vadd.f32 %v3602, %v4146
    %v4148 = vpop.f32.mrb[0].mxu0
    %4149 = vmatprep.mubr.bf16.mxu0 %v1210
    %4150 = vmatmul.mubr.bf16.gmra.mrb[0].mxu0 %v2369
    %v4151 = vpop.f32.mrb[0].mxu0
    %v4152 = vadd.f32 %v3607, %v4151
    %v4153 = vpop.f32.mrb[0].mxu0
    %v4154 = vpop.f32.mrb[0].mxu0
    %v4155 = vadd.f32 %v3610, %v4154
    %v4156 = vpop.f32.mrb[0].mxu0
    %4157 = vmatprep.mubr.bf16.mxu0 %v1211
    %4158 = vmatmul.mubr.bf16.gmra.mrb[0].mxu0 %v2372
    %v4159 = vpop.f32.mrb[0].mxu0
    %v4160 = vadd.f32 %v3615, %v4159
    %v4161 = vpop.f32.mrb[0].mxu0
    %v4162 = vpop.f32.mrb[0].mxu0
    %v4163 = vadd.f32 %v3618, %v4162
    %v4164 = vpop.f32.mrb[0].mxu0
    %4165 = vmatprep.mubr.bf16.mxu0 %v1212
    %4166 = vmatmul.mubr.bf16.gmra.mrb[0].mxu0 %v2375
    %v4167 = vpop.f32.mrb[0].mxu0
    %v4168 = vadd.f32 %v3623, %v4167
    %v4169 = vpop.f32.mrb[0].mxu0
    %v4170 = vpop.f32.mrb[0].mxu0
    %v4171 = vadd.f32 %v3626, %v4170
    %v4172 = vpop.f32.mrb[0].mxu0
    %4173 = vmatprep.mubr.bf16.mxu0 %v1213
    %4174 = vmatmul.mubr.bf16.gmra.mrb[0].mxu0 %v2378
    %v4175 = vpop.f32.mrb[0].mxu0
    %v4176 = vadd.f32 %v3631, %v4175
    %v4177 = vpop.f32.mrb[0].mxu0
    %v4178 = vpop.f32.mrb[0].mxu0
    %v4179 = vadd.f32 %v3634, %v4178
    %v4180 = vpop.f32.mrb[0].mxu0
    %4181 = vdwg.mxu0
    %4182 = vmatprep.subr.bf16.mxu0 0
    %4183 = vmatpush1.bf16.msra.mxu0 %v2980
    %4184 = vmatprep.subr.bf16.mxu0 0
    %4185 = vmatpush1.bf16.msra.mxu0 %v2981
    %4186 = vmatprep.subr.bf16.mxu0 0
    %4187 = vmatpush1.bf16.msra.mxu0 %v2982
    %4188 = vmatprep.subr.bf16.mxu0 0
    %4189 = vmatpush1.bf16.msra.mxu0 %v2983
    %4190 = vmatprep.subr.bf16.mxu0 0
    %4191 = vmatpush1.bf16.msra.mxu0 %v2984
    %4192 = vmatprep.subr.bf16.mxu0 0
    %4193 = vmatpush1.bf16.msra.mxu0 %v2985
    %4194 = vmatprep.subr.bf16.mxu0 0
    %4195 = vmatpush1.bf16.msra.mxu0 %v2986
    %4196 = vmatprep.subr.bf16.mxu0 0
    %4197 = vmatpush1.bf16.msra.mxu0 %v2987
    %4198 = vmatprep.subr.bf16.mxu0 0
    %4199 = vmatpush1.bf16.msra.mxu0 %v2988
    %4200 = vmatprep.subr.bf16.mxu0 0
    %4201 = vmatpush1.bf16.msra.mxu0 %v2989
    %4202 = vmatprep.subr.bf16.mxu0 0
    %4203 = vmatpush1.bf16.msra.mxu0 %v2990
    %4204 = vmatprep.subr.bf16.mxu0 0
    %4205 = vmatpush1.bf16.msra.mxu0 %v2991
    %4206 = vmatprep.subr.bf16.mxu0 0
    %4207 = vmatpush1.bf16.msra.mxu0 %v2992
    %4208 = vmatprep.subr.bf16.mxu0 0
    %4209 = vmatpush1.bf16.msra.mxu0 %v2993
    %4210 = vmatprep.subr.bf16.mxu0 0
    %4211 = vmatpush1.bf16.msra.mxu0 %v2994
    %4212 = vmatprep.subr.bf16.mxu0 0
    %4213 = vmatpush1.bf16.msra.mxu0 %v2995
    %4214 = vmatprep.mubr.bf16.mxu0 %v2201
    %4215 = vmatmul.mubr.bf16.gmra.mrb[0].mxu0 %v1303
    %v4216 = vpop.f32.mrb[0].mxu0
    %v4217 = vadd.f32 %v3672, %v4216
    %v4218 = vpop.f32.mrb[0].mxu0
    %v4219 = vpop.f32.mrb[0].mxu0
    %v4220 = vadd.f32 %v3675, %v4219
    %v4221 = vpop.f32.mrb[0].mxu0
    %4222 = vmatprep.mubr.bf16.mxu0 %v2204
    %4223 = vmatmul.mubr.bf16.gmra.mrb[0].mxu0 %v1315
    %v4224 = vpop.f32.mrb[0].mxu0
    %v4225 = vadd.f32 %v3680, %v4224
    %v4226 = vpop.f32.mrb[0].mxu0
    %v4227 = vpop.f32.mrb[0].mxu0
    %v4228 = vadd.f32 %v3683, %v4227
    %v4229 = vpop.f32.mrb[0].mxu0
    %4230 = vmatprep.mubr.bf16.mxu0 %v2207
    %4231 = vmatmul.mubr.bf16.gmra.mrb[0].mxu0 %v1327
    %v4232 = vpop.f32.mrb[0].mxu0
    %v4233 = vadd.f32 %v3688, %v4232
    %v4234 = vpop.f32.mrb[0].mxu0
    %v4235 = vpop.f32.mrb[0].mxu0
    %v4236 = vadd.f32 %v3691, %v4235
    %v4237 = vpop.f32.mrb[0].mxu0
    %4238 = vmatprep.mubr.bf16.mxu0 %v2210
    %4239 = vmatmul.mubr.bf16.gmra.mrb[0].mxu0 %v1339
    %v4240 = vpop.f32.mrb[0].mxu0
    %v4241 = vadd.f32 %v3696, %v4240
    %v4242 = vpop.f32.mrb[0].mxu0
    %v4243 = vpop.f32.mrb[0].mxu0
    %v4244 = vadd.f32 %v3699, %v4243
    %v4245 = vpop.f32.mrb[0].mxu0
    %4246 = vmatprep.mubr.bf16.mxu0 %v2213
    %4247 = vmatmul.mubr.bf16.gmra.mrb[0].mxu0 %v1351
    %v4248 = vpop.f32.mrb[0].mxu0
    %v4249 = vadd.f32 %v3704, %v4248
    %v4250 = vpop.f32.mrb[0].mxu0
    %v4251 = vpop.f32.mrb[0].mxu0
    %v4252 = vadd.f32 %v3707, %v4251
    %v4253 = vpop.f32.mrb[0].mxu0
    %4254 = vmatprep.mubr.bf16.mxu0 %v2216
    %4255 = vmatmul.mubr.bf16.gmra.mrb[0].mxu0 %v1363
    %v4256 = vpop.f32.mrb[0].mxu0
    %v4257 = vadd.f32 %v3712, %v4256
    %v4258 = vpop.f32.mrb[0].mxu0
    %v4259 = vpop.f32.mrb[0].mxu0
    %v4260 = vadd.f32 %v3715, %v4259
    %v4261 = vpop.f32.mrb[0].mxu0
    %4262 = vmatprep.mubr.bf16.mxu0 %v2219
    %4263 = vmatmul.mubr.bf16.gmra.mrb[0].mxu0 %v1375
    %v4264 = vpop.f32.mrb[0].mxu0
    %v4265 = vadd.f32 %v3720, %v4264
    %v4266 = vpop.f32.mrb[0].mxu0
    %v4267 = vpop.f32.mrb[0].mxu0
    %v4268 = vadd.f32 %v3723, %v4267
    %v4269 = vpop.f32.mrb[0].mxu0
    %4270 = vmatprep.mubr.bf16.mxu0 %v2222
    %4271 = vmatmul.mubr.bf16.gmra.mrb[0].mxu0 %v1387
    %v4272 = vpop.f32.mrb[0].mxu0
    %v4273 = vadd.f32 %v3728, %v4272
    %v4274 = vpop.f32.mrb[0].mxu0
    %v4275 = vpop.f32.mrb[0].mxu0
    %v4276 = vadd.f32 %v3731, %v4275
    %v4277 = vpop.f32.mrb[0].mxu0
    %4278 = vmatprep.mubr.bf16.mxu0 %v2225
    %4279 = vmatmul.mubr.bf16.gmra.mrb[0].mxu0 %v1399
    %v4280 = vpop.f32.mrb[0].mxu0
    %v4281 = vadd.f32 %v3736, %v4280
    %v4282 = vpop.f32.mrb[0].mxu0
    %v4283 = vpop.f32.mrb[0].mxu0
    %v4284 = vadd.f32 %v3739, %v4283
    %v4285 = vpop.f32.mrb[0].mxu0
    %4286 = vmatprep.mubr.bf16.mxu0 %v2228
    %4287 = vmatmul.mubr.bf16.gmra.mrb[0].mxu0 %v1411
    %v4288 = vpop.f32.mrb[0].mxu0
    %v4289 = vadd.f32 %v3744, %v4288
    %v4290 = vpop.f32.mrb[0].mxu0
    %v4291 = vpop.f32.mrb[0].mxu0
    %v4292 = vadd.f32 %v3747, %v4291
    %v4293 = vpop.f32.mrb[0].mxu0
    %4294 = vmatprep.mubr.bf16.mxu0 %v2231
    %4295 = vmatmul.mubr.bf16.gmra.mrb[0].mxu0 %v1423
    %v4296 = vpop.f32.mrb[0].mxu0
    %v4297 = vadd.f32 %v3752, %v4296
    %v4298 = vpop.f32.mrb[0].mxu0
    %v4299 = vpop.f32.mrb[0].mxu0
    %v4300 = vadd.f32 %v3755, %v4299
    %v4301 = vpop.f32.mrb[0].mxu0
    %4302 = vmatprep.mubr.bf16.mxu0 %v2234
    %4303 = vmatmul.mubr.bf16.gmra.mrb[0].mxu0 %v1435
    %v4304 = vpop.f32.mrb[0].mxu0
    %v4305 = vadd.f32 %v3760, %v4304
    %v4306 = vpop.f32.mrb[0].mxu0
    %v4307 = vpop.f32.mrb[0].mxu0
    %v4308 = vadd.f32 %v3763, %v4307
    %v4309 = vpop.f32.mrb[0].mxu0
    %4310 = vmatprep.mubr.bf16.mxu0 %v2237
    %4311 = vmatmul.mubr.bf16.gmra.mrb[0].mxu0 %v1447
    %v4312 = vpop.f32.mrb[0].mxu0
    %v4313 = vadd.f32 %v3768, %v4312
    %v4314 = vpop.f32.mrb[0].mxu0
    %v4315 = vpop.f32.mrb[0].mxu0
    %v4316 = vadd.f32 %v3771, %v4315
    %v4317 = vpop.f32.mrb[0].mxu0
    %4318 = vmatprep.mubr.bf16.mxu0 %v2240
    %4319 = vmatmul.mubr.bf16.gmra.mrb[0].mxu0 %v1459
    %v4320 = vpop.f32.mrb[0].mxu0
    %v4321 = vadd.f32 %v3776, %v4320
    %v4322 = vpop.f32.mrb[0].mxu0
    %v4323 = vpop.f32.mrb[0].mxu0
    %v4324 = vadd.f32 %v3779, %v4323
    %v4325 = vpop.f32.mrb[0].mxu0
    %4326 = vmatprep.mubr.bf16.mxu0 %v2243
    %4327 = vmatmul.mubr.bf16.gmra.mrb[0].mxu0 %v1471
    %v4328 = vpop.f32.mrb[0].mxu0
    %v4329 = vadd.f32 %v3784, %v4328
    %v4330 = vpop.f32.mrb[0].mxu0
    %v4331 = vpop.f32.mrb[0].mxu0
    %v4332 = vadd.f32 %v3787, %v4331
    %v4333 = vpop.f32.mrb[0].mxu0
    %4334 = vmatprep.mubr.bf16.mxu0 %v2502
    %4335 = vmatmul.mubr.bf16.gmra.mrb[0].mxu0 %v2451
    %v4336 = vpop.f32.mrb[0].mxu0
    %v4337 = vadd.f32 %v3792, %v4336
    %v4338 = vpop.f32.mrb[0].mxu0
    %v4339 = vpop.f32.mrb[0].mxu0
    %v4340 = vadd.f32 %v3795, %v4339
    %v4341 = vpop.f32.mrb[0].mxu0
    %4342 = vmatprep.mubr.bf16.mxu0 %v2246
    %4343 = vmatmul.mubr.bf16.gmra.mrb[0].mxu0 %v1483
    %v4344 = vpop.f32.mrb[0].mxu0
    %v4345 = vadd.f32 %v3800, %v4344
    %v4346 = vpop.f32.mrb[0].mxu0
    %v4347 = vpop.f32.mrb[0].mxu0
    %v4348 = vadd.f32 %v3803, %v4347
    %v4349 = vpop.f32.mrb[0].mxu0
    %4350 = vmatprep.mubr.bf16.mxu0 %v2249
    %4351 = vmatmul.mubr.bf16.gmra.mrb[0].mxu0 %v1495
    %v4352 = vpop.f32.mrb[0].mxu0
    %v4353 = vadd.f32 %v3808, %v4352
    %v4354 = vpop.f32.mrb[0].mxu0
    %v4355 = vpop.f32.mrb[0].mxu0
    %v4356 = vadd.f32 %v3811, %v4355
    %v4357 = vpop.f32.mrb[0].mxu0
    %4358 = vmatprep.mubr.bf16.mxu0 %v2252
    %4359 = vmatmul.mubr.bf16.gmra.mrb[0].mxu0 %v1507
    %v4360 = vpop.f32.mrb[0].mxu0
    %v4361 = vadd.f32 %v3816, %v4360
    %v4362 = vpop.f32.mrb[0].mxu0
    %v4363 = vpop.f32.mrb[0].mxu0
    %v4364 = vadd.f32 %v3819, %v4363
    %v4365 = vpop.f32.mrb[0].mxu0
    %4366 = vmatprep.mubr.bf16.mxu0 %v2255
    %4367 = vmatmul.mubr.bf16.gmra.mrb[0].mxu0 %v1519
    %v4368 = vpop.f32.mrb[0].mxu0
    %v4369 = vadd.f32 %v3824, %v4368
    %v4370 = vpop.f32.mrb[0].mxu0
    %v4371 = vpop.f32.mrb[0].mxu0
    %v4372 = vadd.f32 %v3827, %v4371
    %v4373 = vpop.f32.mrb[0].mxu0
    %4374 = vmatprep.mubr.bf16.mxu0 %v2258
    %4375 = vmatmul.mubr.bf16.gmra.mrb[0].mxu0 %v1531
    %v4376 = vpop.f32.mrb[0].mxu0
    %v4377 = vadd.f32 %v3832, %v4376
    %v4378 = vpop.f32.mrb[0].mxu0
    %v4379 = vpop.f32.mrb[0].mxu0
    %v4380 = vadd.f32 %v3835, %v4379
    %v4381 = vpop.f32.mrb[0].mxu0
    %4382 = vmatprep.mubr.bf16.mxu0 %v2261
    %4383 = vmatmul.mubr.bf16.gmra.mrb[0].mxu0 %v1543
    %v4384 = vpop.f32.mrb[0].mxu0
    %v4385 = vadd.f32 %v3840, %v4384
    %v4386 = vpop.f32.mrb[0].mxu0
    %v4387 = vpop.f32.mrb[0].mxu0
    %v4388 = vadd.f32 %v3843, %v4387
    %v4389 = vpop.f32.mrb[0].mxu0
    %4390 = vmatprep.mubr.bf16.mxu0 %v2264
    %4391 = vmatmul.mubr.bf16.gmra.mrb[0].mxu0 %v1555
    %v4392 = vpop.f32.mrb[0].mxu0
    %v4393 = vadd.f32 %v3848, %v4392
    %v4394 = vpop.f32.mrb[0].mxu0
    %v4395 = vpop.f32.mrb[0].mxu0
    %v4396 = vadd.f32 %v3851, %v4395
    %v4397 = vpop.f32.mrb[0].mxu0
    %4398 = vmatprep.mubr.bf16.mxu0 %v2267
    %4399 = vmatmul.mubr.bf16.gmra.mrb[0].mxu0 %v1567
    %v4400 = vpop.f32.mrb[0].mxu0
    %v4401 = vadd.f32 %v3856, %v4400
    %v4402 = vpop.f32.mrb[0].mxu0
    %v4403 = vpop.f32.mrb[0].mxu0
    %v4404 = vadd.f32 %v3859, %v4403
    %v4405 = vpop.f32.mrb[0].mxu0
    %4406 = vmatprep.mubr.bf16.mxu0 %v2270
    %4407 = vmatmul.mubr.bf16.gmra.mrb[0].mxu0 %v1579
    %v4408 = vpop.f32.mrb[0].mxu0
    %v4409 = vadd.f32 %v3864, %v4408
    %v4410 = vpop.f32.mrb[0].mxu0
    %v4411 = vpop.f32.mrb[0].mxu0
    %v4412 = vadd.f32 %v3867, %v4411
    %v4413 = vpop.f32.mrb[0].mxu0
    %4414 = vmatprep.mubr.bf16.mxu0 %v2273
    %4415 = vmatmul.mubr.bf16.gmra.mrb[0].mxu0 %v1591
    %v4416 = vpop.f32.mrb[0].mxu0
    %v4417 = vadd.f32 %v3872, %v4416
    %v4418 = vpop.f32.mrb[0].mxu0
    %v4419 = vpop.f32.mrb[0].mxu0
    %v4420 = vadd.f32 %v3875, %v4419
    %v4421 = vpop.f32.mrb[0].mxu0
    %4422 = vmatprep.mubr.bf16.mxu0 %v2276
    %4423 = vmatmul.mubr.bf16.gmra.mrb[0].mxu0 %v1603
    %v4424 = vpop.f32.mrb[0].mxu0
    %v4425 = vadd.f32 %v3880, %v4424
    %v4426 = vpop.f32.mrb[0].mxu0
    %v4427 = vpop.f32.mrb[0].mxu0
    %v4428 = vadd.f32 %v3883, %v4427
    %v4429 = vpop.f32.mrb[0].mxu0
    %4430 = vmatprep.mubr.bf16.mxu0 %v2279
    %4431 = vmatmul.mubr.bf16.gmra.mrb[0].mxu0 %v1615
    %v4432 = vpop.f32.mrb[0].mxu0
    %v4433 = vadd.f32 %v3888, %v4432
    %v4434 = vpop.f32.mrb[0].mxu0
    %v4435 = vpop.f32.mrb[0].mxu0
    %v4436 = vadd.f32 %v3891, %v4435
    %v4437 = vpop.f32.mrb[0].mxu0
    %4438 = vmatprep.mubr.bf16.mxu0 %v2282
    %4439 = vmatmul.mubr.bf16.gmra.mrb[0].mxu0 %v1627
    %v4440 = vpop.f32.mrb[0].mxu0
    %v4441 = vadd.f32 %v3896, %v4440
    %v4442 = vpop.f32.mrb[0].mxu0
    %v4443 = vpop.f32.mrb[0].mxu0
    %v4444 = vadd.f32 %v3899, %v4443
    %v4445 = vpop.f32.mrb[0].mxu0
    %4446 = vmatprep.mubr.bf16.mxu0 %v2285
    %4447 = vmatmul.mubr.bf16.gmra.mrb[0].mxu0 %v1639
    %v4448 = vpop.f32.mrb[0].mxu0
    %v4449 = vadd.f32 %v3904, %v4448
    %v4450 = vpop.f32.mrb[0].mxu0
    %v4451 = vpop.f32.mrb[0].mxu0
    %v4452 = vadd.f32 %v3907, %v4451
    %v4453 = vpop.f32.mrb[0].mxu0
    %4454 = vmatprep.mubr.bf16.mxu0 %v2288
    %4455 = vmatmul.mubr.bf16.gmra.mrb[0].mxu0 %v1651
    %v4456 = vpop.f32.mrb[0].mxu0
    %v4457 = vadd.f32 %v3912, %v4456
    %v4458 = vpop.f32.mrb[0].mxu0
    %v4459 = vpop.f32.mrb[0].mxu0
    %v4460 = vadd.f32 %v3915, %v4459
    %v4461 = vpop.f32.mrb[0].mxu0
    %4462 = vmatprep.mubr.bf16.mxu0 %v2505
    %4463 = vmatmul.mubr.bf16.gmra.mrb[0].mxu0 %v2463
    %v4464 = vpop.f32.mrb[0].mxu0
    %v4465 = vadd.f32 %v3920, %v4464
    %v4466 = vpop.f32.mrb[0].mxu0
    %v4467 = vpop.f32.mrb[0].mxu0
    %v4468 = vadd.f32 %v3923, %v4467
    %v4469 = vpop.f32.mrb[0].mxu0
    %4470 = vmatprep.mubr.bf16.mxu0 %v2291
    %4471 = vmatmul.mubr.bf16.gmra.mrb[0].mxu0 %v1663
    %v4472 = vpop.f32.mrb[0].mxu0
    %v4473 = vadd.f32 %v3928, %v4472
    %v4474 = vpop.f32.mrb[0].mxu0
    %v4475 = vpop.f32.mrb[0].mxu0
    %v4476 = vadd.f32 %v3931, %v4475
    %v4477 = vpop.f32.mrb[0].mxu0
    %4478 = vmatprep.mubr.bf16.mxu0 %v2294
    %4479 = vmatmul.mubr.bf16.gmra.mrb[0].mxu0 %v1675
    %v4480 = vpop.f32.mrb[0].mxu0
    %v4481 = vadd.f32 %v3936, %v4480
    %v4482 = vpop.f32.mrb[0].mxu0
    %v4483 = vpop.f32.mrb[0].mxu0
    %v4484 = vadd.f32 %v3939, %v4483
    %v4485 = vpop.f32.mrb[0].mxu0
    %4486 = vmatprep.mubr.bf16.mxu0 %v2297
    %4487 = vmatmul.mubr.bf16.gmra.mrb[0].mxu0 %v1687
    %v4488 = vpop.f32.mrb[0].mxu0
    %v4489 = vadd.f32 %v3944, %v4488
    %v4490 = vpop.f32.mrb[0].mxu0
    %v4491 = vpop.f32.mrb[0].mxu0
    %v4492 = vadd.f32 %v3947, %v4491
    %v4493 = vpop.f32.mrb[0].mxu0
    %4494 = vmatprep.mubr.bf16.mxu0 %v2300
    %4495 = vmatmul.mubr.bf16.gmra.mrb[0].mxu0 %v1699
    %v4496 = vpop.f32.mrb[0].mxu0
    %v4497 = vadd.f32 %v3952, %v4496
    %v4498 = vpop.f32.mrb[0].mxu0
    %v4499 = vpop.f32.mrb[0].mxu0
    %v4500 = vadd.f32 %v3955, %v4499
    %v4501 = vpop.f32.mrb[0].mxu0
    %4502 = vmatprep.mubr.bf16.mxu0 %v2303
    %4503 = vmatmul.mubr.bf16.gmra.mrb[0].mxu0 %v1711
    %v4504 = vpop.f32.mrb[0].mxu0
    %v4505 = vadd.f32 %v3960, %v4504
    %v4506 = vpop.f32.mrb[0].mxu0
    %v4507 = vpop.f32.mrb[0].mxu0
    %v4508 = vadd.f32 %v3963, %v4507
    %v4509 = vpop.f32.mrb[0].mxu0
    %4510 = vmatprep.mubr.bf16.mxu0 %v2306
    %4511 = vmatmul.mubr.bf16.gmra.mrb[0].mxu0 %v1723
    %v4512 = vpop.f32.mrb[0].mxu0
    %v4513 = vadd.f32 %v3968, %v4512
    %v4514 = vpop.f32.mrb[0].mxu0
    %v4515 = vpop.f32.mrb[0].mxu0
    %v4516 = vadd.f32 %v3971, %v4515
    %v4517 = vpop.f32.mrb[0].mxu0
    %4518 = vmatprep.mubr.bf16.mxu0 %v2309
    %4519 = vmatmul.mubr.bf16.gmra.mrb[0].mxu0 %v1735
    %v4520 = vpop.f32.mrb[0].mxu0
    %v4521 = vadd.f32 %v3976, %v4520
    %v4522 = vpop.f32.mrb[0].mxu0
    %v4523 = vpop.f32.mrb[0].mxu0
    %v4524 = vadd.f32 %v3979, %v4523
    %v4525 = vpop.f32.mrb[0].mxu0
    %4526 = vmatprep.mubr.bf16.mxu0 %v2312
    %4527 = vmatmul.mubr.bf16.gmra.mrb[0].mxu0 %v1747
    %v4528 = vpop.f32.mrb[0].mxu0
    %v4529 = vadd.f32 %v3984, %v4528
    %v4530 = vpop.f32.mrb[0].mxu0
    %v4531 = vpop.f32.mrb[0].mxu0
    %v4532 = vadd.f32 %v3987, %v4531
    %v4533 = vpop.f32.mrb[0].mxu0
    %4534 = vmatprep.mubr.bf16.mxu0 %v2315
    %4535 = vmatmul.mubr.bf16.gmra.mrb[0].mxu0 %v1759
    %v4536 = vpop.f32.mrb[0].mxu0
    %v4537 = vadd.f32 %v3992, %v4536
    %v4538 = vpop.f32.mrb[0].mxu0
    %v4539 = vpop.f32.mrb[0].mxu0
    %v4540 = vadd.f32 %v3995, %v4539
    %v4541 = vpop.f32.mrb[0].mxu0
    %4542 = vmatprep.mubr.bf16.mxu0 %v2318
    %4543 = vmatmul.mubr.bf16.gmra.mrb[0].mxu0 %v1771
    %v4544 = vpop.f32.mrb[0].mxu0
    %v4545 = vadd.f32 %v4000, %v4544
    %v4546 = vpop.f32.mrb[0].mxu0
    %v4547 = vpop.f32.mrb[0].mxu0
    %v4548 = vadd.f32 %v4003, %v4547
    %v4549 = vpop.f32.mrb[0].mxu0
    %4550 = vmatprep.mubr.bf16.mxu0 %v2321
    %4551 = vmatmul.mubr.bf16.gmra.mrb[0].mxu0 %v1783
    %v4552 = vpop.f32.mrb[0].mxu0
    %v4553 = vadd.f32 %v4008, %v4552
    %v4554 = vpop.f32.mrb[0].mxu0
    %v4555 = vpop.f32.mrb[0].mxu0
    %v4556 = vadd.f32 %v4011, %v4555
    %v4557 = vpop.f32.mrb[0].mxu0
    %4558 = vmatprep.mubr.bf16.mxu0 %v2324
    %4559 = vmatmul.mubr.bf16.gmra.mrb[0].mxu0 %v1795
    %v4560 = vpop.f32.mrb[0].mxu0
    %v4561 = vadd.f32 %v4016, %v4560
    %v4562 = vpop.f32.mrb[0].mxu0
    %v4563 = vpop.f32.mrb[0].mxu0
    %v4564 = vadd.f32 %v4019, %v4563
    %v4565 = vpop.f32.mrb[0].mxu0
    %4566 = vmatprep.mubr.bf16.mxu0 %v2327
    %4567 = vmatmul.mubr.bf16.gmra.mrb[0].mxu0 %v1807
    %v4568 = vpop.f32.mrb[0].mxu0
    %v4569 = vadd.f32 %v4024, %v4568
    %v4570 = vpop.f32.mrb[0].mxu0
    %v4571 = vpop.f32.mrb[0].mxu0
    %v4572 = vadd.f32 %v4027, %v4571
    %v4573 = vpop.f32.mrb[0].mxu0
    %4574 = vmatprep.mubr.bf16.mxu0 %v2330
    %4575 = vmatmul.mubr.bf16.gmra.mrb[0].mxu0 %v1819
    %v4576 = vpop.f32.mrb[0].mxu0
    %v4577 = vadd.f32 %v4032, %v4576
    %v4578 = vpop.f32.mrb[0].mxu0
    %v4579 = vpop.f32.mrb[0].mxu0
    %v4580 = vadd.f32 %v4035, %v4579
    %v4581 = vpop.f32.mrb[0].mxu0
    %4582 = vmatprep.mubr.bf16.mxu0 %v2333
    %4583 = vmatmul.mubr.bf16.gmra.mrb[0].mxu0 %v1831
    %v4584 = vpop.f32.mrb[0].mxu0
    %v4585 = vadd.f32 %v4040, %v4584
    %v4586 = vpop.f32.mrb[0].mxu0
    %v4587 = vpop.f32.mrb[0].mxu0
    %v4588 = vadd.f32 %v4043, %v4587
    %v4589 = vpop.f32.mrb[0].mxu0
    %4590 = vmatprep.mubr.bf16.mxu0 %v2508
    %4591 = vmatmul.mubr.bf16.gmra.mrb[0].mxu0 %v2475
    %v4592 = vpop.f32.mrb[0].mxu0
    %v4593 = vadd.f32 %v4048, %v4592
    %v4594 = vpop.f32.mrb[0].mxu0
    %v4595 = vpop.f32.mrb[0].mxu0
    %v4596 = vadd.f32 %v4051, %v4595
    %v4597 = vpop.f32.mrb[0].mxu0
    %4598 = vmatprep.mubr.bf16.mxu0 %v2336
    %4599 = vmatmul.mubr.bf16.gmra.mrb[0].mxu0 %v1843
    %v4600 = vpop.f32.mrb[0].mxu0
    %v4601 = vadd.f32 %v4056, %v4600
    %v4602 = vpop.f32.mrb[0].mxu0
    %v4603 = vpop.f32.mrb[0].mxu0
    %v4604 = vadd.f32 %v4059, %v4603
    %v4605 = vpop.f32.mrb[0].mxu0
    %4606 = vmatprep.mubr.bf16.mxu0 %v2339
    %4607 = vmatmul.mubr.bf16.gmra.mrb[0].mxu0 %v1855
    %v4608 = vpop.f32.mrb[0].mxu0
    %v4609 = vadd.f32 %v4064, %v4608
    %v4610 = vpop.f32.mrb[0].mxu0
    %v4611 = vpop.f32.mrb[0].mxu0
    %v4612 = vadd.f32 %v4067, %v4611
    %v4613 = vpop.f32.mrb[0].mxu0
    %4614 = vmatprep.mubr.bf16.mxu0 %v2342
    %4615 = vmatmul.mubr.bf16.gmra.mrb[0].mxu0 %v1867
    %v4616 = vpop.f32.mrb[0].mxu0
    %v4617 = vadd.f32 %v4072, %v4616
    %v4618 = vpop.f32.mrb[0].mxu0
    %v4619 = vpop.f32.mrb[0].mxu0
    %v4620 = vadd.f32 %v4075, %v4619
    %v4621 = vpop.f32.mrb[0].mxu0
    %4622 = vmatprep.mubr.bf16.mxu0 %v2345
    %4623 = vmatmul.mubr.bf16.gmra.mrb[0].mxu0 %v1879
    %v4624 = vpop.f32.mrb[0].mxu0
    %v4625 = vadd.f32 %v4080, %v4624
    %v4626 = vpop.f32.mrb[0].mxu0
    %v4627 = vpop.f32.mrb[0].mxu0
    %v4628 = vadd.f32 %v4083, %v4627
    %v4629 = vpop.f32.mrb[0].mxu0
    %4630 = vmatprep.mubr.bf16.mxu0 %v2348
    %4631 = vmatmul.mubr.bf16.gmra.mrb[0].mxu0 %v1891
    %v4632 = vpop.f32.mrb[0].mxu0
    %v4633 = vadd.f32 %v4088, %v4632
    %v4634 = vpop.f32.mrb[0].mxu0
    %v4635 = vpop.f32.mrb[0].mxu0
    %v4636 = vadd.f32 %v4091, %v4635
    %v4637 = vpop.f32.mrb[0].mxu0
    %4638 = vmatprep.mubr.bf16.mxu0 %v2351
    %4639 = vmatmul.mubr.bf16.gmra.mrb[0].mxu0 %v1903
    %v4640 = vpop.f32.mrb[0].mxu0
    %v4641 = vadd.f32 %v4096, %v4640
    %v4642 = vpop.f32.mrb[0].mxu0
    %v4643 = vpop.f32.mrb[0].mxu0
    %v4644 = vadd.f32 %v4099, %v4643
    %v4645 = vpop.f32.mrb[0].mxu0
    %4646 = vmatprep.mubr.bf16.mxu0 %v2354
    %4647 = vmatmul.mubr.bf16.gmra.mrb[0].mxu0 %v1915
    %v4648 = vpop.f32.mrb[0].mxu0
    %v4649 = vadd.f32 %v4104, %v4648
    %v4650 = vpop.f32.mrb[0].mxu0
    %v4651 = vpop.f32.mrb[0].mxu0
    %v4652 = vadd.f32 %v4107, %v4651
    %v4653 = vpop.f32.mrb[0].mxu0
    %4654 = vmatprep.mubr.bf16.mxu0 %v2357
    %4655 = vmatmul.mubr.bf16.gmra.mrb[0].mxu0 %v1927
    %v4656 = vpop.f32.mrb[0].mxu0
    %v4657 = vadd.f32 %v4112, %v4656
    %v4658 = vpop.f32.mrb[0].mxu0
    %v4659 = vpop.f32.mrb[0].mxu0
    %v4660 = vadd.f32 %v4115, %v4659
    %v4661 = vpop.f32.mrb[0].mxu0
    %4662 = vmatprep.mubr.bf16.mxu0 %v2360
    %4663 = vmatmul.mubr.bf16.gmra.mrb[0].mxu0 %v1939
    %v4664 = vpop.f32.mrb[0].mxu0
    %v4665 = vadd.f32 %v4120, %v4664
    %v4666 = vpop.f32.mrb[0].mxu0
    %v4667 = vpop.f32.mrb[0].mxu0
    %v4668 = vadd.f32 %v4123, %v4667
    %v4669 = vpop.f32.mrb[0].mxu0
    %4670 = vmatprep.mubr.bf16.mxu0 %v2363
    %4671 = vmatmul.mubr.bf16.gmra.mrb[0].mxu0 %v1951
    %v4672 = vpop.f32.mrb[0].mxu0
    %v4673 = vadd.f32 %v4128, %v4672
    %v4674 = vpop.f32.mrb[0].mxu0
    %v4675 = vpop.f32.mrb[0].mxu0
    %v4676 = vadd.f32 %v4131, %v4675
    %v4677 = vpop.f32.mrb[0].mxu0
    %4678 = vmatprep.mubr.bf16.mxu0 %v2366
    %4679 = vmatmul.mubr.bf16.gmra.mrb[0].mxu0 %v1963
    %v4680 = vpop.f32.mrb[0].mxu0
    %v4681 = vadd.f32 %v4136, %v4680
    %v4682 = vpop.f32.mrb[0].mxu0
    %v4683 = vpop.f32.mrb[0].mxu0
    %v4684 = vadd.f32 %v4139, %v4683
    %v4685 = vpop.f32.mrb[0].mxu0
    %4686 = vmatprep.mubr.bf16.mxu0 %v2369
    %4687 = vmatmul.mubr.bf16.gmra.mrb[0].mxu0 %v1975
    %v4688 = vpop.f32.mrb[0].mxu0
    %v4689 = vadd.f32 %v4144, %v4688
    %v4690 = vpop.f32.mrb[0].mxu0
    %v4691 = vpop.f32.mrb[0].mxu0
    %v4692 = vadd.f32 %v4147, %v4691
    %v4693 = vpop.f32.mrb[0].mxu0
    %4694 = vmatprep.mubr.bf16.mxu0 %v2372
    %4695 = vmatmul.mubr.bf16.gmra.mrb[0].mxu0 %v1987
    %v4696 = vpop.f32.mrb[0].mxu0
    %v4697 = vadd.f32 %v4152, %v4696
    %v4698 = vpop.f32.mrb[0].mxu0
    %v4699 = vpop.f32.mrb[0].mxu0
    %v4700 = vadd.f32 %v4155, %v4699
    %v4701 = vpop.f32.mrb[0].mxu0
    %4702 = vmatprep.mubr.bf16.mxu0 %v2375
    %4703 = vmatmul.mubr.bf16.gmra.mrb[0].mxu0 %v1999
    %v4704 = vpop.f32.mrb[0].mxu0
    %v4705 = vadd.f32 %v4160, %v4704
    %v4706 = vpop.f32.mrb[0].mxu0
    %v4707 = vpop.f32.mrb[0].mxu0
    %v4708 = vadd.f32 %v4163, %v4707
    %v4709 = vpop.f32.mrb[0].mxu0
    %4710 = vmatprep.mubr.bf16.mxu0 %v2378
    %4711 = vmatmul.mubr.bf16.gmra.mrb[0].mxu0 %v2011
    %v4712 = vpop.f32.mrb[0].mxu0
    %v4713 = vadd.f32 %v4168, %v4712
    %v4714 = vpop.f32.mrb[0].mxu0
    %v4715 = vpop.f32.mrb[0].mxu0
    %v4716 = vadd.f32 %v4171, %v4715
    %v4717 = vpop.f32.mrb[0].mxu0
    %4718 = vmatprep.mubr.bf16.mxu0 %v2511
    %4719 = vmatmul.mubr.bf16.gmra.mrb[0].mxu0 %v2487
    %v4720 = vpop.f32.mrb[0].mxu0
    %v4721 = vadd.f32 %v4176, %v4720
    %v4722 = vpop.f32.mrb[0].mxu0
    %v4723 = vpop.f32.mrb[0].mxu0
    %v4724 = vadd.f32 %v4179, %v4723
    %v4725 = vpop.f32.mrb[0].mxu0
    %4726 = vdwg.mxu0
    %4727 = vmatprep.subr.bf16.mxu0 0
    %4728 = vmatpush1.bf16.msra.mxu0 %v2996
    %4729 = vmatprep.subr.bf16.mxu0 0
    %4730 = vmatpush1.bf16.msra.mxu0 %v2997
    %4731 = vmatprep.subr.bf16.mxu0 0
    %4732 = vmatpush1.bf16.msra.mxu0 %v2998
    %4733 = vmatprep.subr.bf16.mxu0 0
    %4734 = vmatpush1.bf16.msra.mxu0 %v2999
    %4735 = vmatprep.subr.bf16.mxu0 0
    %4736 = vmatpush1.bf16.msra.mxu0 %v3000
    %4737 = vmatprep.subr.bf16.mxu0 0
    %4738 = vmatpush1.bf16.msra.mxu0 %v3001
    %4739 = vmatprep.subr.bf16.mxu0 0
    %4740 = vmatpush1.bf16.msra.mxu0 %v3002
    %4741 = vmatprep.subr.bf16.mxu0 0
    %4742 = vmatpush1.bf16.msra.mxu0 %v3003
    %4743 = vmatprep.subr.bf16.mxu0 0
    %4744 = vmatpush1.bf16.msra.mxu0 %v3004
    %4745 = vmatprep.subr.bf16.mxu0 0
    %4746 = vmatpush1.bf16.msra.mxu0 %v3005
    %4747 = vmatprep.subr.bf16.mxu0 0
    %4748 = vmatpush1.bf16.msra.mxu0 %v3006
    %4749 = vmatprep.subr.bf16.mxu0 0
    %4750 = vmatpush1.bf16.msra.mxu0 %v3007
    %4751 = vmatprep.subr.bf16.mxu0 0
    %4752 = vmatpush1.bf16.msra.mxu0 %v3008
    %4753 = vmatprep.subr.bf16.mxu0 0
    %4754 = vmatpush1.bf16.msra.mxu0 %v3009
    %4755 = vmatprep.subr.bf16.mxu0 0
    %4756 = vmatpush1.bf16.msra.mxu0 %v3010
    %4757 = vmatprep.subr.bf16.mxu0 0
    %4758 = vmatpush1.bf16.msra.mxu0 %v3011
    %4759 = vmatprep.mubr.bf16.mxu0 %v1315
    %4760 = vmatmul.mubr.bf16.gmra.mrb[0].mxu0 %v1151
    %v4761 = vpop.f32.mrb[0].mxu0
    %v4762 = vadd.f32 %v4217, %v4761
    %v4763 = vpop.f32.mrb[0].mxu0
    %v4764 = vpop.f32.mrb[0].mxu0
    %v4765 = vadd.f32 %v4220, %v4764
    %v4766 = vpop.f32.mrb[0].mxu0
    %4767 = vmatprep.mubr.bf16.mxu0 %v1327
    %4768 = vmatmul.mubr.bf16.gmra.mrb[0].mxu0 %v1152
    %v4769 = vpop.f32.mrb[0].mxu0
    %v4770 = vadd.f32 %v4225, %v4769
    %v4771 = vpop.f32.mrb[0].mxu0
    %v4772 = vpop.f32.mrb[0].mxu0
    %v4773 = vadd.f32 %v4228, %v4772
    %v4774 = vpop.f32.mrb[0].mxu0
    %4775 = vmatprep.mubr.bf16.mxu0 %v1339
    %4776 = vmatmul.mubr.bf16.gmra.mrb[0].mxu0 %v1153
    %v4777 = vpop.f32.mrb[0].mxu0
    %v4778 = vadd.f32 %v4233, %v4777
    %v4779 = vpop.f32.mrb[0].mxu0
    %v4780 = vpop.f32.mrb[0].mxu0
    %v4781 = vadd.f32 %v4236, %v4780
    %v4782 = vpop.f32.mrb[0].mxu0
    %4783 = vmatprep.mubr.bf16.mxu0 %v1351
    %4784 = vmatmul.mubr.bf16.gmra.mrb[0].mxu0 %v1154
    %v4785 = vpop.f32.mrb[0].mxu0
    %v4786 = vadd.f32 %v4241, %v4785
    %v4787 = vpop.f32.mrb[0].mxu0
    %v4788 = vpop.f32.mrb[0].mxu0
    %v4789 = vadd.f32 %v4244, %v4788
    %v4790 = vpop.f32.mrb[0].mxu0
    %4791 = vmatprep.mubr.bf16.mxu0 %v1363
    %4792 = vmatmul.mubr.bf16.gmra.mrb[0].mxu0 %v1155
    %v4793 = vpop.f32.mrb[0].mxu0
    %v4794 = vadd.f32 %v4249, %v4793
    %v4795 = vpop.f32.mrb[0].mxu0
    %v4796 = vpop.f32.mrb[0].mxu0
    %v4797 = vadd.f32 %v4252, %v4796
    %v4798 = vpop.f32.mrb[0].mxu0
    %4799 = vmatprep.mubr.bf16.mxu0 %v1375
    %4800 = vmatmul.mubr.bf16.gmra.mrb[0].mxu0 %v1156
    %v4801 = vpop.f32.mrb[0].mxu0
    %v4802 = vadd.f32 %v4257, %v4801
    %v4803 = vpop.f32.mrb[0].mxu0
    %v4804 = vpop.f32.mrb[0].mxu0
    %v4805 = vadd.f32 %v4260, %v4804
    %v4806 = vpop.f32.mrb[0].mxu0
    %4807 = vmatprep.mubr.bf16.mxu0 %v1387
    %4808 = vmatmul.mubr.bf16.gmra.mrb[0].mxu0 %v1157
    %v4809 = vpop.f32.mrb[0].mxu0
    %v4810 = vadd.f32 %v4265, %v4809
    %v4811 = vpop.f32.mrb[0].mxu0
    %v4812 = vpop.f32.mrb[0].mxu0
    %v4813 = vadd.f32 %v4268, %v4812
    %v4814 = vpop.f32.mrb[0].mxu0
    %4815 = vmatprep.mubr.bf16.mxu0 %v1399
    %4816 = vmatmul.mubr.bf16.gmra.mrb[0].mxu0 %v1158
    %v4817 = vpop.f32.mrb[0].mxu0
    %v4818 = vadd.f32 %v4273, %v4817
    %v4819 = vpop.f32.mrb[0].mxu0
    %v4820 = vpop.f32.mrb[0].mxu0
    %v4821 = vadd.f32 %v4276, %v4820
    %v4822 = vpop.f32.mrb[0].mxu0
    %4823 = vmatprep.mubr.bf16.mxu0 %v1411
    %4824 = vmatmul.mubr.bf16.gmra.mrb[0].mxu0 %v1159
    %v4825 = vpop.f32.mrb[0].mxu0
    %v4826 = vadd.f32 %v4281, %v4825
    %v4827 = vpop.f32.mrb[0].mxu0
    %v4828 = vpop.f32.mrb[0].mxu0
    %v4829 = vadd.f32 %v4284, %v4828
    %v4830 = vpop.f32.mrb[0].mxu0
    %4831 = vmatprep.mubr.bf16.mxu0 %v1423
    %4832 = vmatmul.mubr.bf16.gmra.mrb[0].mxu0 %v1160
    %v4833 = vpop.f32.mrb[0].mxu0
    %v4834 = vadd.f32 %v4289, %v4833
    %v4835 = vpop.f32.mrb[0].mxu0
    %v4836 = vpop.f32.mrb[0].mxu0
    %v4837 = vadd.f32 %v4292, %v4836
    %v4838 = vpop.f32.mrb[0].mxu0
    %4839 = vmatprep.mubr.bf16.mxu0 %v1435
    %4840 = vmatmul.mubr.bf16.gmra.mrb[0].mxu0 %v1161
    %v4841 = vpop.f32.mrb[0].mxu0
    %v4842 = vadd.f32 %v4297, %v4841
    %v4843 = vpop.f32.mrb[0].mxu0
    %v4844 = vpop.f32.mrb[0].mxu0
    %v4845 = vadd.f32 %v4300, %v4844
    %v4846 = vpop.f32.mrb[0].mxu0
    %4847 = vmatprep.mubr.bf16.mxu0 %v1447
    %4848 = vmatmul.mubr.bf16.gmra.mrb[0].mxu0 %v1162
    %v4849 = vpop.f32.mrb[0].mxu0
    %v4850 = vadd.f32 %v4305, %v4849
    %v4851 = vpop.f32.mrb[0].mxu0
    %v4852 = vpop.f32.mrb[0].mxu0
    %v4853 = vadd.f32 %v4308, %v4852
    %v4854 = vpop.f32.mrb[0].mxu0
    %4855 = vmatprep.mubr.bf16.mxu0 %v1459
    %4856 = vmatmul.mubr.bf16.gmra.mrb[0].mxu0 %v1163
    %v4857 = vpop.f32.mrb[0].mxu0
    %v4858 = vadd.f32 %v4313, %v4857
    %v4859 = vpop.f32.mrb[0].mxu0
    %v4860 = vpop.f32.mrb[0].mxu0
    %v4861 = vadd.f32 %v4316, %v4860
    %v4862 = vpop.f32.mrb[0].mxu0
    %4863 = vmatprep.mubr.bf16.mxu0 %v1471
    %4864 = vmatmul.mubr.bf16.gmra.mrb[0].mxu0 %v1164
    %v4865 = vpop.f32.mrb[0].mxu0
    %v4866 = vadd.f32 %v4321, %v4865
    %v4867 = vpop.f32.mrb[0].mxu0
    %v4868 = vpop.f32.mrb[0].mxu0
    %v4869 = vadd.f32 %v4324, %v4868
    %v4870 = vpop.f32.mrb[0].mxu0
    %4871 = vmatprep.mubr.bf16.mxu0 %v2451
    %4872 = vmatmul.mubr.bf16.gmra.mrb[0].mxu0 %v1165
    %v4873 = vpop.f32.mrb[0].mxu0
    %v4874 = vadd.f32 %v4329, %v4873
    %v4875 = vpop.f32.mrb[0].mxu0
    %v4876 = vpop.f32.mrb[0].mxu0
    %v4877 = vadd.f32 %v4332, %v4876
    %v4878 = vpop.f32.mrb[0].mxu0
    %4879 = vmatprep.mubr.bf16.mxu0 %v1291
    %4880 = vmatmul.mubr.bf16.gmra.mrb[0].mxu0 %v1149
    %v4881 = vpop.f32.mrb[0].mxu0
    %v4882 = vadd.f32 %v4337, %v4881
    %v4883 = vpop.f32.mrb[0].mxu0
    %v4884 = vpop.f32.mrb[0].mxu0
    %v4885 = vadd.f32 %v4340, %v4884
    %v4886 = vpop.f32.mrb[0].mxu0
    %4887 = vmatprep.mubr.bf16.mxu0 %v1495
    %4888 = vmatmul.mubr.bf16.gmra.mrb[0].mxu0 %v1167
    %v4889 = vpop.f32.mrb[0].mxu0
    %v4890 = vadd.f32 %v4345, %v4889
    %v4891 = vpop.f32.mrb[0].mxu0
    %v4892 = vpop.f32.mrb[0].mxu0
    %v4893 = vadd.f32 %v4348, %v4892
    %v4894 = vpop.f32.mrb[0].mxu0
    %4895 = vmatprep.mubr.bf16.mxu0 %v1507
    %4896 = vmatmul.mubr.bf16.gmra.mrb[0].mxu0 %v1168
    %v4897 = vpop.f32.mrb[0].mxu0
    %v4898 = vadd.f32 %v4353, %v4897
    %v4899 = vpop.f32.mrb[0].mxu0
    %v4900 = vpop.f32.mrb[0].mxu0
    %v4901 = vadd.f32 %v4356, %v4900
    %v4902 = vpop.f32.mrb[0].mxu0
    %4903 = vmatprep.mubr.bf16.mxu0 %v1519
    %4904 = vmatmul.mubr.bf16.gmra.mrb[0].mxu0 %v1169
    %v4905 = vpop.f32.mrb[0].mxu0
    %v4906 = vadd.f32 %v4361, %v4905
    %v4907 = vpop.f32.mrb[0].mxu0
    %v4908 = vpop.f32.mrb[0].mxu0
    %v4909 = vadd.f32 %v4364, %v4908
    %v4910 = vpop.f32.mrb[0].mxu0
    %4911 = vmatprep.mubr.bf16.mxu0 %v1531
    %4912 = vmatmul.mubr.bf16.gmra.mrb[0].mxu0 %v1170
    %v4913 = vpop.f32.mrb[0].mxu0
    %v4914 = vadd.f32 %v4369, %v4913
    %v4915 = vpop.f32.mrb[0].mxu0
    %v4916 = vpop.f32.mrb[0].mxu0
    %v4917 = vadd.f32 %v4372, %v4916
    %v4918 = vpop.f32.mrb[0].mxu0
    %4919 = vmatprep.mubr.bf16.mxu0 %v1543
    %4920 = vmatmul.mubr.bf16.gmra.mrb[0].mxu0 %v1171
    %v4921 = vpop.f32.mrb[0].mxu0
    %v4922 = vadd.f32 %v4377, %v4921
    %v4923 = vpop.f32.mrb[0].mxu0
    %v4924 = vpop.f32.mrb[0].mxu0
    %v4925 = vadd.f32 %v4380, %v4924
    %v4926 = vpop.f32.mrb[0].mxu0
    %4927 = vmatprep.mubr.bf16.mxu0 %v1555
    %4928 = vmatmul.mubr.bf16.gmra.mrb[0].mxu0 %v1172
    %v4929 = vpop.f32.mrb[0].mxu0
    %v4930 = vadd.f32 %v4385, %v4929
    %v4931 = vpop.f32.mrb[0].mxu0
    %v4932 = vpop.f32.mrb[0].mxu0
    %v4933 = vadd.f32 %v4388, %v4932
    %v4934 = vpop.f32.mrb[0].mxu0
    %4935 = vmatprep.mubr.bf16.mxu0 %v1567
    %4936 = vmatmul.mubr.bf16.gmra.mrb[0].mxu0 %v1173
    %v4937 = vpop.f32.mrb[0].mxu0
    %v4938 = vadd.f32 %v4393, %v4937
    %v4939 = vpop.f32.mrb[0].mxu0
    %v4940 = vpop.f32.mrb[0].mxu0
    %v4941 = vadd.f32 %v4396, %v4940
    %v4942 = vpop.f32.mrb[0].mxu0
    %4943 = vmatprep.mubr.bf16.mxu0 %v1579
    %4944 = vmatmul.mubr.bf16.gmra.mrb[0].mxu0 %v1174
    %v4945 = vpop.f32.mrb[0].mxu0
    %v4946 = vadd.f32 %v4401, %v4945
    %v4947 = vpop.f32.mrb[0].mxu0
    %v4948 = vpop.f32.mrb[0].mxu0
    %v4949 = vadd.f32 %v4404, %v4948
    %v4950 = vpop.f32.mrb[0].mxu0
    %4951 = vmatprep.mubr.bf16.mxu0 %v1591
    %4952 = vmatmul.mubr.bf16.gmra.mrb[0].mxu0 %v1175
    %v4953 = vpop.f32.mrb[0].mxu0
    %v4954 = vadd.f32 %v4409, %v4953
    %v4955 = vpop.f32.mrb[0].mxu0
    %v4956 = vpop.f32.mrb[0].mxu0
    %v4957 = vadd.f32 %v4412, %v4956
    %v4958 = vpop.f32.mrb[0].mxu0
    %4959 = vmatprep.mubr.bf16.mxu0 %v1603
    %4960 = vmatmul.mubr.bf16.gmra.mrb[0].mxu0 %v1176
    %v4961 = vpop.f32.mrb[0].mxu0
    %v4962 = vadd.f32 %v4417, %v4961
    %v4963 = vpop.f32.mrb[0].mxu0
    %v4964 = vpop.f32.mrb[0].mxu0
    %v4965 = vadd.f32 %v4420, %v4964
    %v4966 = vpop.f32.mrb[0].mxu0
    %4967 = vmatprep.mubr.bf16.mxu0 %v1615
    %4968 = vmatmul.mubr.bf16.gmra.mrb[0].mxu0 %v1177
    %v4969 = vpop.f32.mrb[0].mxu0
    %v4970 = vadd.f32 %v4425, %v4969
    %v4971 = vpop.f32.mrb[0].mxu0
    %v4972 = vpop.f32.mrb[0].mxu0
    %v4973 = vadd.f32 %v4428, %v4972
    %v4974 = vpop.f32.mrb[0].mxu0
    %4975 = vmatprep.mubr.bf16.mxu0 %v1627
    %4976 = vmatmul.mubr.bf16.gmra.mrb[0].mxu0 %v1178
    %v4977 = vpop.f32.mrb[0].mxu0
    %v4978 = vadd.f32 %v4433, %v4977
    %v4979 = vpop.f32.mrb[0].mxu0
    %v4980 = vpop.f32.mrb[0].mxu0
    %v4981 = vadd.f32 %v4436, %v4980
    %v4982 = vpop.f32.mrb[0].mxu0
    %4983 = vmatprep.mubr.bf16.mxu0 %v1639
    %4984 = vmatmul.mubr.bf16.gmra.mrb[0].mxu0 %v1179
    %v4985 = vpop.f32.mrb[0].mxu0
    %v4986 = vadd.f32 %v4441, %v4985
    %v4987 = vpop.f32.mrb[0].mxu0
    %v4988 = vpop.f32.mrb[0].mxu0
    %v4989 = vadd.f32 %v4444, %v4988
    %v4990 = vpop.f32.mrb[0].mxu0
    %4991 = vmatprep.mubr.bf16.mxu0 %v1651
    %4992 = vmatmul.mubr.bf16.gmra.mrb[0].mxu0 %v1180
    %v4993 = vpop.f32.mrb[0].mxu0
    %v4994 = vadd.f32 %v4449, %v4993
    %v4995 = vpop.f32.mrb[0].mxu0
    %v4996 = vpop.f32.mrb[0].mxu0
    %v4997 = vadd.f32 %v4452, %v4996
    %v4998 = vpop.f32.mrb[0].mxu0
    %4999 = vmatprep.mubr.bf16.mxu0 %v2463
    %5000 = vmatmul.mubr.bf16.gmra.mrb[0].mxu0 %v1181
    %v5001 = vpop.f32.mrb[0].mxu0
    %v5002 = vadd.f32 %v4457, %v5001
    %v5003 = vpop.f32.mrb[0].mxu0
    %v5004 = vpop.f32.mrb[0].mxu0
    %v5005 = vadd.f32 %v4460, %v5004
    %v5006 = vpop.f32.mrb[0].mxu0
    %5007 = vmatprep.mubr.bf16.mxu0 %v1291
    %5008 = vmatmul.mubr.bf16.gmra.mrb[0].mxu0 %v1149
    %v5009 = vpop.f32.mrb[0].mxu0
    %v5010 = vadd.f32 %v4465, %v5009
    %v5011 = vpop.f32.mrb[0].mxu0
    %v5012 = vpop.f32.mrb[0].mxu0
    %v5013 = vadd.f32 %v4468, %v5012
    %v5014 = vpop.f32.mrb[0].mxu0
    %5015 = vmatprep.mubr.bf16.mxu0 %v1675
    %5016 = vmatmul.mubr.bf16.gmra.mrb[0].mxu0 %v1183
    %v5017 = vpop.f32.mrb[0].mxu0
    %v5018 = vadd.f32 %v4473, %v5017
    %v5019 = vpop.f32.mrb[0].mxu0
    %v5020 = vpop.f32.mrb[0].mxu0
    %v5021 = vadd.f32 %v4476, %v5020
    %v5022 = vpop.f32.mrb[0].mxu0
    %5023 = vmatprep.mubr.bf16.mxu0 %v1687
    %5024 = vmatmul.mubr.bf16.gmra.mrb[0].mxu0 %v1184
    %v5025 = vpop.f32.mrb[0].mxu0
    %v5026 = vadd.f32 %v4481, %v5025
    %v5027 = vpop.f32.mrb[0].mxu0
    %v5028 = vpop.f32.mrb[0].mxu0
    %v5029 = vadd.f32 %v4484, %v5028
    %v5030 = vpop.f32.mrb[0].mxu0
    %5031 = vmatprep.mubr.bf16.mxu0 %v1699
    %5032 = vmatmul.mubr.bf16.gmra.mrb[0].mxu0 %v1185
    %v5033 = vpop.f32.mrb[0].mxu0
    %v5034 = vadd.f32 %v4489, %v5033
    %v5035 = vpop.f32.mrb[0].mxu0
    %v5036 = vpop.f32.mrb[0].mxu0
    %v5037 = vadd.f32 %v4492, %v5036
    %v5038 = vpop.f32.mrb[0].mxu0
    %5039 = vmatprep.mubr.bf16.mxu0 %v1711
    %5040 = vmatmul.mubr.bf16.gmra.mrb[0].mxu0 %v1186
    %v5041 = vpop.f32.mrb[0].mxu0
    %v5042 = vadd.f32 %v4497, %v5041
    %v5043 = vpop.f32.mrb[0].mxu0
    %v5044 = vpop.f32.mrb[0].mxu0
    %v5045 = vadd.f32 %v4500, %v5044
    %v5046 = vpop.f32.mrb[0].mxu0
    %5047 = vmatprep.mubr.bf16.mxu0 %v1723
    %5048 = vmatmul.mubr.bf16.gmra.mrb[0].mxu0 %v1187
    %v5049 = vpop.f32.mrb[0].mxu0
    %v5050 = vadd.f32 %v4505, %v5049
    %v5051 = vpop.f32.mrb[0].mxu0
    %v5052 = vpop.f32.mrb[0].mxu0
    %v5053 = vadd.f32 %v4508, %v5052
    %v5054 = vpop.f32.mrb[0].mxu0
    %5055 = vmatprep.mubr.bf16.mxu0 %v1735
    %5056 = vmatmul.mubr.bf16.gmra.mrb[0].mxu0 %v1188
    %v5057 = vpop.f32.mrb[0].mxu0
    %v5058 = vadd.f32 %v4513, %v5057
    %v5059 = vpop.f32.mrb[0].mxu0
    %v5060 = vpop.f32.mrb[0].mxu0
    %v5061 = vadd.f32 %v4516, %v5060
    %v5062 = vpop.f32.mrb[0].mxu0
    %5063 = vmatprep.mubr.bf16.mxu0 %v1747
    %5064 = vmatmul.mubr.bf16.gmra.mrb[0].mxu0 %v1189
    %v5065 = vpop.f32.mrb[0].mxu0
    %v5066 = vadd.f32 %v4521, %v5065
    %v5067 = vpop.f32.mrb[0].mxu0
    %v5068 = vpop.f32.mrb[0].mxu0
    %v5069 = vadd.f32 %v4524, %v5068
    %v5070 = vpop.f32.mrb[0].mxu0
    %5071 = vmatprep.mubr.bf16.mxu0 %v1759
    %5072 = vmatmul.mubr.bf16.gmra.mrb[0].mxu0 %v1190
    %v5073 = vpop.f32.mrb[0].mxu0
    %v5074 = vadd.f32 %v4529, %v5073
    %v5075 = vpop.f32.mrb[0].mxu0
    %v5076 = vpop.f32.mrb[0].mxu0
    %v5077 = vadd.f32 %v4532, %v5076
    %v5078 = vpop.f32.mrb[0].mxu0
    %5079 = vmatprep.mubr.bf16.mxu0 %v1771
    %5080 = vmatmul.mubr.bf16.gmra.mrb[0].mxu0 %v1191
    %v5081 = vpop.f32.mrb[0].mxu0
    %v5082 = vadd.f32 %v4537, %v5081
    %v5083 = vpop.f32.mrb[0].mxu0
    %v5084 = vpop.f32.mrb[0].mxu0
    %v5085 = vadd.f32 %v4540, %v5084
    %v5086 = vpop.f32.mrb[0].mxu0
    %5087 = vmatprep.mubr.bf16.mxu0 %v1783
    %5088 = vmatmul.mubr.bf16.gmra.mrb[0].mxu0 %v1192
    %v5089 = vpop.f32.mrb[0].mxu0
    %v5090 = vadd.f32 %v4545, %v5089
    %v5091 = vpop.f32.mrb[0].mxu0
    %v5092 = vpop.f32.mrb[0].mxu0
    %v5093 = vadd.f32 %v4548, %v5092
    %v5094 = vpop.f32.mrb[0].mxu0
    %5095 = vmatprep.mubr.bf16.mxu0 %v1795
    %5096 = vmatmul.mubr.bf16.gmra.mrb[0].mxu0 %v1193
    %v5097 = vpop.f32.mrb[0].mxu0
    %v5098 = vadd.f32 %v4553, %v5097
    %v5099 = vpop.f32.mrb[0].mxu0
    %v5100 = vpop.f32.mrb[0].mxu0
    %v5101 = vadd.f32 %v4556, %v5100
    %v5102 = vpop.f32.mrb[0].mxu0
    %5103 = vmatprep.mubr.bf16.mxu0 %v1807
    %5104 = vmatmul.mubr.bf16.gmra.mrb[0].mxu0 %v1194
    %v5105 = vpop.f32.mrb[0].mxu0
    %v5106 = vadd.f32 %v4561, %v5105
    %v5107 = vpop.f32.mrb[0].mxu0
    %v5108 = vpop.f32.mrb[0].mxu0
    %v5109 = vadd.f32 %v4564, %v5108
    %v5110 = vpop.f32.mrb[0].mxu0
    %5111 = vmatprep.mubr.bf16.mxu0 %v1819
    %5112 = vmatmul.mubr.bf16.gmra.mrb[0].mxu0 %v1195
    %v5113 = vpop.f32.mrb[0].mxu0
    %v5114 = vadd.f32 %v4569, %v5113
    %v5115 = vpop.f32.mrb[0].mxu0
    %v5116 = vpop.f32.mrb[0].mxu0
    %v5117 = vadd.f32 %v4572, %v5116
    %v5118 = vpop.f32.mrb[0].mxu0
    %5119 = vmatprep.mubr.bf16.mxu0 %v1831
    %5120 = vmatmul.mubr.bf16.gmra.mrb[0].mxu0 %v1196
    %v5121 = vpop.f32.mrb[0].mxu0
    %v5122 = vadd.f32 %v4577, %v5121
    %v5123 = vpop.f32.mrb[0].mxu0
    %v5124 = vpop.f32.mrb[0].mxu0
    %v5125 = vadd.f32 %v4580, %v5124
    %v5126 = vpop.f32.mrb[0].mxu0
    %5127 = vmatprep.mubr.bf16.mxu0 %v2475
    %5128 = vmatmul.mubr.bf16.gmra.mrb[0].mxu0 %v1197
    %v5129 = vpop.f32.mrb[0].mxu0
    %v5130 = vadd.f32 %v4585, %v5129
    %v5131 = vpop.f32.mrb[0].mxu0
    %v5132 = vpop.f32.mrb[0].mxu0
    %v5133 = vadd.f32 %v4588, %v5132
    %v5134 = vpop.f32.mrb[0].mxu0
    %5135 = vmatprep.mubr.bf16.mxu0 %v1291
    %5136 = vmatmul.mubr.bf16.gmra.mrb[0].mxu0 %v1149
    %v5137 = vpop.f32.mrb[0].mxu0
    %v5138 = vadd.f32 %v4593, %v5137
    %v5139 = vpop.f32.mrb[0].mxu0
    %v5140 = vpop.f32.mrb[0].mxu0
    %v5141 = vadd.f32 %v4596, %v5140
    %v5142 = vpop.f32.mrb[0].mxu0
    %5143 = vmatprep.mubr.bf16.mxu0 %v1855
    %5144 = vmatmul.mubr.bf16.gmra.mrb[0].mxu0 %v1199
    %v5145 = vpop.f32.mrb[0].mxu0
    %v5146 = vadd.f32 %v4601, %v5145
    %v5147 = vpop.f32.mrb[0].mxu0
    %v5148 = vpop.f32.mrb[0].mxu0
    %v5149 = vadd.f32 %v4604, %v5148
    %v5150 = vpop.f32.mrb[0].mxu0
    %5151 = vmatprep.mubr.bf16.mxu0 %v1867
    %5152 = vmatmul.mubr.bf16.gmra.mrb[0].mxu0 %v1200
    %v5153 = vpop.f32.mrb[0].mxu0
    %v5154 = vadd.f32 %v4609, %v5153
    %v5155 = vpop.f32.mrb[0].mxu0
    %v5156 = vpop.f32.mrb[0].mxu0
    %v5157 = vadd.f32 %v4612, %v5156
    %v5158 = vpop.f32.mrb[0].mxu0
    %5159 = vmatprep.mubr.bf16.mxu0 %v1879
    %5160 = vmatmul.mubr.bf16.gmra.mrb[0].mxu0 %v1201
    %v5161 = vpop.f32.mrb[0].mxu0
    %v5162 = vadd.f32 %v4617, %v5161
    %v5163 = vpop.f32.mrb[0].mxu0
    %v5164 = vpop.f32.mrb[0].mxu0
    %v5165 = vadd.f32 %v4620, %v5164
    %v5166 = vpop.f32.mrb[0].mxu0
    %5167 = vmatprep.mubr.bf16.mxu0 %v1891
    %5168 = vmatmul.mubr.bf16.gmra.mrb[0].mxu0 %v1202
    %v5169 = vpop.f32.mrb[0].mxu0
    %v5170 = vadd.f32 %v4625, %v5169
    %v5171 = vpop.f32.mrb[0].mxu0
    %v5172 = vpop.f32.mrb[0].mxu0
    %v5173 = vadd.f32 %v4628, %v5172
    %v5174 = vpop.f32.mrb[0].mxu0
    %5175 = vmatprep.mubr.bf16.mxu0 %v1903
    %5176 = vmatmul.mubr.bf16.gmra.mrb[0].mxu0 %v1203
    %v5177 = vpop.f32.mrb[0].mxu0
    %v5178 = vadd.f32 %v4633, %v5177
    %v5179 = vpop.f32.mrb[0].mxu0
    %v5180 = vpop.f32.mrb[0].mxu0
    %v5181 = vadd.f32 %v4636, %v5180
    %v5182 = vpop.f32.mrb[0].mxu0
    %5183 = vmatprep.mubr.bf16.mxu0 %v1915
    %5184 = vmatmul.mubr.bf16.gmra.mrb[0].mxu0 %v1204
    %v5185 = vpop.f32.mrb[0].mxu0
    %v5186 = vadd.f32 %v4641, %v5185
    %v5187 = vpop.f32.mrb[0].mxu0
    %v5188 = vpop.f32.mrb[0].mxu0
    %v5189 = vadd.f32 %v4644, %v5188
    %v5190 = vpop.f32.mrb[0].mxu0
    %5191 = vmatprep.mubr.bf16.mxu0 %v1927
    %5192 = vmatmul.mubr.bf16.gmra.mrb[0].mxu0 %v1205
    %v5193 = vpop.f32.mrb[0].mxu0
    %v5194 = vadd.f32 %v4649, %v5193
    %v5195 = vpop.f32.mrb[0].mxu0
    %v5196 = vpop.f32.mrb[0].mxu0
    %v5197 = vadd.f32 %v4652, %v5196
    %v5198 = vpop.f32.mrb[0].mxu0
    %5199 = vmatprep.mubr.bf16.mxu0 %v1939
    %5200 = vmatmul.mubr.bf16.gmra.mrb[0].mxu0 %v1206
    %v5201 = vpop.f32.mrb[0].mxu0
    %v5202 = vadd.f32 %v4657, %v5201
    %v5203 = vpop.f32.mrb[0].mxu0
    %v5204 = vpop.f32.mrb[0].mxu0
    %v5205 = vadd.f32 %v4660, %v5204
    %v5206 = vpop.f32.mrb[0].mxu0
    %5207 = vmatprep.mubr.bf16.mxu0 %v1951
    %5208 = vmatmul.mubr.bf16.gmra.mrb[0].mxu0 %v1207
    %v5209 = vpop.f32.mrb[0].mxu0
    %v5210 = vadd.f32 %v4665, %v5209
    %v5211 = vpop.f32.mrb[0].mxu0
    %v5212 = vpop.f32.mrb[0].mxu0
    %v5213 = vadd.f32 %v4668, %v5212
    %v5214 = vpop.f32.mrb[0].mxu0
    %5215 = vmatprep.mubr.bf16.mxu0 %v1963
    %5216 = vmatmul.mubr.bf16.gmra.mrb[0].mxu0 %v1208
    %v5217 = vpop.f32.mrb[0].mxu0
    %v5218 = vadd.f32 %v4673, %v5217
    %v5219 = vpop.f32.mrb[0].mxu0
    %v5220 = vpop.f32.mrb[0].mxu0
    %v5221 = vadd.f32 %v4676, %v5220
    %v5222 = vpop.f32.mrb[0].mxu0
    %5223 = vmatprep.mubr.bf16.mxu0 %v1975
    %5224 = vmatmul.mubr.bf16.gmra.mrb[0].mxu0 %v1209
    %v5225 = vpop.f32.mrb[0].mxu0
    %v5226 = vadd.f32 %v4681, %v5225
    %v5227 = vpop.f32.mrb[0].mxu0
    %v5228 = vpop.f32.mrb[0].mxu0
    %v5229 = vadd.f32 %v4684, %v5228
    %v5230 = vpop.f32.mrb[0].mxu0
    %5231 = vmatprep.mubr.bf16.mxu0 %v1987
    %5232 = vmatmul.mubr.bf16.gmra.mrb[0].mxu0 %v1210
    %v5233 = vpop.f32.mrb[0].mxu0
    %v5234 = vadd.f32 %v4689, %v5233
    %v5235 = vpop.f32.mrb[0].mxu0
    %v5236 = vpop.f32.mrb[0].mxu0
    %v5237 = vadd.f32 %v4692, %v5236
    %v5238 = vpop.f32.mrb[0].mxu0
    %5239 = vmatprep.mubr.bf16.mxu0 %v1999
    %5240 = vmatmul.mubr.bf16.gmra.mrb[0].mxu0 %v1211
    %v5241 = vpop.f32.mrb[0].mxu0
    %v5242 = vadd.f32 %v4697, %v5241
    %v5243 = vpop.f32.mrb[0].mxu0
    %v5244 = vpop.f32.mrb[0].mxu0
    %v5245 = vadd.f32 %v4700, %v5244
    %v5246 = vpop.f32.mrb[0].mxu0
    %5247 = vmatprep.mubr.bf16.mxu0 %v2011
    %5248 = vmatmul.mubr.bf16.gmra.mrb[0].mxu0 %v1212
    %v5249 = vpop.f32.mrb[0].mxu0
    %v5250 = vadd.f32 %v4705, %v5249
    %v5251 = vpop.f32.mrb[0].mxu0
    %v5252 = vpop.f32.mrb[0].mxu0
    %v5253 = vadd.f32 %v4708, %v5252
    %v5254 = vpop.f32.mrb[0].mxu0
    %5255 = vmatprep.mubr.bf16.mxu0 %v2487
    %5256 = vmatmul.mubr.bf16.gmra.mrb[0].mxu0 %v1213
    %v5257 = vpop.f32.mrb[0].mxu0
    %v5258 = vadd.f32 %v4713, %v5257
    %v5259 = vpop.f32.mrb[0].mxu0
    %v5260 = vpop.f32.mrb[0].mxu0
    %v5261 = vadd.f32 %v4716, %v5260
    %v5262 = vpop.f32.mrb[0].mxu0
    %5263 = vmatprep.mubr.bf16.mxu0 %v1291
    %5264 = vmatmul.mubr.bf16.gmra.mrb[0].mxu0 %v1149
    %v5265 = vpop.f32.mrb[0].mxu0
    %v5266 = vadd.f32 %v4721, %v5265
    %v5267 = vpop.f32.mrb[0].mxu0
    %v5268 = vpop.f32.mrb[0].mxu0
    %v5269 = vadd.f32 %v4724, %v5268
    %v5270 = vpop.f32.mrb[0].mxu0
    %5271 = vdwg.mxu0
    %5272 = vmatprep.subr.bf16.mxu0 0
    %5273 = vmatpush1.bf16.msra.mxu0 %v3012
    %5274 = vmatprep.subr.bf16.mxu0 0
    %5275 = vmatpush1.bf16.msra.mxu0 %v3013
    %5276 = vmatprep.subr.bf16.mxu0 0
    %5277 = vmatpush1.bf16.msra.mxu0 %v3014
    %5278 = vmatprep.subr.bf16.mxu0 0
    %5279 = vmatpush1.bf16.msra.mxu0 %v3015
    %5280 = vmatprep.subr.bf16.mxu0 0
    %5281 = vmatpush1.bf16.msra.mxu0 %v3016
    %5282 = vmatprep.subr.bf16.mxu0 0
    %5283 = vmatpush1.bf16.msra.mxu0 %v3017
    %5284 = vmatprep.subr.bf16.mxu0 0
    %5285 = vmatpush1.bf16.msra.mxu0 %v3018
    %5286 = vmatprep.subr.bf16.mxu0 0
    %5287 = vmatpush1.bf16.msra.mxu0 %v3019
    %5288 = vmatprep.subr.bf16.mxu0 0
    %5289 = vmatpush1.bf16.msra.mxu0 0
    %5290 = vmatprep.subr.bf16.mxu0 0
    %5291 = vmatpush1.bf16.msra.mxu0 0
    %5292 = vmatprep.subr.bf16.mxu0 0
    %5293 = vmatpush1.bf16.msra.mxu0 0
    %5294 = vmatprep.subr.bf16.mxu0 0
    %5295 = vmatpush1.bf16.msra.mxu0 0
    %5296 = vmatprep.subr.bf16.mxu0 0
    %5297 = vmatpush1.bf16.msra.mxu0 0
    %5298 = vmatprep.subr.bf16.mxu0 0
    %5299 = vmatpush1.bf16.msra.mxu0 0
    %5300 = vmatprep.subr.bf16.mxu0 0
    %5301 = vmatpush1.bf16.msra.mxu0 0
    %5302 = vmatprep.subr.bf16.mxu0 0
    %5303 = vmatpush1.bf16.msra.mxu0 0
    %5304 = vmatprep.mubr.bf16.mxu0 0
    %5305 = vmatmul.mubr.bf16.gmra.mrb[0].mxu0 %v2204
    %v5306 = vpop.f32.mrb[0].mxu0
    %v5307 = vadd.f32 %v4762, %v5306
    %v5308 = vpop.f32.mrb[0].mxu0
    %v5309 = vpop.f32.mrb[0].mxu0
    %v5310 = vadd.f32 %v4765, %v5309
    %v5311 = vpop.f32.mrb[0].mxu0
    %5312 = vmatprep.mubr.bf16.mxu0 0
    %5313 = vmatmul.mubr.bf16.gmra.mrb[0].mxu0 %v2207
    %v5314 = vpop.f32.mrb[0].mxu0
    %v5315 = vadd.f32 %v4770, %v5314
    %v5316 = vpop.f32.mrb[0].mxu0
    %v5317 = vpop.f32.mrb[0].mxu0
    %v5318 = vadd.f32 %v4773, %v5317
    %v5319 = vpop.f32.mrb[0].mxu0
    %5320 = vmatprep.mubr.bf16.mxu0 0
    %5321 = vmatmul.mubr.bf16.gmra.mrb[0].mxu0 %v2210
    %v5322 = vpop.f32.mrb[0].mxu0
    %v5323 = vadd.f32 %v4778, %v5322
    %v5324 = vpop.f32.mrb[0].mxu0
    %v5325 = vpop.f32.mrb[0].mxu0
    %v5326 = vadd.f32 %v4781, %v5325
    %v5327 = vpop.f32.mrb[0].mxu0
    %5328 = vmatprep.mubr.bf16.mxu0 0
    %5329 = vmatmul.mubr.bf16.gmra.mrb[0].mxu0 %v2213
    %v5330 = vpop.f32.mrb[0].mxu0
    %v5331 = vadd.f32 %v4786, %v5330
    %v5332 = vpop.f32.mrb[0].mxu0
    %v5333 = vpop.f32.mrb[0].mxu0
    %v5334 = vadd.f32 %v4789, %v5333
    %v5335 = vpop.f32.mrb[0].mxu0
    %5336 = vmatprep.mubr.bf16.mxu0 0
    %5337 = vmatmul.mubr.bf16.gmra.mrb[0].mxu0 %v2216
    %v5338 = vpop.f32.mrb[0].mxu0
    %v5339 = vadd.f32 %v4794, %v5338
    %v5340 = vpop.f32.mrb[0].mxu0
    %v5341 = vpop.f32.mrb[0].mxu0
    %v5342 = vadd.f32 %v4797, %v5341
    %v5343 = vpop.f32.mrb[0].mxu0
    %5344 = vmatprep.mubr.bf16.mxu0 0
    %5345 = vmatmul.mubr.bf16.gmra.mrb[0].mxu0 %v2219
    %v5346 = vpop.f32.mrb[0].mxu0
    %v5347 = vadd.f32 %v4802, %v5346
    %v5348 = vpop.f32.mrb[0].mxu0
    %v5349 = vpop.f32.mrb[0].mxu0
    %v5350 = vadd.f32 %v4805, %v5349
    %v5351 = vpop.f32.mrb[0].mxu0
    %5352 = vmatprep.mubr.bf16.mxu0 0
    %5353 = vmatmul.mubr.bf16.gmra.mrb[0].mxu0 %v2222
    %v5354 = vpop.f32.mrb[0].mxu0
    %v5355 = vadd.f32 %v4810, %v5354
    %v5356 = vpop.f32.mrb[0].mxu0
    %v5357 = vpop.f32.mrb[0].mxu0
    %v5358 = vadd.f32 %v4813, %v5357
    %v5359 = vpop.f32.mrb[0].mxu0
    %5360 = vmatprep.mubr.bf16.mxu0 0
    %5361 = vmatmul.mubr.bf16.gmra.mrb[0].mxu0 %v2225
    %v5362 = vpop.f32.mrb[0].mxu0
    %v5363 = vadd.f32 %v4818, %v5362
    %v5364 = vpop.f32.mrb[0].mxu0
    %v5365 = vpop.f32.mrb[0].mxu0
    %v5366 = vadd.f32 %v4821, %v5365
    %v5367 = vpop.f32.mrb[0].mxu0
    %5368 = vmatprep.mubr.bf16.mxu0 0
    %5369 = vmatmul.mubr.bf16.gmra.mrb[0].mxu0 %v2228
    %v5370 = vpop.f32.mrb[0].mxu0
    %v5371 = vadd.f32 %v4826, %v5370
    %v5372 = vpop.f32.mrb[0].mxu0
    %v5373 = vpop.f32.mrb[0].mxu0
    %v5374 = vadd.f32 %v4829, %v5373
    %v5375 = vpop.f32.mrb[0].mxu0
    %5376 = vmatprep.mubr.bf16.mxu0 0
    %5377 = vmatmul.mubr.bf16.gmra.mrb[0].mxu0 %v2231
    %v5378 = vpop.f32.mrb[0].mxu0
    %v5379 = vadd.f32 %v4834, %v5378
    %v5380 = vpop.f32.mrb[0].mxu0
    %v5381 = vpop.f32.mrb[0].mxu0
    %v5382 = vadd.f32 %v4837, %v5381
    %v5383 = vpop.f32.mrb[0].mxu0
    %5384 = vmatprep.mubr.bf16.mxu0 0
    %5385 = vmatmul.mubr.bf16.gmra.mrb[0].mxu0 %v2234
    %v5386 = vpop.f32.mrb[0].mxu0
    %v5387 = vadd.f32 %v4842, %v5386
    %v5388 = vpop.f32.mrb[0].mxu0
    %v5389 = vpop.f32.mrb[0].mxu0
    %v5390 = vadd.f32 %v4845, %v5389
    %v5391 = vpop.f32.mrb[0].mxu0
    %5392 = vmatprep.mubr.bf16.mxu0 0
    %5393 = vmatmul.mubr.bf16.gmra.mrb[0].mxu0 %v2237
    %v5394 = vpop.f32.mrb[0].mxu0
    %v5395 = vadd.f32 %v4850, %v5394
    %v5396 = vpop.f32.mrb[0].mxu0
    %v5397 = vpop.f32.mrb[0].mxu0
    %v5398 = vadd.f32 %v4853, %v5397
    %v5399 = vpop.f32.mrb[0].mxu0
    %5400 = vmatprep.mubr.bf16.mxu0 0
    %5401 = vmatmul.mubr.bf16.gmra.mrb[0].mxu0 %v2240
    %v5402 = vpop.f32.mrb[0].mxu0
    %v5403 = vadd.f32 %v4858, %v5402
    %v5404 = vpop.f32.mrb[0].mxu0
    %v5405 = vpop.f32.mrb[0].mxu0
    %v5406 = vadd.f32 %v4861, %v5405
    %v5407 = vpop.f32.mrb[0].mxu0
    %5408 = vmatprep.mubr.bf16.mxu0 0
    %5409 = vmatmul.mubr.bf16.gmra.mrb[0].mxu0 %v2243
    %v5410 = vpop.f32.mrb[0].mxu0
    %v5411 = vadd.f32 %v4866, %v5410
    %v5412 = vpop.f32.mrb[0].mxu0
    %v5413 = vpop.f32.mrb[0].mxu0
    %v5414 = vadd.f32 %v4869, %v5413
    %v5415 = vpop.f32.mrb[0].mxu0
    %5416 = vmatprep.mubr.bf16.mxu0 0
    %5417 = vmatmul.mubr.bf16.gmra.mrb[0].mxu0 %v2502
    %v5418 = vpop.f32.mrb[0].mxu0
    %v5419 = vadd.f32 %v4874, %v5418
    %v5420 = vpop.f32.mrb[0].mxu0
    %v5421 = vpop.f32.mrb[0].mxu0
    %v5422 = vadd.f32 %v4877, %v5421
    %v5423 = vpop.f32.mrb[0].mxu0
    %5424 = vmatprep.mubr.bf16.mxu0 0
    %5425 = vmatmul.mubr.bf16.gmra.mrb[0].mxu0 %v2198
    %v5426 = vpop.f32.mrb[0].mxu0
    %v5427 = vadd.f32 %v4882, %v5426
    %v5428 = vpop.f32.mrb[0].mxu0
    %v5429 = vpop.f32.mrb[0].mxu0
    %v5430 = vadd.f32 %v4885, %v5429
    %v5431 = vpop.f32.mrb[0].mxu0
    %5432 = vmatprep.mubr.bf16.mxu0 0
    %5433 = vmatmul.mubr.bf16.gmra.mrb[0].mxu0 %v2249
    %v5434 = vpop.f32.mrb[0].mxu0
    %v5435 = vadd.f32 %v4890, %v5434
    %v5436 = vpop.f32.mrb[0].mxu0
    %v5437 = vpop.f32.mrb[0].mxu0
    %v5438 = vadd.f32 %v4893, %v5437
    %v5439 = vpop.f32.mrb[0].mxu0
    %5440 = vmatprep.mubr.bf16.mxu0 0
    %5441 = vmatmul.mubr.bf16.gmra.mrb[0].mxu0 %v2252
    %v5442 = vpop.f32.mrb[0].mxu0
    %v5443 = vadd.f32 %v4898, %v5442
    %v5444 = vpop.f32.mrb[0].mxu0
    %v5445 = vpop.f32.mrb[0].mxu0
    %v5446 = vadd.f32 %v4901, %v5445
    %v5447 = vpop.f32.mrb[0].mxu0
    %5448 = vmatprep.mubr.bf16.mxu0 0
    %5449 = vmatmul.mubr.bf16.gmra.mrb[0].mxu0 %v2255
    %v5450 = vpop.f32.mrb[0].mxu0
    %v5451 = vadd.f32 %v4906, %v5450
    %v5452 = vpop.f32.mrb[0].mxu0
    %v5453 = vpop.f32.mrb[0].mxu0
    %v5454 = vadd.f32 %v4909, %v5453
    %v5455 = vpop.f32.mrb[0].mxu0
    %5456 = vmatprep.mubr.bf16.mxu0 0
    %5457 = vmatmul.mubr.bf16.gmra.mrb[0].mxu0 %v2258
    %v5458 = vpop.f32.mrb[0].mxu0
    %v5459 = vadd.f32 %v4914, %v5458
    %v5460 = vpop.f32.mrb[0].mxu0
    %v5461 = vpop.f32.mrb[0].mxu0
    %v5462 = vadd.f32 %v4917, %v5461
    %v5463 = vpop.f32.mrb[0].mxu0
    %5464 = vmatprep.mubr.bf16.mxu0 0
    %5465 = vmatmul.mubr.bf16.gmra.mrb[0].mxu0 %v2261
    %v5466 = vpop.f32.mrb[0].mxu0
    %v5467 = vadd.f32 %v4922, %v5466
    %v5468 = vpop.f32.mrb[0].mxu0
    %v5469 = vpop.f32.mrb[0].mxu0
    %v5470 = vadd.f32 %v4925, %v5469
    %v5471 = vpop.f32.mrb[0].mxu0
    %5472 = vmatprep.mubr.bf16.mxu0 0
    %5473 = vmatmul.mubr.bf16.gmra.mrb[0].mxu0 %v2264
    %v5474 = vpop.f32.mrb[0].mxu0
    %v5475 = vadd.f32 %v4930, %v5474
    %v5476 = vpop.f32.mrb[0].mxu0
    %v5477 = vpop.f32.mrb[0].mxu0
    %v5478 = vadd.f32 %v4933, %v5477
    %v5479 = vpop.f32.mrb[0].mxu0
    %5480 = vmatprep.mubr.bf16.mxu0 0
    %5481 = vmatmul.mubr.bf16.gmra.mrb[0].mxu0 %v2267
    %v5482 = vpop.f32.mrb[0].mxu0
    %v5483 = vadd.f32 %v4938, %v5482
    %v5484 = vpop.f32.mrb[0].mxu0
    %v5485 = vpop.f32.mrb[0].mxu0
    %v5486 = vadd.f32 %v4941, %v5485
    %v5487 = vpop.f32.mrb[0].mxu0
    %5488 = vmatprep.mubr.bf16.mxu0 0
    %5489 = vmatmul.mubr.bf16.gmra.mrb[0].mxu0 %v2270
    %v5490 = vpop.f32.mrb[0].mxu0
    %v5491 = vadd.f32 %v4946, %v5490
    %v5492 = vpop.f32.mrb[0].mxu0
    %v5493 = vpop.f32.mrb[0].mxu0
    %v5494 = vadd.f32 %v4949, %v5493
    %v5495 = vpop.f32.mrb[0].mxu0
    %5496 = vmatprep.mubr.bf16.mxu0 0
    %5497 = vmatmul.mubr.bf16.gmra.mrb[0].mxu0 %v2273
    %v5498 = vpop.f32.mrb[0].mxu0
    %v5499 = vadd.f32 %v4954, %v5498
    %v5500 = vpop.f32.mrb[0].mxu0
    %v5501 = vpop.f32.mrb[0].mxu0
    %v5502 = vadd.f32 %v4957, %v5501
    %v5503 = vpop.f32.mrb[0].mxu0
    %5504 = vmatprep.mubr.bf16.mxu0 0
    %5505 = vmatmul.mubr.bf16.gmra.mrb[0].mxu0 %v2276
    %v5506 = vpop.f32.mrb[0].mxu0
    %v5507 = vadd.f32 %v4962, %v5506
    %v5508 = vpop.f32.mrb[0].mxu0
    %v5509 = vpop.f32.mrb[0].mxu0
    %v5510 = vadd.f32 %v4965, %v5509
    %v5511 = vpop.f32.mrb[0].mxu0
    %5512 = vmatprep.mubr.bf16.mxu0 0
    %5513 = vmatmul.mubr.bf16.gmra.mrb[0].mxu0 %v2279
    %v5514 = vpop.f32.mrb[0].mxu0
    %v5515 = vadd.f32 %v4970, %v5514
    %v5516 = vpop.f32.mrb[0].mxu0
    %v5517 = vpop.f32.mrb[0].mxu0
    %v5518 = vadd.f32 %v4973, %v5517
    %v5519 = vpop.f32.mrb[0].mxu0
    %5520 = vmatprep.mubr.bf16.mxu0 0
    %5521 = vmatmul.mubr.bf16.gmra.mrb[0].mxu0 %v2282
    %v5522 = vpop.f32.mrb[0].mxu0
    %v5523 = vadd.f32 %v4978, %v5522
    %v5524 = vpop.f32.mrb[0].mxu0
    %v5525 = vpop.f32.mrb[0].mxu0
    %v5526 = vadd.f32 %v4981, %v5525
    %v5527 = vpop.f32.mrb[0].mxu0
    %5528 = vmatprep.mubr.bf16.mxu0 0
    %5529 = vmatmul.mubr.bf16.gmra.mrb[0].mxu0 %v2285
    %v5530 = vpop.f32.mrb[0].mxu0
    %v5531 = vadd.f32 %v4986, %v5530
    %v5532 = vpop.f32.mrb[0].mxu0
    %v5533 = vpop.f32.mrb[0].mxu0
    %v5534 = vadd.f32 %v4989, %v5533
    %v5535 = vpop.f32.mrb[0].mxu0
    %5536 = vmatprep.mubr.bf16.mxu0 0
    %5537 = vmatmul.mubr.bf16.gmra.mrb[0].mxu0 %v2288
    %v5538 = vpop.f32.mrb[0].mxu0
    %v5539 = vadd.f32 %v4994, %v5538
    %v5540 = vpop.f32.mrb[0].mxu0
    %v5541 = vpop.f32.mrb[0].mxu0
    %v5542 = vadd.f32 %v4997, %v5541
    %v5543 = vpop.f32.mrb[0].mxu0
    %5544 = vmatprep.mubr.bf16.mxu0 0
    %5545 = vmatmul.mubr.bf16.gmra.mrb[0].mxu0 %v2505
    %v5546 = vpop.f32.mrb[0].mxu0
    %v5547 = vadd.f32 %v5002, %v5546
    %v5548 = vpop.f32.mrb[0].mxu0
    %v5549 = vpop.f32.mrb[0].mxu0
    %v5550 = vadd.f32 %v5005, %v5549
    %v5551 = vpop.f32.mrb[0].mxu0
    %5552 = vmatprep.mubr.bf16.mxu0 0
    %5553 = vmatmul.mubr.bf16.gmra.mrb[0].mxu0 %v2198
    %v5554 = vpop.f32.mrb[0].mxu0
    %v5555 = vadd.f32 %v5010, %v5554
    %v5556 = vpop.f32.mrb[0].mxu0
    %v5557 = vpop.f32.mrb[0].mxu0
    %v5558 = vadd.f32 %v5013, %v5557
    %v5559 = vpop.f32.mrb[0].mxu0
    %5560 = vmatprep.mubr.bf16.mxu0 0
    %5561 = vmatmul.mubr.bf16.gmra.mrb[0].mxu0 %v2294
    %v5562 = vpop.f32.mrb[0].mxu0
    %v5563 = vadd.f32 %v5018, %v5562
    %v5564 = vpop.f32.mrb[0].mxu0
    %v5565 = vpop.f32.mrb[0].mxu0
    %v5566 = vadd.f32 %v5021, %v5565
    %v5567 = vpop.f32.mrb[0].mxu0
    %5568 = vmatprep.mubr.bf16.mxu0 0
    %5569 = vmatmul.mubr.bf16.gmra.mrb[0].mxu0 %v2297
    %v5570 = vpop.f32.mrb[0].mxu0
    %v5571 = vadd.f32 %v5026, %v5570
    %v5572 = vpop.f32.mrb[0].mxu0
    %v5573 = vpop.f32.mrb[0].mxu0
    %v5574 = vadd.f32 %v5029, %v5573
    %v5575 = vpop.f32.mrb[0].mxu0
    %5576 = vmatprep.mubr.bf16.mxu0 0
    %5577 = vmatmul.mubr.bf16.gmra.mrb[0].mxu0 %v2300
    %v5578 = vpop.f32.mrb[0].mxu0
    %v5579 = vadd.f32 %v5034, %v5578
    %v5580 = vpop.f32.mrb[0].mxu0
    %v5581 = vpop.f32.mrb[0].mxu0
    %v5582 = vadd.f32 %v5037, %v5581
    %v5583 = vpop.f32.mrb[0].mxu0
    %5584 = vmatprep.mubr.bf16.mxu0 0
    %5585 = vmatmul.mubr.bf16.gmra.mrb[0].mxu0 %v2303
    %v5586 = vpop.f32.mrb[0].mxu0
    %v5587 = vadd.f32 %v5042, %v5586
    %v5588 = vpop.f32.mrb[0].mxu0
    %v5589 = vpop.f32.mrb[0].mxu0
    %v5590 = vadd.f32 %v5045, %v5589
    %v5591 = vpop.f32.mrb[0].mxu0
    %5592 = vmatprep.mubr.bf16.mxu0 0
    %5593 = vmatmul.mubr.bf16.gmra.mrb[0].mxu0 %v2306
    %v5594 = vpop.f32.mrb[0].mxu0
    %v5595 = vadd.f32 %v5050, %v5594
    %v5596 = vpop.f32.mrb[0].mxu0
    %v5597 = vpop.f32.mrb[0].mxu0
    %v5598 = vadd.f32 %v5053, %v5597
    %v5599 = vpop.f32.mrb[0].mxu0
    %5600 = vmatprep.mubr.bf16.mxu0 0
    %5601 = vmatmul.mubr.bf16.gmra.mrb[0].mxu0 %v2309
    %v5602 = vpop.f32.mrb[0].mxu0
    %v5603 = vadd.f32 %v5058, %v5602
    %v5604 = vpop.f32.mrb[0].mxu0
    %v5605 = vpop.f32.mrb[0].mxu0
    %v5606 = vadd.f32 %v5061, %v5605
    %v5607 = vpop.f32.mrb[0].mxu0
    %5608 = vmatprep.mubr.bf16.mxu0 0
    %5609 = vmatmul.mubr.bf16.gmra.mrb[0].mxu0 %v2312
    %v5610 = vpop.f32.mrb[0].mxu0
    %v5611 = vadd.f32 %v5066, %v5610
    %v5612 = vpop.f32.mrb[0].mxu0
    %v5613 = vpop.f32.mrb[0].mxu0
    %v5614 = vadd.f32 %v5069, %v5613
    %v5615 = vpop.f32.mrb[0].mxu0
    %5616 = vmatprep.mubr.bf16.mxu0 0
    %5617 = vmatmul.mubr.bf16.gmra.mrb[0].mxu0 %v2315
    %v5618 = vpop.f32.mrb[0].mxu0
    %v5619 = vadd.f32 %v5074, %v5618
    %v5620 = vpop.f32.mrb[0].mxu0
    %v5621 = vpop.f32.mrb[0].mxu0
    %v5622 = vadd.f32 %v5077, %v5621
    %v5623 = vpop.f32.mrb[0].mxu0
    %5624 = vmatprep.mubr.bf16.mxu0 0
    %5625 = vmatmul.mubr.bf16.gmra.mrb[0].mxu0 %v2318
    %v5626 = vpop.f32.mrb[0].mxu0
    %v5627 = vadd.f32 %v5082, %v5626
    %v5628 = vpop.f32.mrb[0].mxu0
    %v5629 = vpop.f32.mrb[0].mxu0
    %v5630 = vadd.f32 %v5085, %v5629
    %v5631 = vpop.f32.mrb[0].mxu0
    %5632 = vmatprep.mubr.bf16.mxu0 0
    %5633 = vmatmul.mubr.bf16.gmra.mrb[0].mxu0 %v2321
    %v5634 = vpop.f32.mrb[0].mxu0
    %v5635 = vadd.f32 %v5090, %v5634
    %v5636 = vpop.f32.mrb[0].mxu0
    %v5637 = vpop.f32.mrb[0].mxu0
    %v5638 = vadd.f32 %v5093, %v5637
    %v5639 = vpop.f32.mrb[0].mxu0
    %5640 = vmatprep.mubr.bf16.mxu0 0
    %5641 = vmatmul.mubr.bf16.gmra.mrb[0].mxu0 %v2324
    %v5642 = vpop.f32.mrb[0].mxu0
    %v5643 = vadd.f32 %v5098, %v5642
    %v5644 = vpop.f32.mrb[0].mxu0
    %v5645 = vpop.f32.mrb[0].mxu0
    %v5646 = vadd.f32 %v5101, %v5645
    %v5647 = vpop.f32.mrb[0].mxu0
    %5648 = vmatprep.mubr.bf16.mxu0 0
    %5649 = vmatmul.mubr.bf16.gmra.mrb[0].mxu0 %v2327
    %v5650 = vpop.f32.mrb[0].mxu0
    %v5651 = vadd.f32 %v5106, %v5650
    %v5652 = vpop.f32.mrb[0].mxu0
    %v5653 = vpop.f32.mrb[0].mxu0
    %v5654 = vadd.f32 %v5109, %v5653
    %v5655 = vpop.f32.mrb[0].mxu0
    %5656 = vmatprep.mubr.bf16.mxu0 0
    %5657 = vmatmul.mubr.bf16.gmra.mrb[0].mxu0 %v2330
    %v5658 = vpop.f32.mrb[0].mxu0
    %v5659 = vadd.f32 %v5114, %v5658
    %v5660 = vpop.f32.mrb[0].mxu0
    %v5661 = vpop.f32.mrb[0].mxu0
    %v5662 = vadd.f32 %v5117, %v5661
    %v5663 = vpop.f32.mrb[0].mxu0
    %5664 = vmatprep.mubr.bf16.mxu0 0
    %5665 = vmatmul.mubr.bf16.gmra.mrb[0].mxu0 %v2333
    %v5666 = vpop.f32.mrb[0].mxu0
    %v5667 = vadd.f32 %v5122, %v5666
    %v5668 = vpop.f32.mrb[0].mxu0
    %v5669 = vpop.f32.mrb[0].mxu0
    %v5670 = vadd.f32 %v5125, %v5669
    %v5671 = vpop.f32.mrb[0].mxu0
    %5672 = vmatprep.mubr.bf16.mxu0 0
    %5673 = vmatmul.mubr.bf16.gmra.mrb[0].mxu0 %v2508
    %v5674 = vpop.f32.mrb[0].mxu0
    %v5675 = vadd.f32 %v5130, %v5674
    %v5676 = vpop.f32.mrb[0].mxu0
    %v5677 = vpop.f32.mrb[0].mxu0
    %v5678 = vadd.f32 %v5133, %v5677
    %v5679 = vpop.f32.mrb[0].mxu0
    %5680 = vmatprep.mubr.bf16.mxu0 0
    %5681 = vmatmul.mubr.bf16.gmra.mrb[0].mxu0 %v2198
    %v5682 = vpop.f32.mrb[0].mxu0
    %v5683 = vadd.f32 %v5138, %v5682
    %v5684 = vpop.f32.mrb[0].mxu0
    %v5685 = vpop.f32.mrb[0].mxu0
    %v5686 = vadd.f32 %v5141, %v5685
    %v5687 = vpop.f32.mrb[0].mxu0
    %5688 = vmatprep.mubr.bf16.mxu0 0
    %5689 = vmatmul.mubr.bf16.gmra.mrb[0].mxu0 %v2339
    %v5690 = vpop.f32.mrb[0].mxu0
    %v5691 = vadd.f32 %v5146, %v5690
    %v5692 = vpop.f32.mrb[0].mxu0
    %v5693 = vpop.f32.mrb[0].mxu0
    %v5694 = vadd.f32 %v5149, %v5693
    %v5695 = vpop.f32.mrb[0].mxu0
    %5696 = vmatprep.mubr.bf16.mxu0 0
    %5697 = vmatmul.mubr.bf16.gmra.mrb[0].mxu0 %v2342
    %v5698 = vpop.f32.mrb[0].mxu0
    %v5699 = vadd.f32 %v5154, %v5698
    %v5700 = vpop.f32.mrb[0].mxu0
    %v5701 = vpop.f32.mrb[0].mxu0
    %v5702 = vadd.f32 %v5157, %v5701
    %v5703 = vpop.f32.mrb[0].mxu0
    %5704 = vmatprep.mubr.bf16.mxu0 0
    %5705 = vmatmul.mubr.bf16.gmra.mrb[0].mxu0 %v2345
    %v5706 = vpop.f32.mrb[0].mxu0
    %v5707 = vadd.f32 %v5162, %v5706
    %v5708 = vpop.f32.mrb[0].mxu0
    %v5709 = vpop.f32.mrb[0].mxu0
    %v5710 = vadd.f32 %v5165, %v5709
    %v5711 = vpop.f32.mrb[0].mxu0
    %5712 = vmatprep.mubr.bf16.mxu0 0
    %5713 = vmatmul.mubr.bf16.gmra.mrb[0].mxu0 %v2348
    %v5714 = vpop.f32.mrb[0].mxu0
    %v5715 = vadd.f32 %v5170, %v5714
    %v5716 = vpop.f32.mrb[0].mxu0
    %v5717 = vpop.f32.mrb[0].mxu0
    %v5718 = vadd.f32 %v5173, %v5717
    %v5719 = vpop.f32.mrb[0].mxu0
    %5720 = vmatprep.mubr.bf16.mxu0 0
    %5721 = vmatmul.mubr.bf16.gmra.mrb[0].mxu0 %v2351
    %v5722 = vpop.f32.mrb[0].mxu0
    %v5723 = vadd.f32 %v5178, %v5722
    %v5724 = vpop.f32.mrb[0].mxu0
    %v5725 = vpop.f32.mrb[0].mxu0
    %v5726 = vadd.f32 %v5181, %v5725
    %v5727 = vpop.f32.mrb[0].mxu0
    %5728 = vmatprep.mubr.bf16.mxu0 0
    %5729 = vmatmul.mubr.bf16.gmra.mrb[0].mxu0 %v2354
    %v5730 = vpop.f32.mrb[0].mxu0
    %v5731 = vadd.f32 %v5186, %v5730
    %v5732 = vpop.f32.mrb[0].mxu0
    %v5733 = vpop.f32.mrb[0].mxu0
    %v5734 = vadd.f32 %v5189, %v5733
    %v5735 = vpop.f32.mrb[0].mxu0
    %5736 = vmatprep.mubr.bf16.mxu0 0
    %5737 = vmatmul.mubr.bf16.gmra.mrb[0].mxu0 %v2357
    %v5738 = vpop.f32.mrb[0].mxu0
    %v5739 = vadd.f32 %v5194, %v5738
    %v5740 = vpop.f32.mrb[0].mxu0
    %v5741 = vpop.f32.mrb[0].mxu0
    %v5742 = vadd.f32 %v5197, %v5741
    %v5743 = vpop.f32.mrb[0].mxu0
    %5744 = vmatprep.mubr.bf16.mxu0 0
    %5745 = vmatmul.mubr.bf16.gmra.mrb[0].mxu0 %v2360
    %v5746 = vpop.f32.mrb[0].mxu0
    %v5747 = vadd.f32 %v5202, %v5746
    %v5748 = vpop.f32.mrb[0].mxu0
    %v5749 = vpop.f32.mrb[0].mxu0
    %v5750 = vadd.f32 %v5205, %v5749
    %v5751 = vpop.f32.mrb[0].mxu0
    %5752 = vmatprep.mubr.bf16.mxu0 0
    %5753 = vmatmul.mubr.bf16.gmra.mrb[0].mxu0 %v2363
    %v5754 = vpop.f32.mrb[0].mxu0
    %v5755 = vadd.f32 %v5210, %v5754
    %v5756 = vpop.f32.mrb[0].mxu0
    %v5757 = vpop.f32.mrb[0].mxu0
    %v5758 = vadd.f32 %v5213, %v5757
    %v5759 = vpop.f32.mrb[0].mxu0
    %5760 = vmatprep.mubr.bf16.mxu0 0
    %5761 = vmatmul.mubr.bf16.gmra.mrb[0].mxu0 %v2366
    %v5762 = vpop.f32.mrb[0].mxu0
    %v5763 = vadd.f32 %v5218, %v5762
    %v5764 = vpop.f32.mrb[0].mxu0
    %v5765 = vpop.f32.mrb[0].mxu0
    %v5766 = vadd.f32 %v5221, %v5765
    %v5767 = vpop.f32.mrb[0].mxu0
    %5768 = vmatprep.mubr.bf16.mxu0 0
    %5769 = vmatmul.mubr.bf16.gmra.mrb[0].mxu0 %v2369
    %v5770 = vpop.f32.mrb[0].mxu0
    %v5771 = vadd.f32 %v5226, %v5770
    %v5772 = vpop.f32.mrb[0].mxu0
    %v5773 = vpop.f32.mrb[0].mxu0
    %v5774 = vadd.f32 %v5229, %v5773
    %v5775 = vpop.f32.mrb[0].mxu0
    %5776 = vmatprep.mubr.bf16.mxu0 0
    %5777 = vmatmul.mubr.bf16.gmra.mrb[0].mxu0 %v2372
    %v5778 = vpop.f32.mrb[0].mxu0
    %v5779 = vadd.f32 %v5234, %v5778
    %v5780 = vpop.f32.mrb[0].mxu0
    %v5781 = vpop.f32.mrb[0].mxu0
    %v5782 = vadd.f32 %v5237, %v5781
    %v5783 = vpop.f32.mrb[0].mxu0
    %5784 = vmatprep.mubr.bf16.mxu0 0
    %5785 = vmatmul.mubr.bf16.gmra.mrb[0].mxu0 %v2375
    %v5786 = vpop.f32.mrb[0].mxu0
    %v5787 = vadd.f32 %v5242, %v5786
    %v5788 = vpop.f32.mrb[0].mxu0
    %v5789 = vpop.f32.mrb[0].mxu0
    %v5790 = vadd.f32 %v5245, %v5789
    %v5791 = vpop.f32.mrb[0].mxu0
    %5792 = vmatprep.mubr.bf16.mxu0 0
    %5793 = vmatmul.mubr.bf16.gmra.mrb[0].mxu0 %v2378
    %v5794 = vpop.f32.mrb[0].mxu0
    %v5795 = vadd.f32 %v5250, %v5794
    %v5796 = vpop.f32.mrb[0].mxu0
    %v5797 = vpop.f32.mrb[0].mxu0
    %v5798 = vadd.f32 %v5253, %v5797
    %v5799 = vpop.f32.mrb[0].mxu0
    %5800 = vmatprep.mubr.bf16.mxu0 0
    %5801 = vmatmul.mubr.bf16.gmra.mrb[0].mxu0 %v2511
    %v5802 = vpop.f32.mrb[0].mxu0
    %v5803 = vadd.f32 %v5258, %v5802
    %v5804 = vpop.f32.mrb[0].mxu0
    %v5805 = vpop.f32.mrb[0].mxu0
    %v5806 = vadd.f32 %v5261, %v5805
    %v5807 = vpop.f32.mrb[0].mxu0
    %5808 = vmatprep.mubr.bf16.mxu0 0
    %5809 = vmatmul.mubr.bf16.gmra.mrb[0].mxu0 %v2198
    %v5810 = vpop.f32.mrb[0].mxu0
    %v5811 = vadd.f32 %v5266, %v5810
    %v5812 = vpop.f32.mrb[0].mxu0
    %v5813 = vpop.f32.mrb[0].mxu0
    %v5814 = vadd.f32 %v5269, %v5813
    %v5815 = vpop.f32.mrb[0].mxu0
    %5816 = vdwg.mxu0
    %v5817 = vld [vmem:[%s5] sm:$0x1]
    %v5819 = vlaneseq
    %v5820 = vshrl.u32 %v5819, 7
    %v5821 = vsub.s32 0, %v5820
    %v5822 = vrot.slane %v5817, %v5821
    %v5824 = vmul.f32 %v5307, %v5822
    %v5825 = vmul.f32 %v5310, %v5822
    %v5826 = vmul.f32 %v5315, %v5822
    %v5827 = vmul.f32 %v5318, %v5822
    %v5828 = vmul.f32 %v5323, %v5822
    %v5829 = vmul.f32 %v5326, %v5822
    %v5830 = vmul.f32 %v5331, %v5822
    %v5831 = vmul.f32 %v5334, %v5822
    %v5832 = vmul.f32 %v5339, %v5822
    %v5833 = vmul.f32 %v5342, %v5822
    %v5834 = vmul.f32 %v5347, %v5822
    %v5835 = vmul.f32 %v5350, %v5822
    %v5836 = vmul.f32 %v5355, %v5822
    %v5837 = vmul.f32 %v5358, %v5822
    %v5838 = vmul.f32 %v5363, %v5822
    %v5839 = vmul.f32 %v5366, %v5822
    %v5840 = vmul.f32 %v5371, %v5822
    %v5841 = vmul.f32 %v5374, %v5822
    %v5842 = vmul.f32 %v5379, %v5822
    %v5843 = vmul.f32 %v5382, %v5822
    %v5844 = vmul.f32 %v5387, %v5822
    %v5845 = vmul.f32 %v5390, %v5822
    %v5846 = vmul.f32 %v5395, %v5822
    %v5847 = vmul.f32 %v5398, %v5822
    %v5848 = vmul.f32 %v5403, %v5822
    %v5849 = vmul.f32 %v5406, %v5822
    %v5850 = vmul.f32 %v5411, %v5822
    %v5851 = vmul.f32 %v5414, %v5822
    %v5852 = vmul.f32 %v5419, %v5822
    %v5853 = vmul.f32 %v5422, %v5822
    %v5854 = vmul.f32 %v5427, %v5822
    %v5855 = vmul.f32 %v5430, %v5822
    %v5856 = vmul.f32 %v5435, %v5822
    %v5857 = vmul.f32 %v5438, %v5822
    %v5858 = vmul.f32 %v5443, %v5822
    %v5859 = vmul.f32 %v5446, %v5822
    %v5860 = vmul.f32 %v5451, %v5822
    %v5861 = vmul.f32 %v5454, %v5822
    %v5862 = vmul.f32 %v5459, %v5822
    %v5863 = vmul.f32 %v5462, %v5822
    %v5864 = vmul.f32 %v5467, %v5822
    %v5865 = vmul.f32 %v5470, %v5822
    %v5866 = vmul.f32 %v5475, %v5822
    %v5867 = vmul.f32 %v5478, %v5822
    %v5868 = vmul.f32 %v5483, %v5822
    %v5869 = vmul.f32 %v5486, %v5822
    %v5870 = vmul.f32 %v5491, %v5822
    %v5871 = vmul.f32 %v5494, %v5822
    %v5872 = vmul.f32 %v5499, %v5822
    %v5873 = vmul.f32 %v5502, %v5822
    %v5874 = vmul.f32 %v5507, %v5822
    %v5875 = vmul.f32 %v5510, %v5822
    %v5876 = vmul.f32 %v5515, %v5822
    %v5877 = vmul.f32 %v5518, %v5822
    %v5878 = vmul.f32 %v5523, %v5822
    %v5879 = vmul.f32 %v5526, %v5822
    %v5880 = vmul.f32 %v5531, %v5822
    %v5881 = vmul.f32 %v5534, %v5822
    %v5882 = vmul.f32 %v5539, %v5822
    %v5883 = vmul.f32 %v5542, %v5822
    %v5884 = vmul.f32 %v5547, %v5822
    %v5885 = vmul.f32 %v5550, %v5822
    %v5886 = vmul.f32 %v5555, %v5822
    %v5887 = vmul.f32 %v5558, %v5822
    %v5888 = vmul.f32 %v5563, %v5822
    %v5889 = vmul.f32 %v5566, %v5822
    %v5890 = vmul.f32 %v5571, %v5822
    %v5891 = vmul.f32 %v5574, %v5822
    %v5892 = vmul.f32 %v5579, %v5822
    %v5893 = vmul.f32 %v5582, %v5822
    %v5894 = vmul.f32 %v5587, %v5822
    %v5895 = vmul.f32 %v5590, %v5822
    %v5896 = vmul.f32 %v5595, %v5822
    %v5897 = vmul.f32 %v5598, %v5822
    %v5898 = vmul.f32 %v5603, %v5822
    %v5899 = vmul.f32 %v5606, %v5822
    %v5900 = vmul.f32 %v5611, %v5822
    %v5901 = vmul.f32 %v5614, %v5822
    %v5902 = vmul.f32 %v5619, %v5822
    %v5903 = vmul.f32 %v5622, %v5822
    %v5904 = vmul.f32 %v5627, %v5822
    %v5905 = vmul.f32 %v5630, %v5822
    %v5906 = vmul.f32 %v5635, %v5822
    %v5907 = vmul.f32 %v5638, %v5822
    %v5908 = vmul.f32 %v5643, %v5822
    %v5909 = vmul.f32 %v5646, %v5822
    %v5910 = vmul.f32 %v5651, %v5822
    %v5911 = vmul.f32 %v5654, %v5822
    %v5912 = vmul.f32 %v5659, %v5822
    %v5913 = vmul.f32 %v5662, %v5822
    %v5914 = vmul.f32 %v5667, %v5822
    %v5915 = vmul.f32 %v5670, %v5822
    %v5916 = vmul.f32 %v5675, %v5822
    %v5917 = vmul.f32 %v5678, %v5822
    %v5918 = vmul.f32 %v5683, %v5822
    %v5919 = vmul.f32 %v5686, %v5822
    %v5920 = vmul.f32 %v5691, %v5822
    %v5921 = vmul.f32 %v5694, %v5822
    %v5922 = vmul.f32 %v5699, %v5822
    %v5923 = vmul.f32 %v5702, %v5822
    %v5924 = vmul.f32 %v5707, %v5822
    %v5925 = vmul.f32 %v5710, %v5822
    %v5926 = vmul.f32 %v5715, %v5822
    %v5927 = vmul.f32 %v5718, %v5822
    %v5928 = vmul.f32 %v5723, %v5822
    %v5929 = vmul.f32 %v5726, %v5822
    %v5930 = vmul.f32 %v5731, %v5822
    %v5931 = vmul.f32 %v5734, %v5822
    %v5932 = vmul.f32 %v5739, %v5822
    %v5933 = vmul.f32 %v5742, %v5822
    %v5934 = vmul.f32 %v5747, %v5822
    %v5935 = vmul.f32 %v5750, %v5822
    %v5936 = vmul.f32 %v5755, %v5822
    %v5937 = vmul.f32 %v5758, %v5822
    %v5938 = vmul.f32 %v5763, %v5822
    %v5939 = vmul.f32 %v5766, %v5822
    %v5940 = vmul.f32 %v5771, %v5822
    %v5941 = vmul.f32 %v5774, %v5822
    %v5942 = vmul.f32 %v5779, %v5822
    %v5943 = vmul.f32 %v5782, %v5822
    %v5944 = vmul.f32 %v5787, %v5822
    %v5945 = vmul.f32 %v5790, %v5822
    %v5946 = vmul.f32 %v5795, %v5822
    %v5947 = vmul.f32 %v5798, %v5822
    %v5948 = vmul.f32 %v5803, %v5822
    %v5949 = vmul.f32 %v5806, %v5822
    %v5950 = vmul.f32 %v5811, %v5822
    %v5951 = vmul.f32 %v5814, %v5822
    %v5952 = vld [vmem:[%s6] sm:$0x1]
    %v5954 = vlaneseq
    %v5955 = vshrl.u32 %v5954, 7
    %v5956 = vsub.s32 0, %v5955
    %v5957 = vrot.slane %v5952, %v5956
    %v5959 = vadd.f32 %v5824, %v5957
    %v5960 = vadd.f32 %v5825, %v5957
    %v5961 = vadd.f32 %v5826, %v5957
    %v5962 = vadd.f32 %v5827, %v5957
    %v5963 = vadd.f32 %v5828, %v5957
    %v5964 = vadd.f32 %v5829, %v5957
    %v5965 = vadd.f32 %v5830, %v5957
    %v5966 = vadd.f32 %v5831, %v5957
    %v5967 = vadd.f32 %v5832, %v5957
    %v5968 = vadd.f32 %v5833, %v5957
    %v5969 = vadd.f32 %v5834, %v5957
    %v5970 = vadd.f32 %v5835, %v5957
    %v5971 = vadd.f32 %v5836, %v5957
    %v5972 = vadd.f32 %v5837, %v5957
    %v5973 = vadd.f32 %v5838, %v5957
    %v5974 = vadd.f32 %v5839, %v5957
    %v5975 = vadd.f32 %v5840, %v5957
    %v5976 = vadd.f32 %v5841, %v5957
    %v5977 = vadd.f32 %v5842, %v5957
    %v5978 = vadd.f32 %v5843, %v5957
    %v5979 = vadd.f32 %v5844, %v5957
    %v5980 = vadd.f32 %v5845, %v5957
    %v5981 = vadd.f32 %v5846, %v5957
    %v5982 = vadd.f32 %v5847, %v5957
    %v5983 = vadd.f32 %v5848, %v5957
    %v5984 = vadd.f32 %v5849, %v5957
    %v5985 = vadd.f32 %v5850, %v5957
    %v5986 = vadd.f32 %v5851, %v5957
    %v5987 = vadd.f32 %v5852, %v5957
    %v5988 = vadd.f32 %v5853, %v5957
    %v5989 = vadd.f32 %v5854, %v5957
    %v5990 = vadd.f32 %v5855, %v5957
    %v5991 = vadd.f32 %v5856, %v5957
    %v5992 = vadd.f32 %v5857, %v5957
    %v5993 = vadd.f32 %v5858, %v5957
    %v5994 = vadd.f32 %v5859, %v5957
    %v5995 = vadd.f32 %v5860, %v5957
    %v5996 = vadd.f32 %v5861, %v5957
    %v5997 = vadd.f32 %v5862, %v5957
    %v5998 = vadd.f32 %v5863, %v5957
    %v5999 = vadd.f32 %v5864, %v5957
    %v6000 = vadd.f32 %v5865, %v5957
    %v6001 = vadd.f32 %v5866, %v5957
    %v6002 = vadd.f32 %v5867, %v5957
    %v6003 = vadd.f32 %v5868, %v5957
    %v6004 = vadd.f32 %v5869, %v5957
    %v6005 = vadd.f32 %v5870, %v5957
    %v6006 = vadd.f32 %v5871, %v5957
    %v6007 = vadd.f32 %v5872, %v5957
    %v6008 = vadd.f32 %v5873, %v5957
    %v6009 = vadd.f32 %v5874, %v5957
    %v6010 = vadd.f32 %v5875, %v5957
    %v6011 = vadd.f32 %v5876, %v5957
    %v6012 = vadd.f32 %v5877, %v5957
    %v6013 = vadd.f32 %v5878, %v5957
    %v6014 = vadd.f32 %v5879, %v5957
    %v6015 = vadd.f32 %v5880, %v5957
    %v6016 = vadd.f32 %v5881, %v5957
    %v6017 = vadd.f32 %v5882, %v5957
    %v6018 = vadd.f32 %v5883, %v5957
    %v6019 = vadd.f32 %v5884, %v5957
    %v6020 = vadd.f32 %v5885, %v5957
    %v6021 = vadd.f32 %v5886, %v5957
    %v6022 = vadd.f32 %v5887, %v5957
    %v6023 = vadd.f32 %v5888, %v5957
    %v6024 = vadd.f32 %v5889, %v5957
    %v6025 = vadd.f32 %v5890, %v5957
    %v6026 = vadd.f32 %v5891, %v5957
    %v6027 = vadd.f32 %v5892, %v5957
    %v6028 = vadd.f32 %v5893, %v5957
    %v6029 = vadd.f32 %v5894, %v5957
    %v6030 = vadd.f32 %v5895, %v5957
    %v6031 = vadd.f32 %v5896, %v5957
    %v6032 = vadd.f32 %v5897, %v5957
    %v6033 = vadd.f32 %v5898, %v5957
    %v6034 = vadd.f32 %v5899, %v5957
    %v6035 = vadd.f32 %v5900, %v5957
    %v6036 = vadd.f32 %v5901, %v5957
    %v6037 = vadd.f32 %v5902, %v5957
    %v6038 = vadd.f32 %v5903, %v5957
    %v6039 = vadd.f32 %v5904, %v5957
    %v6040 = vadd.f32 %v5905, %v5957
    %v6041 = vadd.f32 %v5906, %v5957
    %v6042 = vadd.f32 %v5907, %v5957
    %v6043 = vadd.f32 %v5908, %v5957
    %v6044 = vadd.f32 %v5909, %v5957
    %v6045 = vadd.f32 %v5910, %v5957
    %v6046 = vadd.f32 %v5911, %v5957
    %v6047 = vadd.f32 %v5912, %v5957
    %v6048 = vadd.f32 %v5913, %v5957
    %v6049 = vadd.f32 %v5914, %v5957
    %v6050 = vadd.f32 %v5915, %v5957
    %v6051 = vadd.f32 %v5916, %v5957
    %v6052 = vadd.f32 %v5917, %v5957
    %v6053 = vadd.f32 %v5918, %v5957
    %v6054 = vadd.f32 %v5919, %v5957
    %v6055 = vadd.f32 %v5920, %v5957
    %v6056 = vadd.f32 %v5921, %v5957
    %v6057 = vadd.f32 %v5922, %v5957
    %v6058 = vadd.f32 %v5923, %v5957
    %v6059 = vadd.f32 %v5924, %v5957
    %v6060 = vadd.f32 %v5925, %v5957
    %v6061 = vadd.f32 %v5926, %v5957
    %v6062 = vadd.f32 %v5927, %v5957
    %v6063 = vadd.f32 %v5928, %v5957
    %v6064 = vadd.f32 %v5929, %v5957
    %v6065 = vadd.f32 %v5930, %v5957
    %v6066 = vadd.f32 %v5931, %v5957
    %v6067 = vadd.f32 %v5932, %v5957
    %v6068 = vadd.f32 %v5933, %v5957
    %v6069 = vadd.f32 %v5934, %v5957
    %v6070 = vadd.f32 %v5935, %v5957
    %v6071 = vadd.f32 %v5936, %v5957
    %v6072 = vadd.f32 %v5937, %v5957
    %v6073 = vadd.f32 %v5938, %v5957
    %v6074 = vadd.f32 %v5939, %v5957
    %v6075 = vadd.f32 %v5940, %v5957
    %v6076 = vadd.f32 %v5941, %v5957
    %v6077 = vadd.f32 %v5942, %v5957
    %v6078 = vadd.f32 %v5943, %v5957
    %v6079 = vadd.f32 %v5944, %v5957
    %v6080 = vadd.f32 %v5945, %v5957
    %v6081 = vadd.f32 %v5946, %v5957
    %v6082 = vadd.f32 %v5947, %v5957
    %v6083 = vadd.f32 %v5948, %v5957
    %v6084 = vadd.f32 %v5949, %v5957
    %v6085 = vadd.f32 %v5950, %v5957
    %v6086 = vadd.f32 %v5951, %v5957
    %vm6087 = vcmp.ge.f32.partialorder %v5959, 0.0
    %vm6088 = vcmp.ge.f32.partialorder %v5960, 0.0
    %vm6089 = vcmp.ge.f32.partialorder %v5961, 0.0
    %vm6090 = vcmp.ge.f32.partialorder %v5962, 0.0
    %vm6091 = vcmp.ge.f32.partialorder %v5963, 0.0
    %vm6092 = vcmp.ge.f32.partialorder %v5964, 0.0
    %vm6093 = vcmp.ge.f32.partialorder %v5965, 0.0
    %vm6094 = vcmp.ge.f32.partialorder %v5966, 0.0
    %vm6095 = vcmp.ge.f32.partialorder %v5967, 0.0
    %vm6096 = vcmp.ge.f32.partialorder %v5968, 0.0
    %vm6097 = vcmp.ge.f32.partialorder %v5969, 0.0
    %vm6098 = vcmp.ge.f32.partialorder %v5970, 0.0
    %vm6099 = vcmp.ge.f32.partialorder %v5971, 0.0
    %vm6100 = vcmp.ge.f32.partialorder %v5972, 0.0
    %vm6101 = vcmp.ge.f32.partialorder %v5973, 0.0
    %vm6102 = vcmp.ge.f32.partialorder %v5974, 0.0
    %vm6103 = vcmp.ge.f32.partialorder %v5975, 0.0
    %vm6104 = vcmp.ge.f32.partialorder %v5976, 0.0
    %vm6105 = vcmp.ge.f32.partialorder %v5977, 0.0
    %vm6106 = vcmp.ge.f32.partialorder %v5978, 0.0
    %vm6107 = vcmp.ge.f32.partialorder %v5979, 0.0
    %vm6108 = vcmp.ge.f32.partialorder %v5980, 0.0
    %vm6109 = vcmp.ge.f32.partialorder %v5981, 0.0
    %vm6110 = vcmp.ge.f32.partialorder %v5982, 0.0
    %vm6111 = vcmp.ge.f32.partialorder %v5983, 0.0
    %vm6112 = vcmp.ge.f32.partialorder %v5984, 0.0
    %vm6113 = vcmp.ge.f32.partialorder %v5985, 0.0
    %vm6114 = vcmp.ge.f32.partialorder %v5986, 0.0
    %vm6115 = vcmp.ge.f32.partialorder %v5987, 0.0
    %vm6116 = vcmp.ge.f32.partialorder %v5988, 0.0
    %vm6117 = vcmp.ge.f32.partialorder %v5989, 0.0
    %vm6118 = vcmp.ge.f32.partialorder %v5990, 0.0
    %vm6119 = vcmp.ge.f32.partialorder %v5991, 0.0
    %vm6120 = vcmp.ge.f32.partialorder %v5992, 0.0
    %vm6121 = vcmp.ge.f32.partialorder %v5993, 0.0
    %vm6122 = vcmp.ge.f32.partialorder %v5994, 0.0
    %vm6123 = vcmp.ge.f32.partialorder %v5995, 0.0
    %vm6124 = vcmp.ge.f32.partialorder %v5996, 0.0
    %vm6125 = vcmp.ge.f32.partialorder %v5997, 0.0
    %vm6126 = vcmp.ge.f32.partialorder %v5998, 0.0
    %vm6127 = vcmp.ge.f32.partialorder %v5999, 0.0
    %vm6128 = vcmp.ge.f32.partialorder %v6000, 0.0
    %vm6129 = vcmp.ge.f32.partialorder %v6001, 0.0
    %vm6130 = vcmp.ge.f32.partialorder %v6002, 0.0
    %vm6131 = vcmp.ge.f32.partialorder %v6003, 0.0
    %vm6132 = vcmp.ge.f32.partialorder %v6004, 0.0
    %vm6133 = vcmp.ge.f32.partialorder %v6005, 0.0
    %vm6134 = vcmp.ge.f32.partialorder %v6006, 0.0
    %vm6135 = vcmp.ge.f32.partialorder %v6007, 0.0
    %vm6136 = vcmp.ge.f32.partialorder %v6008, 0.0
    %vm6137 = vcmp.ge.f32.partialorder %v6009, 0.0
    %vm6138 = vcmp.ge.f32.partialorder %v6010, 0.0
    %vm6139 = vcmp.ge.f32.partialorder %v6011, 0.0
    %vm6140 = vcmp.ge.f32.partialorder %v6012, 0.0
    %vm6141 = vcmp.ge.f32.partialorder %v6013, 0.0
    %vm6142 = vcmp.ge.f32.partialorder %v6014, 0.0
    %vm6143 = vcmp.ge.f32.partialorder %v6015, 0.0
    %vm6144 = vcmp.ge.f32.partialorder %v6016, 0.0
    %vm6145 = vcmp.ge.f32.partialorder %v6017, 0.0
    %vm6146 = vcmp.ge.f32.partialorder %v6018, 0.0
    %vm6147 = vcmp.ge.f32.partialorder %v6019, 0.0
    %vm6148 = vcmp.ge.f32.partialorder %v6020, 0.0
    %vm6149 = vcmp.ge.f32.partialorder %v6021, 0.0
    %vm6150 = vcmp.ge.f32.partialorder %v6022, 0.0
    %vm6151 = vcmp.ge.f32.partialorder %v6023, 0.0
    %vm6152 = vcmp.ge.f32.partialorder %v6024, 0.0
    %vm6153 = vcmp.ge.f32.partialorder %v6025, 0.0
    %vm6154 = vcmp.ge.f32.partialorder %v6026, 0.0
    %vm6155 = vcmp.ge.f32.partialorder %v6027, 0.0
    %vm6156 = vcmp.ge.f32.partialorder %v6028, 0.0
    %vm6157 = vcmp.ge.f32.partialorder %v6029, 0.0
    %vm6158 = vcmp.ge.f32.partialorder %v6030, 0.0
    %vm6159 = vcmp.ge.f32.partialorder %v6031, 0.0
    %vm6160 = vcmp.ge.f32.partialorder %v6032, 0.0
    %vm6161 = vcmp.ge.f32.partialorder %v6033, 0.0
    %vm6162 = vcmp.ge.f32.partialorder %v6034, 0.0
    %vm6163 = vcmp.ge.f32.partialorder %v6035, 0.0
    %vm6164 = vcmp.ge.f32.partialorder %v6036, 0.0
    %vm6165 = vcmp.ge.f32.partialorder %v6037, 0.0
    %vm6166 = vcmp.ge.f32.partialorder %v6038, 0.0
    %vm6167 = vcmp.ge.f32.partialorder %v6039, 0.0
    %vm6168 = vcmp.ge.f32.partialorder %v6040, 0.0
    %vm6169 = vcmp.ge.f32.partialorder %v6041, 0.0
    %vm6170 = vcmp.ge.f32.partialorder %v6042, 0.0
    %vm6171 = vcmp.ge.f32.partialorder %v6043, 0.0
    %vm6172 = vcmp.ge.f32.partialorder %v6044, 0.0
    %vm6173 = vcmp.ge.f32.partialorder %v6045, 0.0
    %vm6174 = vcmp.ge.f32.partialorder %v6046, 0.0
    %vm6175 = vcmp.ge.f32.partialorder %v6047, 0.0
    %vm6176 = vcmp.ge.f32.partialorder %v6048, 0.0
    %vm6177 = vcmp.ge.f32.partialorder %v6049, 0.0
    %vm6178 = vcmp.ge.f32.partialorder %v6050, 0.0
    %vm6179 = vcmp.ge.f32.partialorder %v6051, 0.0
    %vm6180 = vcmp.ge.f32.partialorder %v6052, 0.0
    %vm6181 = vcmp.ge.f32.partialorder %v6053, 0.0
    %vm6182 = vcmp.ge.f32.partialorder %v6054, 0.0
    %vm6183 = vcmp.ge.f32.partialorder %v6055, 0.0
    %vm6184 = vcmp.ge.f32.partialorder %v6056, 0.0
    %vm6185 = vcmp.ge.f32.partialorder %v6057, 0.0
    %vm6186 = vcmp.ge.f32.partialorder %v6058, 0.0
    %vm6187 = vcmp.ge.f32.partialorder %v6059, 0.0
    %vm6188 = vcmp.ge.f32.partialorder %v6060, 0.0
    %vm6189 = vcmp.ge.f32.partialorder %v6061, 0.0
    %vm6190 = vcmp.ge.f32.partialorder %v6062, 0.0
    %vm6191 = vcmp.ge.f32.partialorder %v6063, 0.0
    %vm6192 = vcmp.ge.f32.partialorder %v6064, 0.0
    %vm6193 = vcmp.ge.f32.partialorder %v6065, 0.0
    %vm6194 = vcmp.ge.f32.partialorder %v6066, 0.0
    %vm6195 = vcmp.ge.f32.partialorder %v6067, 0.0
    %vm6196 = vcmp.ge.f32.partialorder %v6068, 0.0
    %vm6197 = vcmp.ge.f32.partialorder %v6069, 0.0
    %vm6198 = vcmp.ge.f32.partialorder %v6070, 0.0
    %vm6199 = vcmp.ge.f32.partialorder %v6071, 0.0
    %vm6200 = vcmp.ge.f32.partialorder %v6072, 0.0
    %vm6201 = vcmp.ge.f32.partialorder %v6073, 0.0
    %vm6202 = vcmp.ge.f32.partialorder %v6074, 0.0
    %vm6203 = vcmp.ge.f32.partialorder %v6075, 0.0
    %vm6204 = vcmp.ge.f32.partialorder %v6076, 0.0
    %vm6205 = vcmp.ge.f32.partialorder %v6077, 0.0
    %vm6206 = vcmp.ge.f32.partialorder %v6078, 0.0
    %vm6207 = vcmp.ge.f32.partialorder %v6079, 0.0
    %vm6208 = vcmp.ge.f32.partialorder %v6080, 0.0
    %vm6209 = vcmp.ge.f32.partialorder %v6081, 0.0
    %vm6210 = vcmp.ge.f32.partialorder %v6082, 0.0
    %vm6211 = vcmp.ge.f32.partialorder %v6083, 0.0
    %vm6212 = vcmp.ge.f32.partialorder %v6084, 0.0
    %vm6213 = vcmp.ge.f32.partialorder %v6085, 0.0
    %vm6214 = vcmp.ge.f32.partialorder %v6086, 0.0
    %v6215 = vstv %s226
    %v6216 = vmul.f32 %v6215, %v5959
    %v6217 = vmul.f32 %v6215, %v5960
    %v6218 = vmul.f32 %v6215, %v5961
    %v6219 = vmul.f32 %v6215, %v5962
    %v6220 = vmul.f32 %v6215, %v5963
    %v6221 = vmul.f32 %v6215, %v5964
    %v6222 = vmul.f32 %v6215, %v5965
    %v6223 = vmul.f32 %v6215, %v5966
    %v6224 = vmul.f32 %v6215, %v5967
    %v6225 = vmul.f32 %v6215, %v5968
    %v6226 = vmul.f32 %v6215, %v5969
    %v6227 = vmul.f32 %v6215, %v5970
    %v6228 = vmul.f32 %v6215, %v5971
    %v6229 = vmul.f32 %v6215, %v5972
    %v6230 = vmul.f32 %v6215, %v5973
    %v6231 = vmul.f32 %v6215, %v5974
    %v6232 = vmul.f32 %v6215, %v5975
    %v6233 = vmul.f32 %v6215, %v5976
    %v6234 = vmul.f32 %v6215, %v5977
    %v6235 = vmul.f32 %v6215, %v5978
    %v6236 = vmul.f32 %v6215, %v5979
    %v6237 = vmul.f32 %v6215, %v5980
    %v6238 = vmul.f32 %v6215, %v5981
    %v6239 = vmul.f32 %v6215, %v5982
    %v6240 = vmul.f32 %v6215, %v5983
    %v6241 = vmul.f32 %v6215, %v5984
    %v6242 = vmul.f32 %v6215, %v5985
    %v6243 = vmul.f32 %v6215, %v5986
    %v6244 = vmul.f32 %v6215, %v5987
    %v6245 = vmul.f32 %v6215, %v5988
    %v6246 = vmul.f32 %v6215, %v5989
    %v6247 = vmul.f32 %v6215, %v5990
    %v6248 = vmul.f32 %v6215, %v5991
    %v6249 = vmul.f32 %v6215, %v5992
    %v6250 = vmul.f32 %v6215, %v5993
    %v6251 = vmul.f32 %v6215, %v5994
    %v6252 = vmul.f32 %v6215, %v5995
    %v6253 = vmul.f32 %v6215, %v5996
    %v6254 = vmul.f32 %v6215, %v5997
    %v6255 = vmul.f32 %v6215, %v5998
    %v6256 = vmul.f32 %v6215, %v5999
    %v6257 = vmul.f32 %v6215, %v6000
    %v6258 = vmul.f32 %v6215, %v6001
    %v6259 = vmul.f32 %v6215, %v6002
    %v6260 = vmul.f32 %v6215, %v6003
    %v6261 = vmul.f32 %v6215, %v6004
    %v6262 = vmul.f32 %v6215, %v6005
    %v6263 = vmul.f32 %v6215, %v6006
    %v6264 = vmul.f32 %v6215, %v6007
    %v6265 = vmul.f32 %v6215, %v6008
    %v6266 = vmul.f32 %v6215, %v6009
    %v6267 = vmul.f32 %v6215, %v6010
    %v6268 = vmul.f32 %v6215, %v6011
    %v6269 = vmul.f32 %v6215, %v6012
    %v6270 = vmul.f32 %v6215, %v6013
    %v6271 = vmul.f32 %v6215, %v6014
    %v6272 = vmul.f32 %v6215, %v6015
    %v6273 = vmul.f32 %v6215, %v6016
    %v6274 = vmul.f32 %v6215, %v6017
    %v6275 = vmul.f32 %v6215, %v6018
    %v6276 = vmul.f32 %v6215, %v6019
    %v6277 = vmul.f32 %v6215, %v6020
    %v6278 = vmul.f32 %v6215, %v6021
    %v6279 = vmul.f32 %v6215, %v6022
    %v6280 = vmul.f32 %v6215, %v6023
    %v6281 = vmul.f32 %v6215, %v6024
    %v6282 = vmul.f32 %v6215, %v6025
    %v6283 = vmul.f32 %v6215, %v6026
    %v6284 = vmul.f32 %v6215, %v6027
    %v6285 = vmul.f32 %v6215, %v6028
    %v6286 = vmul.f32 %v6215, %v6029
    %v6287 = vmul.f32 %v6215, %v6030
    %v6288 = vmul.f32 %v6215, %v6031
    %v6289 = vmul.f32 %v6215, %v6032
    %v6290 = vmul.f32 %v6215, %v6033
    %v6291 = vmul.f32 %v6215, %v6034
    %v6292 = vmul.f32 %v6215, %v6035
    %v6293 = vmul.f32 %v6215, %v6036
    %v6294 = vmul.f32 %v6215, %v6037
    %v6295 = vmul.f32 %v6215, %v6038
    %v6296 = vmul.f32 %v6215, %v6039
    %v6297 = vmul.f32 %v6215, %v6040
    %v6298 = vmul.f32 %v6215, %v6041
    %v6299 = vmul.f32 %v6215, %v6042
    %v6300 = vmul.f32 %v6215, %v6043
    %v6301 = vmul.f32 %v6215, %v6044
    %v6302 = vmul.f32 %v6215, %v6045
    %v6303 = vmul.f32 %v6215, %v6046
    %v6304 = vmul.f32 %v6215, %v6047
    %v6305 = vmul.f32 %v6215, %v6048
    %v6306 = vmul.f32 %v6215, %v6049
    %v6307 = vmul.f32 %v6215, %v6050
    %v6308 = vmul.f32 %v6215, %v6051
    %v6309 = vmul.f32 %v6215, %v6052
    %v6310 = vmul.f32 %v6215, %v6053
    %v6311 = vmul.f32 %v6215, %v6054
    %v6312 = vmul.f32 %v6215, %v6055
    %v6313 = vmul.f32 %v6215, %v6056
    %v6314 = vmul.f32 %v6215, %v6057
    %v6315 = vmul.f32 %v6215, %v6058
    %v6316 = vmul.f32 %v6215, %v6059
    %v6317 = vmul.f32 %v6215, %v6060
    %v6318 = vmul.f32 %v6215, %v6061
    %v6319 = vmul.f32 %v6215, %v6062
    %v6320 = vmul.f32 %v6215, %v6063
    %v6321 = vmul.f32 %v6215, %v6064
    %v6322 = vmul.f32 %v6215, %v6065
    %v6323 = vmul.f32 %v6215, %v6066
    %v6324 = vmul.f32 %v6215, %v6067
    %v6325 = vmul.f32 %v6215, %v6068
    %v6326 = vmul.f32 %v6215, %v6069
    %v6327 = vmul.f32 %v6215, %v6070
    %v6328 = vmul.f32 %v6215, %v6071
    %v6329 = vmul.f32 %v6215, %v6072
    %v6330 = vmul.f32 %v6215, %v6073
    %v6331 = vmul.f32 %v6215, %v6074
    %v6332 = vmul.f32 %v6215, %v6075
    %v6333 = vmul.f32 %v6215, %v6076
    %v6334 = vmul.f32 %v6215, %v6077
    %v6335 = vmul.f32 %v6215, %v6078
    %v6336 = vmul.f32 %v6215, %v6079
    %v6337 = vmul.f32 %v6215, %v6080
    %v6338 = vmul.f32 %v6215, %v6081
    %v6339 = vmul.f32 %v6215, %v6082
    %v6340 = vmul.f32 %v6215, %v6083
    %v6341 = vmul.f32 %v6215, %v6084
    %v6342 = vmul.f32 %v6215, %v6085
    %v6343 = vmul.f32 %v6215, %v6086
    %v6344 = vsel %vm6087, %v5959, %v6216
    %v6345 = vsel %vm6088, %v5960, %v6217
    %v6346 = vsel %vm6089, %v5961, %v6218
    %v6347 = vsel %vm6090, %v5962, %v6219
    %v6348 = vsel %vm6091, %v5963, %v6220
    %v6349 = vsel %vm6092, %v5964, %v6221
    %v6350 = vsel %vm6093, %v5965, %v6222
    %v6351 = vsel %vm6094, %v5966, %v6223
    %v6352 = vsel %vm6095, %v5967, %v6224
    %v6353 = vsel %vm6096, %v5968, %v6225
    %v6354 = vsel %vm6097, %v5969, %v6226
    %v6355 = vsel %vm6098, %v5970, %v6227
    %v6356 = vsel %vm6099, %v5971, %v6228
    %v6357 = vsel %vm6100, %v5972, %v6229
    %v6358 = vsel %vm6101, %v5973, %v6230
    %v6359 = vsel %vm6102, %v5974, %v6231
    %v6360 = vsel %vm6103, %v5975, %v6232
    %v6361 = vsel %vm6104, %v5976, %v6233
    %v6362 = vsel %vm6105, %v5977, %v6234
    %v6363 = vsel %vm6106, %v5978, %v6235
    %v6364 = vsel %vm6107, %v5979, %v6236
    %v6365 = vsel %vm6108, %v5980, %v6237
    %v6366 = vsel %vm6109, %v5981, %v6238
    %v6367 = vsel %vm6110, %v5982, %v6239
    %v6368 = vsel %vm6111, %v5983, %v6240
    %v6369 = vsel %vm6112, %v5984, %v6241
    %v6370 = vsel %vm6113, %v5985, %v6242
    %v6371 = vsel %vm6114, %v5986, %v6243
    %v6372 = vsel %vm6115, %v5987, %v6244
    %v6373 = vsel %vm6116, %v5988, %v6245
    %v6374 = vsel %vm6117, %v5989, %v6246
    %v6375 = vsel %vm6118, %v5990, %v6247
    %v6376 = vsel %vm6119, %v5991, %v6248
    %v6377 = vsel %vm6120, %v5992, %v6249
    %v6378 = vsel %vm6121, %v5993, %v6250
    %v6379 = vsel %vm6122, %v5994, %v6251
    %v6380 = vsel %vm6123, %v5995, %v6252
    %v6381 = vsel %vm6124, %v5996, %v6253
    %v6382 = vsel %vm6125, %v5997, %v6254
    %v6383 = vsel %vm6126, %v5998, %v6255
    %v6384 = vsel %vm6127, %v5999, %v6256
    %v6385 = vsel %vm6128, %v6000, %v6257
    %v6386 = vsel %vm6129, %v6001, %v6258
    %v6387 = vsel %vm6130, %v6002, %v6259
    %v6388 = vsel %vm6131, %v6003, %v6260
    %v6389 = vsel %vm6132, %v6004, %v6261
    %v6390 = vsel %vm6133, %v6005, %v6262
    %v6391 = vsel %vm6134, %v6006, %v6263
    %v6392 = vsel %vm6135, %v6007, %v6264
    %v6393 = vsel %vm6136, %v6008, %v6265
    %v6394 = vsel %vm6137, %v6009, %v6266
    %v6395 = vsel %vm6138, %v6010, %v6267
    %v6396 = vsel %vm6139, %v6011, %v6268
    %v6397 = vsel %vm6140, %v6012, %v6269
    %v6398 = vsel %vm6141, %v6013, %v6270
    %v6399 = vsel %vm6142, %v6014, %v6271
    %v6400 = vsel %vm6143, %v6015, %v6272
    %v6401 = vsel %vm6144, %v6016, %v6273
    %v6402 = vsel %vm6145, %v6017, %v6274
    %v6403 = vsel %vm6146, %v6018, %v6275
    %v6404 = vsel %vm6147, %v6019, %v6276
    %v6405 = vsel %vm6148, %v6020, %v6277
    %v6406 = vsel %vm6149, %v6021, %v6278
    %v6407 = vsel %vm6150, %v6022, %v6279
    %v6408 = vsel %vm6151, %v6023, %v6280
    %v6409 = vsel %vm6152, %v6024, %v6281
    %v6410 = vsel %vm6153, %v6025, %v6282
    %v6411 = vsel %vm6154, %v6026, %v6283
    %v6412 = vsel %vm6155, %v6027, %v6284
    %v6413 = vsel %vm6156, %v6028, %v6285
    %v6414 = vsel %vm6157, %v6029, %v6286
    %v6415 = vsel %vm6158, %v6030, %v6287
    %v6416 = vsel %vm6159, %v6031, %v6288
    %v6417 = vsel %vm6160, %v6032, %v6289
    %v6418 = vsel %vm6161, %v6033, %v6290
    %v6419 = vsel %vm6162, %v6034, %v6291
    %v6420 = vsel %vm6163, %v6035, %v6292
    %v6421 = vsel %vm6164, %v6036, %v6293
    %v6422 = vsel %vm6165, %v6037, %v6294
    %v6423 = vsel %vm6166, %v6038, %v6295
    %v6424 = vsel %vm6167, %v6039, %v6296
    %v6425 = vsel %vm6168, %v6040, %v6297
    %v6426 = vsel %vm6169, %v6041, %v6298
    %v6427 = vsel %vm6170, %v6042, %v6299
    %v6428 = vsel %vm6171, %v6043, %v6300
    %v6429 = vsel %vm6172, %v6044, %v6301
    %v6430 = vsel %vm6173, %v6045, %v6302
    %v6431 = vsel %vm6174, %v6046, %v6303
    %v6432 = vsel %vm6175, %v6047, %v6304
    %v6433 = vsel %vm6176, %v6048, %v6305
    %v6434 = vsel %vm6177, %v6049, %v6306
    %v6435 = vsel %vm6178, %v6050, %v6307
    %v6436 = vsel %vm6179, %v6051, %v6308
    %v6437 = vsel %vm6180, %v6052, %v6309
    %v6438 = vsel %vm6181, %v6053, %v6310
    %v6439 = vsel %vm6182, %v6054, %v6311
    %v6440 = vsel %vm6183, %v6055, %v6312
    %v6441 = vsel %vm6184, %v6056, %v6313
    %v6442 = vsel %vm6185, %v6057, %v6314
    %v6443 = vsel %vm6186, %v6058, %v6315
    %v6444 = vsel %vm6187, %v6059, %v6316
    %v6445 = vsel %vm6188, %v6060, %v6317
    %v6446 = vsel %vm6189, %v6061, %v6318
    %v6447 = vsel %vm6190, %v6062, %v6319
    %v6448 = vsel %vm6191, %v6063, %v6320
    %v6449 = vsel %vm6192, %v6064, %v6321
    %v6450 = vsel %vm6193, %v6065, %v6322
    %v6451 = vsel %vm6194, %v6066, %v6323
    %v6452 = vsel %vm6195, %v6067, %v6324
    %v6453 = vsel %vm6196, %v6068, %v6325
    %v6454 = vsel %vm6197, %v6069, %v6326
    %v6455 = vsel %vm6198, %v6070, %v6327
    %v6456 = vsel %vm6199, %v6071, %v6328
    %v6457 = vsel %vm6200, %v6072, %v6329
    %v6458 = vsel %vm6201, %v6073, %v6330
    %v6459 = vsel %vm6202, %v6074, %v6331
    %v6460 = vsel %vm6203, %v6075, %v6332
    %v6461 = vsel %vm6204, %v6076, %v6333
    %v6462 = vsel %vm6205, %v6077, %v6334
    %v6463 = vsel %vm6206, %v6078, %v6335
    %v6464 = vsel %vm6207, %v6079, %v6336
    %v6465 = vsel %vm6208, %v6080, %v6337
    %v6466 = vsel %vm6209, %v6081, %v6338
    %v6467 = vsel %vm6210, %v6082, %v6339
    %v6468 = vsel %vm6211, %v6083, %v6340
    %v6469 = vsel %vm6212, %v6084, %v6341
    %v6470 = vsel %vm6213, %v6085, %v6342
    %v6471 = vsel %vm6214, %v6086, %v6343
    %v6472 = vpack.c.bf16 %v6345, %v6344
    %v6473 = vpack.c.bf16 %v6347, %v6346
    %v6474 = vpack.c.bf16 %v6349, %v6348
    %v6475 = vpack.c.bf16 %v6351, %v6350
    %v6476 = vpack.c.bf16 %v6353, %v6352
    %v6477 = vpack.c.bf16 %v6355, %v6354
    %v6478 = vpack.c.bf16 %v6357, %v6356
    %v6479 = vpack.c.bf16 %v6359, %v6358
    %v6480 = vpack.c.bf16 %v6361, %v6360
    %v6481 = vpack.c.bf16 %v6363, %v6362
    %v6482 = vpack.c.bf16 %v6365, %v6364
    %v6483 = vpack.c.bf16 %v6367, %v6366
    %v6484 = vpack.c.bf16 %v6369, %v6368
    %v6485 = vpack.c.bf16 %v6371, %v6370
    %v6486 = vpack.c.bf16 %v6373, %v6372
    %v6487 = vpack.c.bf16 %v6375, %v6374
    %v6488 = vpack.c.bf16 %v6377, %v6376
    %v6489 = vpack.c.bf16 %v6379, %v6378
    %v6490 = vpack.c.bf16 %v6381, %v6380
    %v6491 = vpack.c.bf16 %v6383, %v6382
    %v6492 = vpack.c.bf16 %v6385, %v6384
    %v6493 = vpack.c.bf16 %v6387, %v6386
    %v6494 = vpack.c.bf16 %v6389, %v6388
    %v6495 = vpack.c.bf16 %v6391, %v6390
    %v6496 = vpack.c.bf16 %v6393, %v6392
    %v6497 = vpack.c.bf16 %v6395, %v6394
    %v6498 = vpack.c.bf16 %v6397, %v6396
    %v6499 = vpack.c.bf16 %v6399, %v6398
    %v6500 = vpack.c.bf16 %v6401, %v6400
    %v6501 = vpack.c.bf16 %v6403, %v6402
    %v6502 = vpack.c.bf16 %v6405, %v6404
    %v6503 = vpack.c.bf16 %v6407, %v6406
    %v6504 = vpack.c.bf16 %v6409, %v6408
    %v6505 = vpack.c.bf16 %v6411, %v6410
    %v6506 = vpack.c.bf16 %v6413, %v6412
    %v6507 = vpack.c.bf16 %v6415, %v6414
    %v6508 = vpack.c.bf16 %v6417, %v6416
    %v6509 = vpack.c.bf16 %v6419, %v6418
    %v6510 = vpack.c.bf16 %v6421, %v6420
    %v6511 = vpack.c.bf16 %v6423, %v6422
    %v6512 = vpack.c.bf16 %v6425, %v6424
    %v6513 = vpack.c.bf16 %v6427, %v6426
    %v6514 = vpack.c.bf16 %v6429, %v6428
    %v6515 = vpack.c.bf16 %v6431, %v6430
    %v6516 = vpack.c.bf16 %v6433, %v6432
    %v6517 = vpack.c.bf16 %v6435, %v6434
    %v6518 = vpack.c.bf16 %v6437, %v6436
    %v6519 = vpack.c.bf16 %v6439, %v6438
    %v6520 = vpack.c.bf16 %v6441, %v6440
    %v6521 = vpack.c.bf16 %v6443, %v6442
    %v6522 = vpack.c.bf16 %v6445, %v6444
    %v6523 = vpack.c.bf16 %v6447, %v6446
    %v6524 = vpack.c.bf16 %v6449, %v6448
    %v6525 = vpack.c.bf16 %v6451, %v6450
    %v6526 = vpack.c.bf16 %v6453, %v6452
    %v6527 = vpack.c.bf16 %v6455, %v6454
    %v6528 = vpack.c.bf16 %v6457, %v6456
    %v6529 = vpack.c.bf16 %v6459, %v6458
    %v6530 = vpack.c.bf16 %v6461, %v6460
    %v6531 = vpack.c.bf16 %v6463, %v6462
    %v6532 = vpack.c.bf16 %v6465, %v6464
    %v6533 = vpack.c.bf16 %v6467, %v6466
    %v6534 = vpack.c.bf16 %v6469, %v6468
    %v6535 = vpack.c.bf16 %v6471, %v6470
    %v6537 = vshrl.u32 %v6472, 16
    %v6539 = vrot.slane %v6537, 7
    %v6540 = vshll.u32 %v6472, 16
    %v6542 = vor.u32 %v6539, %v6540
    %v6544 = vshrl.u32 %v6473, 16
    %v6546 = vrot.slane %v6544, 7
    %v6547 = vshll.u32 %v6473, 16
    %v6549 = vor.u32 %v6546, %v6547
    %v6551 = vshrl.u32 %v6474, 16
    %v6553 = vrot.slane %v6551, 7
    %v6554 = vshll.u32 %v6474, 16
    %v6556 = vor.u32 %v6553, %v6554
    %v6558 = vshrl.u32 %v6475, 16
    %v6560 = vrot.slane %v6558, 7
    %v6561 = vshll.u32 %v6475, 16
    %v6563 = vor.u32 %v6560, %v6561
    %v6565 = vshrl.u32 %v6476, 16
    %v6567 = vrot.slane %v6565, 7
    %v6568 = vshll.u32 %v6476, 16
    %v6570 = vor.u32 %v6567, %v6568
    %v6572 = vshrl.u32 %v6477, 16
    %v6574 = vrot.slane %v6572, 7
    %v6575 = vshll.u32 %v6477, 16
    %v6577 = vor.u32 %v6574, %v6575
    %v6579 = vshrl.u32 %v6478, 16
    %v6581 = vrot.slane %v6579, 7
    %v6582 = vshll.u32 %v6478, 16
    %v6584 = vor.u32 %v6581, %v6582
    %v6586 = vshrl.u32 %v6479, 16
    %v6588 = vrot.slane %v6586, 7
    %v6589 = vshll.u32 %v6479, 16
    %v6591 = vor.u32 %v6588, %v6589
    %v6593 = vshrl.u32 %v6480, 16
    %v6595 = vrot.slane %v6593, 7
    %v6596 = vshll.u32 %v6480, 16
    %v6598 = vor.u32 %v6595, %v6596
    %v6600 = vshrl.u32 %v6481, 16
    %v6602 = vrot.slane %v6600, 7
    %v6603 = vshll.u32 %v6481, 16
    %v6605 = vor.u32 %v6602, %v6603
    %v6607 = vshrl.u32 %v6482, 16
    %v6609 = vrot.slane %v6607, 7
    %v6610 = vshll.u32 %v6482, 16
    %v6612 = vor.u32 %v6609, %v6610
    %v6614 = vshrl.u32 %v6483, 16
    %v6616 = vrot.slane %v6614, 7
    %v6617 = vshll.u32 %v6483, 16
    %v6619 = vor.u32 %v6616, %v6617
    %v6621 = vshrl.u32 %v6484, 16
    %v6623 = vrot.slane %v6621, 7
    %v6624 = vshll.u32 %v6484, 16
    %v6626 = vor.u32 %v6623, %v6624
    %v6628 = vshrl.u32 %v6485, 16
    %v6630 = vrot.slane %v6628, 7
    %v6631 = vshll.u32 %v6485, 16
    %v6633 = vor.u32 %v6630, %v6631
    %v6635 = vshrl.u32 %v6486, 16
    %v6637 = vrot.slane %v6635, 7
    %v6638 = vshll.u32 %v6486, 16
    %v6640 = vor.u32 %v6637, %v6638
    %v6642 = vshrl.u32 %v6487, 16
    %v6644 = vrot.slane %v6642, 7
    %v6645 = vshll.u32 %v6487, 16
    %v6647 = vor.u32 %v6644, %v6645
    %v6649 = vshrl.u32 %v6488, 16
    %v6651 = vrot.slane %v6649, 7
    %v6652 = vshll.u32 %v6488, 16
    %v6654 = vor.u32 %v6651, %v6652
    %v6656 = vshrl.u32 %v6489, 16
    %v6658 = vrot.slane %v6656, 7
    %v6659 = vshll.u32 %v6489, 16
    %v6661 = vor.u32 %v6658, %v6659
    %v6663 = vshrl.u32 %v6490, 16
    %v6665 = vrot.slane %v6663, 7
    %v6666 = vshll.u32 %v6490, 16
    %v6668 = vor.u32 %v6665, %v6666
    %v6670 = vshrl.u32 %v6491, 16
    %v6672 = vrot.slane %v6670, 7
    %v6673 = vshll.u32 %v6491, 16
    %v6675 = vor.u32 %v6672, %v6673
    %v6677 = vshrl.u32 %v6492, 16
    %v6679 = vrot.slane %v6677, 7
    %v6680 = vshll.u32 %v6492, 16
    %v6682 = vor.u32 %v6679, %v6680
    %v6684 = vshrl.u32 %v6493, 16
    %v6686 = vrot.slane %v6684, 7
    %v6687 = vshll.u32 %v6493, 16
    %v6689 = vor.u32 %v6686, %v6687
    %v6691 = vshrl.u32 %v6494, 16
    %v6693 = vrot.slane %v6691, 7
    %v6694 = vshll.u32 %v6494, 16
    %v6696 = vor.u32 %v6693, %v6694
    %v6698 = vshrl.u32 %v6495, 16
    %v6700 = vrot.slane %v6698, 7
    %v6701 = vshll.u32 %v6495, 16
    %v6703 = vor.u32 %v6700, %v6701
    %v6705 = vshrl.u32 %v6496, 16
    %v6707 = vrot.slane %v6705, 7
    %v6708 = vshll.u32 %v6496, 16
    %v6710 = vor.u32 %v6707, %v6708
    %v6712 = vshrl.u32 %v6497, 16
    %v6714 = vrot.slane %v6712, 7
    %v6715 = vshll.u32 %v6497, 16
    %v6717 = vor.u32 %v6714, %v6715
    %v6719 = vshrl.u32 %v6498, 16
    %v6721 = vrot.slane %v6719, 7
    %v6722 = vshll.u32 %v6498, 16
    %v6724 = vor.u32 %v6721, %v6722
    %v6726 = vshrl.u32 %v6499, 16
    %v6728 = vrot.slane %v6726, 7
    %v6729 = vshll.u32 %v6499, 16
    %v6731 = vor.u32 %v6728, %v6729
    %v6733 = vshrl.u32 %v6500, 16
    %v6735 = vrot.slane %v6733, 7
    %v6736 = vshll.u32 %v6500, 16
    %v6738 = vor.u32 %v6735, %v6736
    %v6740 = vshrl.u32 %v6501, 16
    %v6742 = vrot.slane %v6740, 7
    %v6743 = vshll.u32 %v6501, 16
    %v6745 = vor.u32 %v6742, %v6743
    %v6747 = vshrl.u32 %v6502, 16
    %v6749 = vrot.slane %v6747, 7
    %v6750 = vshll.u32 %v6502, 16
    %v6752 = vor.u32 %v6749, %v6750
    %v6754 = vshrl.u32 %v6503, 16
    %v6756 = vrot.slane %v6754, 7
    %v6757 = vshll.u32 %v6503, 16
    %v6759 = vor.u32 %v6756, %v6757
    %v6761 = vshrl.u32 %v6504, 16
    %v6763 = vrot.slane %v6761, 7
    %v6764 = vshll.u32 %v6504, 16
    %v6766 = vor.u32 %v6763, %v6764
    %v6768 = vshrl.u32 %v6505, 16
    %v6770 = vrot.slane %v6768, 7
    %v6771 = vshll.u32 %v6505, 16
    %v6773 = vor.u32 %v6770, %v6771
    %v6775 = vshrl.u32 %v6506, 16
    %v6777 = vrot.slane %v6775, 7
    %v6778 = vshll.u32 %v6506, 16
    %v6780 = vor.u32 %v6777, %v6778
    %v6782 = vshrl.u32 %v6507, 16
    %v6784 = vrot.slane %v6782, 7
    %v6785 = vshll.u32 %v6507, 16
    %v6787 = vor.u32 %v6784, %v6785
    %v6789 = vshrl.u32 %v6508, 16
    %v6791 = vrot.slane %v6789, 7
    %v6792 = vshll.u32 %v6508, 16
    %v6794 = vor.u32 %v6791, %v6792
    %v6796 = vshrl.u32 %v6509, 16
    %v6798 = vrot.slane %v6796, 7
    %v6799 = vshll.u32 %v6509, 16
    %v6801 = vor.u32 %v6798, %v6799
    %v6803 = vshrl.u32 %v6510, 16
    %v6805 = vrot.slane %v6803, 7
    %v6806 = vshll.u32 %v6510, 16
    %v6808 = vor.u32 %v6805, %v6806
    %v6810 = vshrl.u32 %v6511, 16
    %v6812 = vrot.slane %v6810, 7
    %v6813 = vshll.u32 %v6511, 16
    %v6815 = vor.u32 %v6812, %v6813
    %v6817 = vshrl.u32 %v6512, 16
    %v6819 = vrot.slane %v6817, 7
    %v6820 = vshll.u32 %v6512, 16
    %v6822 = vor.u32 %v6819, %v6820
    %v6824 = vshrl.u32 %v6513, 16
    %v6826 = vrot.slane %v6824, 7
    %v6827 = vshll.u32 %v6513, 16
    %v6829 = vor.u32 %v6826, %v6827
    %v6831 = vshrl.u32 %v6514, 16
    %v6833 = vrot.slane %v6831, 7
    %v6834 = vshll.u32 %v6514, 16
    %v6836 = vor.u32 %v6833, %v6834
    %v6838 = vshrl.u32 %v6515, 16
    %v6840 = vrot.slane %v6838, 7
    %v6841 = vshll.u32 %v6515, 16
    %v6843 = vor.u32 %v6840, %v6841
    %v6845 = vshrl.u32 %v6516, 16
    %v6847 = vrot.slane %v6845, 7
    %v6848 = vshll.u32 %v6516, 16
    %v6850 = vor.u32 %v6847, %v6848
    %v6852 = vshrl.u32 %v6517, 16
    %v6854 = vrot.slane %v6852, 7
    %v6855 = vshll.u32 %v6517, 16
    %v6857 = vor.u32 %v6854, %v6855
    %v6859 = vshrl.u32 %v6518, 16
    %v6861 = vrot.slane %v6859, 7
    %v6862 = vshll.u32 %v6518, 16
    %v6864 = vor.u32 %v6861, %v6862
    %v6866 = vshrl.u32 %v6519, 16
    %v6868 = vrot.slane %v6866, 7
    %v6869 = vshll.u32 %v6519, 16
    %v6871 = vor.u32 %v6868, %v6869
    %v6873 = vshrl.u32 %v6520, 16
    %v6875 = vrot.slane %v6873, 7
    %v6876 = vshll.u32 %v6520, 16
    %v6878 = vor.u32 %v6875, %v6876
    %v6880 = vshrl.u32 %v6521, 16
    %v6882 = vrot.slane %v6880, 7
    %v6883 = vshll.u32 %v6521, 16
    %v6885 = vor.u32 %v6882, %v6883
    %v6887 = vshrl.u32 %v6522, 16
    %v6889 = vrot.slane %v6887, 7
    %v6890 = vshll.u32 %v6522, 16
    %v6892 = vor.u32 %v6889, %v6890
    %v6894 = vshrl.u32 %v6523, 16
    %v6896 = vrot.slane %v6894, 7
    %v6897 = vshll.u32 %v6523, 16
    %v6899 = vor.u32 %v6896, %v6897
    %v6901 = vshrl.u32 %v6524, 16
    %v6903 = vrot.slane %v6901, 7
    %v6904 = vshll.u32 %v6524, 16
    %v6906 = vor.u32 %v6903, %v6904
    %v6908 = vshrl.u32 %v6525, 16
    %v6910 = vrot.slane %v6908, 7
    %v6911 = vshll.u32 %v6525, 16
    %v6913 = vor.u32 %v6910, %v6911
    %v6915 = vshrl.u32 %v6526, 16
    %v6917 = vrot.slane %v6915, 7
    %v6918 = vshll.u32 %v6526, 16
    %v6920 = vor.u32 %v6917, %v6918
    %v6922 = vshrl.u32 %v6527, 16
    %v6924 = vrot.slane %v6922, 7
    %v6925 = vshll.u32 %v6527, 16
    %v6927 = vor.u32 %v6924, %v6925
    %v6929 = vshrl.u32 %v6528, 16
    %v6931 = vrot.slane %v6929, 7
    %v6932 = vshll.u32 %v6528, 16
    %v6934 = vor.u32 %v6931, %v6932
    %v6936 = vshrl.u32 %v6529, 16
    %v6938 = vrot.slane %v6936, 7
    %v6939 = vshll.u32 %v6529, 16
    %v6941 = vor.u32 %v6938, %v6939
    %v6943 = vshrl.u32 %v6530, 16
    %v6945 = vrot.slane %v6943, 7
    %v6946 = vshll.u32 %v6530, 16
    %v6948 = vor.u32 %v6945, %v6946
    %v6950 = vshrl.u32 %v6531, 16
    %v6952 = vrot.slane %v6950, 7
    %v6953 = vshll.u32 %v6531, 16
    %v6955 = vor.u32 %v6952, %v6953
    %v6957 = vshrl.u32 %v6532, 16
    %v6959 = vrot.slane %v6957, 7
    %v6960 = vshll.u32 %v6532, 16
    %v6962 = vor.u32 %v6959, %v6960
    %v6964 = vshrl.u32 %v6533, 16
    %v6966 = vrot.slane %v6964, 7
    %v6967 = vshll.u32 %v6533, 16
    %v6969 = vor.u32 %v6966, %v6967
    %v6971 = vshrl.u32 %v6534, 16
    %v6973 = vrot.slane %v6971, 7
    %v6974 = vshll.u32 %v6534, 16
    %v6976 = vor.u32 %v6973, %v6974
    %v6978 = vshrl.u32 %v6535, 16
    %v6980 = vrot.slane %v6978, 7
    %v6981 = vshll.u32 %v6535, 16
    %v6983 = vor.u32 %v6980, %v6981
    %v7112 = vsel %vm1148, 0, %v6542
    %v7113 = vsel %vm1148, 0, %v6549
    %v7114 = vsel %vm1148, 0, %v6556
    %v7115 = vsel %vm1148, 0, %v6563
    %v7116 = vsel %vm1148, 0, %v6570
    %v7117 = vsel %vm1148, 0, %v6577
    %v7118 = vsel %vm1148, 0, %v6584
    %v7119 = vsel %vm1148, 0, %v6591
    %v7120 = vsel %vm1148, 0, %v6598
    %v7121 = vsel %vm1148, 0, %v6605
    %v7122 = vsel %vm1148, 0, %v6612
    %v7123 = vsel %vm1148, 0, %v6619
    %v7124 = vsel %vm1148, 0, %v6626
    %v7125 = vsel %vm1148, 0, %v6633
    %v7126 = vsel %vm1148, 0, %v6640
    %v7127 = vsel %vm1148, 0, %v6647
    %v7128 = vsel %vm1148, 0, %v6654
    %v7129 = vsel %vm1148, 0, %v6661
    %v7130 = vsel %vm1148, 0, %v6668
    %v7131 = vsel %vm1148, 0, %v6675
    %v7132 = vsel %vm1148, 0, %v6682
    %v7133 = vsel %vm1148, 0, %v6689
    %v7134 = vsel %vm1148, 0, %v6696
    %v7135 = vsel %vm1148, 0, %v6703
    %v7136 = vsel %vm1148, 0, %v6710
    %v7137 = vsel %vm1148, 0, %v6717
    %v7138 = vsel %vm1148, 0, %v6724
    %v7139 = vsel %vm1148, 0, %v6731
    %v7140 = vsel %vm1148, 0, %v6738
    %v7141 = vsel %vm1148, 0, %v6745
    %v7142 = vsel %vm1148, 0, %v6752
    %v7143 = vsel %vm1148, 0, %v6759
    %v7144 = vsel %vm1148, 0, %v6766
    %v7145 = vsel %vm1148, 0, %v6773
    %v7146 = vsel %vm1148, 0, %v6780
    %v7147 = vsel %vm1148, 0, %v6787
    %v7148 = vsel %vm1148, 0, %v6794
    %v7149 = vsel %vm1148, 0, %v6801
    %v7150 = vsel %vm1148, 0, %v6808
    %v7151 = vsel %vm1148, 0, %v6815
    %v7152 = vsel %vm1148, 0, %v6822
    %v7153 = vsel %vm1148, 0, %v6829
    %v7154 = vsel %vm1148, 0, %v6836
    %v7155 = vsel %vm1148, 0, %v6843
    %v7156 = vsel %vm1148, 0, %v6850
    %v7157 = vsel %vm1148, 0, %v6857
    %v7158 = vsel %vm1148, 0, %v6864
    %v7159 = vsel %vm1148, 0, %v6871
    %v7160 = vsel %vm1148, 0, %v6878
    %v7161 = vsel %vm1148, 0, %v6885
    %v7162 = vsel %vm1148, 0, %v6892
    %v7163 = vsel %vm1148, 0, %v6899
    %v7164 = vsel %vm1148, 0, %v6906
    %v7165 = vsel %vm1148, 0, %v6913
    %v7166 = vsel %vm1148, 0, %v6920
    %v7167 = vsel %vm1148, 0, %v6927
    %v7168 = vsel %vm1148, 0, %v6934
    %v7169 = vsel %vm1148, 0, %v6941
    %v7170 = vsel %vm1148, 0, %v6948
    %v7171 = vsel %vm1148, 0, %v6955
    %v7172 = vsel %vm1148, 0, %v6962
    %v7173 = vsel %vm1148, 0, %v6969
    %v7174 = vsel %vm1148, 0, %v6976
    %v7175 = vsel %vm1148, 0, %v6983
    %v7176 = vsel %vm1148, %v6539, 0
    %v7177 = vsel %vm1148, %v6546, 0
    %v7178 = vsel %vm1148, %v6553, 0
    %v7179 = vsel %vm1148, %v6560, 0
    %v7180 = vsel %vm1148, %v6567, 0
    %v7181 = vsel %vm1148, %v6574, 0
    %v7182 = vsel %vm1148, %v6581, 0
    %v7183 = vsel %vm1148, %v6588, 0
    %v7184 = vsel %vm1148, %v6595, 0
    %v7185 = vsel %vm1148, %v6602, 0
    %v7186 = vsel %vm1148, %v6609, 0
    %v7187 = vsel %vm1148, %v6616, 0
    %v7188 = vsel %vm1148, %v6623, 0
    %v7189 = vsel %vm1148, %v6630, 0
    %v7190 = vsel %vm1148, %v6637, 0
    %v7191 = vsel %vm1148, %v6644, 0
    %v7192 = vsel %vm1148, %v6651, 0
    %v7193 = vsel %vm1148, %v6658, 0
    %v7194 = vsel %vm1148, %v6665, 0
    %v7195 = vsel %vm1148, %v6672, 0
    %v7196 = vsel %vm1148, %v6679, 0
    %v7197 = vsel %vm1148, %v6686, 0
    %v7198 = vsel %vm1148, %v6693, 0
    %v7199 = vsel %vm1148, %v6700, 0
    %v7200 = vsel %vm1148, %v6707, 0
    %v7201 = vsel %vm1148, %v6714, 0
    %v7202 = vsel %vm1148, %v6721, 0
    %v7203 = vsel %vm1148, %v6728, 0
    %v7204 = vsel %vm1148, %v6735, 0
    %v7205 = vsel %vm1148, %v6742, 0
    %v7206 = vsel %vm1148, %v6749, 0
    %v7207 = vsel %vm1148, %v6756, 0
    %v7208 = vsel %vm1148, %v6763, 0
    %v7209 = vsel %vm1148, %v6770, 0
    %v7210 = vsel %vm1148, %v6777, 0
    %v7211 = vsel %vm1148, %v6784, 0
    %v7212 = vsel %vm1148, %v6791, 0
    %v7213 = vsel %vm1148, %v6798, 0
    %v7214 = vsel %vm1148, %v6805, 0
    %v7215 = vsel %vm1148, %v6812, 0
    %v7216 = vsel %vm1148, %v6819, 0
    %v7217 = vsel %vm1148, %v6826, 0
    %v7218 = vsel %vm1148, %v6833, 0
    %v7219 = vsel %vm1148, %v6840, 0
    %v7220 = vsel %vm1148, %v6847, 0
    %v7221 = vsel %vm1148, %v6854, 0
    %v7222 = vsel %vm1148, %v6861, 0
    %v7223 = vsel %vm1148, %v6868, 0
    %v7224 = vsel %vm1148, %v6875, 0
    %v7225 = vsel %vm1148, %v6882, 0
    %v7226 = vsel %vm1148, %v6889, 0
    %v7227 = vsel %vm1148, %v6896, 0
    %v7228 = vsel %vm1148, %v6903, 0
    %v7229 = vsel %vm1148, %v6910, 0
    %v7230 = vsel %vm1148, %v6917, 0
    %v7231 = vsel %vm1148, %v6924, 0
    %v7232 = vsel %vm1148, %v6931, 0
    %v7233 = vsel %vm1148, %v6938, 0
    %v7234 = vsel %vm1148, %v6945, 0
    %v7235 = vsel %vm1148, %v6952, 0
    %v7236 = vsel %vm1148, %v6959, 0
    %v7237 = vsel %vm1148, %v6966, 0
    %v7238 = vsel %vm1148, %v6973, 0
    %v7239 = vsel %vm1148, %v6980, 0
    %v7241 = vshrl.u32 %v7112, 16
    %v7243 = vshll.u32 %v7112, 16
    %v7245 = vrot.slane %v7243, 1
    %v7246 = vor.u32 %v7241, %v7245
    %v7248 = vshll.u32 %v7176, 16
    %v7250 = vrot.slane %v7248, 1
    %v7251 = vsel %vm1279, %v7246, %v7250
    %v7253 = vshrl.u32 %v7113, 16
    %v7255 = vshll.u32 %v7113, 16
    %v7257 = vrot.slane %v7255, 1
    %v7258 = vor.u32 %v7253, %v7257
    %v7260 = vshll.u32 %v7177, 16
    %v7262 = vrot.slane %v7260, 1
    %v7263 = vsel %vm1279, %v7258, %v7262
    %v7265 = vshrl.u32 %v7114, 16
    %v7267 = vshll.u32 %v7114, 16
    %v7269 = vrot.slane %v7267, 1
    %v7270 = vor.u32 %v7265, %v7269
    %v7272 = vshll.u32 %v7178, 16
    %v7274 = vrot.slane %v7272, 1
    %v7275 = vsel %vm1279, %v7270, %v7274
    %v7277 = vshrl.u32 %v7115, 16
    %v7279 = vshll.u32 %v7115, 16
    %v7281 = vrot.slane %v7279, 1
    %v7282 = vor.u32 %v7277, %v7281
    %v7284 = vshll.u32 %v7179, 16
    %v7286 = vrot.slane %v7284, 1
    %v7287 = vsel %vm1279, %v7282, %v7286
    %v7289 = vshrl.u32 %v7116, 16
    %v7291 = vshll.u32 %v7116, 16
    %v7293 = vrot.slane %v7291, 1
    %v7294 = vor.u32 %v7289, %v7293
    %v7296 = vshll.u32 %v7180, 16
    %v7298 = vrot.slane %v7296, 1
    %v7299 = vsel %vm1279, %v7294, %v7298
    %v7301 = vshrl.u32 %v7117, 16
    %v7303 = vshll.u32 %v7117, 16
    %v7305 = vrot.slane %v7303, 1
    %v7306 = vor.u32 %v7301, %v7305
    %v7308 = vshll.u32 %v7181, 16
    %v7310 = vrot.slane %v7308, 1
    %v7311 = vsel %vm1279, %v7306, %v7310
    %v7313 = vshrl.u32 %v7118, 16
    %v7315 = vshll.u32 %v7118, 16
    %v7317 = vrot.slane %v7315, 1
    %v7318 = vor.u32 %v7313, %v7317
    %v7320 = vshll.u32 %v7182, 16
    %v7322 = vrot.slane %v7320, 1
    %v7323 = vsel %vm1279, %v7318, %v7322
    %v7325 = vshrl.u32 %v7119, 16
    %v7327 = vshll.u32 %v7119, 16
    %v7329 = vrot.slane %v7327, 1
    %v7330 = vor.u32 %v7325, %v7329
    %v7332 = vshll.u32 %v7183, 16
    %v7334 = vrot.slane %v7332, 1
    %v7335 = vsel %vm1279, %v7330, %v7334
    %v7337 = vshrl.u32 %v7120, 16
    %v7339 = vshll.u32 %v7120, 16
    %v7341 = vrot.slane %v7339, 1
    %v7342 = vor.u32 %v7337, %v7341
    %v7344 = vshll.u32 %v7184, 16
    %v7346 = vrot.slane %v7344, 1
    %v7347 = vsel %vm1279, %v7342, %v7346
    %v7349 = vshrl.u32 %v7121, 16
    %v7351 = vshll.u32 %v7121, 16
    %v7353 = vrot.slane %v7351, 1
    %v7354 = vor.u32 %v7349, %v7353
    %v7356 = vshll.u32 %v7185, 16
    %v7358 = vrot.slane %v7356, 1
    %v7359 = vsel %vm1279, %v7354, %v7358
    %v7361 = vshrl.u32 %v7122, 16
    %v7363 = vshll.u32 %v7122, 16
    %v7365 = vrot.slane %v7363, 1
    %v7366 = vor.u32 %v7361, %v7365
    %v7368 = vshll.u32 %v7186, 16
    %v7370 = vrot.slane %v7368, 1
    %v7371 = vsel %vm1279, %v7366, %v7370
    %v7373 = vshrl.u32 %v7123, 16
    %v7375 = vshll.u32 %v7123, 16
    %v7377 = vrot.slane %v7375, 1
    %v7378 = vor.u32 %v7373, %v7377
    %v7380 = vshll.u32 %v7187, 16
    %v7382 = vrot.slane %v7380, 1
    %v7383 = vsel %vm1279, %v7378, %v7382
    %v7385 = vshrl.u32 %v7124, 16
    %v7387 = vshll.u32 %v7124, 16
    %v7389 = vrot.slane %v7387, 1
    %v7390 = vor.u32 %v7385, %v7389
    %v7392 = vshll.u32 %v7188, 16
    %v7394 = vrot.slane %v7392, 1
    %v7395 = vsel %vm1279, %v7390, %v7394
    %v7397 = vshrl.u32 %v7125, 16
    %v7399 = vshll.u32 %v7125, 16
    %v7401 = vrot.slane %v7399, 1
    %v7402 = vor.u32 %v7397, %v7401
    %v7404 = vshll.u32 %v7189, 16
    %v7406 = vrot.slane %v7404, 1
    %v7407 = vsel %vm1279, %v7402, %v7406
    %v7409 = vshrl.u32 %v7126, 16
    %v7411 = vshll.u32 %v7126, 16
    %v7413 = vrot.slane %v7411, 1
    %v7414 = vor.u32 %v7409, %v7413
    %v7416 = vshll.u32 %v7190, 16
    %v7418 = vrot.slane %v7416, 1
    %v7419 = vsel %vm1279, %v7414, %v7418
    %v7421 = vshrl.u32 %v7128, 16
    %v7423 = vshll.u32 %v7128, 16
    %v7425 = vrot.slane %v7423, 1
    %v7426 = vor.u32 %v7421, %v7425
    %v7428 = vshll.u32 %v7192, 16
    %v7430 = vrot.slane %v7428, 1
    %v7431 = vsel %vm1279, %v7426, %v7430
    %v7433 = vshrl.u32 %v7129, 16
    %v7435 = vshll.u32 %v7129, 16
    %v7437 = vrot.slane %v7435, 1
    %v7438 = vor.u32 %v7433, %v7437
    %v7440 = vshll.u32 %v7193, 16
    %v7442 = vrot.slane %v7440, 1
    %v7443 = vsel %vm1279, %v7438, %v7442
    %v7445 = vshrl.u32 %v7130, 16
    %v7447 = vshll.u32 %v7130, 16
    %v7449 = vrot.slane %v7447, 1
    %v7450 = vor.u32 %v7445, %v7449
    %v7452 = vshll.u32 %v7194, 16
    %v7454 = vrot.slane %v7452, 1
    %v7455 = vsel %vm1279, %v7450, %v7454
    %v7457 = vshrl.u32 %v7131, 16
    %v7459 = vshll.u32 %v7131, 16
    %v7461 = vrot.slane %v7459, 1
    %v7462 = vor.u32 %v7457, %v7461
    %v7464 = vshll.u32 %v7195, 16
    %v7466 = vrot.slane %v7464, 1
    %v7467 = vsel %vm1279, %v7462, %v7466
    %v7469 = vshrl.u32 %v7132, 16
    %v7471 = vshll.u32 %v7132, 16
    %v7473 = vrot.slane %v7471, 1
    %v7474 = vor.u32 %v7469, %v7473
    %v7476 = vshll.u32 %v7196, 16
    %v7478 = vrot.slane %v7476, 1
    %v7479 = vsel %vm1279, %v7474, %v7478
    %v7481 = vshrl.u32 %v7133, 16
    %v7483 = vshll.u32 %v7133, 16
    %v7485 = vrot.slane %v7483, 1
    %v7486 = vor.u32 %v7481, %v7485
    %v7488 = vshll.u32 %v7197, 16
    %v7490 = vrot.slane %v7488, 1
    %v7491 = vsel %vm1279, %v7486, %v7490
    %v7493 = vshrl.u32 %v7134, 16
    %v7495 = vshll.u32 %v7134, 16
    %v7497 = vrot.slane %v7495, 1
    %v7498 = vor.u32 %v7493, %v7497
    %v7500 = vshll.u32 %v7198, 16
    %v7502 = vrot.slane %v7500, 1
    %v7503 = vsel %vm1279, %v7498, %v7502
    %v7505 = vshrl.u32 %v7135, 16
    %v7507 = vshll.u32 %v7135, 16
    %v7509 = vrot.slane %v7507, 1
    %v7510 = vor.u32 %v7505, %v7509
    %v7512 = vshll.u32 %v7199, 16
    %v7514 = vrot.slane %v7512, 1
    %v7515 = vsel %vm1279, %v7510, %v7514
    %v7517 = vshrl.u32 %v7136, 16
    %v7519 = vshll.u32 %v7136, 16
    %v7521 = vrot.slane %v7519, 1
    %v7522 = vor.u32 %v7517, %v7521
    %v7524 = vshll.u32 %v7200, 16
    %v7526 = vrot.slane %v7524, 1
    %v7527 = vsel %vm1279, %v7522, %v7526
    %v7529 = vshrl.u32 %v7137, 16
    %v7531 = vshll.u32 %v7137, 16
    %v7533 = vrot.slane %v7531, 1
    %v7534 = vor.u32 %v7529, %v7533
    %v7536 = vshll.u32 %v7201, 16
    %v7538 = vrot.slane %v7536, 1
    %v7539 = vsel %vm1279, %v7534, %v7538
    %v7541 = vshrl.u32 %v7138, 16
    %v7543 = vshll.u32 %v7138, 16
    %v7545 = vrot.slane %v7543, 1
    %v7546 = vor.u32 %v7541, %v7545
    %v7548 = vshll.u32 %v7202, 16
    %v7550 = vrot.slane %v7548, 1
    %v7551 = vsel %vm1279, %v7546, %v7550
    %v7553 = vshrl.u32 %v7139, 16
    %v7555 = vshll.u32 %v7139, 16
    %v7557 = vrot.slane %v7555, 1
    %v7558 = vor.u32 %v7553, %v7557
    %v7560 = vshll.u32 %v7203, 16
    %v7562 = vrot.slane %v7560, 1
    %v7563 = vsel %vm1279, %v7558, %v7562
    %v7565 = vshrl.u32 %v7140, 16
    %v7567 = vshll.u32 %v7140, 16
    %v7569 = vrot.slane %v7567, 1
    %v7570 = vor.u32 %v7565, %v7569
    %v7572 = vshll.u32 %v7204, 16
    %v7574 = vrot.slane %v7572, 1
    %v7575 = vsel %vm1279, %v7570, %v7574
    %v7577 = vshrl.u32 %v7141, 16
    %v7579 = vshll.u32 %v7141, 16
    %v7581 = vrot.slane %v7579, 1
    %v7582 = vor.u32 %v7577, %v7581
    %v7584 = vshll.u32 %v7205, 16
    %v7586 = vrot.slane %v7584, 1
    %v7587 = vsel %vm1279, %v7582, %v7586
    %v7589 = vshrl.u32 %v7142, 16
    %v7591 = vshll.u32 %v7142, 16
    %v7593 = vrot.slane %v7591, 1
    %v7594 = vor.u32 %v7589, %v7593
    %v7596 = vshll.u32 %v7206, 16
    %v7598 = vrot.slane %v7596, 1
    %v7599 = vsel %vm1279, %v7594, %v7598
    %v7601 = vshrl.u32 %v7144, 16
    %v7603 = vshll.u32 %v7144, 16
    %v7605 = vrot.slane %v7603, 1
    %v7606 = vor.u32 %v7601, %v7605
    %v7608 = vshll.u32 %v7208, 16
    %v7610 = vrot.slane %v7608, 1
    %v7611 = vsel %vm1279, %v7606, %v7610
    %v7613 = vshrl.u32 %v7145, 16
    %v7615 = vshll.u32 %v7145, 16
    %v7617 = vrot.slane %v7615, 1
    %v7618 = vor.u32 %v7613, %v7617
    %v7620 = vshll.u32 %v7209, 16
    %v7622 = vrot.slane %v7620, 1
    %v7623 = vsel %vm1279, %v7618, %v7622
    %v7625 = vshrl.u32 %v7146, 16
    %v7627 = vshll.u32 %v7146, 16
    %v7629 = vrot.slane %v7627, 1
    %v7630 = vor.u32 %v7625, %v7629
    %v7632 = vshll.u32 %v7210, 16
    %v7634 = vrot.slane %v7632, 1
    %v7635 = vsel %vm1279, %v7630, %v7634
    %v7637 = vshrl.u32 %v7147, 16
    %v7639 = vshll.u32 %v7147, 16
    %v7641 = vrot.slane %v7639, 1
    %v7642 = vor.u32 %v7637, %v7641
    %v7644 = vshll.u32 %v7211, 16
    %v7646 = vrot.slane %v7644, 1
    %v7647 = vsel %vm1279, %v7642, %v7646
    %v7649 = vshrl.u32 %v7148, 16
    %v7651 = vshll.u32 %v7148, 16
    %v7653 = vrot.slane %v7651, 1
    %v7654 = vor.u32 %v7649, %v7653
    %v7656 = vshll.u32 %v7212, 16
    %v7658 = vrot.slane %v7656, 1
    %v7659 = vsel %vm1279, %v7654, %v7658
    %v7661 = vshrl.u32 %v7149, 16
    %v7663 = vshll.u32 %v7149, 16
    %v7665 = vrot.slane %v7663, 1
    %v7666 = vor.u32 %v7661, %v7665
    %v7668 = vshll.u32 %v7213, 16
    %v7670 = vrot.slane %v7668, 1
    %v7671 = vsel %vm1279, %v7666, %v7670
    %v7673 = vshrl.u32 %v7150, 16
    %v7675 = vshll.u32 %v7150, 16
    %v7677 = vrot.slane %v7675, 1
    %v7678 = vor.u32 %v7673, %v7677
    %v7680 = vshll.u32 %v7214, 16
    %v7682 = vrot.slane %v7680, 1
    %v7683 = vsel %vm1279, %v7678, %v7682
    %v7685 = vshrl.u32 %v7151, 16
    %v7687 = vshll.u32 %v7151, 16
    %v7689 = vrot.slane %v7687, 1
    %v7690 = vor.u32 %v7685, %v7689
    %v7692 = vshll.u32 %v7215, 16
    %v7694 = vrot.slane %v7692, 1
    %v7695 = vsel %vm1279, %v7690, %v7694
    %v7697 = vshrl.u32 %v7152, 16
    %v7699 = vshll.u32 %v7152, 16
    %v7701 = vrot.slane %v7699, 1
    %v7702 = vor.u32 %v7697, %v7701
    %v7704 = vshll.u32 %v7216, 16
    %v7706 = vrot.slane %v7704, 1
    %v7707 = vsel %vm1279, %v7702, %v7706
    %v7709 = vshrl.u32 %v7153, 16
    %v7711 = vshll.u32 %v7153, 16
    %v7713 = vrot.slane %v7711, 1
    %v7714 = vor.u32 %v7709, %v7713
    %v7716 = vshll.u32 %v7217, 16
    %v7718 = vrot.slane %v7716, 1
    %v7719 = vsel %vm1279, %v7714, %v7718
    %v7721 = vshrl.u32 %v7154, 16
    %v7723 = vshll.u32 %v7154, 16
    %v7725 = vrot.slane %v7723, 1
    %v7726 = vor.u32 %v7721, %v7725
    %v7728 = vshll.u32 %v7218, 16
    %v7730 = vrot.slane %v7728, 1
    %v7731 = vsel %vm1279, %v7726, %v7730
    %v7733 = vshrl.u32 %v7155, 16
    %v7735 = vshll.u32 %v7155, 16
    %v7737 = vrot.slane %v7735, 1
    %v7738 = vor.u32 %v7733, %v7737
    %v7740 = vshll.u32 %v7219, 16
    %v7742 = vrot.slane %v7740, 1
    %v7743 = vsel %vm1279, %v7738, %v7742
    %v7745 = vshrl.u32 %v7156, 16
    %v7747 = vshll.u32 %v7156, 16
    %v7749 = vrot.slane %v7747, 1
    %v7750 = vor.u32 %v7745, %v7749
    %v7752 = vshll.u32 %v7220, 16
    %v7754 = vrot.slane %v7752, 1
    %v7755 = vsel %vm1279, %v7750, %v7754
    %v7757 = vshrl.u32 %v7157, 16
    %v7759 = vshll.u32 %v7157, 16
    %v7761 = vrot.slane %v7759, 1
    %v7762 = vor.u32 %v7757, %v7761
    %v7764 = vshll.u32 %v7221, 16
    %v7766 = vrot.slane %v7764, 1
    %v7767 = vsel %vm1279, %v7762, %v7766
    %v7769 = vshrl.u32 %v7158, 16
    %v7771 = vshll.u32 %v7158, 16
    %v7773 = vrot.slane %v7771, 1
    %v7774 = vor.u32 %v7769, %v7773
    %v7776 = vshll.u32 %v7222, 16
    %v7778 = vrot.slane %v7776, 1
    %v7779 = vsel %vm1279, %v7774, %v7778
    %v7781 = vshrl.u32 %v7160, 16
    %v7783 = vshll.u32 %v7160, 16
    %v7785 = vrot.slane %v7783, 1
    %v7786 = vor.u32 %v7781, %v7785
    %v7788 = vshll.u32 %v7224, 16
    %v7790 = vrot.slane %v7788, 1
    %v7791 = vsel %vm1279, %v7786, %v7790
    %v7793 = vshrl.u32 %v7161, 16
    %v7795 = vshll.u32 %v7161, 16
    %v7797 = vrot.slane %v7795, 1
    %v7798 = vor.u32 %v7793, %v7797
    %v7800 = vshll.u32 %v7225, 16
    %v7802 = vrot.slane %v7800, 1
    %v7803 = vsel %vm1279, %v7798, %v7802
    %v7805 = vshrl.u32 %v7162, 16
    %v7807 = vshll.u32 %v7162, 16
    %v7809 = vrot.slane %v7807, 1
    %v7810 = vor.u32 %v7805, %v7809
    %v7812 = vshll.u32 %v7226, 16
    %v7814 = vrot.slane %v7812, 1
    %v7815 = vsel %vm1279, %v7810, %v7814
    %v7817 = vshrl.u32 %v7163, 16
    %v7819 = vshll.u32 %v7163, 16
    %v7821 = vrot.slane %v7819, 1
    %v7822 = vor.u32 %v7817, %v7821
    %v7824 = vshll.u32 %v7227, 16
    %v7826 = vrot.slane %v7824, 1
    %v7827 = vsel %vm1279, %v7822, %v7826
    %v7829 = vshrl.u32 %v7164, 16
    %v7831 = vshll.u32 %v7164, 16
    %v7833 = vrot.slane %v7831, 1
    %v7834 = vor.u32 %v7829, %v7833
    %v7836 = vshll.u32 %v7228, 16
    %v7838 = vrot.slane %v7836, 1
    %v7839 = vsel %vm1279, %v7834, %v7838
    %v7841 = vshrl.u32 %v7165, 16
    %v7843 = vshll.u32 %v7165, 16
    %v7845 = vrot.slane %v7843, 1
    %v7846 = vor.u32 %v7841, %v7845
    %v7848 = vshll.u32 %v7229, 16
    %v7850 = vrot.slane %v7848, 1
    %v7851 = vsel %vm1279, %v7846, %v7850
    %v7853 = vshrl.u32 %v7166, 16
    %v7855 = vshll.u32 %v7166, 16
    %v7857 = vrot.slane %v7855, 1
    %v7858 = vor.u32 %v7853, %v7857
    %v7860 = vshll.u32 %v7230, 16
    %v7862 = vrot.slane %v7860, 1
    %v7863 = vsel %vm1279, %v7858, %v7862
    %v7865 = vshrl.u32 %v7167, 16
    %v7867 = vshll.u32 %v7167, 16
    %v7869 = vrot.slane %v7867, 1
    %v7870 = vor.u32 %v7865, %v7869
    %v7872 = vshll.u32 %v7231, 16
    %v7874 = vrot.slane %v7872, 1
    %v7875 = vsel %vm1279, %v7870, %v7874
    %v7877 = vshrl.u32 %v7168, 16
    %v7879 = vshll.u32 %v7168, 16
    %v7881 = vrot.slane %v7879, 1
    %v7882 = vor.u32 %v7877, %v7881
    %v7884 = vshll.u32 %v7232, 16
    %v7886 = vrot.slane %v7884, 1
    %v7887 = vsel %vm1279, %v7882, %v7886
    %v7889 = vshrl.u32 %v7169, 16
    %v7891 = vshll.u32 %v7169, 16
    %v7893 = vrot.slane %v7891, 1
    %v7894 = vor.u32 %v7889, %v7893
    %v7896 = vshll.u32 %v7233, 16
    %v7898 = vrot.slane %v7896, 1
    %v7899 = vsel %vm1279, %v7894, %v7898
    %v7901 = vshrl.u32 %v7170, 16
    %v7903 = vshll.u32 %v7170, 16
    %v7905 = vrot.slane %v7903, 1
    %v7906 = vor.u32 %v7901, %v7905
    %v7908 = vshll.u32 %v7234, 16
    %v7910 = vrot.slane %v7908, 1
    %v7911 = vsel %vm1279, %v7906, %v7910
    %v7913 = vshrl.u32 %v7171, 16
    %v7915 = vshll.u32 %v7171, 16
    %v7917 = vrot.slane %v7915, 1
    %v7918 = vor.u32 %v7913, %v7917
    %v7920 = vshll.u32 %v7235, 16
    %v7922 = vrot.slane %v7920, 1
    %v7923 = vsel %vm1279, %v7918, %v7922
    %v7925 = vshrl.u32 %v7172, 16
    %v7927 = vshll.u32 %v7172, 16
    %v7929 = vrot.slane %v7927, 1
    %v7930 = vor.u32 %v7925, %v7929
    %v7932 = vshll.u32 %v7236, 16
    %v7934 = vrot.slane %v7932, 1
    %v7935 = vsel %vm1279, %v7930, %v7934
    %v7937 = vshrl.u32 %v7173, 16
    %v7939 = vshll.u32 %v7173, 16
    %v7941 = vrot.slane %v7939, 1
    %v7942 = vor.u32 %v7937, %v7941
    %v7944 = vshll.u32 %v7237, 16
    %v7946 = vrot.slane %v7944, 1
    %v7947 = vsel %vm1279, %v7942, %v7946
    %v7949 = vshrl.u32 %v7174, 16
    %v7951 = vshll.u32 %v7174, 16
    %v7953 = vrot.slane %v7951, 1
    %v7954 = vor.u32 %v7949, %v7953
    %v7956 = vshll.u32 %v7238, 16
    %v7958 = vrot.slane %v7956, 1
    %v7959 = vsel %vm1279, %v7954, %v7958
    %v8140 = vrot.slane %v7112, 1
    %v8141 = vrot.slane %v7176, 1
    %v8142 = vsel %vm2195, %v8140, %v8141
    %v8143 = vrot.slane %v7113, 1
    %v8144 = vrot.slane %v7177, 1
    %v8145 = vsel %vm2195, %v8143, %v8144
    %v8146 = vrot.slane %v7114, 1
    %v8147 = vrot.slane %v7178, 1
    %v8148 = vsel %vm2195, %v8146, %v8147
    %v8149 = vrot.slane %v7115, 1
    %v8150 = vrot.slane %v7179, 1
    %v8151 = vsel %vm2195, %v8149, %v8150
    %v8152 = vrot.slane %v7116, 1
    %v8153 = vrot.slane %v7180, 1
    %v8154 = vsel %vm2195, %v8152, %v8153
    %v8155 = vrot.slane %v7117, 1
    %v8156 = vrot.slane %v7181, 1
    %v8157 = vsel %vm2195, %v8155, %v8156
    %v8158 = vrot.slane %v7118, 1
    %v8159 = vrot.slane %v7182, 1
    %v8160 = vsel %vm2195, %v8158, %v8159
    %v8161 = vrot.slane %v7119, 1
    %v8162 = vrot.slane %v7183, 1
    %v8163 = vsel %vm2195, %v8161, %v8162
    %v8164 = vrot.slane %v7120, 1
    %v8165 = vrot.slane %v7184, 1
    %v8166 = vsel %vm2195, %v8164, %v8165
    %v8167 = vrot.slane %v7121, 1
    %v8168 = vrot.slane %v7185, 1
    %v8169 = vsel %vm2195, %v8167, %v8168
    %v8170 = vrot.slane %v7122, 1
    %v8171 = vrot.slane %v7186, 1
    %v8172 = vsel %vm2195, %v8170, %v8171
    %v8173 = vrot.slane %v7123, 1
    %v8174 = vrot.slane %v7187, 1
    %v8175 = vsel %vm2195, %v8173, %v8174
    %v8176 = vrot.slane %v7124, 1
    %v8177 = vrot.slane %v7188, 1
    %v8178 = vsel %vm2195, %v8176, %v8177
    %v8179 = vrot.slane %v7125, 1
    %v8180 = vrot.slane %v7189, 1
    %v8181 = vsel %vm2195, %v8179, %v8180
    %v8182 = vrot.slane %v7126, 1
    %v8183 = vrot.slane %v7190, 1
    %v8184 = vsel %vm2195, %v8182, %v8183
    %v8185 = vrot.slane %v7128, 1
    %v8186 = vrot.slane %v7192, 1
    %v8187 = vsel %vm2195, %v8185, %v8186
    %v8188 = vrot.slane %v7129, 1
    %v8189 = vrot.slane %v7193, 1
    %v8190 = vsel %vm2195, %v8188, %v8189
    %v8191 = vrot.slane %v7130, 1
    %v8192 = vrot.slane %v7194, 1
    %v8193 = vsel %vm2195, %v8191, %v8192
    %v8194 = vrot.slane %v7131, 1
    %v8195 = vrot.slane %v7195, 1
    %v8196 = vsel %vm2195, %v8194, %v8195
    %v8197 = vrot.slane %v7132, 1
    %v8198 = vrot.slane %v7196, 1
    %v8199 = vsel %vm2195, %v8197, %v8198
    %v8200 = vrot.slane %v7133, 1
    %v8201 = vrot.slane %v7197, 1
    %v8202 = vsel %vm2195, %v8200, %v8201
    %v8203 = vrot.slane %v7134, 1
    %v8204 = vrot.slane %v7198, 1
    %v8205 = vsel %vm2195, %v8203, %v8204
    %v8206 = vrot.slane %v7135, 1
    %v8207 = vrot.slane %v7199, 1
    %v8208 = vsel %vm2195, %v8206, %v8207
    %v8209 = vrot.slane %v7136, 1
    %v8210 = vrot.slane %v7200, 1
    %v8211 = vsel %vm2195, %v8209, %v8210
    %v8212 = vrot.slane %v7137, 1
    %v8213 = vrot.slane %v7201, 1
    %v8214 = vsel %vm2195, %v8212, %v8213
    %v8215 = vrot.slane %v7138, 1
    %v8216 = vrot.slane %v7202, 1
    %v8217 = vsel %vm2195, %v8215, %v8216
    %v8218 = vrot.slane %v7139, 1
    %v8219 = vrot.slane %v7203, 1
    %v8220 = vsel %vm2195, %v8218, %v8219
    %v8221 = vrot.slane %v7140, 1
    %v8222 = vrot.slane %v7204, 1
    %v8223 = vsel %vm2195, %v8221, %v8222
    %v8224 = vrot.slane %v7141, 1
    %v8225 = vrot.slane %v7205, 1
    %v8226 = vsel %vm2195, %v8224, %v8225
    %v8227 = vrot.slane %v7142, 1
    %v8228 = vrot.slane %v7206, 1
    %v8229 = vsel %vm2195, %v8227, %v8228
    %v8230 = vrot.slane %v7144, 1
    %v8231 = vrot.slane %v7208, 1
    %v8232 = vsel %vm2195, %v8230, %v8231
    %v8233 = vrot.slane %v7145, 1
    %v8234 = vrot.slane %v7209, 1
    %v8235 = vsel %vm2195, %v8233, %v8234
    %v8236 = vrot.slane %v7146, 1
    %v8237 = vrot.slane %v7210, 1
    %v8238 = vsel %vm2195, %v8236, %v8237
    %v8239 = vrot.slane %v7147, 1
    %v8240 = vrot.slane %v7211, 1
    %v8241 = vsel %vm2195, %v8239, %v8240
    %v8242 = vrot.slane %v7148, 1
    %v8243 = vrot.slane %v7212, 1
    %v8244 = vsel %vm2195, %v8242, %v8243
    %v8245 = vrot.slane %v7149, 1
    %v8246 = vrot.slane %v7213, 1
    %v8247 = vsel %vm2195, %v8245, %v8246
    %v8248 = vrot.slane %v7150, 1
    %v8249 = vrot.slane %v7214, 1
    %v8250 = vsel %vm2195, %v8248, %v8249
    %v8251 = vrot.slane %v7151, 1
    %v8252 = vrot.slane %v7215, 1
    %v8253 = vsel %vm2195, %v8251, %v8252
    %v8254 = vrot.slane %v7152, 1
    %v8255 = vrot.slane %v7216, 1
    %v8256 = vsel %vm2195, %v8254, %v8255
    %v8257 = vrot.slane %v7153, 1
    %v8258 = vrot.slane %v7217, 1
    %v8259 = vsel %vm2195, %v8257, %v8258
    %v8260 = vrot.slane %v7154, 1
    %v8261 = vrot.slane %v7218, 1
    %v8262 = vsel %vm2195, %v8260, %v8261
    %v8263 = vrot.slane %v7155, 1
    %v8264 = vrot.slane %v7219, 1
    %v8265 = vsel %vm2195, %v8263, %v8264
    %v8266 = vrot.slane %v7156, 1
    %v8267 = vrot.slane %v7220, 1
    %v8268 = vsel %vm2195, %v8266, %v8267
    %v8269 = vrot.slane %v7157, 1
    %v8270 = vrot.slane %v7221, 1
    %v8271 = vsel %vm2195, %v8269, %v8270
    %v8272 = vrot.slane %v7158, 1
    %v8273 = vrot.slane %v7222, 1
    %v8274 = vsel %vm2195, %v8272, %v8273
    %v8275 = vrot.slane %v7160, 1
    %v8276 = vrot.slane %v7224, 1
    %v8277 = vsel %vm2195, %v8275, %v8276
    %v8278 = vrot.slane %v7161, 1
    %v8279 = vrot.slane %v7225, 1
    %v8280 = vsel %vm2195, %v8278, %v8279
    %v8281 = vrot.slane %v7162, 1
    %v8282 = vrot.slane %v7226, 1
    %v8283 = vsel %vm2195, %v8281, %v8282
    %v8284 = vrot.slane %v7163, 1
    %v8285 = vrot.slane %v7227, 1
    %v8286 = vsel %vm2195, %v8284, %v8285
    %v8287 = vrot.slane %v7164, 1
    %v8288 = vrot.slane %v7228, 1
    %v8289 = vsel %vm2195, %v8287, %v8288
    %v8290 = vrot.slane %v7165, 1
    %v8291 = vrot.slane %v7229, 1
    %v8292 = vsel %vm2195, %v8290, %v8291
    %v8293 = vrot.slane %v7166, 1
    %v8294 = vrot.slane %v7230, 1
    %v8295 = vsel %vm2195, %v8293, %v8294
    %v8296 = vrot.slane %v7167, 1
    %v8297 = vrot.slane %v7231, 1
    %v8298 = vsel %vm2195, %v8296, %v8297
    %v8299 = vrot.slane %v7168, 1
    %v8300 = vrot.slane %v7232, 1
    %v8301 = vsel %vm2195, %v8299, %v8300
    %v8302 = vrot.slane %v7169, 1
    %v8303 = vrot.slane %v7233, 1
    %v8304 = vsel %vm2195, %v8302, %v8303
    %v8305 = vrot.slane %v7170, 1
    %v8306 = vrot.slane %v7234, 1
    %v8307 = vsel %vm2195, %v8305, %v8306
    %v8308 = vrot.slane %v7171, 1
    %v8309 = vrot.slane %v7235, 1
    %v8310 = vsel %vm2195, %v8308, %v8309
    %v8311 = vrot.slane %v7172, 1
    %v8312 = vrot.slane %v7236, 1
    %v8313 = vsel %vm2195, %v8311, %v8312
    %v8314 = vrot.slane %v7173, 1
    %v8315 = vrot.slane %v7237, 1
    %v8316 = vsel %vm2195, %v8314, %v8315
    %v8317 = vrot.slane %v7174, 1
    %v8318 = vrot.slane %v7238, 1
    %v8319 = vsel %vm2195, %v8317, %v8318
    %v8381 = vshrl.u32 %v7127, 16
    %v8383 = vshll.u32 %v7127, 16
    %v8385 = vrot.slane %v8383, 1
    %v8386 = vor.u32 %v8381, %v8385
    %v8388 = vshll.u32 %v7191, 16
    %v8390 = vrot.slane %v8388, 1
    %v8391 = vsel %vm1279, %v8386, %v8390
    %v8393 = vshrl.u32 %v7143, 16
    %v8395 = vshll.u32 %v7143, 16
    %v8397 = vrot.slane %v8395, 1
    %v8398 = vor.u32 %v8393, %v8397
    %v8400 = vshll.u32 %v7207, 16
    %v8402 = vrot.slane %v8400, 1
    %v8403 = vsel %vm1279, %v8398, %v8402
    %v8405 = vshrl.u32 %v7159, 16
    %v8407 = vshll.u32 %v7159, 16
    %v8409 = vrot.slane %v8407, 1
    %v8410 = vor.u32 %v8405, %v8409
    %v8412 = vshll.u32 %v7223, 16
    %v8414 = vrot.slane %v8412, 1
    %v8415 = vsel %vm1279, %v8410, %v8414
    %v8417 = vshrl.u32 %v7175, 16
    %v8419 = vshll.u32 %v7175, 16
    %v8421 = vrot.slane %v8419, 1
    %v8422 = vor.u32 %v8417, %v8421
    %v8424 = vshll.u32 %v7239, 16
    %v8426 = vrot.slane %v8424, 1
    %v8427 = vsel %vm1279, %v8422, %v8426
    %v8440 = vrot.slane %v7127, 1
    %v8441 = vrot.slane %v7191, 1
    %v8442 = vsel %vm2195, %v8440, %v8441
    %v8443 = vrot.slane %v7143, 1
    %v8444 = vrot.slane %v7207, 1
    %v8445 = vsel %vm2195, %v8443, %v8444
    %v8446 = vrot.slane %v7159, 1
    %v8447 = vrot.slane %v7223, 1
    %v8448 = vsel %vm2195, %v8446, %v8447
    %v8449 = vrot.slane %v7175, 1
    %v8450 = vrot.slane %v7239, 1
    %v8451 = vsel %vm2195, %v8449, %v8450
    %v8456 = vld [vmem:[#allocation9] sm:$0xf]
    %v8457 = vld [vmem:[#allocation9 + $0x4] sm:$0xf]
    %v8458 = vld [vmem:[#allocation9 + $0x8] sm:$0xf]
    %v8459 = vld [vmem:[#allocation9 + $0xc] sm:$0xf]
    %v8460 = vld [vmem:[#allocation9 + $0x10] sm:$0xf]
    %v8461 = vld [vmem:[#allocation9 + $0x14] sm:$0xf]
    %v8462 = vld [vmem:[#allocation9 + $0x18] sm:$0xf]
    %v8463 = vld [vmem:[#allocation9 + $0x1c] sm:$0xf]
    %v8464 = vld [vmem:[#allocation9 + $0x20] sm:$0xf]
    %v8465 = vld [vmem:[#allocation9 + $0x24] sm:$0xf]
    %v8466 = vld [vmem:[#allocation9 + $0x28] sm:$0xf]
    %v8467 = vld [vmem:[#allocation9 + $0x2c] sm:$0xf]
    %v8468 = vld [vmem:[#allocation9 + $0x30] sm:$0xf]
    %v8469 = vld [vmem:[#allocation9 + $0x34] sm:$0xf]
    %v8470 = vld [vmem:[#allocation9 + $0x38] sm:$0xf]
    %v8471 = vld [vmem:[#allocation9 + $0x3c] sm:$0xf]
    %v8472 = vld [vmem:[#allocation9 + $0x40] sm:$0xf]
    %v8473 = vld [vmem:[#allocation9 + $0x44] sm:$0xf]
    %v8474 = vld [vmem:[#allocation9 + $0x48] sm:$0xf]
    %v8475 = vld [vmem:[#allocation9 + $0x4c] sm:$0xf]
    %v8476 = vld [vmem:[#allocation9 + $0x50] sm:$0xf]
    %v8477 = vld [vmem:[#allocation9 + $0x54] sm:$0xf]
    %v8478 = vld [vmem:[#allocation9 + $0x58] sm:$0xf]
    %v8479 = vld [vmem:[#allocation9 + $0x5c] sm:$0xf]
    %v8480 = vld [vmem:[#allocation9 + $0x60] sm:$0xf]
    %v8481 = vld [vmem:[#allocation9 + $0x64] sm:$0xf]
    %v8482 = vld [vmem:[#allocation9 + $0x68] sm:$0xf]
    %v8483 = vld [vmem:[#allocation9 + $0x6c] sm:$0xf]
    %v8484 = vld [vmem:[#allocation9 + $0x70] sm:$0xf]
    %v8485 = vld [vmem:[#allocation9 + $0x74] sm:$0xf]
    %v8486 = vld [vmem:[#allocation9 + $0x78] sm:$0xf]
    %v8487 = vld [vmem:[#allocation9 + $0x7c] sm:$0xf]
    %v8488 = vld [vmem:[#allocation9 + $0x80] sm:$0xf]
    %v8489 = vld [vmem:[#allocation9 + $0x84] sm:$0xf]
    %v8490 = vld [vmem:[#allocation9 + $0x88] sm:$0xf]
    %v8491 = vld [vmem:[#allocation9 + $0x8c] sm:$0xf]
    %v8492 = vld [vmem:[#allocation9 + $0x90] sm:$0xf]
    %v8493 = vld [vmem:[#allocation9 + $0x94] sm:$0xf]
    %v8494 = vld [vmem:[#allocation9 + $0x98] sm:$0xf]
    %v8495 = vld [vmem:[#allocation9 + $0x9c] sm:$0xf]
    %v8496 = vld [vmem:[#allocation9 + $0xa0] sm:$0xf]
    %v8497 = vld [vmem:[#allocation9 + $0xa4] sm:$0xf]
    %v8498 = vld [vmem:[#allocation9 + $0xa8] sm:$0xf]
    %v8499 = vld [vmem:[#allocation9 + $0xac] sm:$0xf]
    %v8500 = vld [vmem:[#allocation9 + $0xb0] sm:$0xf]
    %v8501 = vld [vmem:[#allocation9 + $0xb4] sm:$0xf]
    %v8502 = vld [vmem:[#allocation9 + $0xb8] sm:$0xf]
    %v8503 = vld [vmem:[#allocation9 + $0xbc] sm:$0xf]
    %v8504 = vld [vmem:[#allocation9 + $0xc0] sm:$0xf]
    %v8505 = vld [vmem:[#allocation9 + $0xc4] sm:$0xf]
    %v8506 = vld [vmem:[#allocation9 + $0xc8] sm:$0xf]
    %v8507 = vld [vmem:[#allocation9 + $0xcc] sm:$0xf]
    %v8508 = vld [vmem:[#allocation9 + $0xd0] sm:$0xf]
    %v8509 = vld [vmem:[#allocation9 + $0xd4] sm:$0xf]
    %v8510 = vld [vmem:[#allocation9 + $0xd8] sm:$0xf]
    %v8511 = vld [vmem:[#allocation9 + $0xdc] sm:$0xf]
    %v8512 = vld [vmem:[#allocation9 + $0xe0] sm:$0xf]
    %v8513 = vld [vmem:[#allocation9 + $0xe4] sm:$0xf]
    %v8514 = vld [vmem:[#allocation9 + $0xe8] sm:$0xf]
    %v8515 = vld [vmem:[#allocation9 + $0xec] sm:$0xf]
    %v8516 = vld [vmem:[#allocation9 + $0xf0] sm:$0xf]
    %v8517 = vld [vmem:[#allocation9 + $0xf4] sm:$0xf]
    %v8518 = vld [vmem:[#allocation9 + $0xf8] sm:$0xf]
    %v8519 = vld [vmem:[#allocation9 + $0xfc] sm:$0xf]
    %v8520 = vld [vmem:[#allocation9 + $0x100] sm:$0xf]
    %v8521 = vld [vmem:[#allocation9 + $0x104] sm:$0xf]
    %v8522 = vld [vmem:[#allocation9 + $0x108] sm:$0xf]
    %v8523 = vld [vmem:[#allocation9 + $0x10c] sm:$0xf]
    %v8524 = vld [vmem:[#allocation9 + $0x110] sm:$0xf]
    %v8525 = vld [vmem:[#allocation9 + $0x114] sm:$0xf]
    %v8526 = vld [vmem:[#allocation9 + $0x118] sm:$0xf]
    %v8527 = vld [vmem:[#allocation9 + $0x11c] sm:$0xf]
    %v8528 = vld [vmem:[#allocation9 + $0x120] sm:$0xf]
    %v8529 = vld [vmem:[#allocation9 + $0x124] sm:$0xf]
    %v8530 = vld [vmem:[#allocation9 + $0x128] sm:$0xf]
    %v8531 = vld [vmem:[#allocation9 + $0x12c] sm:$0xf]
    %v8532 = vld [vmem:[#allocation9 + $0x130] sm:$0xf]
    %v8533 = vld [vmem:[#allocation9 + $0x134] sm:$0xf]
    %v8534 = vld [vmem:[#allocation9 + $0x138] sm:$0xf]
    %v8535 = vld [vmem:[#allocation9 + $0x13c] sm:$0xf]
    %v8536 = vld [vmem:[#allocation9 + $0x140] sm:$0xf]
    %v8537 = vld [vmem:[#allocation9 + $0x144] sm:$0xf]
    %v8538 = vld [vmem:[#allocation9 + $0x148] sm:$0xf]
    %v8539 = vld [vmem:[#allocation9 + $0x14c] sm:$0xf]
    %v8540 = vld [vmem:[#allocation9 + $0x150] sm:$0xf]
    %v8541 = vld [vmem:[#allocation9 + $0x154] sm:$0xf]
    %v8542 = vld [vmem:[#allocation9 + $0x158] sm:$0xf]
    %v8543 = vld [vmem:[#allocation9 + $0x15c] sm:$0xf]
    %v8544 = vld [vmem:[#allocation9 + $0x160] sm:$0xf]
    %v8545 = vld [vmem:[#allocation9 + $0x164] sm:$0xf]
    %v8546 = vld [vmem:[#allocation9 + $0x168] sm:$0xf]
    %v8547 = vld [vmem:[#allocation9 + $0x16c] sm:$0xf]
    %v8548 = vld [vmem:[#allocation9 + $0x170] sm:$0xf]
    %v8549 = vld [vmem:[#allocation9 + $0x174] sm:$0xf]
    %v8550 = vld [vmem:[#allocation9 + $0x178] sm:$0xf]
    %v8551 = vld [vmem:[#allocation9 + $0x17c] sm:$0xf]
    %v8552 = vld [vmem:[#allocation9 + $0x180] sm:$0xf]
    %v8553 = vld [vmem:[#allocation9 + $0x184] sm:$0xf]
    %v8554 = vld [vmem:[#allocation9 + $0x188] sm:$0xf]
    %v8555 = vld [vmem:[#allocation9 + $0x18c] sm:$0xf]
    %v8556 = vld [vmem:[#allocation9 + $0x190] sm:$0xf]
    %v8557 = vld [vmem:[#allocation9 + $0x194] sm:$0xf]
    %v8558 = vld [vmem:[#allocation9 + $0x198] sm:$0xf]
    %v8559 = vld [vmem:[#allocation9 + $0x19c] sm:$0xf]
    %v8560 = vld [vmem:[#allocation9 + $0x1a0] sm:$0xf]
    %v8561 = vld [vmem:[#allocation9 + $0x1a4] sm:$0xf]
    %v8562 = vld [vmem:[#allocation9 + $0x1a8] sm:$0xf]
    %v8563 = vld [vmem:[#allocation9 + $0x1ac] sm:$0xf]
    %v8564 = vld [vmem:[#allocation9 + $0x1b0] sm:$0xf]
    %v8565 = vld [vmem:[#allocation9 + $0x1b4] sm:$0xf]
    %v8566 = vld [vmem:[#allocation9 + $0x1b8] sm:$0xf]
    %v8567 = vld [vmem:[#allocation9 + $0x1bc] sm:$0xf]
    %v8568 = vld [vmem:[#allocation9 + $0x1c0] sm:$0xf]
    %v8569 = vld [vmem:[#allocation9 + $0x1c4] sm:$0xf]
    %v8570 = vld [vmem:[#allocation9 + $0x1c8] sm:$0xf]
    %v8571 = vld [vmem:[#allocation9 + $0x1cc] sm:$0xf]
    %v8572 = vld [vmem:[#allocation9 + $0x1d0] sm:$0xf]
    %v8573 = vld [vmem:[#allocation9 + $0x1d4] sm:$0xf]
    %v8574 = vld [vmem:[#allocation9 + $0x1d8] sm:$0xf]
    %v8575 = vld [vmem:[#allocation9 + $0x1dc] sm:$0xf]
    %v8576 = vld [vmem:[#allocation9 + $0x1e0] sm:$0xf]
    %v8577 = vld [vmem:[#allocation9 + $0x1e4] sm:$0xf]
    %v8578 = vld [vmem:[#allocation9 + $0x1e8] sm:$0xf]
    %v8579 = vld [vmem:[#allocation9 + $0x1ec] sm:$0xf]
    %v8580 = vld [vmem:[#allocation9 + $0x1f0] sm:$0xf]
    %v8581 = vld [vmem:[#allocation9 + $0x1f4] sm:$0xf]
    %v8582 = vld [vmem:[#allocation9 + $0x1f8] sm:$0xf]
    %v8583 = vld [vmem:[#allocation9 + $0x1fc] sm:$0xf]
    %v8584 = vld [vmem:[#allocation9 + $0x200] sm:$0xf]
    %v8585 = vld [vmem:[#allocation9 + $0x204] sm:$0xf]
    %v8586 = vld [vmem:[#allocation9 + $0x208] sm:$0xf]
    %v8587 = vld [vmem:[#allocation9 + $0x20c] sm:$0xf]
    %v8588 = vld [vmem:[#allocation9 + $0x210] sm:$0xf]
    %v8589 = vld [vmem:[#allocation9 + $0x214] sm:$0xf]
    %v8590 = vld [vmem:[#allocation9 + $0x218] sm:$0xf]
    %v8591 = vld [vmem:[#allocation9 + $0x21c] sm:$0xf]
    %v8592 = vld [vmem:[#allocation9 + $0x220] sm:$0xf]
    %v8593 = vld [vmem:[#allocation9 + $0x224] sm:$0xf]
    %v8594 = vld [vmem:[#allocation9 + $0x228] sm:$0xf]
    %v8595 = vld [vmem:[#allocation9 + $0x22c] sm:$0xf]
    %v8596 = vld [vmem:[#allocation9 + $0x230] sm:$0xf]
    %v8597 = vld [vmem:[#allocation9 + $0x234] sm:$0xf]
    %v8598 = vld [vmem:[#allocation9 + $0x238] sm:$0xf]
    %v8599 = vld [vmem:[#allocation9 + $0x23c] sm:$0xf]
    %v8744 = vunpack.c.l.b16 %v8456
    %v8745 = vunpack.c.l.b16 %v8457
    %v8746 = vunpack.c.l.b16 %v8458
    %v8747 = vunpack.c.l.b16 %v8459
    %v8748 = vunpack.c.l.b16 %v8460
    %v8749 = vunpack.c.l.b16 %v8461
    %v8750 = vunpack.c.l.b16 %v8462
    %v8751 = vunpack.c.l.b16 %v8463
    %v8752 = vunpack.c.l.b16 %v8464
    %v8753 = vunpack.c.l.b16 %v8465
    %v8754 = vunpack.c.l.b16 %v8466
    %v8755 = vunpack.c.l.b16 %v8467
    %v8756 = vunpack.c.l.b16 %v8468
    %v8757 = vunpack.c.l.b16 %v8469
    %v8758 = vunpack.c.l.b16 %v8470
    %v8759 = vunpack.c.l.b16 %v8471
    %v8760 = vunpack.c.l.b16 %v8472
    %v8761 = vunpack.c.l.b16 %v8473
    %v8762 = vunpack.c.l.b16 %v8474
    %v8763 = vunpack.c.l.b16 %v8475
    %v8764 = vunpack.c.l.b16 %v8476
    %v8765 = vunpack.c.l.b16 %v8477
    %v8766 = vunpack.c.l.b16 %v8478
    %v8767 = vunpack.c.l.b16 %v8479
    %v8768 = vunpack.c.l.b16 %v8480
    %v8769 = vunpack.c.l.b16 %v8481
    %v8770 = vunpack.c.l.b16 %v8482
    %v8771 = vunpack.c.l.b16 %v8483
    %v8772 = vunpack.c.l.b16 %v8484
    %v8773 = vunpack.c.l.b16 %v8485
    %v8774 = vunpack.c.l.b16 %v8486
    %v8775 = vunpack.c.l.b16 %v8487
    %v8776 = vunpack.c.l.b16 %v8488
    %v8777 = vunpack.c.l.b16 %v8489
    %v8778 = vunpack.c.l.b16 %v8490
    %v8779 = vunpack.c.l.b16 %v8491
    %v8780 = vunpack.c.l.b16 %v8492
    %v8781 = vunpack.c.l.b16 %v8493
    %v8782 = vunpack.c.l.b16 %v8494
    %v8783 = vunpack.c.l.b16 %v8495
    %v8784 = vunpack.c.l.b16 %v8496
    %v8785 = vunpack.c.l.b16 %v8497
    %v8786 = vunpack.c.l.b16 %v8498
    %v8787 = vunpack.c.l.b16 %v8499
    %v8788 = vunpack.c.l.b16 %v8500
    %v8789 = vunpack.c.l.b16 %v8501
    %v8790 = vunpack.c.l.b16 %v8502
    %v8791 = vunpack.c.l.b16 %v8503
    %v8792 = vunpack.c.l.b16 %v8504
    %v8793 = vunpack.c.l.b16 %v8505
    %v8794 = vunpack.c.l.b16 %v8506
    %v8795 = vunpack.c.l.b16 %v8507
    %v8796 = vunpack.c.l.b16 %v8508
    %v8797 = vunpack.c.l.b16 %v8509
    %v8798 = vunpack.c.l.b16 %v8510
    %v8799 = vunpack.c.l.b16 %v8511
    %v8800 = vunpack.c.l.b16 %v8512
    %v8801 = vunpack.c.l.b16 %v8513
    %v8802 = vunpack.c.l.b16 %v8514
    %v8803 = vunpack.c.l.b16 %v8515
    %v8804 = vunpack.c.l.b16 %v8516
    %v8805 = vunpack.c.l.b16 %v8517
    %v8806 = vunpack.c.l.b16 %v8518
    %v8807 = vunpack.c.l.b16 %v8519
    %v8808 = vunpack.c.l.b16 %v8520
    %v8809 = vunpack.c.l.b16 %v8521
    %v8810 = vunpack.c.l.b16 %v8522
    %v8811 = vunpack.c.l.b16 %v8523
    %v8812 = vunpack.c.l.b16 %v8524
    %v8813 = vunpack.c.l.b16 %v8525
    %v8814 = vunpack.c.l.b16 %v8526
    %v8815 = vunpack.c.l.b16 %v8527
    %v8816 = vunpack.c.l.b16 %v8528
    %v8817 = vunpack.c.l.b16 %v8529
    %v8818 = vunpack.c.l.b16 %v8530
    %v8819 = vunpack.c.l.b16 %v8531
    %v8820 = vunpack.c.l.b16 %v8532
    %v8821 = vunpack.c.l.b16 %v8533
    %v8822 = vunpack.c.l.b16 %v8534
    %v8823 = vunpack.c.l.b16 %v8535
    %v8824 = vunpack.c.l.b16 %v8536
    %v8825 = vunpack.c.l.b16 %v8537
    %v8826 = vunpack.c.l.b16 %v8538
    %v8827 = vunpack.c.l.b16 %v8539
    %v8828 = vunpack.c.l.b16 %v8540
    %v8829 = vunpack.c.l.b16 %v8541
    %v8830 = vunpack.c.l.b16 %v8542
    %v8831 = vunpack.c.l.b16 %v8543
    %v8832 = vunpack.c.l.b16 %v8544
    %v8833 = vunpack.c.l.b16 %v8545
    %v8834 = vunpack.c.l.b16 %v8546
    %v8835 = vunpack.c.l.b16 %v8547
    %v8836 = vunpack.c.l.b16 %v8548
    %v8837 = vunpack.c.l.b16 %v8549
    %v8838 = vunpack.c.l.b16 %v8550
    %v8839 = vunpack.c.l.b16 %v8551
    %v8840 = vunpack.c.l.b16 %v8552
    %v8841 = vunpack.c.l.b16 %v8553
    %v8842 = vunpack.c.l.b16 %v8554
    %v8843 = vunpack.c.l.b16 %v8555
    %v8844 = vunpack.c.l.b16 %v8556
    %v8845 = vunpack.c.l.b16 %v8557
    %v8846 = vunpack.c.l.b16 %v8558
    %v8847 = vunpack.c.l.b16 %v8559
    %v8848 = vunpack.c.l.b16 %v8560
    %v8849 = vunpack.c.l.b16 %v8561
    %v8850 = vunpack.c.l.b16 %v8562
    %v8851 = vunpack.c.l.b16 %v8563
    %v8852 = vunpack.c.l.b16 %v8564
    %v8853 = vunpack.c.l.b16 %v8565
    %v8854 = vunpack.c.l.b16 %v8566
    %v8855 = vunpack.c.l.b16 %v8567
    %v8856 = vunpack.c.l.b16 %v8568
    %v8857 = vunpack.c.l.b16 %v8569
    %v8858 = vunpack.c.l.b16 %v8570
    %v8859 = vunpack.c.l.b16 %v8571
    %v8860 = vunpack.c.l.b16 %v8572
    %v8861 = vunpack.c.l.b16 %v8573
    %v8862 = vunpack.c.l.b16 %v8574
    %v8863 = vunpack.c.l.b16 %v8575
    %v8864 = vunpack.c.l.b16 %v8576
    %v8865 = vunpack.c.l.b16 %v8577
    %v8866 = vunpack.c.l.b16 %v8578
    %v8867 = vunpack.c.l.b16 %v8579
    %v8868 = vunpack.c.l.b16 %v8580
    %v8869 = vunpack.c.l.b16 %v8581
    %v8870 = vunpack.c.l.b16 %v8582
    %v8871 = vunpack.c.l.b16 %v8583
    %v8872 = vunpack.c.l.b16 %v8584
    %v8873 = vunpack.c.l.b16 %v8585
    %v8874 = vunpack.c.l.b16 %v8586
    %v8875 = vunpack.c.l.b16 %v8587
    %v8876 = vunpack.c.l.b16 %v8588
    %v8877 = vunpack.c.l.b16 %v8589
    %v8878 = vunpack.c.l.b16 %v8590
    %v8879 = vunpack.c.l.b16 %v8591
    %v8880 = vunpack.c.l.b16 %v8592
    %v8881 = vunpack.c.l.b16 %v8593
    %v8882 = vunpack.c.l.b16 %v8594
    %v8883 = vunpack.c.l.b16 %v8595
    %v8884 = vunpack.c.l.b16 %v8596
    %v8885 = vunpack.c.l.b16 %v8597
    %v8886 = vunpack.c.l.b16 %v8598
    %v8887 = vunpack.c.l.b16 %v8599
    %v8888 = vpack.c.b16 %v8745, %v8744
    %v8889 = vpack.c.b16 %v8747, %v8746
    %v8890 = vpack.c.b16 %v8749, %v8748
    %v8891 = vpack.c.b16 %v8751, %v8750
    %v8892 = vpack.c.b16 %v8753, %v8752
    %v8893 = vpack.c.b16 %v8755, %v8754
    %v8894 = vpack.c.b16 %v8757, %v8756
    %v8895 = vpack.c.b16 %v8759, %v8758
    %v8896 = vpack.c.b16 %v8761, %v8760
    %v8897 = vpack.c.b16 %v8763, %v8762
    %v8898 = vpack.c.b16 %v8765, %v8764
    %v8899 = vpack.c.b16 %v8767, %v8766
    %v8900 = vpack.c.b16 %v8769, %v8768
    %v8901 = vpack.c.b16 %v8771, %v8770
    %v8902 = vpack.c.b16 %v8773, %v8772
    %v8903 = vpack.c.b16 %v8775, %v8774
    %v8904 = vpack.c.b16 %v8777, %v8776
    %v8905 = vpack.c.b16 %v8779, %v8778
    %v8906 = vpack.c.b16 %v8781, %v8780
    %v8907 = vpack.c.b16 %v8783, %v8782
    %v8908 = vpack.c.b16 %v8785, %v8784
    %v8909 = vpack.c.b16 %v8787, %v8786
    %v8910 = vpack.c.b16 %v8789, %v8788
    %v8911 = vpack.c.b16 %v8791, %v8790
    %v8912 = vpack.c.b16 %v8793, %v8792
    %v8913 = vpack.c.b16 %v8795, %v8794
    %v8914 = vpack.c.b16 %v8797, %v8796
    %v8915 = vpack.c.b16 %v8799, %v8798
    %v8916 = vpack.c.b16 %v8801, %v8800
    %v8917 = vpack.c.b16 %v8803, %v8802
    %v8918 = vpack.c.b16 %v8805, %v8804
    %v8919 = vpack.c.b16 %v8807, %v8806
    %v8920 = vpack.c.b16 %v8809, %v8808
    %v8921 = vpack.c.b16 %v8811, %v8810
    %v8922 = vpack.c.b16 %v8813, %v8812
    %v8923 = vpack.c.b16 %v8815, %v8814
    %v8924 = vpack.c.b16 %v8817, %v8816
    %v8925 = vpack.c.b16 %v8819, %v8818
    %v8926 = vpack.c.b16 %v8821, %v8820
    %v8927 = vpack.c.b16 %v8823, %v8822
    %v8928 = vpack.c.b16 %v8825, %v8824
    %v8929 = vpack.c.b16 %v8827, %v8826
    %v8930 = vpack.c.b16 %v8829, %v8828
    %v8931 = vpack.c.b16 %v8831, %v8830
    %v8932 = vpack.c.b16 %v8833, %v8832
    %v8933 = vpack.c.b16 %v8835, %v8834
    %v8934 = vpack.c.b16 %v8837, %v8836
    %v8935 = vpack.c.b16 %v8839, %v8838
    %v8936 = vpack.c.b16 %v8841, %v8840
    %v8937 = vpack.c.b16 %v8843, %v8842
    %v8938 = vpack.c.b16 %v8845, %v8844
    %v8939 = vpack.c.b16 %v8847, %v8846
    %v8940 = vpack.c.b16 %v8849, %v8848
    %v8941 = vpack.c.b16 %v8851, %v8850
    %v8942 = vpack.c.b16 %v8853, %v8852
    %v8943 = vpack.c.b16 %v8855, %v8854
    %v8944 = vpack.c.b16 %v8857, %v8856
    %v8945 = vpack.c.b16 %v8859, %v8858
    %v8946 = vpack.c.b16 %v8861, %v8860
    %v8947 = vpack.c.b16 %v8863, %v8862
    %v8948 = vpack.c.b16 %v8865, %v8864
    %v8949 = vpack.c.b16 %v8867, %v8866
    %v8950 = vpack.c.b16 %v8869, %v8868
    %v8951 = vpack.c.b16 %v8871, %v8870
    %v8952 = vpack.c.b16 %v8873, %v8872
    %v8953 = vpack.c.b16 %v8875, %v8874
    %v8954 = vpack.c.b16 %v8877, %v8876
    %v8955 = vpack.c.b16 %v8879, %v8878
    %v8956 = vpack.c.b16 %v8881, %v8880
    %v8957 = vpack.c.b16 %v8883, %v8882
    %v8958 = vpack.c.b16 %v8885, %v8884
    %v8959 = vpack.c.b16 %v8887, %v8886
    %9032 = vmatprep.subr.bf16.mxu0 0
    %9033 = vmatpush1.bf16.msra.mxu0 %v8888
    %9034 = vmatprep.subr.bf16.mxu0 0
    %9035 = vmatpush1.bf16.msra.mxu0 %v8889
    %9036 = vmatprep.subr.bf16.mxu0 0
    %9037 = vmatpush1.bf16.msra.mxu0 %v8890
    %9038 = vmatprep.subr.bf16.mxu0 0
    %9039 = vmatpush1.bf16.msra.mxu0 %v8891
    %9040 = vmatprep.subr.bf16.mxu0 0
    %9041 = vmatpush1.bf16.msra.mxu0 %v8892
    %9042 = vmatprep.subr.bf16.mxu0 0
    %9043 = vmatpush1.bf16.msra.mxu0 %v8893
    %9044 = vmatprep.subr.bf16.mxu0 0
    %9045 = vmatpush1.bf16.msra.mxu0 %v8894
    %9046 = vmatprep.subr.bf16.mxu0 0
    %9047 = vmatpush1.bf16.msra.mxu0 %v8895
    %9048 = vmatprep.subr.bf16.mxu0 0
    %9049 = vmatpush1.bf16.msra.mxu0 %v8896
    %9050 = vmatprep.subr.bf16.mxu0 0
    %9051 = vmatpush1.bf16.msra.mxu0 %v8897
    %9052 = vmatprep.subr.bf16.mxu0 0
    %9053 = vmatpush1.bf16.msra.mxu0 %v8898
    %9054 = vmatprep.subr.bf16.mxu0 0
    %9055 = vmatpush1.bf16.msra.mxu0 %v8899
    %9056 = vmatprep.subr.bf16.mxu0 0
    %9057 = vmatpush1.bf16.msra.mxu0 %v8900
    %9058 = vmatprep.subr.bf16.mxu0 0
    %9059 = vmatpush1.bf16.msra.mxu0 %v8901
    %9060 = vmatprep.subr.bf16.mxu0 0
    %9061 = vmatpush1.bf16.msra.mxu0 %v8902
    %9062 = vmatprep.subr.bf16.mxu0 0
    %9063 = vmatpush1.bf16.msra.mxu0 %v8903
    %9064 = vmatprep.mubr.bf16.mxu0 %v1291
    %9065 = vmatmul.mubr.bf16.gmra.mrb[0].mxu0 %v1149
    %v9066 = vpop.f32.mrb[0].mxu0
    %v9067 = vadd.f32 0.0, %v9066
    %v9068 = vpop.f32.mrb[0].mxu0
    %v9069 = vpop.f32.mrb[0].mxu0
    %v9070 = vadd.f32 0.0, %v9069
    %v9071 = vpop.f32.mrb[0].mxu0
    %9072 = vmatprep.mubr.bf16.mxu0 %v7251
    %9073 = vmatmul.mubr.bf16.gmra.mrb[0].mxu0 %v7112
    %v9074 = vpop.f32.mrb[0].mxu0
    %v9075 = vadd.f32 0.0, %v9074
    %v9076 = vpop.f32.mrb[0].mxu0
    %v9077 = vpop.f32.mrb[0].mxu0
    %v9078 = vadd.f32 0.0, %v9077
    %v9079 = vpop.f32.mrb[0].mxu0
    %9080 = vmatprep.mubr.bf16.mxu0 %v7263
    %9081 = vmatmul.mubr.bf16.gmra.mrb[0].mxu0 %v7113
    %v9082 = vpop.f32.mrb[0].mxu0
    %v9083 = vadd.f32 0.0, %v9082
    %v9084 = vpop.f32.mrb[0].mxu0
    %v9085 = vpop.f32.mrb[0].mxu0
    %v9086 = vadd.f32 0.0, %v9085
    %v9087 = vpop.f32.mrb[0].mxu0
    %9088 = vmatprep.mubr.bf16.mxu0 %v7275
    %9089 = vmatmul.mubr.bf16.gmra.mrb[0].mxu0 %v7114
    %v9090 = vpop.f32.mrb[0].mxu0
    %v9091 = vadd.f32 0.0, %v9090
    %v9092 = vpop.f32.mrb[0].mxu0
    %v9093 = vpop.f32.mrb[0].mxu0
    %v9094 = vadd.f32 0.0, %v9093
    %v9095 = vpop.f32.mrb[0].mxu0
    %9096 = vmatprep.mubr.bf16.mxu0 %v7287
    %9097 = vmatmul.mubr.bf16.gmra.mrb[0].mxu0 %v7115
    %v9098 = vpop.f32.mrb[0].mxu0
    %v9099 = vadd.f32 0.0, %v9098
    %v9100 = vpop.f32.mrb[0].mxu0
    %v9101 = vpop.f32.mrb[0].mxu0
    %v9102 = vadd.f32 0.0, %v9101
    %v9103 = vpop.f32.mrb[0].mxu0
    %9104 = vmatprep.mubr.bf16.mxu0 %v7299
    %9105 = vmatmul.mubr.bf16.gmra.mrb[0].mxu0 %v7116
    %v9106 = vpop.f32.mrb[0].mxu0
    %v9107 = vadd.f32 0.0, %v9106
    %v9108 = vpop.f32.mrb[0].mxu0
    %v9109 = vpop.f32.mrb[0].mxu0
    %v9110 = vadd.f32 0.0, %v9109
    %v9111 = vpop.f32.mrb[0].mxu0
    %9112 = vmatprep.mubr.bf16.mxu0 %v7311
    %9113 = vmatmul.mubr.bf16.gmra.mrb[0].mxu0 %v7117
    %v9114 = vpop.f32.mrb[0].mxu0
    %v9115 = vadd.f32 0.0, %v9114
    %v9116 = vpop.f32.mrb[0].mxu0
    %v9117 = vpop.f32.mrb[0].mxu0
    %v9118 = vadd.f32 0.0, %v9117
    %v9119 = vpop.f32.mrb[0].mxu0
    %9120 = vmatprep.mubr.bf16.mxu0 %v7323
    %9121 = vmatmul.mubr.bf16.gmra.mrb[0].mxu0 %v7118
    %v9122 = vpop.f32.mrb[0].mxu0
    %v9123 = vadd.f32 0.0, %v9122
    %v9124 = vpop.f32.mrb[0].mxu0
    %v9125 = vpop.f32.mrb[0].mxu0
    %v9126 = vadd.f32 0.0, %v9125
    %v9127 = vpop.f32.mrb[0].mxu0
    %9128 = vmatprep.mubr.bf16.mxu0 %v7335
    %9129 = vmatmul.mubr.bf16.gmra.mrb[0].mxu0 %v7119
    %v9130 = vpop.f32.mrb[0].mxu0
    %v9131 = vadd.f32 0.0, %v9130
    %v9132 = vpop.f32.mrb[0].mxu0
    %v9133 = vpop.f32.mrb[0].mxu0
    %v9134 = vadd.f32 0.0, %v9133
    %v9135 = vpop.f32.mrb[0].mxu0
    %9136 = vmatprep.mubr.bf16.mxu0 %v7347
    %9137 = vmatmul.mubr.bf16.gmra.mrb[0].mxu0 %v7120
    %v9138 = vpop.f32.mrb[0].mxu0
    %v9139 = vadd.f32 0.0, %v9138
    %v9140 = vpop.f32.mrb[0].mxu0
    %v9141 = vpop.f32.mrb[0].mxu0
    %v9142 = vadd.f32 0.0, %v9141
    %v9143 = vpop.f32.mrb[0].mxu0
    %9144 = vmatprep.mubr.bf16.mxu0 %v7359
    %9145 = vmatmul.mubr.bf16.gmra.mrb[0].mxu0 %v7121
    %v9146 = vpop.f32.mrb[0].mxu0
    %v9147 = vadd.f32 0.0, %v9146
    %v9148 = vpop.f32.mrb[0].mxu0
    %v9149 = vpop.f32.mrb[0].mxu0
    %v9150 = vadd.f32 0.0, %v9149
    %v9151 = vpop.f32.mrb[0].mxu0
    %9152 = vmatprep.mubr.bf16.mxu0 %v7371
    %9153 = vmatmul.mubr.bf16.gmra.mrb[0].mxu0 %v7122
    %v9154 = vpop.f32.mrb[0].mxu0
    %v9155 = vadd.f32 0.0, %v9154
    %v9156 = vpop.f32.mrb[0].mxu0
    %v9157 = vpop.f32.mrb[0].mxu0
    %v9158 = vadd.f32 0.0, %v9157
    %v9159 = vpop.f32.mrb[0].mxu0
    %9160 = vmatprep.mubr.bf16.mxu0 %v7383
    %9161 = vmatmul.mubr.bf16.gmra.mrb[0].mxu0 %v7123
    %v9162 = vpop.f32.mrb[0].mxu0
    %v9163 = vadd.f32 0.0, %v9162
    %v9164 = vpop.f32.mrb[0].mxu0
    %v9165 = vpop.f32.mrb[0].mxu0
    %v9166 = vadd.f32 0.0, %v9165
    %v9167 = vpop.f32.mrb[0].mxu0
    %9168 = vmatprep.mubr.bf16.mxu0 %v7395
    %9169 = vmatmul.mubr.bf16.gmra.mrb[0].mxu0 %v7124
    %v9170 = vpop.f32.mrb[0].mxu0
    %v9171 = vadd.f32 0.0, %v9170
    %v9172 = vpop.f32.mrb[0].mxu0
    %v9173 = vpop.f32.mrb[0].mxu0
    %v9174 = vadd.f32 0.0, %v9173
    %v9175 = vpop.f32.mrb[0].mxu0
    %9176 = vmatprep.mubr.bf16.mxu0 %v7407
    %9177 = vmatmul.mubr.bf16.gmra.mrb[0].mxu0 %v7125
    %v9178 = vpop.f32.mrb[0].mxu0
    %v9179 = vadd.f32 0.0, %v9178
    %v9180 = vpop.f32.mrb[0].mxu0
    %v9181 = vpop.f32.mrb[0].mxu0
    %v9182 = vadd.f32 0.0, %v9181
    %v9183 = vpop.f32.mrb[0].mxu0
    %9184 = vmatprep.mubr.bf16.mxu0 %v7419
    %9185 = vmatmul.mubr.bf16.gmra.mrb[0].mxu0 %v7126
    %v9186 = vpop.f32.mrb[0].mxu0
    %v9187 = vadd.f32 0.0, %v9186
    %v9188 = vpop.f32.mrb[0].mxu0
    %v9189 = vpop.f32.mrb[0].mxu0
    %v9190 = vadd.f32 0.0, %v9189
    %v9191 = vpop.f32.mrb[0].mxu0
    %9192 = vmatprep.mubr.bf16.mxu0 %v1291
    %9193 = vmatmul.mubr.bf16.gmra.mrb[0].mxu0 %v1149
    %v9194 = vpop.f32.mrb[0].mxu0
    %v9195 = vadd.f32 0.0, %v9194
    %v9196 = vpop.f32.mrb[0].mxu0
    %v9197 = vpop.f32.mrb[0].mxu0
    %v9198 = vadd.f32 0.0, %v9197
    %v9199 = vpop.f32.mrb[0].mxu0
    %9200 = vmatprep.mubr.bf16.mxu0 %v7431
    %9201 = vmatmul.mubr.bf16.gmra.mrb[0].mxu0 %v7128
    %v9202 = vpop.f32.mrb[0].mxu0
    %v9203 = vadd.f32 0.0, %v9202
    %v9204 = vpop.f32.mrb[0].mxu0
    %v9205 = vpop.f32.mrb[0].mxu0
    %v9206 = vadd.f32 0.0, %v9205
    %v9207 = vpop.f32.mrb[0].mxu0
    %9208 = vmatprep.mubr.bf16.mxu0 %v7443
    %9209 = vmatmul.mubr.bf16.gmra.mrb[0].mxu0 %v7129
    %v9210 = vpop.f32.mrb[0].mxu0
    %v9211 = vadd.f32 0.0, %v9210
    %v9212 = vpop.f32.mrb[0].mxu0
    %v9213 = vpop.f32.mrb[0].mxu0
    %v9214 = vadd.f32 0.0, %v9213
    %v9215 = vpop.f32.mrb[0].mxu0
    %9216 = vmatprep.mubr.bf16.mxu0 %v7455
    %9217 = vmatmul.mubr.bf16.gmra.mrb[0].mxu0 %v7130
    %v9218 = vpop.f32.mrb[0].mxu0
    %v9219 = vadd.f32 0.0, %v9218
    %v9220 = vpop.f32.mrb[0].mxu0
    %v9221 = vpop.f32.mrb[0].mxu0
    %v9222 = vadd.f32 0.0, %v9221
    %v9223 = vpop.f32.mrb[0].mxu0
    %9224 = vmatprep.mubr.bf16.mxu0 %v7467
    %9225 = vmatmul.mubr.bf16.gmra.mrb[0].mxu0 %v7131
    %v9226 = vpop.f32.mrb[0].mxu0
    %v9227 = vadd.f32 0.0, %v9226
    %v9228 = vpop.f32.mrb[0].mxu0
    %v9229 = vpop.f32.mrb[0].mxu0
    %v9230 = vadd.f32 0.0, %v9229
    %v9231 = vpop.f32.mrb[0].mxu0
    %9232 = vmatprep.mubr.bf16.mxu0 %v7479
    %9233 = vmatmul.mubr.bf16.gmra.mrb[0].mxu0 %v7132
    %v9234 = vpop.f32.mrb[0].mxu0
    %v9235 = vadd.f32 0.0, %v9234
    %v9236 = vpop.f32.mrb[0].mxu0
    %v9237 = vpop.f32.mrb[0].mxu0
    %v9238 = vadd.f32 0.0, %v9237
    %v9239 = vpop.f32.mrb[0].mxu0
    %9240 = vmatprep.mubr.bf16.mxu0 %v7491
    %9241 = vmatmul.mubr.bf16.gmra.mrb[0].mxu0 %v7133
    %v9242 = vpop.f32.mrb[0].mxu0
    %v9243 = vadd.f32 0.0, %v9242
    %v9244 = vpop.f32.mrb[0].mxu0
    %v9245 = vpop.f32.mrb[0].mxu0
    %v9246 = vadd.f32 0.0, %v9245
    %v9247 = vpop.f32.mrb[0].mxu0
    %9248 = vmatprep.mubr.bf16.mxu0 %v7503
    %9249 = vmatmul.mubr.bf16.gmra.mrb[0].mxu0 %v7134
    %v9250 = vpop.f32.mrb[0].mxu0
    %v9251 = vadd.f32 0.0, %v9250
    %v9252 = vpop.f32.mrb[0].mxu0
    %v9253 = vpop.f32.mrb[0].mxu0
    %v9254 = vadd.f32 0.0, %v9253
    %v9255 = vpop.f32.mrb[0].mxu0
    %9256 = vmatprep.mubr.bf16.mxu0 %v7515
    %9257 = vmatmul.mubr.bf16.gmra.mrb[0].mxu0 %v7135
    %v9258 = vpop.f32.mrb[0].mxu0
    %v9259 = vadd.f32 0.0, %v9258
    %v9260 = vpop.f32.mrb[0].mxu0
    %v9261 = vpop.f32.mrb[0].mxu0
    %v9262 = vadd.f32 0.0, %v9261
    %v9263 = vpop.f32.mrb[0].mxu0
    %9264 = vmatprep.mubr.bf16.mxu0 %v7527
    %9265 = vmatmul.mubr.bf16.gmra.mrb[0].mxu0 %v7136
    %v9266 = vpop.f32.mrb[0].mxu0
    %v9267 = vadd.f32 0.0, %v9266
    %v9268 = vpop.f32.mrb[0].mxu0
    %v9269 = vpop.f32.mrb[0].mxu0
    %v9270 = vadd.f32 0.0, %v9269
    %v9271 = vpop.f32.mrb[0].mxu0
    %9272 = vmatprep.mubr.bf16.mxu0 %v7539
    %9273 = vmatmul.mubr.bf16.gmra.mrb[0].mxu0 %v7137
    %v9274 = vpop.f32.mrb[0].mxu0
    %v9275 = vadd.f32 0.0, %v9274
    %v9276 = vpop.f32.mrb[0].mxu0
    %v9277 = vpop.f32.mrb[0].mxu0
    %v9278 = vadd.f32 0.0, %v9277
    %v9279 = vpop.f32.mrb[0].mxu0
    %9280 = vmatprep.mubr.bf16.mxu0 %v7551
    %9281 = vmatmul.mubr.bf16.gmra.mrb[0].mxu0 %v7138
    %v9282 = vpop.f32.mrb[0].mxu0
    %v9283 = vadd.f32 0.0, %v9282
    %v9284 = vpop.f32.mrb[0].mxu0
    %v9285 = vpop.f32.mrb[0].mxu0
    %v9286 = vadd.f32 0.0, %v9285
    %v9287 = vpop.f32.mrb[0].mxu0
    %9288 = vmatprep.mubr.bf16.mxu0 %v7563
    %9289 = vmatmul.mubr.bf16.gmra.mrb[0].mxu0 %v7139
    %v9290 = vpop.f32.mrb[0].mxu0
    %v9291 = vadd.f32 0.0, %v9290
    %v9292 = vpop.f32.mrb[0].mxu0
    %v9293 = vpop.f32.mrb[0].mxu0
    %v9294 = vadd.f32 0.0, %v9293
    %v9295 = vpop.f32.mrb[0].mxu0
    %9296 = vmatprep.mubr.bf16.mxu0 %v7575
    %9297 = vmatmul.mubr.bf16.gmra.mrb[0].mxu0 %v7140
    %v9298 = vpop.f32.mrb[0].mxu0
    %v9299 = vadd.f32 0.0, %v9298
    %v9300 = vpop.f32.mrb[0].mxu0
    %v9301 = vpop.f32.mrb[0].mxu0
    %v9302 = vadd.f32 0.0, %v9301
    %v9303 = vpop.f32.mrb[0].mxu0
    %9304 = vmatprep.mubr.bf16.mxu0 %v7587
    %9305 = vmatmul.mubr.bf16.gmra.mrb[0].mxu0 %v7141
    %v9306 = vpop.f32.mrb[0].mxu0
    %v9307 = vadd.f32 0.0, %v9306
    %v9308 = vpop.f32.mrb[0].mxu0
    %v9309 = vpop.f32.mrb[0].mxu0
    %v9310 = vadd.f32 0.0, %v9309
    %v9311 = vpop.f32.mrb[0].mxu0
    %9312 = vmatprep.mubr.bf16.mxu0 %v7599
    %9313 = vmatmul.mubr.bf16.gmra.mrb[0].mxu0 %v7142
    %v9314 = vpop.f32.mrb[0].mxu0
    %v9315 = vadd.f32 0.0, %v9314
    %v9316 = vpop.f32.mrb[0].mxu0
    %v9317 = vpop.f32.mrb[0].mxu0
    %v9318 = vadd.f32 0.0, %v9317
    %v9319 = vpop.f32.mrb[0].mxu0
    %9320 = vmatprep.mubr.bf16.mxu0 %v1291
    %9321 = vmatmul.mubr.bf16.gmra.mrb[0].mxu0 %v1149
    %v9322 = vpop.f32.mrb[0].mxu0
    %v9323 = vadd.f32 0.0, %v9322
    %v9324 = vpop.f32.mrb[0].mxu0
    %v9325 = vpop.f32.mrb[0].mxu0
    %v9326 = vadd.f32 0.0, %v9325
    %v9327 = vpop.f32.mrb[0].mxu0
    %9328 = vmatprep.mubr.bf16.mxu0 %v7611
    %9329 = vmatmul.mubr.bf16.gmra.mrb[0].mxu0 %v7144
    %v9330 = vpop.f32.mrb[0].mxu0
    %v9331 = vadd.f32 0.0, %v9330
    %v9332 = vpop.f32.mrb[0].mxu0
    %v9333 = vpop.f32.mrb[0].mxu0
    %v9334 = vadd.f32 0.0, %v9333
    %v9335 = vpop.f32.mrb[0].mxu0
    %9336 = vmatprep.mubr.bf16.mxu0 %v7623
    %9337 = vmatmul.mubr.bf16.gmra.mrb[0].mxu0 %v7145
    %v9338 = vpop.f32.mrb[0].mxu0
    %v9339 = vadd.f32 0.0, %v9338
    %v9340 = vpop.f32.mrb[0].mxu0
    %v9341 = vpop.f32.mrb[0].mxu0
    %v9342 = vadd.f32 0.0, %v9341
    %v9343 = vpop.f32.mrb[0].mxu0
    %9344 = vmatprep.mubr.bf16.mxu0 %v7635
    %9345 = vmatmul.mubr.bf16.gmra.mrb[0].mxu0 %v7146
    %v9346 = vpop.f32.mrb[0].mxu0
    %v9347 = vadd.f32 0.0, %v9346
    %v9348 = vpop.f32.mrb[0].mxu0
    %v9349 = vpop.f32.mrb[0].mxu0
    %v9350 = vadd.f32 0.0, %v9349
    %v9351 = vpop.f32.mrb[0].mxu0
    %9352 = vmatprep.mubr.bf16.mxu0 %v7647
    %9353 = vmatmul.mubr.bf16.gmra.mrb[0].mxu0 %v7147
    %v9354 = vpop.f32.mrb[0].mxu0
    %v9355 = vadd.f32 0.0, %v9354
    %v9356 = vpop.f32.mrb[0].mxu0
    %v9357 = vpop.f32.mrb[0].mxu0
    %v9358 = vadd.f32 0.0, %v9357
    %v9359 = vpop.f32.mrb[0].mxu0
    %9360 = vmatprep.mubr.bf16.mxu0 %v7659
    %9361 = vmatmul.mubr.bf16.gmra.mrb[0].mxu0 %v7148
    %v9362 = vpop.f32.mrb[0].mxu0
    %v9363 = vadd.f32 0.0, %v9362
    %v9364 = vpop.f32.mrb[0].mxu0
    %v9365 = vpop.f32.mrb[0].mxu0
    %v9366 = vadd.f32 0.0, %v9365
    %v9367 = vpop.f32.mrb[0].mxu0
    %9368 = vmatprep.mubr.bf16.mxu0 %v7671
    %9369 = vmatmul.mubr.bf16.gmra.mrb[0].mxu0 %v7149
    %v9370 = vpop.f32.mrb[0].mxu0
    %v9371 = vadd.f32 0.0, %v9370
    %v9372 = vpop.f32.mrb[0].mxu0
    %v9373 = vpop.f32.mrb[0].mxu0
    %v9374 = vadd.f32 0.0, %v9373
    %v9375 = vpop.f32.mrb[0].mxu0
    %9376 = vmatprep.mubr.bf16.mxu0 %v7683
    %9377 = vmatmul.mubr.bf16.gmra.mrb[0].mxu0 %v7150
    %v9378 = vpop.f32.mrb[0].mxu0
    %v9379 = vadd.f32 0.0, %v9378
    %v9380 = vpop.f32.mrb[0].mxu0
    %v9381 = vpop.f32.mrb[0].mxu0
    %v9382 = vadd.f32 0.0, %v9381
    %v9383 = vpop.f32.mrb[0].mxu0
    %9384 = vmatprep.mubr.bf16.mxu0 %v7695
    %9385 = vmatmul.mubr.bf16.gmra.mrb[0].mxu0 %v7151
    %v9386 = vpop.f32.mrb[0].mxu0
    %v9387 = vadd.f32 0.0, %v9386
    %v9388 = vpop.f32.mrb[0].mxu0
    %v9389 = vpop.f32.mrb[0].mxu0
    %v9390 = vadd.f32 0.0, %v9389
    %v9391 = vpop.f32.mrb[0].mxu0
    %9392 = vmatprep.mubr.bf16.mxu0 %v7707
    %9393 = vmatmul.mubr.bf16.gmra.mrb[0].mxu0 %v7152
    %v9394 = vpop.f32.mrb[0].mxu0
    %v9395 = vadd.f32 0.0, %v9394
    %v9396 = vpop.f32.mrb[0].mxu0
    %v9397 = vpop.f32.mrb[0].mxu0
    %v9398 = vadd.f32 0.0, %v9397
    %v9399 = vpop.f32.mrb[0].mxu0
    %9400 = vmatprep.mubr.bf16.mxu0 %v7719
    %9401 = vmatmul.mubr.bf16.gmra.mrb[0].mxu0 %v7153
    %v9402 = vpop.f32.mrb[0].mxu0
    %v9403 = vadd.f32 0.0, %v9402
    %v9404 = vpop.f32.mrb[0].mxu0
    %v9405 = vpop.f32.mrb[0].mxu0
    %v9406 = vadd.f32 0.0, %v9405
    %v9407 = vpop.f32.mrb[0].mxu0
    %9408 = vmatprep.mubr.bf16.mxu0 %v7731
    %9409 = vmatmul.mubr.bf16.gmra.mrb[0].mxu0 %v7154
    %v9410 = vpop.f32.mrb[0].mxu0
    %v9411 = vadd.f32 0.0, %v9410
    %v9412 = vpop.f32.mrb[0].mxu0
    %v9413 = vpop.f32.mrb[0].mxu0
    %v9414 = vadd.f32 0.0, %v9413
    %v9415 = vpop.f32.mrb[0].mxu0
    %9416 = vmatprep.mubr.bf16.mxu0 %v7743
    %9417 = vmatmul.mubr.bf16.gmra.mrb[0].mxu0 %v7155
    %v9418 = vpop.f32.mrb[0].mxu0
    %v9419 = vadd.f32 0.0, %v9418
    %v9420 = vpop.f32.mrb[0].mxu0
    %v9421 = vpop.f32.mrb[0].mxu0
    %v9422 = vadd.f32 0.0, %v9421
    %v9423 = vpop.f32.mrb[0].mxu0
    %9424 = vmatprep.mubr.bf16.mxu0 %v7755
    %9425 = vmatmul.mubr.bf16.gmra.mrb[0].mxu0 %v7156
    %v9426 = vpop.f32.mrb[0].mxu0
    %v9427 = vadd.f32 0.0, %v9426
    %v9428 = vpop.f32.mrb[0].mxu0
    %v9429 = vpop.f32.mrb[0].mxu0
    %v9430 = vadd.f32 0.0, %v9429
    %v9431 = vpop.f32.mrb[0].mxu0
    %9432 = vmatprep.mubr.bf16.mxu0 %v7767
    %9433 = vmatmul.mubr.bf16.gmra.mrb[0].mxu0 %v7157
    %v9434 = vpop.f32.mrb[0].mxu0
    %v9435 = vadd.f32 0.0, %v9434
    %v9436 = vpop.f32.mrb[0].mxu0
    %v9437 = vpop.f32.mrb[0].mxu0
    %v9438 = vadd.f32 0.0, %v9437
    %v9439 = vpop.f32.mrb[0].mxu0
    %9440 = vmatprep.mubr.bf16.mxu0 %v7779
    %9441 = vmatmul.mubr.bf16.gmra.mrb[0].mxu0 %v7158
    %v9442 = vpop.f32.mrb[0].mxu0
    %v9443 = vadd.f32 0.0, %v9442
    %v9444 = vpop.f32.mrb[0].mxu0
    %v9445 = vpop.f32.mrb[0].mxu0
    %v9446 = vadd.f32 0.0, %v9445
    %v9447 = vpop.f32.mrb[0].mxu0
    %9448 = vmatprep.mubr.bf16.mxu0 %v1291
    %9449 = vmatmul.mubr.bf16.gmra.mrb[0].mxu0 %v1149
    %v9450 = vpop.f32.mrb[0].mxu0
    %v9451 = vadd.f32 0.0, %v9450
    %v9452 = vpop.f32.mrb[0].mxu0
    %v9453 = vpop.f32.mrb[0].mxu0
    %v9454 = vadd.f32 0.0, %v9453
    %v9455 = vpop.f32.mrb[0].mxu0
    %9456 = vmatprep.mubr.bf16.mxu0 %v7791
    %9457 = vmatmul.mubr.bf16.gmra.mrb[0].mxu0 %v7160
    %v9458 = vpop.f32.mrb[0].mxu0
    %v9459 = vadd.f32 0.0, %v9458
    %v9460 = vpop.f32.mrb[0].mxu0
    %v9461 = vpop.f32.mrb[0].mxu0
    %v9462 = vadd.f32 0.0, %v9461
    %v9463 = vpop.f32.mrb[0].mxu0
    %9464 = vmatprep.mubr.bf16.mxu0 %v7803
    %9465 = vmatmul.mubr.bf16.gmra.mrb[0].mxu0 %v7161
    %v9466 = vpop.f32.mrb[0].mxu0
    %v9467 = vadd.f32 0.0, %v9466
    %v9468 = vpop.f32.mrb[0].mxu0
    %v9469 = vpop.f32.mrb[0].mxu0
    %v9470 = vadd.f32 0.0, %v9469
    %v9471 = vpop.f32.mrb[0].mxu0
    %9472 = vmatprep.mubr.bf16.mxu0 %v7815
    %9473 = vmatmul.mubr.bf16.gmra.mrb[0].mxu0 %v7162
    %v9474 = vpop.f32.mrb[0].mxu0
    %v9475 = vadd.f32 0.0, %v9474
    %v9476 = vpop.f32.mrb[0].mxu0
    %v9477 = vpop.f32.mrb[0].mxu0
    %v9478 = vadd.f32 0.0, %v9477
    %v9479 = vpop.f32.mrb[0].mxu0
    %9480 = vmatprep.mubr.bf16.mxu0 %v7827
    %9481 = vmatmul.mubr.bf16.gmra.mrb[0].mxu0 %v7163
    %v9482 = vpop.f32.mrb[0].mxu0
    %v9483 = vadd.f32 0.0, %v9482
    %v9484 = vpop.f32.mrb[0].mxu0
    %v9485 = vpop.f32.mrb[0].mxu0
    %v9486 = vadd.f32 0.0, %v9485
    %v9487 = vpop.f32.mrb[0].mxu0
    %9488 = vmatprep.mubr.bf16.mxu0 %v7839
    %9489 = vmatmul.mubr.bf16.gmra.mrb[0].mxu0 %v7164
    %v9490 = vpop.f32.mrb[0].mxu0
    %v9491 = vadd.f32 0.0, %v9490
    %v9492 = vpop.f32.mrb[0].mxu0
    %v9493 = vpop.f32.mrb[0].mxu0
    %v9494 = vadd.f32 0.0, %v9493
    %v9495 = vpop.f32.mrb[0].mxu0
    %9496 = vmatprep.mubr.bf16.mxu0 %v7851
    %9497 = vmatmul.mubr.bf16.gmra.mrb[0].mxu0 %v7165
    %v9498 = vpop.f32.mrb[0].mxu0
    %v9499 = vadd.f32 0.0, %v9498
    %v9500 = vpop.f32.mrb[0].mxu0
    %v9501 = vpop.f32.mrb[0].mxu0
    %v9502 = vadd.f32 0.0, %v9501
    %v9503 = vpop.f32.mrb[0].mxu0
    %9504 = vmatprep.mubr.bf16.mxu0 %v7863
    %9505 = vmatmul.mubr.bf16.gmra.mrb[0].mxu0 %v7166
    %v9506 = vpop.f32.mrb[0].mxu0
    %v9507 = vadd.f32 0.0, %v9506
    %v9508 = vpop.f32.mrb[0].mxu0
    %v9509 = vpop.f32.mrb[0].mxu0
    %v9510 = vadd.f32 0.0, %v9509
    %v9511 = vpop.f32.mrb[0].mxu0
    %9512 = vmatprep.mubr.bf16.mxu0 %v7875
    %9513 = vmatmul.mubr.bf16.gmra.mrb[0].mxu0 %v7167
    %v9514 = vpop.f32.mrb[0].mxu0
    %v9515 = vadd.f32 0.0, %v9514
    %v9516 = vpop.f32.mrb[0].mxu0
    %v9517 = vpop.f32.mrb[0].mxu0
    %v9518 = vadd.f32 0.0, %v9517
    %v9519 = vpop.f32.mrb[0].mxu0
    %9520 = vmatprep.mubr.bf16.mxu0 %v7887
    %9521 = vmatmul.mubr.bf16.gmra.mrb[0].mxu0 %v7168
    %v9522 = vpop.f32.mrb[0].mxu0
    %v9523 = vadd.f32 0.0, %v9522
    %v9524 = vpop.f32.mrb[0].mxu0
    %v9525 = vpop.f32.mrb[0].mxu0
    %v9526 = vadd.f32 0.0, %v9525
    %v9527 = vpop.f32.mrb[0].mxu0
    %9528 = vmatprep.mubr.bf16.mxu0 %v7899
    %9529 = vmatmul.mubr.bf16.gmra.mrb[0].mxu0 %v7169
    %v9530 = vpop.f32.mrb[0].mxu0
    %v9531 = vadd.f32 0.0, %v9530
    %v9532 = vpop.f32.mrb[0].mxu0
    %v9533 = vpop.f32.mrb[0].mxu0
    %v9534 = vadd.f32 0.0, %v9533
    %v9535 = vpop.f32.mrb[0].mxu0
    %9536 = vmatprep.mubr.bf16.mxu0 %v7911
    %9537 = vmatmul.mubr.bf16.gmra.mrb[0].mxu0 %v7170
    %v9538 = vpop.f32.mrb[0].mxu0
    %v9539 = vadd.f32 0.0, %v9538
    %v9540 = vpop.f32.mrb[0].mxu0
    %v9541 = vpop.f32.mrb[0].mxu0
    %v9542 = vadd.f32 0.0, %v9541
    %v9543 = vpop.f32.mrb[0].mxu0
    %9544 = vmatprep.mubr.bf16.mxu0 %v7923
    %9545 = vmatmul.mubr.bf16.gmra.mrb[0].mxu0 %v7171
    %v9546 = vpop.f32.mrb[0].mxu0
    %v9547 = vadd.f32 0.0, %v9546
    %v9548 = vpop.f32.mrb[0].mxu0
    %v9549 = vpop.f32.mrb[0].mxu0
    %v9550 = vadd.f32 0.0, %v9549
    %v9551 = vpop.f32.mrb[0].mxu0
    %9552 = vmatprep.mubr.bf16.mxu0 %v7935
    %9553 = vmatmul.mubr.bf16.gmra.mrb[0].mxu0 %v7172
    %v9554 = vpop.f32.mrb[0].mxu0
    %v9555 = vadd.f32 0.0, %v9554
    %v9556 = vpop.f32.mrb[0].mxu0
    %v9557 = vpop.f32.mrb[0].mxu0
    %v9558 = vadd.f32 0.0, %v9557
    %v9559 = vpop.f32.mrb[0].mxu0
    %9560 = vmatprep.mubr.bf16.mxu0 %v7947
    %9561 = vmatmul.mubr.bf16.gmra.mrb[0].mxu0 %v7173
    %v9562 = vpop.f32.mrb[0].mxu0
    %v9563 = vadd.f32 0.0, %v9562
    %v9564 = vpop.f32.mrb[0].mxu0
    %v9565 = vpop.f32.mrb[0].mxu0
    %v9566 = vadd.f32 0.0, %v9565
    %v9567 = vpop.f32.mrb[0].mxu0
    %9568 = vmatprep.mubr.bf16.mxu0 %v7959
    %9569 = vmatmul.mubr.bf16.gmra.mrb[0].mxu0 %v7174
    %v9570 = vpop.f32.mrb[0].mxu0
    %v9571 = vadd.f32 0.0, %v9570
    %v9572 = vpop.f32.mrb[0].mxu0
    %v9573 = vpop.f32.mrb[0].mxu0
    %v9574 = vadd.f32 0.0, %v9573
    %v9575 = vpop.f32.mrb[0].mxu0
    %9576 = vdwg.mxu0
    %9577 = vmatprep.subr.bf16.mxu0 0
    %9578 = vmatpush1.bf16.msra.mxu0 %v8904
    %9579 = vmatprep.subr.bf16.mxu0 0
    %9580 = vmatpush1.bf16.msra.mxu0 %v8905
    %9581 = vmatprep.subr.bf16.mxu0 0
    %9582 = vmatpush1.bf16.msra.mxu0 %v8906
    %9583 = vmatprep.subr.bf16.mxu0 0
    %9584 = vmatpush1.bf16.msra.mxu0 %v8907
    %9585 = vmatprep.subr.bf16.mxu0 0
    %9586 = vmatpush1.bf16.msra.mxu0 %v8908
    %9587 = vmatprep.subr.bf16.mxu0 0
    %9588 = vmatpush1.bf16.msra.mxu0 %v8909
    %9589 = vmatprep.subr.bf16.mxu0 0
    %9590 = vmatpush1.bf16.msra.mxu0 %v8910
    %9591 = vmatprep.subr.bf16.mxu0 0
    %9592 = vmatpush1.bf16.msra.mxu0 %v8911
    %9593 = vmatprep.subr.bf16.mxu0 0
    %9594 = vmatpush1.bf16.msra.mxu0 %v8912
    %9595 = vmatprep.subr.bf16.mxu0 0
    %9596 = vmatpush1.bf16.msra.mxu0 %v8913
    %9597 = vmatprep.subr.bf16.mxu0 0
    %9598 = vmatpush1.bf16.msra.mxu0 %v8914
    %9599 = vmatprep.subr.bf16.mxu0 0
    %9600 = vmatpush1.bf16.msra.mxu0 %v8915
    %9601 = vmatprep.subr.bf16.mxu0 0
    %9602 = vmatpush1.bf16.msra.mxu0 %v8916
    %9603 = vmatprep.subr.bf16.mxu0 0
    %9604 = vmatpush1.bf16.msra.mxu0 %v8917
    %9605 = vmatprep.subr.bf16.mxu0 0
    %9606 = vmatpush1.bf16.msra.mxu0 %v8918
    %9607 = vmatprep.subr.bf16.mxu0 0
    %9608 = vmatpush1.bf16.msra.mxu0 %v8919
    %9609 = vmatprep.mubr.bf16.mxu0 %v7112
    %9610 = vmatmul.mubr.bf16.gmra.mrb[0].mxu0 %v2198
    %v9611 = vpop.f32.mrb[0].mxu0
    %v9612 = vadd.f32 %v9067, %v9611
    %v9613 = vpop.f32.mrb[0].mxu0
    %v9614 = vpop.f32.mrb[0].mxu0
    %v9615 = vadd.f32 %v9070, %v9614
    %v9616 = vpop.f32.mrb[0].mxu0
    %9617 = vmatprep.mubr.bf16.mxu0 %v7113
    %9618 = vmatmul.mubr.bf16.gmra.mrb[0].mxu0 %v8142
    %v9619 = vpop.f32.mrb[0].mxu0
    %v9620 = vadd.f32 %v9075, %v9619
    %v9621 = vpop.f32.mrb[0].mxu0
    %v9622 = vpop.f32.mrb[0].mxu0
    %v9623 = vadd.f32 %v9078, %v9622
    %v9624 = vpop.f32.mrb[0].mxu0
    %9625 = vmatprep.mubr.bf16.mxu0 %v7114
    %9626 = vmatmul.mubr.bf16.gmra.mrb[0].mxu0 %v8145
    %v9627 = vpop.f32.mrb[0].mxu0
    %v9628 = vadd.f32 %v9083, %v9627
    %v9629 = vpop.f32.mrb[0].mxu0
    %v9630 = vpop.f32.mrb[0].mxu0
    %v9631 = vadd.f32 %v9086, %v9630
    %v9632 = vpop.f32.mrb[0].mxu0
    %9633 = vmatprep.mubr.bf16.mxu0 %v7115
    %9634 = vmatmul.mubr.bf16.gmra.mrb[0].mxu0 %v8148
    %v9635 = vpop.f32.mrb[0].mxu0
    %v9636 = vadd.f32 %v9091, %v9635
    %v9637 = vpop.f32.mrb[0].mxu0
    %v9638 = vpop.f32.mrb[0].mxu0
    %v9639 = vadd.f32 %v9094, %v9638
    %v9640 = vpop.f32.mrb[0].mxu0
    %9641 = vmatprep.mubr.bf16.mxu0 %v7116
    %9642 = vmatmul.mubr.bf16.gmra.mrb[0].mxu0 %v8151
    %v9643 = vpop.f32.mrb[0].mxu0
    %v9644 = vadd.f32 %v9099, %v9643
    %v9645 = vpop.f32.mrb[0].mxu0
    %v9646 = vpop.f32.mrb[0].mxu0
    %v9647 = vadd.f32 %v9102, %v9646
    %v9648 = vpop.f32.mrb[0].mxu0
    %9649 = vmatprep.mubr.bf16.mxu0 %v7117
    %9650 = vmatmul.mubr.bf16.gmra.mrb[0].mxu0 %v8154
    %v9651 = vpop.f32.mrb[0].mxu0
    %v9652 = vadd.f32 %v9107, %v9651
    %v9653 = vpop.f32.mrb[0].mxu0
    %v9654 = vpop.f32.mrb[0].mxu0
    %v9655 = vadd.f32 %v9110, %v9654
    %v9656 = vpop.f32.mrb[0].mxu0
    %9657 = vmatprep.mubr.bf16.mxu0 %v7118
    %9658 = vmatmul.mubr.bf16.gmra.mrb[0].mxu0 %v8157
    %v9659 = vpop.f32.mrb[0].mxu0
    %v9660 = vadd.f32 %v9115, %v9659
    %v9661 = vpop.f32.mrb[0].mxu0
    %v9662 = vpop.f32.mrb[0].mxu0
    %v9663 = vadd.f32 %v9118, %v9662
    %v9664 = vpop.f32.mrb[0].mxu0
    %9665 = vmatprep.mubr.bf16.mxu0 %v7119
    %9666 = vmatmul.mubr.bf16.gmra.mrb[0].mxu0 %v8160
    %v9667 = vpop.f32.mrb[0].mxu0
    %v9668 = vadd.f32 %v9123, %v9667
    %v9669 = vpop.f32.mrb[0].mxu0
    %v9670 = vpop.f32.mrb[0].mxu0
    %v9671 = vadd.f32 %v9126, %v9670
    %v9672 = vpop.f32.mrb[0].mxu0
    %9673 = vmatprep.mubr.bf16.mxu0 %v7120
    %9674 = vmatmul.mubr.bf16.gmra.mrb[0].mxu0 %v8163
    %v9675 = vpop.f32.mrb[0].mxu0
    %v9676 = vadd.f32 %v9131, %v9675
    %v9677 = vpop.f32.mrb[0].mxu0
    %v9678 = vpop.f32.mrb[0].mxu0
    %v9679 = vadd.f32 %v9134, %v9678
    %v9680 = vpop.f32.mrb[0].mxu0
    %9681 = vmatprep.mubr.bf16.mxu0 %v7121
    %9682 = vmatmul.mubr.bf16.gmra.mrb[0].mxu0 %v8166
    %v9683 = vpop.f32.mrb[0].mxu0
    %v9684 = vadd.f32 %v9139, %v9683
    %v9685 = vpop.f32.mrb[0].mxu0
    %v9686 = vpop.f32.mrb[0].mxu0
    %v9687 = vadd.f32 %v9142, %v9686
    %v9688 = vpop.f32.mrb[0].mxu0
    %9689 = vmatprep.mubr.bf16.mxu0 %v7122
    %9690 = vmatmul.mubr.bf16.gmra.mrb[0].mxu0 %v8169
    %v9691 = vpop.f32.mrb[0].mxu0
    %v9692 = vadd.f32 %v9147, %v9691
    %v9693 = vpop.f32.mrb[0].mxu0
    %v9694 = vpop.f32.mrb[0].mxu0
    %v9695 = vadd.f32 %v9150, %v9694
    %v9696 = vpop.f32.mrb[0].mxu0
    %9697 = vmatprep.mubr.bf16.mxu0 %v7123
    %9698 = vmatmul.mubr.bf16.gmra.mrb[0].mxu0 %v8172
    %v9699 = vpop.f32.mrb[0].mxu0
    %v9700 = vadd.f32 %v9155, %v9699
    %v9701 = vpop.f32.mrb[0].mxu0
    %v9702 = vpop.f32.mrb[0].mxu0
    %v9703 = vadd.f32 %v9158, %v9702
    %v9704 = vpop.f32.mrb[0].mxu0
    %9705 = vmatprep.mubr.bf16.mxu0 %v7124
    %9706 = vmatmul.mubr.bf16.gmra.mrb[0].mxu0 %v8175
    %v9707 = vpop.f32.mrb[0].mxu0
    %v9708 = vadd.f32 %v9163, %v9707
    %v9709 = vpop.f32.mrb[0].mxu0
    %v9710 = vpop.f32.mrb[0].mxu0
    %v9711 = vadd.f32 %v9166, %v9710
    %v9712 = vpop.f32.mrb[0].mxu0
    %9713 = vmatprep.mubr.bf16.mxu0 %v7125
    %9714 = vmatmul.mubr.bf16.gmra.mrb[0].mxu0 %v8178
    %v9715 = vpop.f32.mrb[0].mxu0
    %v9716 = vadd.f32 %v9171, %v9715
    %v9717 = vpop.f32.mrb[0].mxu0
    %v9718 = vpop.f32.mrb[0].mxu0
    %v9719 = vadd.f32 %v9174, %v9718
    %v9720 = vpop.f32.mrb[0].mxu0
    %9721 = vmatprep.mubr.bf16.mxu0 %v7126
    %9722 = vmatmul.mubr.bf16.gmra.mrb[0].mxu0 %v8181
    %v9723 = vpop.f32.mrb[0].mxu0
    %v9724 = vadd.f32 %v9179, %v9723
    %v9725 = vpop.f32.mrb[0].mxu0
    %v9726 = vpop.f32.mrb[0].mxu0
    %v9727 = vadd.f32 %v9182, %v9726
    %v9728 = vpop.f32.mrb[0].mxu0
    %9729 = vmatprep.mubr.bf16.mxu0 %v7127
    %9730 = vmatmul.mubr.bf16.gmra.mrb[0].mxu0 %v8184
    %v9731 = vpop.f32.mrb[0].mxu0
    %v9732 = vadd.f32 %v9187, %v9731
    %v9733 = vpop.f32.mrb[0].mxu0
    %v9734 = vpop.f32.mrb[0].mxu0
    %v9735 = vadd.f32 %v9190, %v9734
    %v9736 = vpop.f32.mrb[0].mxu0
    %9737 = vmatprep.mubr.bf16.mxu0 %v7128
    %9738 = vmatmul.mubr.bf16.gmra.mrb[0].mxu0 %v2198
    %v9739 = vpop.f32.mrb[0].mxu0
    %v9740 = vadd.f32 %v9195, %v9739
    %v9741 = vpop.f32.mrb[0].mxu0
    %v9742 = vpop.f32.mrb[0].mxu0
    %v9743 = vadd.f32 %v9198, %v9742
    %v9744 = vpop.f32.mrb[0].mxu0
    %9745 = vmatprep.mubr.bf16.mxu0 %v7129
    %9746 = vmatmul.mubr.bf16.gmra.mrb[0].mxu0 %v8187
    %v9747 = vpop.f32.mrb[0].mxu0
    %v9748 = vadd.f32 %v9203, %v9747
    %v9749 = vpop.f32.mrb[0].mxu0
    %v9750 = vpop.f32.mrb[0].mxu0
    %v9751 = vadd.f32 %v9206, %v9750
    %v9752 = vpop.f32.mrb[0].mxu0
    %9753 = vmatprep.mubr.bf16.mxu0 %v7130
    %9754 = vmatmul.mubr.bf16.gmra.mrb[0].mxu0 %v8190
    %v9755 = vpop.f32.mrb[0].mxu0
    %v9756 = vadd.f32 %v9211, %v9755
    %v9757 = vpop.f32.mrb[0].mxu0
    %v9758 = vpop.f32.mrb[0].mxu0
    %v9759 = vadd.f32 %v9214, %v9758
    %v9760 = vpop.f32.mrb[0].mxu0
    %9761 = vmatprep.mubr.bf16.mxu0 %v7131
    %9762 = vmatmul.mubr.bf16.gmra.mrb[0].mxu0 %v8193
    %v9763 = vpop.f32.mrb[0].mxu0
    %v9764 = vadd.f32 %v9219, %v9763
    %v9765 = vpop.f32.mrb[0].mxu0
    %v9766 = vpop.f32.mrb[0].mxu0
    %v9767 = vadd.f32 %v9222, %v9766
    %v9768 = vpop.f32.mrb[0].mxu0
    %9769 = vmatprep.mubr.bf16.mxu0 %v7132
    %9770 = vmatmul.mubr.bf16.gmra.mrb[0].mxu0 %v8196
    %v9771 = vpop.f32.mrb[0].mxu0
    %v9772 = vadd.f32 %v9227, %v9771
    %v9773 = vpop.f32.mrb[0].mxu0
    %v9774 = vpop.f32.mrb[0].mxu0
    %v9775 = vadd.f32 %v9230, %v9774
    %v9776 = vpop.f32.mrb[0].mxu0
    %9777 = vmatprep.mubr.bf16.mxu0 %v7133
    %9778 = vmatmul.mubr.bf16.gmra.mrb[0].mxu0 %v8199
    %v9779 = vpop.f32.mrb[0].mxu0
    %v9780 = vadd.f32 %v9235, %v9779
    %v9781 = vpop.f32.mrb[0].mxu0
    %v9782 = vpop.f32.mrb[0].mxu0
    %v9783 = vadd.f32 %v9238, %v9782
    %v9784 = vpop.f32.mrb[0].mxu0
    %9785 = vmatprep.mubr.bf16.mxu0 %v7134
    %9786 = vmatmul.mubr.bf16.gmra.mrb[0].mxu0 %v8202
    %v9787 = vpop.f32.mrb[0].mxu0
    %v9788 = vadd.f32 %v9243, %v9787
    %v9789 = vpop.f32.mrb[0].mxu0
    %v9790 = vpop.f32.mrb[0].mxu0
    %v9791 = vadd.f32 %v9246, %v9790
    %v9792 = vpop.f32.mrb[0].mxu0
    %9793 = vmatprep.mubr.bf16.mxu0 %v7135
    %9794 = vmatmul.mubr.bf16.gmra.mrb[0].mxu0 %v8205
    %v9795 = vpop.f32.mrb[0].mxu0
    %v9796 = vadd.f32 %v9251, %v9795
    %v9797 = vpop.f32.mrb[0].mxu0
    %v9798 = vpop.f32.mrb[0].mxu0
    %v9799 = vadd.f32 %v9254, %v9798
    %v9800 = vpop.f32.mrb[0].mxu0
    %9801 = vmatprep.mubr.bf16.mxu0 %v7136
    %9802 = vmatmul.mubr.bf16.gmra.mrb[0].mxu0 %v8208
    %v9803 = vpop.f32.mrb[0].mxu0
    %v9804 = vadd.f32 %v9259, %v9803
    %v9805 = vpop.f32.mrb[0].mxu0
    %v9806 = vpop.f32.mrb[0].mxu0
    %v9807 = vadd.f32 %v9262, %v9806
    %v9808 = vpop.f32.mrb[0].mxu0
    %9809 = vmatprep.mubr.bf16.mxu0 %v7137
    %9810 = vmatmul.mubr.bf16.gmra.mrb[0].mxu0 %v8211
    %v9811 = vpop.f32.mrb[0].mxu0
    %v9812 = vadd.f32 %v9267, %v9811
    %v9813 = vpop.f32.mrb[0].mxu0
    %v9814 = vpop.f32.mrb[0].mxu0
    %v9815 = vadd.f32 %v9270, %v9814
    %v9816 = vpop.f32.mrb[0].mxu0
    %9817 = vmatprep.mubr.bf16.mxu0 %v7138
    %9818 = vmatmul.mubr.bf16.gmra.mrb[0].mxu0 %v8214
    %v9819 = vpop.f32.mrb[0].mxu0
    %v9820 = vadd.f32 %v9275, %v9819
    %v9821 = vpop.f32.mrb[0].mxu0
    %v9822 = vpop.f32.mrb[0].mxu0
    %v9823 = vadd.f32 %v9278, %v9822
    %v9824 = vpop.f32.mrb[0].mxu0
    %9825 = vmatprep.mubr.bf16.mxu0 %v7139
    %9826 = vmatmul.mubr.bf16.gmra.mrb[0].mxu0 %v8217
    %v9827 = vpop.f32.mrb[0].mxu0
    %v9828 = vadd.f32 %v9283, %v9827
    %v9829 = vpop.f32.mrb[0].mxu0
    %v9830 = vpop.f32.mrb[0].mxu0
    %v9831 = vadd.f32 %v9286, %v9830
    %v9832 = vpop.f32.mrb[0].mxu0
    %9833 = vmatprep.mubr.bf16.mxu0 %v7140
    %9834 = vmatmul.mubr.bf16.gmra.mrb[0].mxu0 %v8220
    %v9835 = vpop.f32.mrb[0].mxu0
    %v9836 = vadd.f32 %v9291, %v9835
    %v9837 = vpop.f32.mrb[0].mxu0
    %v9838 = vpop.f32.mrb[0].mxu0
    %v9839 = vadd.f32 %v9294, %v9838
    %v9840 = vpop.f32.mrb[0].mxu0
    %9841 = vmatprep.mubr.bf16.mxu0 %v7141
    %9842 = vmatmul.mubr.bf16.gmra.mrb[0].mxu0 %v8223
    %v9843 = vpop.f32.mrb[0].mxu0
    %v9844 = vadd.f32 %v9299, %v9843
    %v9845 = vpop.f32.mrb[0].mxu0
    %v9846 = vpop.f32.mrb[0].mxu0
    %v9847 = vadd.f32 %v9302, %v9846
    %v9848 = vpop.f32.mrb[0].mxu0
    %9849 = vmatprep.mubr.bf16.mxu0 %v7142
    %9850 = vmatmul.mubr.bf16.gmra.mrb[0].mxu0 %v8226
    %v9851 = vpop.f32.mrb[0].mxu0
    %v9852 = vadd.f32 %v9307, %v9851
    %v9853 = vpop.f32.mrb[0].mxu0
    %v9854 = vpop.f32.mrb[0].mxu0
    %v9855 = vadd.f32 %v9310, %v9854
    %v9856 = vpop.f32.mrb[0].mxu0
    %9857 = vmatprep.mubr.bf16.mxu0 %v7143
    %9858 = vmatmul.mubr.bf16.gmra.mrb[0].mxu0 %v8229
    %v9859 = vpop.f32.mrb[0].mxu0
    %v9860 = vadd.f32 %v9315, %v9859
    %v9861 = vpop.f32.mrb[0].mxu0
    %v9862 = vpop.f32.mrb[0].mxu0
    %v9863 = vadd.f32 %v9318, %v9862
    %v9864 = vpop.f32.mrb[0].mxu0
    %9865 = vmatprep.mubr.bf16.mxu0 %v7144
    %9866 = vmatmul.mubr.bf16.gmra.mrb[0].mxu0 %v2198
    %v9867 = vpop.f32.mrb[0].mxu0
    %v9868 = vadd.f32 %v9323, %v9867
    %v9869 = vpop.f32.mrb[0].mxu0
    %v9870 = vpop.f32.mrb[0].mxu0
    %v9871 = vadd.f32 %v9326, %v9870
    %v9872 = vpop.f32.mrb[0].mxu0
    %9873 = vmatprep.mubr.bf16.mxu0 %v7145
    %9874 = vmatmul.mubr.bf16.gmra.mrb[0].mxu0 %v8232
    %v9875 = vpop.f32.mrb[0].mxu0
    %v9876 = vadd.f32 %v9331, %v9875
    %v9877 = vpop.f32.mrb[0].mxu0
    %v9878 = vpop.f32.mrb[0].mxu0
    %v9879 = vadd.f32 %v9334, %v9878
    %v9880 = vpop.f32.mrb[0].mxu0
    %9881 = vmatprep.mubr.bf16.mxu0 %v7146
    %9882 = vmatmul.mubr.bf16.gmra.mrb[0].mxu0 %v8235
    %v9883 = vpop.f32.mrb[0].mxu0
    %v9884 = vadd.f32 %v9339, %v9883
    %v9885 = vpop.f32.mrb[0].mxu0
    %v9886 = vpop.f32.mrb[0].mxu0
    %v9887 = vadd.f32 %v9342, %v9886
    %v9888 = vpop.f32.mrb[0].mxu0
    %9889 = vmatprep.mubr.bf16.mxu0 %v7147
    %9890 = vmatmul.mubr.bf16.gmra.mrb[0].mxu0 %v8238
    %v9891 = vpop.f32.mrb[0].mxu0
    %v9892 = vadd.f32 %v9347, %v9891
    %v9893 = vpop.f32.mrb[0].mxu0
    %v9894 = vpop.f32.mrb[0].mxu0
    %v9895 = vadd.f32 %v9350, %v9894
    %v9896 = vpop.f32.mrb[0].mxu0
    %9897 = vmatprep.mubr.bf16.mxu0 %v7148
    %9898 = vmatmul.mubr.bf16.gmra.mrb[0].mxu0 %v8241
    %v9899 = vpop.f32.mrb[0].mxu0
    %v9900 = vadd.f32 %v9355, %v9899
    %v9901 = vpop.f32.mrb[0].mxu0
    %v9902 = vpop.f32.mrb[0].mxu0
    %v9903 = vadd.f32 %v9358, %v9902
    %v9904 = vpop.f32.mrb[0].mxu0
    %9905 = vmatprep.mubr.bf16.mxu0 %v7149
    %9906 = vmatmul.mubr.bf16.gmra.mrb[0].mxu0 %v8244
    %v9907 = vpop.f32.mrb[0].mxu0
    %v9908 = vadd.f32 %v9363, %v9907
    %v9909 = vpop.f32.mrb[0].mxu0
    %v9910 = vpop.f32.mrb[0].mxu0
    %v9911 = vadd.f32 %v9366, %v9910
    %v9912 = vpop.f32.mrb[0].mxu0
    %9913 = vmatprep.mubr.bf16.mxu0 %v7150
    %9914 = vmatmul.mubr.bf16.gmra.mrb[0].mxu0 %v8247
    %v9915 = vpop.f32.mrb[0].mxu0
    %v9916 = vadd.f32 %v9371, %v9915
    %v9917 = vpop.f32.mrb[0].mxu0
    %v9918 = vpop.f32.mrb[0].mxu0
    %v9919 = vadd.f32 %v9374, %v9918
    %v9920 = vpop.f32.mrb[0].mxu0
    %9921 = vmatprep.mubr.bf16.mxu0 %v7151
    %9922 = vmatmul.mubr.bf16.gmra.mrb[0].mxu0 %v8250
    %v9923 = vpop.f32.mrb[0].mxu0
    %v9924 = vadd.f32 %v9379, %v9923
    %v9925 = vpop.f32.mrb[0].mxu0
    %v9926 = vpop.f32.mrb[0].mxu0
    %v9927 = vadd.f32 %v9382, %v9926
    %v9928 = vpop.f32.mrb[0].mxu0
    %9929 = vmatprep.mubr.bf16.mxu0 %v7152
    %9930 = vmatmul.mubr.bf16.gmra.mrb[0].mxu0 %v8253
    %v9931 = vpop.f32.mrb[0].mxu0
    %v9932 = vadd.f32 %v9387, %v9931
    %v9933 = vpop.f32.mrb[0].mxu0
    %v9934 = vpop.f32.mrb[0].mxu0
    %v9935 = vadd.f32 %v9390, %v9934
    %v9936 = vpop.f32.mrb[0].mxu0
    %9937 = vmatprep.mubr.bf16.mxu0 %v7153
    %9938 = vmatmul.mubr.bf16.gmra.mrb[0].mxu0 %v8256
    %v9939 = vpop.f32.mrb[0].mxu0
    %v9940 = vadd.f32 %v9395, %v9939
    %v9941 = vpop.f32.mrb[0].mxu0
    %v9942 = vpop.f32.mrb[0].mxu0
    %v9943 = vadd.f32 %v9398, %v9942
    %v9944 = vpop.f32.mrb[0].mxu0
    %9945 = vmatprep.mubr.bf16.mxu0 %v7154
    %9946 = vmatmul.mubr.bf16.gmra.mrb[0].mxu0 %v8259
    %v9947 = vpop.f32.mrb[0].mxu0
    %v9948 = vadd.f32 %v9403, %v9947
    %v9949 = vpop.f32.mrb[0].mxu0
    %v9950 = vpop.f32.mrb[0].mxu0
    %v9951 = vadd.f32 %v9406, %v9950
    %v9952 = vpop.f32.mrb[0].mxu0
    %9953 = vmatprep.mubr.bf16.mxu0 %v7155
    %9954 = vmatmul.mubr.bf16.gmra.mrb[0].mxu0 %v8262
    %v9955 = vpop.f32.mrb[0].mxu0
    %v9956 = vadd.f32 %v9411, %v9955
    %v9957 = vpop.f32.mrb[0].mxu0
    %v9958 = vpop.f32.mrb[0].mxu0
    %v9959 = vadd.f32 %v9414, %v9958
    %v9960 = vpop.f32.mrb[0].mxu0
    %9961 = vmatprep.mubr.bf16.mxu0 %v7156
    %9962 = vmatmul.mubr.bf16.gmra.mrb[0].mxu0 %v8265
    %v9963 = vpop.f32.mrb[0].mxu0
    %v9964 = vadd.f32 %v9419, %v9963
    %v9965 = vpop.f32.mrb[0].mxu0
    %v9966 = vpop.f32.mrb[0].mxu0
    %v9967 = vadd.f32 %v9422, %v9966
    %v9968 = vpop.f32.mrb[0].mxu0
    %9969 = vmatprep.mubr.bf16.mxu0 %v7157
    %9970 = vmatmul.mubr.bf16.gmra.mrb[0].mxu0 %v8268
    %v9971 = vpop.f32.mrb[0].mxu0
    %v9972 = vadd.f32 %v9427, %v9971
    %v9973 = vpop.f32.mrb[0].mxu0
    %v9974 = vpop.f32.mrb[0].mxu0
    %v9975 = vadd.f32 %v9430, %v9974
    %v9976 = vpop.f32.mrb[0].mxu0
    %9977 = vmatprep.mubr.bf16.mxu0 %v7158
    %9978 = vmatmul.mubr.bf16.gmra.mrb[0].mxu0 %v8271
    %v9979 = vpop.f32.mrb[0].mxu0
    %v9980 = vadd.f32 %v9435, %v9979
    %v9981 = vpop.f32.mrb[0].mxu0
    %v9982 = vpop.f32.mrb[0].mxu0
    %v9983 = vadd.f32 %v9438, %v9982
    %v9984 = vpop.f32.mrb[0].mxu0
    %9985 = vmatprep.mubr.bf16.mxu0 %v7159
    %9986 = vmatmul.mubr.bf16.gmra.mrb[0].mxu0 %v8274
    %v9987 = vpop.f32.mrb[0].mxu0
    %v9988 = vadd.f32 %v9443, %v9987
    %v9989 = vpop.f32.mrb[0].mxu0
    %v9990 = vpop.f32.mrb[0].mxu0
    %v9991 = vadd.f32 %v9446, %v9990
    %v9992 = vpop.f32.mrb[0].mxu0
    %9993 = vmatprep.mubr.bf16.mxu0 %v7160
    %9994 = vmatmul.mubr.bf16.gmra.mrb[0].mxu0 %v2198
    %v9995 = vpop.f32.mrb[0].mxu0
    %v9996 = vadd.f32 %v9451, %v9995
    %v9997 = vpop.f32.mrb[0].mxu0
    %v9998 = vpop.f32.mrb[0].mxu0
    %v9999 = vadd.f32 %v9454, %v9998
    %v10000 = vpop.f32.mrb[0].mxu0
    %10001 = vmatprep.mubr.bf16.mxu0 %v7161
    %10002 = vmatmul.mubr.bf16.gmra.mrb[0].mxu0 %v8277
    %v10003 = vpop.f32.mrb[0].mxu0
    %v10004 = vadd.f32 %v9459, %v10003
    %v10005 = vpop.f32.mrb[0].mxu0
    %v10006 = vpop.f32.mrb[0].mxu0
    %v10007 = vadd.f32 %v9462, %v10006
    %v10008 = vpop.f32.mrb[0].mxu0
    %10009 = vmatprep.mubr.bf16.mxu0 %v7162
    %10010 = vmatmul.mubr.bf16.gmra.mrb[0].mxu0 %v8280
    %v10011 = vpop.f32.mrb[0].mxu0
    %v10012 = vadd.f32 %v9467, %v10011
    %v10013 = vpop.f32.mrb[0].mxu0
    %v10014 = vpop.f32.mrb[0].mxu0
    %v10015 = vadd.f32 %v9470, %v10014
    %v10016 = vpop.f32.mrb[0].mxu0
    %10017 = vmatprep.mubr.bf16.mxu0 %v7163
    %10018 = vmatmul.mubr.bf16.gmra.mrb[0].mxu0 %v8283
    %v10019 = vpop.f32.mrb[0].mxu0
    %v10020 = vadd.f32 %v9475, %v10019
    %v10021 = vpop.f32.mrb[0].mxu0
    %v10022 = vpop.f32.mrb[0].mxu0
    %v10023 = vadd.f32 %v9478, %v10022
    %v10024 = vpop.f32.mrb[0].mxu0
    %10025 = vmatprep.mubr.bf16.mxu0 %v7164
    %10026 = vmatmul.mubr.bf16.gmra.mrb[0].mxu0 %v8286
    %v10027 = vpop.f32.mrb[0].mxu0
    %v10028 = vadd.f32 %v9483, %v10027
    %v10029 = vpop.f32.mrb[0].mxu0
    %v10030 = vpop.f32.mrb[0].mxu0
    %v10031 = vadd.f32 %v9486, %v10030
    %v10032 = vpop.f32.mrb[0].mxu0
    %10033 = vmatprep.mubr.bf16.mxu0 %v7165
    %10034 = vmatmul.mubr.bf16.gmra.mrb[0].mxu0 %v8289
    %v10035 = vpop.f32.mrb[0].mxu0
    %v10036 = vadd.f32 %v9491, %v10035
    %v10037 = vpop.f32.mrb[0].mxu0
    %v10038 = vpop.f32.mrb[0].mxu0
    %v10039 = vadd.f32 %v9494, %v10038
    %v10040 = vpop.f32.mrb[0].mxu0
    %10041 = vmatprep.mubr.bf16.mxu0 %v7166
    %10042 = vmatmul.mubr.bf16.gmra.mrb[0].mxu0 %v8292
    %v10043 = vpop.f32.mrb[0].mxu0
    %v10044 = vadd.f32 %v9499, %v10043
    %v10045 = vpop.f32.mrb[0].mxu0
    %v10046 = vpop.f32.mrb[0].mxu0
    %v10047 = vadd.f32 %v9502, %v10046
    %v10048 = vpop.f32.mrb[0].mxu0
    %10049 = vmatprep.mubr.bf16.mxu0 %v7167
    %10050 = vmatmul.mubr.bf16.gmra.mrb[0].mxu0 %v8295
    %v10051 = vpop.f32.mrb[0].mxu0
    %v10052 = vadd.f32 %v9507, %v10051
    %v10053 = vpop.f32.mrb[0].mxu0
    %v10054 = vpop.f32.mrb[0].mxu0
    %v10055 = vadd.f32 %v9510, %v10054
    %v10056 = vpop.f32.mrb[0].mxu0
    %10057 = vmatprep.mubr.bf16.mxu0 %v7168
    %10058 = vmatmul.mubr.bf16.gmra.mrb[0].mxu0 %v8298
    %v10059 = vpop.f32.mrb[0].mxu0
    %v10060 = vadd.f32 %v9515, %v10059
    %v10061 = vpop.f32.mrb[0].mxu0
    %v10062 = vpop.f32.mrb[0].mxu0
    %v10063 = vadd.f32 %v9518, %v10062
    %v10064 = vpop.f32.mrb[0].mxu0
    %10065 = vmatprep.mubr.bf16.mxu0 %v7169
    %10066 = vmatmul.mubr.bf16.gmra.mrb[0].mxu0 %v8301
    %v10067 = vpop.f32.mrb[0].mxu0
    %v10068 = vadd.f32 %v9523, %v10067
    %v10069 = vpop.f32.mrb[0].mxu0
    %v10070 = vpop.f32.mrb[0].mxu0
    %v10071 = vadd.f32 %v9526, %v10070
    %v10072 = vpop.f32.mrb[0].mxu0
    %10073 = vmatprep.mubr.bf16.mxu0 %v7170
    %10074 = vmatmul.mubr.bf16.gmra.mrb[0].mxu0 %v8304
    %v10075 = vpop.f32.mrb[0].mxu0
    %v10076 = vadd.f32 %v9531, %v10075
    %v10077 = vpop.f32.mrb[0].mxu0
    %v10078 = vpop.f32.mrb[0].mxu0
    %v10079 = vadd.f32 %v9534, %v10078
    %v10080 = vpop.f32.mrb[0].mxu0
    %10081 = vmatprep.mubr.bf16.mxu0 %v7171
    %10082 = vmatmul.mubr.bf16.gmra.mrb[0].mxu0 %v8307
    %v10083 = vpop.f32.mrb[0].mxu0
    %v10084 = vadd.f32 %v9539, %v10083
    %v10085 = vpop.f32.mrb[0].mxu0
    %v10086 = vpop.f32.mrb[0].mxu0
    %v10087 = vadd.f32 %v9542, %v10086
    %v10088 = vpop.f32.mrb[0].mxu0
    %10089 = vmatprep.mubr.bf16.mxu0 %v7172
    %10090 = vmatmul.mubr.bf16.gmra.mrb[0].mxu0 %v8310
    %v10091 = vpop.f32.mrb[0].mxu0
    %v10092 = vadd.f32 %v9547, %v10091
    %v10093 = vpop.f32.mrb[0].mxu0
    %v10094 = vpop.f32.mrb[0].mxu0
    %v10095 = vadd.f32 %v9550, %v10094
    %v10096 = vpop.f32.mrb[0].mxu0
    %10097 = vmatprep.mubr.bf16.mxu0 %v7173
    %10098 = vmatmul.mubr.bf16.gmra.mrb[0].mxu0 %v8313
    %v10099 = vpop.f32.mrb[0].mxu0
    %v10100 = vadd.f32 %v9555, %v10099
    %v10101 = vpop.f32.mrb[0].mxu0
    %v10102 = vpop.f32.mrb[0].mxu0
    %v10103 = vadd.f32 %v9558, %v10102
    %v10104 = vpop.f32.mrb[0].mxu0
    %10105 = vmatprep.mubr.bf16.mxu0 %v7174
    %10106 = vmatmul.mubr.bf16.gmra.mrb[0].mxu0 %v8316
    %v10107 = vpop.f32.mrb[0].mxu0
    %v10108 = vadd.f32 %v9563, %v10107
    %v10109 = vpop.f32.mrb[0].mxu0
    %v10110 = vpop.f32.mrb[0].mxu0
    %v10111 = vadd.f32 %v9566, %v10110
    %v10112 = vpop.f32.mrb[0].mxu0
    %10113 = vmatprep.mubr.bf16.mxu0 %v7175
    %10114 = vmatmul.mubr.bf16.gmra.mrb[0].mxu0 %v8319
    %v10115 = vpop.f32.mrb[0].mxu0
    %v10116 = vadd.f32 %v9571, %v10115
    %v10117 = vpop.f32.mrb[0].mxu0
    %v10118 = vpop.f32.mrb[0].mxu0
    %v10119 = vadd.f32 %v9574, %v10118
    %v10120 = vpop.f32.mrb[0].mxu0
    %10121 = vdwg.mxu0
    %10122 = vmatprep.subr.bf16.mxu0 0
    %10123 = vmatpush1.bf16.msra.mxu0 %v8920
    %10124 = vmatprep.subr.bf16.mxu0 0
    %10125 = vmatpush1.bf16.msra.mxu0 %v8921
    %10126 = vmatprep.subr.bf16.mxu0 0
    %10127 = vmatpush1.bf16.msra.mxu0 %v8922
    %10128 = vmatprep.subr.bf16.mxu0 0
    %10129 = vmatpush1.bf16.msra.mxu0 %v8923
    %10130 = vmatprep.subr.bf16.mxu0 0
    %10131 = vmatpush1.bf16.msra.mxu0 %v8924
    %10132 = vmatprep.subr.bf16.mxu0 0
    %10133 = vmatpush1.bf16.msra.mxu0 %v8925
    %10134 = vmatprep.subr.bf16.mxu0 0
    %10135 = vmatpush1.bf16.msra.mxu0 %v8926
    %10136 = vmatprep.subr.bf16.mxu0 0
    %10137 = vmatpush1.bf16.msra.mxu0 %v8927
    %10138 = vmatprep.subr.bf16.mxu0 0
    %10139 = vmatpush1.bf16.msra.mxu0 %v8928
    %10140 = vmatprep.subr.bf16.mxu0 0
    %10141 = vmatpush1.bf16.msra.mxu0 %v8929
    %10142 = vmatprep.subr.bf16.mxu0 0
    %10143 = vmatpush1.bf16.msra.mxu0 %v8930
    %10144 = vmatprep.subr.bf16.mxu0 0
    %10145 = vmatpush1.bf16.msra.mxu0 %v8931
    %10146 = vmatprep.subr.bf16.mxu0 0
    %10147 = vmatpush1.bf16.msra.mxu0 %v8932
    %10148 = vmatprep.subr.bf16.mxu0 0
    %10149 = vmatpush1.bf16.msra.mxu0 %v8933
    %10150 = vmatprep.subr.bf16.mxu0 0
    %10151 = vmatpush1.bf16.msra.mxu0 %v8934
    %10152 = vmatprep.subr.bf16.mxu0 0
    %10153 = vmatpush1.bf16.msra.mxu0 %v8935
    %10154 = vmatprep.mubr.bf16.mxu0 %v8142
    %10155 = vmatmul.mubr.bf16.gmra.mrb[0].mxu0 %v7251
    %v10156 = vpop.f32.mrb[0].mxu0
    %v10157 = vadd.f32 %v9612, %v10156
    %v10158 = vpop.f32.mrb[0].mxu0
    %v10159 = vpop.f32.mrb[0].mxu0
    %v10160 = vadd.f32 %v9615, %v10159
    %v10161 = vpop.f32.mrb[0].mxu0
    %10162 = vmatprep.mubr.bf16.mxu0 %v8145
    %10163 = vmatmul.mubr.bf16.gmra.mrb[0].mxu0 %v7263
    %v10164 = vpop.f32.mrb[0].mxu0
    %v10165 = vadd.f32 %v9620, %v10164
    %v10166 = vpop.f32.mrb[0].mxu0
    %v10167 = vpop.f32.mrb[0].mxu0
    %v10168 = vadd.f32 %v9623, %v10167
    %v10169 = vpop.f32.mrb[0].mxu0
    %10170 = vmatprep.mubr.bf16.mxu0 %v8148
    %10171 = vmatmul.mubr.bf16.gmra.mrb[0].mxu0 %v7275
    %v10172 = vpop.f32.mrb[0].mxu0
    %v10173 = vadd.f32 %v9628, %v10172
    %v10174 = vpop.f32.mrb[0].mxu0
    %v10175 = vpop.f32.mrb[0].mxu0
    %v10176 = vadd.f32 %v9631, %v10175
    %v10177 = vpop.f32.mrb[0].mxu0
    %10178 = vmatprep.mubr.bf16.mxu0 %v8151
    %10179 = vmatmul.mubr.bf16.gmra.mrb[0].mxu0 %v7287
    %v10180 = vpop.f32.mrb[0].mxu0
    %v10181 = vadd.f32 %v9636, %v10180
    %v10182 = vpop.f32.mrb[0].mxu0
    %v10183 = vpop.f32.mrb[0].mxu0
    %v10184 = vadd.f32 %v9639, %v10183
    %v10185 = vpop.f32.mrb[0].mxu0
    %10186 = vmatprep.mubr.bf16.mxu0 %v8154
    %10187 = vmatmul.mubr.bf16.gmra.mrb[0].mxu0 %v7299
    %v10188 = vpop.f32.mrb[0].mxu0
    %v10189 = vadd.f32 %v9644, %v10188
    %v10190 = vpop.f32.mrb[0].mxu0
    %v10191 = vpop.f32.mrb[0].mxu0
    %v10192 = vadd.f32 %v9647, %v10191
    %v10193 = vpop.f32.mrb[0].mxu0
    %10194 = vmatprep.mubr.bf16.mxu0 %v8157
    %10195 = vmatmul.mubr.bf16.gmra.mrb[0].mxu0 %v7311
    %v10196 = vpop.f32.mrb[0].mxu0
    %v10197 = vadd.f32 %v9652, %v10196
    %v10198 = vpop.f32.mrb[0].mxu0
    %v10199 = vpop.f32.mrb[0].mxu0
    %v10200 = vadd.f32 %v9655, %v10199
    %v10201 = vpop.f32.mrb[0].mxu0
    %10202 = vmatprep.mubr.bf16.mxu0 %v8160
    %10203 = vmatmul.mubr.bf16.gmra.mrb[0].mxu0 %v7323
    %v10204 = vpop.f32.mrb[0].mxu0
    %v10205 = vadd.f32 %v9660, %v10204
    %v10206 = vpop.f32.mrb[0].mxu0
    %v10207 = vpop.f32.mrb[0].mxu0
    %v10208 = vadd.f32 %v9663, %v10207
    %v10209 = vpop.f32.mrb[0].mxu0
    %10210 = vmatprep.mubr.bf16.mxu0 %v8163
    %10211 = vmatmul.mubr.bf16.gmra.mrb[0].mxu0 %v7335
    %v10212 = vpop.f32.mrb[0].mxu0
    %v10213 = vadd.f32 %v9668, %v10212
    %v10214 = vpop.f32.mrb[0].mxu0
    %v10215 = vpop.f32.mrb[0].mxu0
    %v10216 = vadd.f32 %v9671, %v10215
    %v10217 = vpop.f32.mrb[0].mxu0
    %10218 = vmatprep.mubr.bf16.mxu0 %v8166
    %10219 = vmatmul.mubr.bf16.gmra.mrb[0].mxu0 %v7347
    %v10220 = vpop.f32.mrb[0].mxu0
    %v10221 = vadd.f32 %v9676, %v10220
    %v10222 = vpop.f32.mrb[0].mxu0
    %v10223 = vpop.f32.mrb[0].mxu0
    %v10224 = vadd.f32 %v9679, %v10223
    %v10225 = vpop.f32.mrb[0].mxu0
    %10226 = vmatprep.mubr.bf16.mxu0 %v8169
    %10227 = vmatmul.mubr.bf16.gmra.mrb[0].mxu0 %v7359
    %v10228 = vpop.f32.mrb[0].mxu0
    %v10229 = vadd.f32 %v9684, %v10228
    %v10230 = vpop.f32.mrb[0].mxu0
    %v10231 = vpop.f32.mrb[0].mxu0
    %v10232 = vadd.f32 %v9687, %v10231
    %v10233 = vpop.f32.mrb[0].mxu0
    %10234 = vmatprep.mubr.bf16.mxu0 %v8172
    %10235 = vmatmul.mubr.bf16.gmra.mrb[0].mxu0 %v7371
    %v10236 = vpop.f32.mrb[0].mxu0
    %v10237 = vadd.f32 %v9692, %v10236
    %v10238 = vpop.f32.mrb[0].mxu0
    %v10239 = vpop.f32.mrb[0].mxu0
    %v10240 = vadd.f32 %v9695, %v10239
    %v10241 = vpop.f32.mrb[0].mxu0
    %10242 = vmatprep.mubr.bf16.mxu0 %v8175
    %10243 = vmatmul.mubr.bf16.gmra.mrb[0].mxu0 %v7383
    %v10244 = vpop.f32.mrb[0].mxu0
    %v10245 = vadd.f32 %v9700, %v10244
    %v10246 = vpop.f32.mrb[0].mxu0
    %v10247 = vpop.f32.mrb[0].mxu0
    %v10248 = vadd.f32 %v9703, %v10247
    %v10249 = vpop.f32.mrb[0].mxu0
    %10250 = vmatprep.mubr.bf16.mxu0 %v8178
    %10251 = vmatmul.mubr.bf16.gmra.mrb[0].mxu0 %v7395
    %v10252 = vpop.f32.mrb[0].mxu0
    %v10253 = vadd.f32 %v9708, %v10252
    %v10254 = vpop.f32.mrb[0].mxu0
    %v10255 = vpop.f32.mrb[0].mxu0
    %v10256 = vadd.f32 %v9711, %v10255
    %v10257 = vpop.f32.mrb[0].mxu0
    %10258 = vmatprep.mubr.bf16.mxu0 %v8181
    %10259 = vmatmul.mubr.bf16.gmra.mrb[0].mxu0 %v7407
    %v10260 = vpop.f32.mrb[0].mxu0
    %v10261 = vadd.f32 %v9716, %v10260
    %v10262 = vpop.f32.mrb[0].mxu0
    %v10263 = vpop.f32.mrb[0].mxu0
    %v10264 = vadd.f32 %v9719, %v10263
    %v10265 = vpop.f32.mrb[0].mxu0
    %10266 = vmatprep.mubr.bf16.mxu0 %v8184
    %10267 = vmatmul.mubr.bf16.gmra.mrb[0].mxu0 %v7419
    %v10268 = vpop.f32.mrb[0].mxu0
    %v10269 = vadd.f32 %v9724, %v10268
    %v10270 = vpop.f32.mrb[0].mxu0
    %v10271 = vpop.f32.mrb[0].mxu0
    %v10272 = vadd.f32 %v9727, %v10271
    %v10273 = vpop.f32.mrb[0].mxu0
    %10274 = vmatprep.mubr.bf16.mxu0 %v8442
    %10275 = vmatmul.mubr.bf16.gmra.mrb[0].mxu0 %v8391
    %v10276 = vpop.f32.mrb[0].mxu0
    %v10277 = vadd.f32 %v9732, %v10276
    %v10278 = vpop.f32.mrb[0].mxu0
    %v10279 = vpop.f32.mrb[0].mxu0
    %v10280 = vadd.f32 %v9735, %v10279
    %v10281 = vpop.f32.mrb[0].mxu0
    %10282 = vmatprep.mubr.bf16.mxu0 %v8187
    %10283 = vmatmul.mubr.bf16.gmra.mrb[0].mxu0 %v7431
    %v10284 = vpop.f32.mrb[0].mxu0
    %v10285 = vadd.f32 %v9740, %v10284
    %v10286 = vpop.f32.mrb[0].mxu0
    %v10287 = vpop.f32.mrb[0].mxu0
    %v10288 = vadd.f32 %v9743, %v10287
    %v10289 = vpop.f32.mrb[0].mxu0
    %10290 = vmatprep.mubr.bf16.mxu0 %v8190
    %10291 = vmatmul.mubr.bf16.gmra.mrb[0].mxu0 %v7443
    %v10292 = vpop.f32.mrb[0].mxu0
    %v10293 = vadd.f32 %v9748, %v10292
    %v10294 = vpop.f32.mrb[0].mxu0
    %v10295 = vpop.f32.mrb[0].mxu0
    %v10296 = vadd.f32 %v9751, %v10295
    %v10297 = vpop.f32.mrb[0].mxu0
    %10298 = vmatprep.mubr.bf16.mxu0 %v8193
    %10299 = vmatmul.mubr.bf16.gmra.mrb[0].mxu0 %v7455
    %v10300 = vpop.f32.mrb[0].mxu0
    %v10301 = vadd.f32 %v9756, %v10300
    %v10302 = vpop.f32.mrb[0].mxu0
    %v10303 = vpop.f32.mrb[0].mxu0
    %v10304 = vadd.f32 %v9759, %v10303
    %v10305 = vpop.f32.mrb[0].mxu0
    %10306 = vmatprep.mubr.bf16.mxu0 %v8196
    %10307 = vmatmul.mubr.bf16.gmra.mrb[0].mxu0 %v7467
    %v10308 = vpop.f32.mrb[0].mxu0
    %v10309 = vadd.f32 %v9764, %v10308
    %v10310 = vpop.f32.mrb[0].mxu0
    %v10311 = vpop.f32.mrb[0].mxu0
    %v10312 = vadd.f32 %v9767, %v10311
    %v10313 = vpop.f32.mrb[0].mxu0
    %10314 = vmatprep.mubr.bf16.mxu0 %v8199
    %10315 = vmatmul.mubr.bf16.gmra.mrb[0].mxu0 %v7479
    %v10316 = vpop.f32.mrb[0].mxu0
    %v10317 = vadd.f32 %v9772, %v10316
    %v10318 = vpop.f32.mrb[0].mxu0
    %v10319 = vpop.f32.mrb[0].mxu0
    %v10320 = vadd.f32 %v9775, %v10319
    %v10321 = vpop.f32.mrb[0].mxu0
    %10322 = vmatprep.mubr.bf16.mxu0 %v8202
    %10323 = vmatmul.mubr.bf16.gmra.mrb[0].mxu0 %v7491
    %v10324 = vpop.f32.mrb[0].mxu0
    %v10325 = vadd.f32 %v9780, %v10324
    %v10326 = vpop.f32.mrb[0].mxu0
    %v10327 = vpop.f32.mrb[0].mxu0
    %v10328 = vadd.f32 %v9783, %v10327
    %v10329 = vpop.f32.mrb[0].mxu0
    %10330 = vmatprep.mubr.bf16.mxu0 %v8205
    %10331 = vmatmul.mubr.bf16.gmra.mrb[0].mxu0 %v7503
    %v10332 = vpop.f32.mrb[0].mxu0
    %v10333 = vadd.f32 %v9788, %v10332
    %v10334 = vpop.f32.mrb[0].mxu0
    %v10335 = vpop.f32.mrb[0].mxu0
    %v10336 = vadd.f32 %v9791, %v10335
    %v10337 = vpop.f32.mrb[0].mxu0
    %10338 = vmatprep.mubr.bf16.mxu0 %v8208
    %10339 = vmatmul.mubr.bf16.gmra.mrb[0].mxu0 %v7515
    %v10340 = vpop.f32.mrb[0].mxu0
    %v10341 = vadd.f32 %v9796, %v10340
    %v10342 = vpop.f32.mrb[0].mxu0
    %v10343 = vpop.f32.mrb[0].mxu0
    %v10344 = vadd.f32 %v9799, %v10343
    %v10345 = vpop.f32.mrb[0].mxu0
    %10346 = vmatprep.mubr.bf16.mxu0 %v8211
    %10347 = vmatmul.mubr.bf16.gmra.mrb[0].mxu0 %v7527
    %v10348 = vpop.f32.mrb[0].mxu0
    %v10349 = vadd.f32 %v9804, %v10348
    %v10350 = vpop.f32.mrb[0].mxu0
    %v10351 = vpop.f32.mrb[0].mxu0
    %v10352 = vadd.f32 %v9807, %v10351
    %v10353 = vpop.f32.mrb[0].mxu0
    %10354 = vmatprep.mubr.bf16.mxu0 %v8214
    %10355 = vmatmul.mubr.bf16.gmra.mrb[0].mxu0 %v7539
    %v10356 = vpop.f32.mrb[0].mxu0
    %v10357 = vadd.f32 %v9812, %v10356
    %v10358 = vpop.f32.mrb[0].mxu0
    %v10359 = vpop.f32.mrb[0].mxu0
    %v10360 = vadd.f32 %v9815, %v10359
    %v10361 = vpop.f32.mrb[0].mxu0
    %10362 = vmatprep.mubr.bf16.mxu0 %v8217
    %10363 = vmatmul.mubr.bf16.gmra.mrb[0].mxu0 %v7551
    %v10364 = vpop.f32.mrb[0].mxu0
    %v10365 = vadd.f32 %v9820, %v10364
    %v10366 = vpop.f32.mrb[0].mxu0
    %v10367 = vpop.f32.mrb[0].mxu0
    %v10368 = vadd.f32 %v9823, %v10367
    %v10369 = vpop.f32.mrb[0].mxu0
    %10370 = vmatprep.mubr.bf16.mxu0 %v8220
    %10371 = vmatmul.mubr.bf16.gmra.mrb[0].mxu0 %v7563
    %v10372 = vpop.f32.mrb[0].mxu0
    %v10373 = vadd.f32 %v9828, %v10372
    %v10374 = vpop.f32.mrb[0].mxu0
    %v10375 = vpop.f32.mrb[0].mxu0
    %v10376 = vadd.f32 %v9831, %v10375
    %v10377 = vpop.f32.mrb[0].mxu0
    %10378 = vmatprep.mubr.bf16.mxu0 %v8223
    %10379 = vmatmul.mubr.bf16.gmra.mrb[0].mxu0 %v7575
    %v10380 = vpop.f32.mrb[0].mxu0
    %v10381 = vadd.f32 %v9836, %v10380
    %v10382 = vpop.f32.mrb[0].mxu0
    %v10383 = vpop.f32.mrb[0].mxu0
    %v10384 = vadd.f32 %v9839, %v10383
    %v10385 = vpop.f32.mrb[0].mxu0
    %10386 = vmatprep.mubr.bf16.mxu0 %v8226
    %10387 = vmatmul.mubr.bf16.gmra.mrb[0].mxu0 %v7587
    %v10388 = vpop.f32.mrb[0].mxu0
    %v10389 = vadd.f32 %v9844, %v10388
    %v10390 = vpop.f32.mrb[0].mxu0
    %v10391 = vpop.f32.mrb[0].mxu0
    %v10392 = vadd.f32 %v9847, %v10391
    %v10393 = vpop.f32.mrb[0].mxu0
    %10394 = vmatprep.mubr.bf16.mxu0 %v8229
    %10395 = vmatmul.mubr.bf16.gmra.mrb[0].mxu0 %v7599
    %v10396 = vpop.f32.mrb[0].mxu0
    %v10397 = vadd.f32 %v9852, %v10396
    %v10398 = vpop.f32.mrb[0].mxu0
    %v10399 = vpop.f32.mrb[0].mxu0
    %v10400 = vadd.f32 %v9855, %v10399
    %v10401 = vpop.f32.mrb[0].mxu0
    %10402 = vmatprep.mubr.bf16.mxu0 %v8445
    %10403 = vmatmul.mubr.bf16.gmra.mrb[0].mxu0 %v8403
    %v10404 = vpop.f32.mrb[0].mxu0
    %v10405 = vadd.f32 %v9860, %v10404
    %v10406 = vpop.f32.mrb[0].mxu0
    %v10407 = vpop.f32.mrb[0].mxu0
    %v10408 = vadd.f32 %v9863, %v10407
    %v10409 = vpop.f32.mrb[0].mxu0
    %10410 = vmatprep.mubr.bf16.mxu0 %v8232
    %10411 = vmatmul.mubr.bf16.gmra.mrb[0].mxu0 %v7611
    %v10412 = vpop.f32.mrb[0].mxu0
    %v10413 = vadd.f32 %v9868, %v10412
    %v10414 = vpop.f32.mrb[0].mxu0
    %v10415 = vpop.f32.mrb[0].mxu0
    %v10416 = vadd.f32 %v9871, %v10415
    %v10417 = vpop.f32.mrb[0].mxu0
    %10418 = vmatprep.mubr.bf16.mxu0 %v8235
    %10419 = vmatmul.mubr.bf16.gmra.mrb[0].mxu0 %v7623
    %v10420 = vpop.f32.mrb[0].mxu0
    %v10421 = vadd.f32 %v9876, %v10420
    %v10422 = vpop.f32.mrb[0].mxu0
    %v10423 = vpop.f32.mrb[0].mxu0
    %v10424 = vadd.f32 %v9879, %v10423
    %v10425 = vpop.f32.mrb[0].mxu0
    %10426 = vmatprep.mubr.bf16.mxu0 %v8238
    %10427 = vmatmul.mubr.bf16.gmra.mrb[0].mxu0 %v7635
    %v10428 = vpop.f32.mrb[0].mxu0
    %v10429 = vadd.f32 %v9884, %v10428
    %v10430 = vpop.f32.mrb[0].mxu0
    %v10431 = vpop.f32.mrb[0].mxu0
    %v10432 = vadd.f32 %v9887, %v10431
    %v10433 = vpop.f32.mrb[0].mxu0
    %10434 = vmatprep.mubr.bf16.mxu0 %v8241
    %10435 = vmatmul.mubr.bf16.gmra.mrb[0].mxu0 %v7647
    %v10436 = vpop.f32.mrb[0].mxu0
    %v10437 = vadd.f32 %v9892, %v10436
    %v10438 = vpop.f32.mrb[0].mxu0
    %v10439 = vpop.f32.mrb[0].mxu0
    %v10440 = vadd.f32 %v9895, %v10439
    %v10441 = vpop.f32.mrb[0].mxu0
    %10442 = vmatprep.mubr.bf16.mxu0 %v8244
    %10443 = vmatmul.mubr.bf16.gmra.mrb[0].mxu0 %v7659
    %v10444 = vpop.f32.mrb[0].mxu0
    %v10445 = vadd.f32 %v9900, %v10444
    %v10446 = vpop.f32.mrb[0].mxu0
    %v10447 = vpop.f32.mrb[0].mxu0
    %v10448 = vadd.f32 %v9903, %v10447
    %v10449 = vpop.f32.mrb[0].mxu0
    %10450 = vmatprep.mubr.bf16.mxu0 %v8247
    %10451 = vmatmul.mubr.bf16.gmra.mrb[0].mxu0 %v7671
    %v10452 = vpop.f32.mrb[0].mxu0
    %v10453 = vadd.f32 %v9908, %v10452
    %v10454 = vpop.f32.mrb[0].mxu0
    %v10455 = vpop.f32.mrb[0].mxu0
    %v10456 = vadd.f32 %v9911, %v10455
    %v10457 = vpop.f32.mrb[0].mxu0
    %10458 = vmatprep.mubr.bf16.mxu0 %v8250
    %10459 = vmatmul.mubr.bf16.gmra.mrb[0].mxu0 %v7683
    %v10460 = vpop.f32.mrb[0].mxu0
    %v10461 = vadd.f32 %v9916, %v10460
    %v10462 = vpop.f32.mrb[0].mxu0
    %v10463 = vpop.f32.mrb[0].mxu0
    %v10464 = vadd.f32 %v9919, %v10463
    %v10465 = vpop.f32.mrb[0].mxu0
    %10466 = vmatprep.mubr.bf16.mxu0 %v8253
    %10467 = vmatmul.mubr.bf16.gmra.mrb[0].mxu0 %v7695
    %v10468 = vpop.f32.mrb[0].mxu0
    %v10469 = vadd.f32 %v9924, %v10468
    %v10470 = vpop.f32.mrb[0].mxu0
    %v10471 = vpop.f32.mrb[0].mxu0
    %v10472 = vadd.f32 %v9927, %v10471
    %v10473 = vpop.f32.mrb[0].mxu0
    %10474 = vmatprep.mubr.bf16.mxu0 %v8256
    %10475 = vmatmul.mubr.bf16.gmra.mrb[0].mxu0 %v7707
    %v10476 = vpop.f32.mrb[0].mxu0
    %v10477 = vadd.f32 %v9932, %v10476
    %v10478 = vpop.f32.mrb[0].mxu0
    %v10479 = vpop.f32.mrb[0].mxu0
    %v10480 = vadd.f32 %v9935, %v10479
    %v10481 = vpop.f32.mrb[0].mxu0
    %10482 = vmatprep.mubr.bf16.mxu0 %v8259
    %10483 = vmatmul.mubr.bf16.gmra.mrb[0].mxu0 %v7719
    %v10484 = vpop.f32.mrb[0].mxu0
    %v10485 = vadd.f32 %v9940, %v10484
    %v10486 = vpop.f32.mrb[0].mxu0
    %v10487 = vpop.f32.mrb[0].mxu0
    %v10488 = vadd.f32 %v9943, %v10487
    %v10489 = vpop.f32.mrb[0].mxu0
    %10490 = vmatprep.mubr.bf16.mxu0 %v8262
    %10491 = vmatmul.mubr.bf16.gmra.mrb[0].mxu0 %v7731
    %v10492 = vpop.f32.mrb[0].mxu0
    %v10493 = vadd.f32 %v9948, %v10492
    %v10494 = vpop.f32.mrb[0].mxu0
    %v10495 = vpop.f32.mrb[0].mxu0
    %v10496 = vadd.f32 %v9951, %v10495
    %v10497 = vpop.f32.mrb[0].mxu0
    %10498 = vmatprep.mubr.bf16.mxu0 %v8265
    %10499 = vmatmul.mubr.bf16.gmra.mrb[0].mxu0 %v7743
    %v10500 = vpop.f32.mrb[0].mxu0
    %v10501 = vadd.f32 %v9956, %v10500
    %v10502 = vpop.f32.mrb[0].mxu0
    %v10503 = vpop.f32.mrb[0].mxu0
    %v10504 = vadd.f32 %v9959, %v10503
    %v10505 = vpop.f32.mrb[0].mxu0
    %10506 = vmatprep.mubr.bf16.mxu0 %v8268
    %10507 = vmatmul.mubr.bf16.gmra.mrb[0].mxu0 %v7755
    %v10508 = vpop.f32.mrb[0].mxu0
    %v10509 = vadd.f32 %v9964, %v10508
    %v10510 = vpop.f32.mrb[0].mxu0
    %v10511 = vpop.f32.mrb[0].mxu0
    %v10512 = vadd.f32 %v9967, %v10511
    %v10513 = vpop.f32.mrb[0].mxu0
    %10514 = vmatprep.mubr.bf16.mxu0 %v8271
    %10515 = vmatmul.mubr.bf16.gmra.mrb[0].mxu0 %v7767
    %v10516 = vpop.f32.mrb[0].mxu0
    %v10517 = vadd.f32 %v9972, %v10516
    %v10518 = vpop.f32.mrb[0].mxu0
    %v10519 = vpop.f32.mrb[0].mxu0
    %v10520 = vadd.f32 %v9975, %v10519
    %v10521 = vpop.f32.mrb[0].mxu0
    %10522 = vmatprep.mubr.bf16.mxu0 %v8274
    %10523 = vmatmul.mubr.bf16.gmra.mrb[0].mxu0 %v7779
    %v10524 = vpop.f32.mrb[0].mxu0
    %v10525 = vadd.f32 %v9980, %v10524
    %v10526 = vpop.f32.mrb[0].mxu0
    %v10527 = vpop.f32.mrb[0].mxu0
    %v10528 = vadd.f32 %v9983, %v10527
    %v10529 = vpop.f32.mrb[0].mxu0
    %10530 = vmatprep.mubr.bf16.mxu0 %v8448
    %10531 = vmatmul.mubr.bf16.gmra.mrb[0].mxu0 %v8415
    %v10532 = vpop.f32.mrb[0].mxu0
    %v10533 = vadd.f32 %v9988, %v10532
    %v10534 = vpop.f32.mrb[0].mxu0
    %v10535 = vpop.f32.mrb[0].mxu0
    %v10536 = vadd.f32 %v9991, %v10535
    %v10537 = vpop.f32.mrb[0].mxu0
    %10538 = vmatprep.mubr.bf16.mxu0 %v8277
    %10539 = vmatmul.mubr.bf16.gmra.mrb[0].mxu0 %v7791
    %v10540 = vpop.f32.mrb[0].mxu0
    %v10541 = vadd.f32 %v9996, %v10540
    %v10542 = vpop.f32.mrb[0].mxu0
    %v10543 = vpop.f32.mrb[0].mxu0
    %v10544 = vadd.f32 %v9999, %v10543
    %v10545 = vpop.f32.mrb[0].mxu0
    %10546 = vmatprep.mubr.bf16.mxu0 %v8280
    %10547 = vmatmul.mubr.bf16.gmra.mrb[0].mxu0 %v7803
    %v10548 = vpop.f32.mrb[0].mxu0
    %v10549 = vadd.f32 %v10004, %v10548
    %v10550 = vpop.f32.mrb[0].mxu0
    %v10551 = vpop.f32.mrb[0].mxu0
    %v10552 = vadd.f32 %v10007, %v10551
    %v10553 = vpop.f32.mrb[0].mxu0
    %10554 = vmatprep.mubr.bf16.mxu0 %v8283
    %10555 = vmatmul.mubr.bf16.gmra.mrb[0].mxu0 %v7815
    %v10556 = vpop.f32.mrb[0].mxu0
    %v10557 = vadd.f32 %v10012, %v10556
    %v10558 = vpop.f32.mrb[0].mxu0
    %v10559 = vpop.f32.mrb[0].mxu0
    %v10560 = vadd.f32 %v10015, %v10559
    %v10561 = vpop.f32.mrb[0].mxu0
    %10562 = vmatprep.mubr.bf16.mxu0 %v8286
    %10563 = vmatmul.mubr.bf16.gmra.mrb[0].mxu0 %v7827
    %v10564 = vpop.f32.mrb[0].mxu0
    %v10565 = vadd.f32 %v10020, %v10564
    %v10566 = vpop.f32.mrb[0].mxu0
    %v10567 = vpop.f32.mrb[0].mxu0
    %v10568 = vadd.f32 %v10023, %v10567
    %v10569 = vpop.f32.mrb[0].mxu0
    %10570 = vmatprep.mubr.bf16.mxu0 %v8289
    %10571 = vmatmul.mubr.bf16.gmra.mrb[0].mxu0 %v7839
    %v10572 = vpop.f32.mrb[0].mxu0
    %v10573 = vadd.f32 %v10028, %v10572
    %v10574 = vpop.f32.mrb[0].mxu0
    %v10575 = vpop.f32.mrb[0].mxu0
    %v10576 = vadd.f32 %v10031, %v10575
    %v10577 = vpop.f32.mrb[0].mxu0
    %10578 = vmatprep.mubr.bf16.mxu0 %v8292
    %10579 = vmatmul.mubr.bf16.gmra.mrb[0].mxu0 %v7851
    %v10580 = vpop.f32.mrb[0].mxu0
    %v10581 = vadd.f32 %v10036, %v10580
    %v10582 = vpop.f32.mrb[0].mxu0
    %v10583 = vpop.f32.mrb[0].mxu0
    %v10584 = vadd.f32 %v10039, %v10583
    %v10585 = vpop.f32.mrb[0].mxu0
    %10586 = vmatprep.mubr.bf16.mxu0 %v8295
    %10587 = vmatmul.mubr.bf16.gmra.mrb[0].mxu0 %v7863
    %v10588 = vpop.f32.mrb[0].mxu0
    %v10589 = vadd.f32 %v10044, %v10588
    %v10590 = vpop.f32.mrb[0].mxu0
    %v10591 = vpop.f32.mrb[0].mxu0
    %v10592 = vadd.f32 %v10047, %v10591
    %v10593 = vpop.f32.mrb[0].mxu0
    %10594 = vmatprep.mubr.bf16.mxu0 %v8298
    %10595 = vmatmul.mubr.bf16.gmra.mrb[0].mxu0 %v7875
    %v10596 = vpop.f32.mrb[0].mxu0
    %v10597 = vadd.f32 %v10052, %v10596
    %v10598 = vpop.f32.mrb[0].mxu0
    %v10599 = vpop.f32.mrb[0].mxu0
    %v10600 = vadd.f32 %v10055, %v10599
    %v10601 = vpop.f32.mrb[0].mxu0
    %10602 = vmatprep.mubr.bf16.mxu0 %v8301
    %10603 = vmatmul.mubr.bf16.gmra.mrb[0].mxu0 %v7887
    %v10604 = vpop.f32.mrb[0].mxu0
    %v10605 = vadd.f32 %v10060, %v10604
    %v10606 = vpop.f32.mrb[0].mxu0
    %v10607 = vpop.f32.mrb[0].mxu0
    %v10608 = vadd.f32 %v10063, %v10607
    %v10609 = vpop.f32.mrb[0].mxu0
    %10610 = vmatprep.mubr.bf16.mxu0 %v8304
    %10611 = vmatmul.mubr.bf16.gmra.mrb[0].mxu0 %v7899
    %v10612 = vpop.f32.mrb[0].mxu0
    %v10613 = vadd.f32 %v10068, %v10612
    %v10614 = vpop.f32.mrb[0].mxu0
    %v10615 = vpop.f32.mrb[0].mxu0
    %v10616 = vadd.f32 %v10071, %v10615
    %v10617 = vpop.f32.mrb[0].mxu0
    %10618 = vmatprep.mubr.bf16.mxu0 %v8307
    %10619 = vmatmul.mubr.bf16.gmra.mrb[0].mxu0 %v7911
    %v10620 = vpop.f32.mrb[0].mxu0
    %v10621 = vadd.f32 %v10076, %v10620
    %v10622 = vpop.f32.mrb[0].mxu0
    %v10623 = vpop.f32.mrb[0].mxu0
    %v10624 = vadd.f32 %v10079, %v10623
    %v10625 = vpop.f32.mrb[0].mxu0
    %10626 = vmatprep.mubr.bf16.mxu0 %v8310
    %10627 = vmatmul.mubr.bf16.gmra.mrb[0].mxu0 %v7923
    %v10628 = vpop.f32.mrb[0].mxu0
    %v10629 = vadd.f32 %v10084, %v10628
    %v10630 = vpop.f32.mrb[0].mxu0
    %v10631 = vpop.f32.mrb[0].mxu0
    %v10632 = vadd.f32 %v10087, %v10631
    %v10633 = vpop.f32.mrb[0].mxu0
    %10634 = vmatprep.mubr.bf16.mxu0 %v8313
    %10635 = vmatmul.mubr.bf16.gmra.mrb[0].mxu0 %v7935
    %v10636 = vpop.f32.mrb[0].mxu0
    %v10637 = vadd.f32 %v10092, %v10636
    %v10638 = vpop.f32.mrb[0].mxu0
    %v10639 = vpop.f32.mrb[0].mxu0
    %v10640 = vadd.f32 %v10095, %v10639
    %v10641 = vpop.f32.mrb[0].mxu0
    %10642 = vmatprep.mubr.bf16.mxu0 %v8316
    %10643 = vmatmul.mubr.bf16.gmra.mrb[0].mxu0 %v7947
    %v10644 = vpop.f32.mrb[0].mxu0
    %v10645 = vadd.f32 %v10100, %v10644
    %v10646 = vpop.f32.mrb[0].mxu0
    %v10647 = vpop.f32.mrb[0].mxu0
    %v10648 = vadd.f32 %v10103, %v10647
    %v10649 = vpop.f32.mrb[0].mxu0
    %10650 = vmatprep.mubr.bf16.mxu0 %v8319
    %10651 = vmatmul.mubr.bf16.gmra.mrb[0].mxu0 %v7959
    %v10652 = vpop.f32.mrb[0].mxu0
    %v10653 = vadd.f32 %v10108, %v10652
    %v10654 = vpop.f32.mrb[0].mxu0
    %v10655 = vpop.f32.mrb[0].mxu0
    %v10656 = vadd.f32 %v10111, %v10655
    %v10657 = vpop.f32.mrb[0].mxu0
    %10658 = vmatprep.mubr.bf16.mxu0 %v8451
    %10659 = vmatmul.mubr.bf16.gmra.mrb[0].mxu0 %v8427
    %v10660 = vpop.f32.mrb[0].mxu0
    %v10661 = vadd.f32 %v10116, %v10660
    %v10662 = vpop.f32.mrb[0].mxu0
    %v10663 = vpop.f32.mrb[0].mxu0
    %v10664 = vadd.f32 %v10119, %v10663
    %v10665 = vpop.f32.mrb[0].mxu0
    %10666 = vdwg.mxu0
    %10667 = vmatprep.subr.bf16.mxu0 0
    %10668 = vmatpush1.bf16.msra.mxu0 %v8936
    %10669 = vmatprep.subr.bf16.mxu0 0
    %10670 = vmatpush1.bf16.msra.mxu0 %v8937
    %10671 = vmatprep.subr.bf16.mxu0 0
    %10672 = vmatpush1.bf16.msra.mxu0 %v8938
    %10673 = vmatprep.subr.bf16.mxu0 0
    %10674 = vmatpush1.bf16.msra.mxu0 %v8939
    %10675 = vmatprep.subr.bf16.mxu0 0
    %10676 = vmatpush1.bf16.msra.mxu0 %v8940
    %10677 = vmatprep.subr.bf16.mxu0 0
    %10678 = vmatpush1.bf16.msra.mxu0 %v8941
    %10679 = vmatprep.subr.bf16.mxu0 0
    %10680 = vmatpush1.bf16.msra.mxu0 %v8942
    %10681 = vmatprep.subr.bf16.mxu0 0
    %10682 = vmatpush1.bf16.msra.mxu0 %v8943
    %10683 = vmatprep.subr.bf16.mxu0 0
    %10684 = vmatpush1.bf16.msra.mxu0 %v8944
    %10685 = vmatprep.subr.bf16.mxu0 0
    %10686 = vmatpush1.bf16.msra.mxu0 %v8945
    %10687 = vmatprep.subr.bf16.mxu0 0
    %10688 = vmatpush1.bf16.msra.mxu0 %v8946
    %10689 = vmatprep.subr.bf16.mxu0 0
    %10690 = vmatpush1.bf16.msra.mxu0 %v8947
    %10691 = vmatprep.subr.bf16.mxu0 0
    %10692 = vmatpush1.bf16.msra.mxu0 %v8948
    %10693 = vmatprep.subr.bf16.mxu0 0
    %10694 = vmatpush1.bf16.msra.mxu0 %v8949
    %10695 = vmatprep.subr.bf16.mxu0 0
    %10696 = vmatpush1.bf16.msra.mxu0 %v8950
    %10697 = vmatprep.subr.bf16.mxu0 0
    %10698 = vmatpush1.bf16.msra.mxu0 %v8951
    %10699 = vmatprep.mubr.bf16.mxu0 %v7263
    %10700 = vmatmul.mubr.bf16.gmra.mrb[0].mxu0 %v7113
    %v10701 = vpop.f32.mrb[0].mxu0
    %v10702 = vadd.f32 %v10157, %v10701
    %v10703 = vpop.f32.mrb[0].mxu0
    %v10704 = vpop.f32.mrb[0].mxu0
    %v10705 = vadd.f32 %v10160, %v10704
    %v10706 = vpop.f32.mrb[0].mxu0
    %10707 = vmatprep.mubr.bf16.mxu0 %v7275
    %10708 = vmatmul.mubr.bf16.gmra.mrb[0].mxu0 %v7114
    %v10709 = vpop.f32.mrb[0].mxu0
    %v10710 = vadd.f32 %v10165, %v10709
    %v10711 = vpop.f32.mrb[0].mxu0
    %v10712 = vpop.f32.mrb[0].mxu0
    %v10713 = vadd.f32 %v10168, %v10712
    %v10714 = vpop.f32.mrb[0].mxu0
    %10715 = vmatprep.mubr.bf16.mxu0 %v7287
    %10716 = vmatmul.mubr.bf16.gmra.mrb[0].mxu0 %v7115
    %v10717 = vpop.f32.mrb[0].mxu0
    %v10718 = vadd.f32 %v10173, %v10717
    %v10719 = vpop.f32.mrb[0].mxu0
    %v10720 = vpop.f32.mrb[0].mxu0
    %v10721 = vadd.f32 %v10176, %v10720
    %v10722 = vpop.f32.mrb[0].mxu0
    %10723 = vmatprep.mubr.bf16.mxu0 %v7299
    %10724 = vmatmul.mubr.bf16.gmra.mrb[0].mxu0 %v7116
    %v10725 = vpop.f32.mrb[0].mxu0
    %v10726 = vadd.f32 %v10181, %v10725
    %v10727 = vpop.f32.mrb[0].mxu0
    %v10728 = vpop.f32.mrb[0].mxu0
    %v10729 = vadd.f32 %v10184, %v10728
    %v10730 = vpop.f32.mrb[0].mxu0
    %10731 = vmatprep.mubr.bf16.mxu0 %v7311
    %10732 = vmatmul.mubr.bf16.gmra.mrb[0].mxu0 %v7117
    %v10733 = vpop.f32.mrb[0].mxu0
    %v10734 = vadd.f32 %v10189, %v10733
    %v10735 = vpop.f32.mrb[0].mxu0
    %v10736 = vpop.f32.mrb[0].mxu0
    %v10737 = vadd.f32 %v10192, %v10736
    %v10738 = vpop.f32.mrb[0].mxu0
    %10739 = vmatprep.mubr.bf16.mxu0 %v7323
    %10740 = vmatmul.mubr.bf16.gmra.mrb[0].mxu0 %v7118
    %v10741 = vpop.f32.mrb[0].mxu0
    %v10742 = vadd.f32 %v10197, %v10741
    %v10743 = vpop.f32.mrb[0].mxu0
    %v10744 = vpop.f32.mrb[0].mxu0
    %v10745 = vadd.f32 %v10200, %v10744
    %v10746 = vpop.f32.mrb[0].mxu0
    %10747 = vmatprep.mubr.bf16.mxu0 %v7335
    %10748 = vmatmul.mubr.bf16.gmra.mrb[0].mxu0 %v7119
    %v10749 = vpop.f32.mrb[0].mxu0
    %v10750 = vadd.f32 %v10205, %v10749
    %v10751 = vpop.f32.mrb[0].mxu0
    %v10752 = vpop.f32.mrb[0].mxu0
    %v10753 = vadd.f32 %v10208, %v10752
    %v10754 = vpop.f32.mrb[0].mxu0
    %10755 = vmatprep.mubr.bf16.mxu0 %v7347
    %10756 = vmatmul.mubr.bf16.gmra.mrb[0].mxu0 %v7120
    %v10757 = vpop.f32.mrb[0].mxu0
    %v10758 = vadd.f32 %v10213, %v10757
    %v10759 = vpop.f32.mrb[0].mxu0
    %v10760 = vpop.f32.mrb[0].mxu0
    %v10761 = vadd.f32 %v10216, %v10760
    %v10762 = vpop.f32.mrb[0].mxu0
    %10763 = vmatprep.mubr.bf16.mxu0 %v7359
    %10764 = vmatmul.mubr.bf16.gmra.mrb[0].mxu0 %v7121
    %v10765 = vpop.f32.mrb[0].mxu0
    %v10766 = vadd.f32 %v10221, %v10765
    %v10767 = vpop.f32.mrb[0].mxu0
    %v10768 = vpop.f32.mrb[0].mxu0
    %v10769 = vadd.f32 %v10224, %v10768
    %v10770 = vpop.f32.mrb[0].mxu0
    %10771 = vmatprep.mubr.bf16.mxu0 %v7371
    %10772 = vmatmul.mubr.bf16.gmra.mrb[0].mxu0 %v7122
    %v10773 = vpop.f32.mrb[0].mxu0
    %v10774 = vadd.f32 %v10229, %v10773
    %v10775 = vpop.f32.mrb[0].mxu0
    %v10776 = vpop.f32.mrb[0].mxu0
    %v10777 = vadd.f32 %v10232, %v10776
    %v10778 = vpop.f32.mrb[0].mxu0
    %10779 = vmatprep.mubr.bf16.mxu0 %v7383
    %10780 = vmatmul.mubr.bf16.gmra.mrb[0].mxu0 %v7123
    %v10781 = vpop.f32.mrb[0].mxu0
    %v10782 = vadd.f32 %v10237, %v10781
    %v10783 = vpop.f32.mrb[0].mxu0
    %v10784 = vpop.f32.mrb[0].mxu0
    %v10785 = vadd.f32 %v10240, %v10784
    %v10786 = vpop.f32.mrb[0].mxu0
    %10787 = vmatprep.mubr.bf16.mxu0 %v7395
    %10788 = vmatmul.mubr.bf16.gmra.mrb[0].mxu0 %v7124
    %v10789 = vpop.f32.mrb[0].mxu0
    %v10790 = vadd.f32 %v10245, %v10789
    %v10791 = vpop.f32.mrb[0].mxu0
    %v10792 = vpop.f32.mrb[0].mxu0
    %v10793 = vadd.f32 %v10248, %v10792
    %v10794 = vpop.f32.mrb[0].mxu0
    %10795 = vmatprep.mubr.bf16.mxu0 %v7407
    %10796 = vmatmul.mubr.bf16.gmra.mrb[0].mxu0 %v7125
    %v10797 = vpop.f32.mrb[0].mxu0
    %v10798 = vadd.f32 %v10253, %v10797
    %v10799 = vpop.f32.mrb[0].mxu0
    %v10800 = vpop.f32.mrb[0].mxu0
    %v10801 = vadd.f32 %v10256, %v10800
    %v10802 = vpop.f32.mrb[0].mxu0
    %10803 = vmatprep.mubr.bf16.mxu0 %v7419
    %10804 = vmatmul.mubr.bf16.gmra.mrb[0].mxu0 %v7126
    %v10805 = vpop.f32.mrb[0].mxu0
    %v10806 = vadd.f32 %v10261, %v10805
    %v10807 = vpop.f32.mrb[0].mxu0
    %v10808 = vpop.f32.mrb[0].mxu0
    %v10809 = vadd.f32 %v10264, %v10808
    %v10810 = vpop.f32.mrb[0].mxu0
    %10811 = vmatprep.mubr.bf16.mxu0 %v8391
    %10812 = vmatmul.mubr.bf16.gmra.mrb[0].mxu0 %v7127
    %v10813 = vpop.f32.mrb[0].mxu0
    %v10814 = vadd.f32 %v10269, %v10813
    %v10815 = vpop.f32.mrb[0].mxu0
    %v10816 = vpop.f32.mrb[0].mxu0
    %v10817 = vadd.f32 %v10272, %v10816
    %v10818 = vpop.f32.mrb[0].mxu0
    %10819 = vmatprep.mubr.bf16.mxu0 %v1291
    %10820 = vmatmul.mubr.bf16.gmra.mrb[0].mxu0 %v1149
    %v10821 = vpop.f32.mrb[0].mxu0
    %v10822 = vadd.f32 %v10277, %v10821
    %v10823 = vpop.f32.mrb[0].mxu0
    %v10824 = vpop.f32.mrb[0].mxu0
    %v10825 = vadd.f32 %v10280, %v10824
    %v10826 = vpop.f32.mrb[0].mxu0
    %10827 = vmatprep.mubr.bf16.mxu0 %v7443
    %10828 = vmatmul.mubr.bf16.gmra.mrb[0].mxu0 %v7129
    %v10829 = vpop.f32.mrb[0].mxu0
    %v10830 = vadd.f32 %v10285, %v10829
    %v10831 = vpop.f32.mrb[0].mxu0
    %v10832 = vpop.f32.mrb[0].mxu0
    %v10833 = vadd.f32 %v10288, %v10832
    %v10834 = vpop.f32.mrb[0].mxu0
    %10835 = vmatprep.mubr.bf16.mxu0 %v7455
    %10836 = vmatmul.mubr.bf16.gmra.mrb[0].mxu0 %v7130
    %v10837 = vpop.f32.mrb[0].mxu0
    %v10838 = vadd.f32 %v10293, %v10837
    %v10839 = vpop.f32.mrb[0].mxu0
    %v10840 = vpop.f32.mrb[0].mxu0
    %v10841 = vadd.f32 %v10296, %v10840
    %v10842 = vpop.f32.mrb[0].mxu0
    %10843 = vmatprep.mubr.bf16.mxu0 %v7467
    %10844 = vmatmul.mubr.bf16.gmra.mrb[0].mxu0 %v7131
    %v10845 = vpop.f32.mrb[0].mxu0
    %v10846 = vadd.f32 %v10301, %v10845
    %v10847 = vpop.f32.mrb[0].mxu0
    %v10848 = vpop.f32.mrb[0].mxu0
    %v10849 = vadd.f32 %v10304, %v10848
    %v10850 = vpop.f32.mrb[0].mxu0
    %10851 = vmatprep.mubr.bf16.mxu0 %v7479
    %10852 = vmatmul.mubr.bf16.gmra.mrb[0].mxu0 %v7132
    %v10853 = vpop.f32.mrb[0].mxu0
    %v10854 = vadd.f32 %v10309, %v10853
    %v10855 = vpop.f32.mrb[0].mxu0
    %v10856 = vpop.f32.mrb[0].mxu0
    %v10857 = vadd.f32 %v10312, %v10856
    %v10858 = vpop.f32.mrb[0].mxu0
    %10859 = vmatprep.mubr.bf16.mxu0 %v7491
    %10860 = vmatmul.mubr.bf16.gmra.mrb[0].mxu0 %v7133
    %v10861 = vpop.f32.mrb[0].mxu0
    %v10862 = vadd.f32 %v10317, %v10861
    %v10863 = vpop.f32.mrb[0].mxu0
    %v10864 = vpop.f32.mrb[0].mxu0
    %v10865 = vadd.f32 %v10320, %v10864
    %v10866 = vpop.f32.mrb[0].mxu0
    %10867 = vmatprep.mubr.bf16.mxu0 %v7503
    %10868 = vmatmul.mubr.bf16.gmra.mrb[0].mxu0 %v7134
    %v10869 = vpop.f32.mrb[0].mxu0
    %v10870 = vadd.f32 %v10325, %v10869
    %v10871 = vpop.f32.mrb[0].mxu0
    %v10872 = vpop.f32.mrb[0].mxu0
    %v10873 = vadd.f32 %v10328, %v10872
    %v10874 = vpop.f32.mrb[0].mxu0
    %10875 = vmatprep.mubr.bf16.mxu0 %v7515
    %10876 = vmatmul.mubr.bf16.gmra.mrb[0].mxu0 %v7135
    %v10877 = vpop.f32.mrb[0].mxu0
    %v10878 = vadd.f32 %v10333, %v10877
    %v10879 = vpop.f32.mrb[0].mxu0
    %v10880 = vpop.f32.mrb[0].mxu0
    %v10881 = vadd.f32 %v10336, %v10880
    %v10882 = vpop.f32.mrb[0].mxu0
    %10883 = vmatprep.mubr.bf16.mxu0 %v7527
    %10884 = vmatmul.mubr.bf16.gmra.mrb[0].mxu0 %v7136
    %v10885 = vpop.f32.mrb[0].mxu0
    %v10886 = vadd.f32 %v10341, %v10885
    %v10887 = vpop.f32.mrb[0].mxu0
    %v10888 = vpop.f32.mrb[0].mxu0
    %v10889 = vadd.f32 %v10344, %v10888
    %v10890 = vpop.f32.mrb[0].mxu0
    %10891 = vmatprep.mubr.bf16.mxu0 %v7539
    %10892 = vmatmul.mubr.bf16.gmra.mrb[0].mxu0 %v7137
    %v10893 = vpop.f32.mrb[0].mxu0
    %v10894 = vadd.f32 %v10349, %v10893
    %v10895 = vpop.f32.mrb[0].mxu0
    %v10896 = vpop.f32.mrb[0].mxu0
    %v10897 = vadd.f32 %v10352, %v10896
    %v10898 = vpop.f32.mrb[0].mxu0
    %10899 = vmatprep.mubr.bf16.mxu0 %v7551
    %10900 = vmatmul.mubr.bf16.gmra.mrb[0].mxu0 %v7138
    %v10901 = vpop.f32.mrb[0].mxu0
    %v10902 = vadd.f32 %v10357, %v10901
    %v10903 = vpop.f32.mrb[0].mxu0
    %v10904 = vpop.f32.mrb[0].mxu0
    %v10905 = vadd.f32 %v10360, %v10904
    %v10906 = vpop.f32.mrb[0].mxu0
    %10907 = vmatprep.mubr.bf16.mxu0 %v7563
    %10908 = vmatmul.mubr.bf16.gmra.mrb[0].mxu0 %v7139
    %v10909 = vpop.f32.mrb[0].mxu0
    %v10910 = vadd.f32 %v10365, %v10909
    %v10911 = vpop.f32.mrb[0].mxu0
    %v10912 = vpop.f32.mrb[0].mxu0
    %v10913 = vadd.f32 %v10368, %v10912
    %v10914 = vpop.f32.mrb[0].mxu0
    %10915 = vmatprep.mubr.bf16.mxu0 %v7575
    %10916 = vmatmul.mubr.bf16.gmra.mrb[0].mxu0 %v7140
    %v10917 = vpop.f32.mrb[0].mxu0
    %v10918 = vadd.f32 %v10373, %v10917
    %v10919 = vpop.f32.mrb[0].mxu0
    %v10920 = vpop.f32.mrb[0].mxu0
    %v10921 = vadd.f32 %v10376, %v10920
    %v10922 = vpop.f32.mrb[0].mxu0
    %10923 = vmatprep.mubr.bf16.mxu0 %v7587
    %10924 = vmatmul.mubr.bf16.gmra.mrb[0].mxu0 %v7141
    %v10925 = vpop.f32.mrb[0].mxu0
    %v10926 = vadd.f32 %v10381, %v10925
    %v10927 = vpop.f32.mrb[0].mxu0
    %v10928 = vpop.f32.mrb[0].mxu0
    %v10929 = vadd.f32 %v10384, %v10928
    %v10930 = vpop.f32.mrb[0].mxu0
    %10931 = vmatprep.mubr.bf16.mxu0 %v7599
    %10932 = vmatmul.mubr.bf16.gmra.mrb[0].mxu0 %v7142
    %v10933 = vpop.f32.mrb[0].mxu0
    %v10934 = vadd.f32 %v10389, %v10933
    %v10935 = vpop.f32.mrb[0].mxu0
    %v10936 = vpop.f32.mrb[0].mxu0
    %v10937 = vadd.f32 %v10392, %v10936
    %v10938 = vpop.f32.mrb[0].mxu0
    %10939 = vmatprep.mubr.bf16.mxu0 %v8403
    %10940 = vmatmul.mubr.bf16.gmra.mrb[0].mxu0 %v7143
    %v10941 = vpop.f32.mrb[0].mxu0
    %v10942 = vadd.f32 %v10397, %v10941
    %v10943 = vpop.f32.mrb[0].mxu0
    %v10944 = vpop.f32.mrb[0].mxu0
    %v10945 = vadd.f32 %v10400, %v10944
    %v10946 = vpop.f32.mrb[0].mxu0
    %10947 = vmatprep.mubr.bf16.mxu0 %v1291
    %10948 = vmatmul.mubr.bf16.gmra.mrb[0].mxu0 %v1149
    %v10949 = vpop.f32.mrb[0].mxu0
    %v10950 = vadd.f32 %v10405, %v10949
    %v10951 = vpop.f32.mrb[0].mxu0
    %v10952 = vpop.f32.mrb[0].mxu0
    %v10953 = vadd.f32 %v10408, %v10952
    %v10954 = vpop.f32.mrb[0].mxu0
    %10955 = vmatprep.mubr.bf16.mxu0 %v7623
    %10956 = vmatmul.mubr.bf16.gmra.mrb[0].mxu0 %v7145
    %v10957 = vpop.f32.mrb[0].mxu0
    %v10958 = vadd.f32 %v10413, %v10957
    %v10959 = vpop.f32.mrb[0].mxu0
    %v10960 = vpop.f32.mrb[0].mxu0
    %v10961 = vadd.f32 %v10416, %v10960
    %v10962 = vpop.f32.mrb[0].mxu0
    %10963 = vmatprep.mubr.bf16.mxu0 %v7635
    %10964 = vmatmul.mubr.bf16.gmra.mrb[0].mxu0 %v7146
    %v10965 = vpop.f32.mrb[0].mxu0
    %v10966 = vadd.f32 %v10421, %v10965
    %v10967 = vpop.f32.mrb[0].mxu0
    %v10968 = vpop.f32.mrb[0].mxu0
    %v10969 = vadd.f32 %v10424, %v10968
    %v10970 = vpop.f32.mrb[0].mxu0
    %10971 = vmatprep.mubr.bf16.mxu0 %v7647
    %10972 = vmatmul.mubr.bf16.gmra.mrb[0].mxu0 %v7147
    %v10973 = vpop.f32.mrb[0].mxu0
    %v10974 = vadd.f32 %v10429, %v10973
    %v10975 = vpop.f32.mrb[0].mxu0
    %v10976 = vpop.f32.mrb[0].mxu0
    %v10977 = vadd.f32 %v10432, %v10976
    %v10978 = vpop.f32.mrb[0].mxu0
    %10979 = vmatprep.mubr.bf16.mxu0 %v7659
    %10980 = vmatmul.mubr.bf16.gmra.mrb[0].mxu0 %v7148
    %v10981 = vpop.f32.mrb[0].mxu0
    %v10982 = vadd.f32 %v10437, %v10981
    %v10983 = vpop.f32.mrb[0].mxu0
    %v10984 = vpop.f32.mrb[0].mxu0
    %v10985 = vadd.f32 %v10440, %v10984
    %v10986 = vpop.f32.mrb[0].mxu0
    %10987 = vmatprep.mubr.bf16.mxu0 %v7671
    %10988 = vmatmul.mubr.bf16.gmra.mrb[0].mxu0 %v7149
    %v10989 = vpop.f32.mrb[0].mxu0
    %v10990 = vadd.f32 %v10445, %v10989
    %v10991 = vpop.f32.mrb[0].mxu0
    %v10992 = vpop.f32.mrb[0].mxu0
    %v10993 = vadd.f32 %v10448, %v10992
    %v10994 = vpop.f32.mrb[0].mxu0
    %10995 = vmatprep.mubr.bf16.mxu0 %v7683
    %10996 = vmatmul.mubr.bf16.gmra.mrb[0].mxu0 %v7150
    %v10997 = vpop.f32.mrb[0].mxu0
    %v10998 = vadd.f32 %v10453, %v10997
    %v10999 = vpop.f32.mrb[0].mxu0
    %v11000 = vpop.f32.mrb[0].mxu0
    %v11001 = vadd.f32 %v10456, %v11000
    %v11002 = vpop.f32.mrb[0].mxu0
    %11003 = vmatprep.mubr.bf16.mxu0 %v7695
    %11004 = vmatmul.mubr.bf16.gmra.mrb[0].mxu0 %v7151
    %v11005 = vpop.f32.mrb[0].mxu0
    %v11006 = vadd.f32 %v10461, %v11005
    %v11007 = vpop.f32.mrb[0].mxu0
    %v11008 = vpop.f32.mrb[0].mxu0
    %v11009 = vadd.f32 %v10464, %v11008
    %v11010 = vpop.f32.mrb[0].mxu0
    %11011 = vmatprep.mubr.bf16.mxu0 %v7707
    %11012 = vmatmul.mubr.bf16.gmra.mrb[0].mxu0 %v7152
    %v11013 = vpop.f32.mrb[0].mxu0
    %v11014 = vadd.f32 %v10469, %v11013
    %v11015 = vpop.f32.mrb[0].mxu0
    %v11016 = vpop.f32.mrb[0].mxu0
    %v11017 = vadd.f32 %v10472, %v11016
    %v11018 = vpop.f32.mrb[0].mxu0
    %11019 = vmatprep.mubr.bf16.mxu0 %v7719
    %11020 = vmatmul.mubr.bf16.gmra.mrb[0].mxu0 %v7153
    %v11021 = vpop.f32.mrb[0].mxu0
    %v11022 = vadd.f32 %v10477, %v11021
    %v11023 = vpop.f32.mrb[0].mxu0
    %v11024 = vpop.f32.mrb[0].mxu0
    %v11025 = vadd.f32 %v10480, %v11024
    %v11026 = vpop.f32.mrb[0].mxu0
    %11027 = vmatprep.mubr.bf16.mxu0 %v7731
    %11028 = vmatmul.mubr.bf16.gmra.mrb[0].mxu0 %v7154
    %v11029 = vpop.f32.mrb[0].mxu0
    %v11030 = vadd.f32 %v10485, %v11029
    %v11031 = vpop.f32.mrb[0].mxu0
    %v11032 = vpop.f32.mrb[0].mxu0
    %v11033 = vadd.f32 %v10488, %v11032
    %v11034 = vpop.f32.mrb[0].mxu0
    %11035 = vmatprep.mubr.bf16.mxu0 %v7743
    %11036 = vmatmul.mubr.bf16.gmra.mrb[0].mxu0 %v7155
    %v11037 = vpop.f32.mrb[0].mxu0
    %v11038 = vadd.f32 %v10493, %v11037
    %v11039 = vpop.f32.mrb[0].mxu0
    %v11040 = vpop.f32.mrb[0].mxu0
    %v11041 = vadd.f32 %v10496, %v11040
    %v11042 = vpop.f32.mrb[0].mxu0
    %11043 = vmatprep.mubr.bf16.mxu0 %v7755
    %11044 = vmatmul.mubr.bf16.gmra.mrb[0].mxu0 %v7156
    %v11045 = vpop.f32.mrb[0].mxu0
    %v11046 = vadd.f32 %v10501, %v11045
    %v11047 = vpop.f32.mrb[0].mxu0
    %v11048 = vpop.f32.mrb[0].mxu0
    %v11049 = vadd.f32 %v10504, %v11048
    %v11050 = vpop.f32.mrb[0].mxu0
    %11051 = vmatprep.mubr.bf16.mxu0 %v7767
    %11052 = vmatmul.mubr.bf16.gmra.mrb[0].mxu0 %v7157
    %v11053 = vpop.f32.mrb[0].mxu0
    %v11054 = vadd.f32 %v10509, %v11053
    %v11055 = vpop.f32.mrb[0].mxu0
    %v11056 = vpop.f32.mrb[0].mxu0
    %v11057 = vadd.f32 %v10512, %v11056
    %v11058 = vpop.f32.mrb[0].mxu0
    %11059 = vmatprep.mubr.bf16.mxu0 %v7779
    %11060 = vmatmul.mubr.bf16.gmra.mrb[0].mxu0 %v7158
    %v11061 = vpop.f32.mrb[0].mxu0
    %v11062 = vadd.f32 %v10517, %v11061
    %v11063 = vpop.f32.mrb[0].mxu0
    %v11064 = vpop.f32.mrb[0].mxu0
    %v11065 = vadd.f32 %v10520, %v11064
    %v11066 = vpop.f32.mrb[0].mxu0
    %11067 = vmatprep.mubr.bf16.mxu0 %v8415
    %11068 = vmatmul.mubr.bf16.gmra.mrb[0].mxu0 %v7159
    %v11069 = vpop.f32.mrb[0].mxu0
    %v11070 = vadd.f32 %v10525, %v11069
    %v11071 = vpop.f32.mrb[0].mxu0
    %v11072 = vpop.f32.mrb[0].mxu0
    %v11073 = vadd.f32 %v10528, %v11072
    %v11074 = vpop.f32.mrb[0].mxu0
    %11075 = vmatprep.mubr.bf16.mxu0 %v1291
    %11076 = vmatmul.mubr.bf16.gmra.mrb[0].mxu0 %v1149
    %v11077 = vpop.f32.mrb[0].mxu0
    %v11078 = vadd.f32 %v10533, %v11077
    %v11079 = vpop.f32.mrb[0].mxu0
    %v11080 = vpop.f32.mrb[0].mxu0
    %v11081 = vadd.f32 %v10536, %v11080
    %v11082 = vpop.f32.mrb[0].mxu0
    %11083 = vmatprep.mubr.bf16.mxu0 %v7803
    %11084 = vmatmul.mubr.bf16.gmra.mrb[0].mxu0 %v7161
    %v11085 = vpop.f32.mrb[0].mxu0
    %v11086 = vadd.f32 %v10541, %v11085
    %v11087 = vpop.f32.mrb[0].mxu0
    %v11088 = vpop.f32.mrb[0].mxu0
    %v11089 = vadd.f32 %v10544, %v11088
    %v11090 = vpop.f32.mrb[0].mxu0
    %11091 = vmatprep.mubr.bf16.mxu0 %v7815
    %11092 = vmatmul.mubr.bf16.gmra.mrb[0].mxu0 %v7162
    %v11093 = vpop.f32.mrb[0].mxu0
    %v11094 = vadd.f32 %v10549, %v11093
    %v11095 = vpop.f32.mrb[0].mxu0
    %v11096 = vpop.f32.mrb[0].mxu0
    %v11097 = vadd.f32 %v10552, %v11096
    %v11098 = vpop.f32.mrb[0].mxu0
    %11099 = vmatprep.mubr.bf16.mxu0 %v7827
    %11100 = vmatmul.mubr.bf16.gmra.mrb[0].mxu0 %v7163
    %v11101 = vpop.f32.mrb[0].mxu0
    %v11102 = vadd.f32 %v10557, %v11101
    %v11103 = vpop.f32.mrb[0].mxu0
    %v11104 = vpop.f32.mrb[0].mxu0
    %v11105 = vadd.f32 %v10560, %v11104
    %v11106 = vpop.f32.mrb[0].mxu0
    %11107 = vmatprep.mubr.bf16.mxu0 %v7839
    %11108 = vmatmul.mubr.bf16.gmra.mrb[0].mxu0 %v7164
    %v11109 = vpop.f32.mrb[0].mxu0
    %v11110 = vadd.f32 %v10565, %v11109
    %v11111 = vpop.f32.mrb[0].mxu0
    %v11112 = vpop.f32.mrb[0].mxu0
    %v11113 = vadd.f32 %v10568, %v11112
    %v11114 = vpop.f32.mrb[0].mxu0
    %11115 = vmatprep.mubr.bf16.mxu0 %v7851
    %11116 = vmatmul.mubr.bf16.gmra.mrb[0].mxu0 %v7165
    %v11117 = vpop.f32.mrb[0].mxu0
    %v11118 = vadd.f32 %v10573, %v11117
    %v11119 = vpop.f32.mrb[0].mxu0
    %v11120 = vpop.f32.mrb[0].mxu0
    %v11121 = vadd.f32 %v10576, %v11120
    %v11122 = vpop.f32.mrb[0].mxu0
    %11123 = vmatprep.mubr.bf16.mxu0 %v7863
    %11124 = vmatmul.mubr.bf16.gmra.mrb[0].mxu0 %v7166
    %v11125 = vpop.f32.mrb[0].mxu0
    %v11126 = vadd.f32 %v10581, %v11125
    %v11127 = vpop.f32.mrb[0].mxu0
    %v11128 = vpop.f32.mrb[0].mxu0
    %v11129 = vadd.f32 %v10584, %v11128
    %v11130 = vpop.f32.mrb[0].mxu0
    %11131 = vmatprep.mubr.bf16.mxu0 %v7875
    %11132 = vmatmul.mubr.bf16.gmra.mrb[0].mxu0 %v7167
    %v11133 = vpop.f32.mrb[0].mxu0
    %v11134 = vadd.f32 %v10589, %v11133
    %v11135 = vpop.f32.mrb[0].mxu0
    %v11136 = vpop.f32.mrb[0].mxu0
    %v11137 = vadd.f32 %v10592, %v11136
    %v11138 = vpop.f32.mrb[0].mxu0
    %11139 = vmatprep.mubr.bf16.mxu0 %v7887
    %11140 = vmatmul.mubr.bf16.gmra.mrb[0].mxu0 %v7168
    %v11141 = vpop.f32.mrb[0].mxu0
    %v11142 = vadd.f32 %v10597, %v11141
    %v11143 = vpop.f32.mrb[0].mxu0
    %v11144 = vpop.f32.mrb[0].mxu0
    %v11145 = vadd.f32 %v10600, %v11144
    %v11146 = vpop.f32.mrb[0].mxu0
    %11147 = vmatprep.mubr.bf16.mxu0 %v7899
    %11148 = vmatmul.mubr.bf16.gmra.mrb[0].mxu0 %v7169
    %v11149 = vpop.f32.mrb[0].mxu0
    %v11150 = vadd.f32 %v10605, %v11149
    %v11151 = vpop.f32.mrb[0].mxu0
    %v11152 = vpop.f32.mrb[0].mxu0
    %v11153 = vadd.f32 %v10608, %v11152
    %v11154 = vpop.f32.mrb[0].mxu0
    %11155 = vmatprep.mubr.bf16.mxu0 %v7911
    %11156 = vmatmul.mubr.bf16.gmra.mrb[0].mxu0 %v7170
    %v11157 = vpop.f32.mrb[0].mxu0
    %v11158 = vadd.f32 %v10613, %v11157
    %v11159 = vpop.f32.mrb[0].mxu0
    %v11160 = vpop.f32.mrb[0].mxu0
    %v11161 = vadd.f32 %v10616, %v11160
    %v11162 = vpop.f32.mrb[0].mxu0
    %11163 = vmatprep.mubr.bf16.mxu0 %v7923
    %11164 = vmatmul.mubr.bf16.gmra.mrb[0].mxu0 %v7171
    %v11165 = vpop.f32.mrb[0].mxu0
    %v11166 = vadd.f32 %v10621, %v11165
    %v11167 = vpop.f32.mrb[0].mxu0
    %v11168 = vpop.f32.mrb[0].mxu0
    %v11169 = vadd.f32 %v10624, %v11168
    %v11170 = vpop.f32.mrb[0].mxu0
    %11171 = vmatprep.mubr.bf16.mxu0 %v7935
    %11172 = vmatmul.mubr.bf16.gmra.mrb[0].mxu0 %v7172
    %v11173 = vpop.f32.mrb[0].mxu0
    %v11174 = vadd.f32 %v10629, %v11173
    %v11175 = vpop.f32.mrb[0].mxu0
    %v11176 = vpop.f32.mrb[0].mxu0
    %v11177 = vadd.f32 %v10632, %v11176
    %v11178 = vpop.f32.mrb[0].mxu0
    %11179 = vmatprep.mubr.bf16.mxu0 %v7947
    %11180 = vmatmul.mubr.bf16.gmra.mrb[0].mxu0 %v7173
    %v11181 = vpop.f32.mrb[0].mxu0
    %v11182 = vadd.f32 %v10637, %v11181
    %v11183 = vpop.f32.mrb[0].mxu0
    %v11184 = vpop.f32.mrb[0].mxu0
    %v11185 = vadd.f32 %v10640, %v11184
    %v11186 = vpop.f32.mrb[0].mxu0
    %11187 = vmatprep.mubr.bf16.mxu0 %v7959
    %11188 = vmatmul.mubr.bf16.gmra.mrb[0].mxu0 %v7174
    %v11189 = vpop.f32.mrb[0].mxu0
    %v11190 = vadd.f32 %v10645, %v11189
    %v11191 = vpop.f32.mrb[0].mxu0
    %v11192 = vpop.f32.mrb[0].mxu0
    %v11193 = vadd.f32 %v10648, %v11192
    %v11194 = vpop.f32.mrb[0].mxu0
    %11195 = vmatprep.mubr.bf16.mxu0 %v8427
    %11196 = vmatmul.mubr.bf16.gmra.mrb[0].mxu0 %v7175
    %v11197 = vpop.f32.mrb[0].mxu0
    %v11198 = vadd.f32 %v10653, %v11197
    %v11199 = vpop.f32.mrb[0].mxu0
    %v11200 = vpop.f32.mrb[0].mxu0
    %v11201 = vadd.f32 %v10656, %v11200
    %v11202 = vpop.f32.mrb[0].mxu0
    %11203 = vmatprep.mubr.bf16.mxu0 %v1291
    %11204 = vmatmul.mubr.bf16.gmra.mrb[0].mxu0 %v1149
    %v11205 = vpop.f32.mrb[0].mxu0
    %v11206 = vadd.f32 %v10661, %v11205
    %v11207 = vpop.f32.mrb[0].mxu0
    %v11208 = vpop.f32.mrb[0].mxu0
    %v11209 = vadd.f32 %v10664, %v11208
    %v11210 = vpop.f32.mrb[0].mxu0
    %11211 = vdwg.mxu0
    %11212 = vmatprep.subr.bf16.mxu0 0
    %11213 = vmatpush1.bf16.msra.mxu0 %v8952
    %11214 = vmatprep.subr.bf16.mxu0 0
    %11215 = vmatpush1.bf16.msra.mxu0 %v8953
    %11216 = vmatprep.subr.bf16.mxu0 0
    %11217 = vmatpush1.bf16.msra.mxu0 %v8954
    %11218 = vmatprep.subr.bf16.mxu0 0
    %11219 = vmatpush1.bf16.msra.mxu0 %v8955
    %11220 = vmatprep.subr.bf16.mxu0 0
    %11221 = vmatpush1.bf16.msra.mxu0 %v8956
    %11222 = vmatprep.subr.bf16.mxu0 0
    %11223 = vmatpush1.bf16.msra.mxu0 %v8957
    %11224 = vmatprep.subr.bf16.mxu0 0
    %11225 = vmatpush1.bf16.msra.mxu0 %v8958
    %11226 = vmatprep.subr.bf16.mxu0 0
    %11227 = vmatpush1.bf16.msra.mxu0 %v8959
    %11228 = vmatprep.subr.bf16.mxu0 0
    %11229 = vmatpush1.bf16.msra.mxu0 0
    %11230 = vmatprep.subr.bf16.mxu0 0
    %11231 = vmatpush1.bf16.msra.mxu0 0
    %11232 = vmatprep.subr.bf16.mxu0 0
    %11233 = vmatpush1.bf16.msra.mxu0 0
    %11234 = vmatprep.subr.bf16.mxu0 0
    %11235 = vmatpush1.bf16.msra.mxu0 0
    %11236 = vmatprep.subr.bf16.mxu0 0
    %11237 = vmatpush1.bf16.msra.mxu0 0
    %11238 = vmatprep.subr.bf16.mxu0 0
    %11239 = vmatpush1.bf16.msra.mxu0 0
    %11240 = vmatprep.subr.bf16.mxu0 0
    %11241 = vmatpush1.bf16.msra.mxu0 0
    %11242 = vmatprep.subr.bf16.mxu0 0
    %11243 = vmatpush1.bf16.msra.mxu0 0
    %11244 = vmatprep.mubr.bf16.mxu0 0
    %11245 = vmatmul.mubr.bf16.gmra.mrb[0].mxu0 %v8145
    %v11246 = vpop.f32.mrb[0].mxu0
    %v11247 = vadd.f32 %v10702, %v11246
    %v11248 = vpop.f32.mrb[0].mxu0
    %v11249 = vpop.f32.mrb[0].mxu0
    %v11250 = vadd.f32 %v10705, %v11249
    %v11251 = vpop.f32.mrb[0].mxu0
    %11252 = vmatprep.mubr.bf16.mxu0 0
    %11253 = vmatmul.mubr.bf16.gmra.mrb[0].mxu0 %v8148
    %v11254 = vpop.f32.mrb[0].mxu0
    %v11255 = vadd.f32 %v10710, %v11254
    %v11256 = vpop.f32.mrb[0].mxu0
    %v11257 = vpop.f32.mrb[0].mxu0
    %v11258 = vadd.f32 %v10713, %v11257
    %v11259 = vpop.f32.mrb[0].mxu0
    %11260 = vmatprep.mubr.bf16.mxu0 0
    %11261 = vmatmul.mubr.bf16.gmra.mrb[0].mxu0 %v8151
    %v11262 = vpop.f32.mrb[0].mxu0
    %v11263 = vadd.f32 %v10718, %v11262
    %v11264 = vpop.f32.mrb[0].mxu0
    %v11265 = vpop.f32.mrb[0].mxu0
    %v11266 = vadd.f32 %v10721, %v11265
    %v11267 = vpop.f32.mrb[0].mxu0
    %11268 = vmatprep.mubr.bf16.mxu0 0
    %11269 = vmatmul.mubr.bf16.gmra.mrb[0].mxu0 %v8154
    %v11270 = vpop.f32.mrb[0].mxu0
    %v11271 = vadd.f32 %v10726, %v11270
    %v11272 = vpop.f32.mrb[0].mxu0
    %v11273 = vpop.f32.mrb[0].mxu0
    %v11274 = vadd.f32 %v10729, %v11273
    %v11275 = vpop.f32.mrb[0].mxu0
    %11276 = vmatprep.mubr.bf16.mxu0 0
    %11277 = vmatmul.mubr.bf16.gmra.mrb[0].mxu0 %v8157
    %v11278 = vpop.f32.mrb[0].mxu0
    %v11279 = vadd.f32 %v10734, %v11278
    %v11280 = vpop.f32.mrb[0].mxu0
    %v11281 = vpop.f32.mrb[0].mxu0
    %v11282 = vadd.f32 %v10737, %v11281
    %v11283 = vpop.f32.mrb[0].mxu0
    %11284 = vmatprep.mubr.bf16.mxu0 0
    %11285 = vmatmul.mubr.bf16.gmra.mrb[0].mxu0 %v8160
    %v11286 = vpop.f32.mrb[0].mxu0
    %v11287 = vadd.f32 %v10742, %v11286
    %v11288 = vpop.f32.mrb[0].mxu0
    %v11289 = vpop.f32.mrb[0].mxu0
    %v11290 = vadd.f32 %v10745, %v11289
    %v11291 = vpop.f32.mrb[0].mxu0
    %11292 = vmatprep.mubr.bf16.mxu0 0
    %11293 = vmatmul.mubr.bf16.gmra.mrb[0].mxu0 %v8163
    %v11294 = vpop.f32.mrb[0].mxu0
    %v11295 = vadd.f32 %v10750, %v11294
    %v11296 = vpop.f32.mrb[0].mxu0
    %v11297 = vpop.f32.mrb[0].mxu0
    %v11298 = vadd.f32 %v10753, %v11297
    %v11299 = vpop.f32.mrb[0].mxu0
    %11300 = vmatprep.mubr.bf16.mxu0 0
    %11301 = vmatmul.mubr.bf16.gmra.mrb[0].mxu0 %v8166
    %v11302 = vpop.f32.mrb[0].mxu0
    %v11303 = vadd.f32 %v10758, %v11302
    %v11304 = vpop.f32.mrb[0].mxu0
    %v11305 = vpop.f32.mrb[0].mxu0
    %v11306 = vadd.f32 %v10761, %v11305
    %v11307 = vpop.f32.mrb[0].mxu0
    %11308 = vmatprep.mubr.bf16.mxu0 0
    %11309 = vmatmul.mubr.bf16.gmra.mrb[0].mxu0 %v8169
    %v11310 = vpop.f32.mrb[0].mxu0
    %v11311 = vadd.f32 %v10766, %v11310
    %v11312 = vpop.f32.mrb[0].mxu0
    %v11313 = vpop.f32.mrb[0].mxu0
    %v11314 = vadd.f32 %v10769, %v11313
    %v11315 = vpop.f32.mrb[0].mxu0
    %11316 = vmatprep.mubr.bf16.mxu0 0
    %11317 = vmatmul.mubr.bf16.gmra.mrb[0].mxu0 %v8172
    %v11318 = vpop.f32.mrb[0].mxu0
    %v11319 = vadd.f32 %v10774, %v11318
    %v11320 = vpop.f32.mrb[0].mxu0
    %v11321 = vpop.f32.mrb[0].mxu0
    %v11322 = vadd.f32 %v10777, %v11321
    %v11323 = vpop.f32.mrb[0].mxu0
    %11324 = vmatprep.mubr.bf16.mxu0 0
    %11325 = vmatmul.mubr.bf16.gmra.mrb[0].mxu0 %v8175
    %v11326 = vpop.f32.mrb[0].mxu0
    %v11327 = vadd.f32 %v10782, %v11326
    %v11328 = vpop.f32.mrb[0].mxu0
    %v11329 = vpop.f32.mrb[0].mxu0
    %v11330 = vadd.f32 %v10785, %v11329
    %v11331 = vpop.f32.mrb[0].mxu0
    %11332 = vmatprep.mubr.bf16.mxu0 0
    %11333 = vmatmul.mubr.bf16.gmra.mrb[0].mxu0 %v8178
    %v11334 = vpop.f32.mrb[0].mxu0
    %v11335 = vadd.f32 %v10790, %v11334
    %v11336 = vpop.f32.mrb[0].mxu0
    %v11337 = vpop.f32.mrb[0].mxu0
    %v11338 = vadd.f32 %v10793, %v11337
    %v11339 = vpop.f32.mrb[0].mxu0
    %11340 = vmatprep.mubr.bf16.mxu0 0
    %11341 = vmatmul.mubr.bf16.gmra.mrb[0].mxu0 %v8181
    %v11342 = vpop.f32.mrb[0].mxu0
    %v11343 = vadd.f32 %v10798, %v11342
    %v11344 = vpop.f32.mrb[0].mxu0
    %v11345 = vpop.f32.mrb[0].mxu0
    %v11346 = vadd.f32 %v10801, %v11345
    %v11347 = vpop.f32.mrb[0].mxu0
    %11348 = vmatprep.mubr.bf16.mxu0 0
    %11349 = vmatmul.mubr.bf16.gmra.mrb[0].mxu0 %v8184
    %v11350 = vpop.f32.mrb[0].mxu0
    %v11351 = vadd.f32 %v10806, %v11350
    %v11352 = vpop.f32.mrb[0].mxu0
    %v11353 = vpop.f32.mrb[0].mxu0
    %v11354 = vadd.f32 %v10809, %v11353
    %v11355 = vpop.f32.mrb[0].mxu0
    %11356 = vmatprep.mubr.bf16.mxu0 0
    %11357 = vmatmul.mubr.bf16.gmra.mrb[0].mxu0 %v8442
    %v11358 = vpop.f32.mrb[0].mxu0
    %v11359 = vadd.f32 %v10814, %v11358
    %v11360 = vpop.f32.mrb[0].mxu0
    %v11361 = vpop.f32.mrb[0].mxu0
    %v11362 = vadd.f32 %v10817, %v11361
    %v11363 = vpop.f32.mrb[0].mxu0
    %11364 = vmatprep.mubr.bf16.mxu0 0
    %11365 = vmatmul.mubr.bf16.gmra.mrb[0].mxu0 %v2198
    %v11366 = vpop.f32.mrb[0].mxu0
    %v11367 = vadd.f32 %v10822, %v11366
    %v11368 = vpop.f32.mrb[0].mxu0
    %v11369 = vpop.f32.mrb[0].mxu0
    %v11370 = vadd.f32 %v10825, %v11369
    %v11371 = vpop.f32.mrb[0].mxu0
    %11372 = vmatprep.mubr.bf16.mxu0 0
    %11373 = vmatmul.mubr.bf16.gmra.mrb[0].mxu0 %v8190
    %v11374 = vpop.f32.mrb[0].mxu0
    %v11375 = vadd.f32 %v10830, %v11374
    %v11376 = vpop.f32.mrb[0].mxu0
    %v11377 = vpop.f32.mrb[0].mxu0
    %v11378 = vadd.f32 %v10833, %v11377
    %v11379 = vpop.f32.mrb[0].mxu0
    %11380 = vmatprep.mubr.bf16.mxu0 0
    %11381 = vmatmul.mubr.bf16.gmra.mrb[0].mxu0 %v8193
    %v11382 = vpop.f32.mrb[0].mxu0
    %v11383 = vadd.f32 %v10838, %v11382
    %v11384 = vpop.f32.mrb[0].mxu0
    %v11385 = vpop.f32.mrb[0].mxu0
    %v11386 = vadd.f32 %v10841, %v11385
    %v11387 = vpop.f32.mrb[0].mxu0
    %11388 = vmatprep.mubr.bf16.mxu0 0
    %11389 = vmatmul.mubr.bf16.gmra.mrb[0].mxu0 %v8196
    %v11390 = vpop.f32.mrb[0].mxu0
    %v11391 = vadd.f32 %v10846, %v11390
    %v11392 = vpop.f32.mrb[0].mxu0
    %v11393 = vpop.f32.mrb[0].mxu0
    %v11394 = vadd.f32 %v10849, %v11393
    %v11395 = vpop.f32.mrb[0].mxu0
    %11396 = vmatprep.mubr.bf16.mxu0 0
    %11397 = vmatmul.mubr.bf16.gmra.mrb[0].mxu0 %v8199
    %v11398 = vpop.f32.mrb[0].mxu0
    %v11399 = vadd.f32 %v10854, %v11398
    %v11400 = vpop.f32.mrb[0].mxu0
    %v11401 = vpop.f32.mrb[0].mxu0
    %v11402 = vadd.f32 %v10857, %v11401
    %v11403 = vpop.f32.mrb[0].mxu0
    %11404 = vmatprep.mubr.bf16.mxu0 0
    %11405 = vmatmul.mubr.bf16.gmra.mrb[0].mxu0 %v8202
    %v11406 = vpop.f32.mrb[0].mxu0
    %v11407 = vadd.f32 %v10862, %v11406
    %v11408 = vpop.f32.mrb[0].mxu0
    %v11409 = vpop.f32.mrb[0].mxu0
    %v11410 = vadd.f32 %v10865, %v11409
    %v11411 = vpop.f32.mrb[0].mxu0
    %11412 = vmatprep.mubr.bf16.mxu0 0
    %11413 = vmatmul.mubr.bf16.gmra.mrb[0].mxu0 %v8205
    %v11414 = vpop.f32.mrb[0].mxu0
    %v11415 = vadd.f32 %v10870, %v11414
    %v11416 = vpop.f32.mrb[0].mxu0
    %v11417 = vpop.f32.mrb[0].mxu0
    %v11418 = vadd.f32 %v10873, %v11417
    %v11419 = vpop.f32.mrb[0].mxu0
    %11420 = vmatprep.mubr.bf16.mxu0 0
    %11421 = vmatmul.mubr.bf16.gmra.mrb[0].mxu0 %v8208
    %v11422 = vpop.f32.mrb[0].mxu0
    %v11423 = vadd.f32 %v10878, %v11422
    %v11424 = vpop.f32.mrb[0].mxu0
    %v11425 = vpop.f32.mrb[0].mxu0
    %v11426 = vadd.f32 %v10881, %v11425
    %v11427 = vpop.f32.mrb[0].mxu0
    %11428 = vmatprep.mubr.bf16.mxu0 0
    %11429 = vmatmul.mubr.bf16.gmra.mrb[0].mxu0 %v8211
    %v11430 = vpop.f32.mrb[0].mxu0
    %v11431 = vadd.f32 %v10886, %v11430
    %v11432 = vpop.f32.mrb[0].mxu0
    %v11433 = vpop.f32.mrb[0].mxu0
    %v11434 = vadd.f32 %v10889, %v11433
    %v11435 = vpop.f32.mrb[0].mxu0
    %11436 = vmatprep.mubr.bf16.mxu0 0
    %11437 = vmatmul.mubr.bf16.gmra.mrb[0].mxu0 %v8214
    %v11438 = vpop.f32.mrb[0].mxu0
    %v11439 = vadd.f32 %v10894, %v11438
    %v11440 = vpop.f32.mrb[0].mxu0
    %v11441 = vpop.f32.mrb[0].mxu0
    %v11442 = vadd.f32 %v10897, %v11441
    %v11443 = vpop.f32.mrb[0].mxu0
    %11444 = vmatprep.mubr.bf16.mxu0 0
    %11445 = vmatmul.mubr.bf16.gmra.mrb[0].mxu0 %v8217
    %v11446 = vpop.f32.mrb[0].mxu0
    %v11447 = vadd.f32 %v10902, %v11446
    %v11448 = vpop.f32.mrb[0].mxu0
    %v11449 = vpop.f32.mrb[0].mxu0
    %v11450 = vadd.f32 %v10905, %v11449
    %v11451 = vpop.f32.mrb[0].mxu0
    %11452 = vmatprep.mubr.bf16.mxu0 0
    %11453 = vmatmul.mubr.bf16.gmra.mrb[0].mxu0 %v8220
    %v11454 = vpop.f32.mrb[0].mxu0
    %v11455 = vadd.f32 %v10910, %v11454
    %v11456 = vpop.f32.mrb[0].mxu0
    %v11457 = vpop.f32.mrb[0].mxu0
    %v11458 = vadd.f32 %v10913, %v11457
    %v11459 = vpop.f32.mrb[0].mxu0
    %11460 = vmatprep.mubr.bf16.mxu0 0
    %11461 = vmatmul.mubr.bf16.gmra.mrb[0].mxu0 %v8223
    %v11462 = vpop.f32.mrb[0].mxu0
    %v11463 = vadd.f32 %v10918, %v11462
    %v11464 = vpop.f32.mrb[0].mxu0
    %v11465 = vpop.f32.mrb[0].mxu0
    %v11466 = vadd.f32 %v10921, %v11465
    %v11467 = vpop.f32.mrb[0].mxu0
    %11468 = vmatprep.mubr.bf16.mxu0 0
    %11469 = vmatmul.mubr.bf16.gmra.mrb[0].mxu0 %v8226
    %v11470 = vpop.f32.mrb[0].mxu0
    %v11471 = vadd.f32 %v10926, %v11470
    %v11472 = vpop.f32.mrb[0].mxu0
    %v11473 = vpop.f32.mrb[0].mxu0
    %v11474 = vadd.f32 %v10929, %v11473
    %v11475 = vpop.f32.mrb[0].mxu0
    %11476 = vmatprep.mubr.bf16.mxu0 0
    %11477 = vmatmul.mubr.bf16.gmra.mrb[0].mxu0 %v8229
    %v11478 = vpop.f32.mrb[0].mxu0
    %v11479 = vadd.f32 %v10934, %v11478
    %v11480 = vpop.f32.mrb[0].mxu0
    %v11481 = vpop.f32.mrb[0].mxu0
    %v11482 = vadd.f32 %v10937, %v11481
    %v11483 = vpop.f32.mrb[0].mxu0
    %11484 = vmatprep.mubr.bf16.mxu0 0
    %11485 = vmatmul.mubr.bf16.gmra.mrb[0].mxu0 %v8445
    %v11486 = vpop.f32.mrb[0].mxu0
    %v11487 = vadd.f32 %v10942, %v11486
    %v11488 = vpop.f32.mrb[0].mxu0
    %v11489 = vpop.f32.mrb[0].mxu0
    %v11490 = vadd.f32 %v10945, %v11489
    %v11491 = vpop.f32.mrb[0].mxu0
    %11492 = vmatprep.mubr.bf16.mxu0 0
    %11493 = vmatmul.mubr.bf16.gmra.mrb[0].mxu0 %v2198
    %v11494 = vpop.f32.mrb[0].mxu0
    %v11495 = vadd.f32 %v10950, %v11494
    %v11496 = vpop.f32.mrb[0].mxu0
    %v11497 = vpop.f32.mrb[0].mxu0
    %v11498 = vadd.f32 %v10953, %v11497
    %v11499 = vpop.f32.mrb[0].mxu0
    %11500 = vmatprep.mubr.bf16.mxu0 0
    %11501 = vmatmul.mubr.bf16.gmra.mrb[0].mxu0 %v8235
    %v11502 = vpop.f32.mrb[0].mxu0
    %v11503 = vadd.f32 %v10958, %v11502
    %v11504 = vpop.f32.mrb[0].mxu0
    %v11505 = vpop.f32.mrb[0].mxu0
    %v11506 = vadd.f32 %v10961, %v11505
    %v11507 = vpop.f32.mrb[0].mxu0
    %11508 = vmatprep.mubr.bf16.mxu0 0
    %11509 = vmatmul.mubr.bf16.gmra.mrb[0].mxu0 %v8238
    %v11510 = vpop.f32.mrb[0].mxu0
    %v11511 = vadd.f32 %v10966, %v11510
    %v11512 = vpop.f32.mrb[0].mxu0
    %v11513 = vpop.f32.mrb[0].mxu0
    %v11514 = vadd.f32 %v10969, %v11513
    %v11515 = vpop.f32.mrb[0].mxu0
    %11516 = vmatprep.mubr.bf16.mxu0 0
    %11517 = vmatmul.mubr.bf16.gmra.mrb[0].mxu0 %v8241
    %v11518 = vpop.f32.mrb[0].mxu0
    %v11519 = vadd.f32 %v10974, %v11518
    %v11520 = vpop.f32.mrb[0].mxu0
    %v11521 = vpop.f32.mrb[0].mxu0
    %v11522 = vadd.f32 %v10977, %v11521
    %v11523 = vpop.f32.mrb[0].mxu0
    %11524 = vmatprep.mubr.bf16.mxu0 0
    %11525 = vmatmul.mubr.bf16.gmra.mrb[0].mxu0 %v8244
    %v11526 = vpop.f32.mrb[0].mxu0
    %v11527 = vadd.f32 %v10982, %v11526
    %v11528 = vpop.f32.mrb[0].mxu0
    %v11529 = vpop.f32.mrb[0].mxu0
    %v11530 = vadd.f32 %v10985, %v11529
    %v11531 = vpop.f32.mrb[0].mxu0
    %11532 = vmatprep.mubr.bf16.mxu0 0
    %11533 = vmatmul.mubr.bf16.gmra.mrb[0].mxu0 %v8247
    %v11534 = vpop.f32.mrb[0].mxu0
    %v11535 = vadd.f32 %v10990, %v11534
    %v11536 = vpop.f32.mrb[0].mxu0
    %v11537 = vpop.f32.mrb[0].mxu0
    %v11538 = vadd.f32 %v10993, %v11537
    %v11539 = vpop.f32.mrb[0].mxu0
    %11540 = vmatprep.mubr.bf16.mxu0 0
    %11541 = vmatmul.mubr.bf16.gmra.mrb[0].mxu0 %v8250
    %v11542 = vpop.f32.mrb[0].mxu0
    %v11543 = vadd.f32 %v10998, %v11542
    %v11544 = vpop.f32.mrb[0].mxu0
    %v11545 = vpop.f32.mrb[0].mxu0
    %v11546 = vadd.f32 %v11001, %v11545
    %v11547 = vpop.f32.mrb[0].mxu0
    %11548 = vmatprep.mubr.bf16.mxu0 0
    %11549 = vmatmul.mubr.bf16.gmra.mrb[0].mxu0 %v8253
    %v11550 = vpop.f32.mrb[0].mxu0
    %v11551 = vadd.f32 %v11006, %v11550
    %v11552 = vpop.f32.mrb[0].mxu0
    %v11553 = vpop.f32.mrb[0].mxu0
    %v11554 = vadd.f32 %v11009, %v11553
    %v11555 = vpop.f32.mrb[0].mxu0
    %11556 = vmatprep.mubr.bf16.mxu0 0
    %11557 = vmatmul.mubr.bf16.gmra.mrb[0].mxu0 %v8256
    %v11558 = vpop.f32.mrb[0].mxu0
    %v11559 = vadd.f32 %v11014, %v11558
    %v11560 = vpop.f32.mrb[0].mxu0
    %v11561 = vpop.f32.mrb[0].mxu0
    %v11562 = vadd.f32 %v11017, %v11561
    %v11563 = vpop.f32.mrb[0].mxu0
    %11564 = vmatprep.mubr.bf16.mxu0 0
    %11565 = vmatmul.mubr.bf16.gmra.mrb[0].mxu0 %v8259
    %v11566 = vpop.f32.mrb[0].mxu0
    %v11567 = vadd.f32 %v11022, %v11566
    %v11568 = vpop.f32.mrb[0].mxu0
    %v11569 = vpop.f32.mrb[0].mxu0
    %v11570 = vadd.f32 %v11025, %v11569
    %v11571 = vpop.f32.mrb[0].mxu0
    %11572 = vmatprep.mubr.bf16.mxu0 0
    %11573 = vmatmul.mubr.bf16.gmra.mrb[0].mxu0 %v8262
    %v11574 = vpop.f32.mrb[0].mxu0
    %v11575 = vadd.f32 %v11030, %v11574
    %v11576 = vpop.f32.mrb[0].mxu0
    %v11577 = vpop.f32.mrb[0].mxu0
    %v11578 = vadd.f32 %v11033, %v11577
    %v11579 = vpop.f32.mrb[0].mxu0
    %11580 = vmatprep.mubr.bf16.mxu0 0
    %11581 = vmatmul.mubr.bf16.gmra.mrb[0].mxu0 %v8265
    %v11582 = vpop.f32.mrb[0].mxu0
    %v11583 = vadd.f32 %v11038, %v11582
    %v11584 = vpop.f32.mrb[0].mxu0
    %v11585 = vpop.f32.mrb[0].mxu0
    %v11586 = vadd.f32 %v11041, %v11585
    %v11587 = vpop.f32.mrb[0].mxu0
    %11588 = vmatprep.mubr.bf16.mxu0 0
    %11589 = vmatmul.mubr.bf16.gmra.mrb[0].mxu0 %v8268
    %v11590 = vpop.f32.mrb[0].mxu0
    %v11591 = vadd.f32 %v11046, %v11590
    %v11592 = vpop.f32.mrb[0].mxu0
    %v11593 = vpop.f32.mrb[0].mxu0
    %v11594 = vadd.f32 %v11049, %v11593
    %v11595 = vpop.f32.mrb[0].mxu0
    %11596 = vmatprep.mubr.bf16.mxu0 0
    %11597 = vmatmul.mubr.bf16.gmra.mrb[0].mxu0 %v8271
    %v11598 = vpop.f32.mrb[0].mxu0
    %v11599 = vadd.f32 %v11054, %v11598
    %v11600 = vpop.f32.mrb[0].mxu0
    %v11601 = vpop.f32.mrb[0].mxu0
    %v11602 = vadd.f32 %v11057, %v11601
    %v11603 = vpop.f32.mrb[0].mxu0
    %11604 = vmatprep.mubr.bf16.mxu0 0
    %11605 = vmatmul.mubr.bf16.gmra.mrb[0].mxu0 %v8274
    %v11606 = vpop.f32.mrb[0].mxu0
    %v11607 = vadd.f32 %v11062, %v11606
    %v11608 = vpop.f32.mrb[0].mxu0
    %v11609 = vpop.f32.mrb[0].mxu0
    %v11610 = vadd.f32 %v11065, %v11609
    %v11611 = vpop.f32.mrb[0].mxu0
    %11612 = vmatprep.mubr.bf16.mxu0 0
    %11613 = vmatmul.mubr.bf16.gmra.mrb[0].mxu0 %v8448
    %v11614 = vpop.f32.mrb[0].mxu0
    %v11615 = vadd.f32 %v11070, %v11614
    %v11616 = vpop.f32.mrb[0].mxu0
    %v11617 = vpop.f32.mrb[0].mxu0
    %v11618 = vadd.f32 %v11073, %v11617
    %v11619 = vpop.f32.mrb[0].mxu0
    %11620 = vmatprep.mubr.bf16.mxu0 0
    %11621 = vmatmul.mubr.bf16.gmra.mrb[0].mxu0 %v2198
    %v11622 = vpop.f32.mrb[0].mxu0
    %v11623 = vadd.f32 %v11078, %v11622
    %v11624 = vpop.f32.mrb[0].mxu0
    %v11625 = vpop.f32.mrb[0].mxu0
    %v11626 = vadd.f32 %v11081, %v11625
    %v11627 = vpop.f32.mrb[0].mxu0
    %11628 = vmatprep.mubr.bf16.mxu0 0
    %11629 = vmatmul.mubr.bf16.gmra.mrb[0].mxu0 %v8280
    %v11630 = vpop.f32.mrb[0].mxu0
    %v11631 = vadd.f32 %v11086, %v11630
    %v11632 = vpop.f32.mrb[0].mxu0
    %v11633 = vpop.f32.mrb[0].mxu0
    %v11634 = vadd.f32 %v11089, %v11633
    %v11635 = vpop.f32.mrb[0].mxu0
    %11636 = vmatprep.mubr.bf16.mxu0 0
    %11637 = vmatmul.mubr.bf16.gmra.mrb[0].mxu0 %v8283
    %v11638 = vpop.f32.mrb[0].mxu0
    %v11639 = vadd.f32 %v11094, %v11638
    %v11640 = vpop.f32.mrb[0].mxu0
    %v11641 = vpop.f32.mrb[0].mxu0
    %v11642 = vadd.f32 %v11097, %v11641
    %v11643 = vpop.f32.mrb[0].mxu0
    %11644 = vmatprep.mubr.bf16.mxu0 0
    %11645 = vmatmul.mubr.bf16.gmra.mrb[0].mxu0 %v8286
    %v11646 = vpop.f32.mrb[0].mxu0
    %v11647 = vadd.f32 %v11102, %v11646
    %v11648 = vpop.f32.mrb[0].mxu0
    %v11649 = vpop.f32.mrb[0].mxu0
    %v11650 = vadd.f32 %v11105, %v11649
    %v11651 = vpop.f32.mrb[0].mxu0
    %11652 = vmatprep.mubr.bf16.mxu0 0
    %11653 = vmatmul.mubr.bf16.gmra.mrb[0].mxu0 %v8289
    %v11654 = vpop.f32.mrb[0].mxu0
    %v11655 = vadd.f32 %v11110, %v11654
    %v11656 = vpop.f32.mrb[0].mxu0
    %v11657 = vpop.f32.mrb[0].mxu0
    %v11658 = vadd.f32 %v11113, %v11657
    %v11659 = vpop.f32.mrb[0].mxu0
    %11660 = vmatprep.mubr.bf16.mxu0 0
    %11661 = vmatmul.mubr.bf16.gmra.mrb[0].mxu0 %v8292
    %v11662 = vpop.f32.mrb[0].mxu0
    %v11663 = vadd.f32 %v11118, %v11662
    %v11664 = vpop.f32.mrb[0].mxu0
    %v11665 = vpop.f32.mrb[0].mxu0
    %v11666 = vadd.f32 %v11121, %v11665
    %v11667 = vpop.f32.mrb[0].mxu0
    %11668 = vmatprep.mubr.bf16.mxu0 0
    %11669 = vmatmul.mubr.bf16.gmra.mrb[0].mxu0 %v8295
    %v11670 = vpop.f32.mrb[0].mxu0
    %v11671 = vadd.f32 %v11126, %v11670
    %v11672 = vpop.f32.mrb[0].mxu0
    %v11673 = vpop.f32.mrb[0].mxu0
    %v11674 = vadd.f32 %v11129, %v11673
    %v11675 = vpop.f32.mrb[0].mxu0
    %11676 = vmatprep.mubr.bf16.mxu0 0
    %11677 = vmatmul.mubr.bf16.gmra.mrb[0].mxu0 %v8298
    %v11678 = vpop.f32.mrb[0].mxu0
    %v11679 = vadd.f32 %v11134, %v11678
    %v11680 = vpop.f32.mrb[0].mxu0
    %v11681 = vpop.f32.mrb[0].mxu0
    %v11682 = vadd.f32 %v11137, %v11681
    %v11683 = vpop.f32.mrb[0].mxu0
    %11684 = vmatprep.mubr.bf16.mxu0 0
    %11685 = vmatmul.mubr.bf16.gmra.mrb[0].mxu0 %v8301
    %v11686 = vpop.f32.mrb[0].mxu0
    %v11687 = vadd.f32 %v11142, %v11686
    %v11688 = vpop.f32.mrb[0].mxu0
    %v11689 = vpop.f32.mrb[0].mxu0
    %v11690 = vadd.f32 %v11145, %v11689
    %v11691 = vpop.f32.mrb[0].mxu0
    %11692 = vmatprep.mubr.bf16.mxu0 0
    %11693 = vmatmul.mubr.bf16.gmra.mrb[0].mxu0 %v8304
    %v11694 = vpop.f32.mrb[0].mxu0
    %v11695 = vadd.f32 %v11150, %v11694
    %v11696 = vpop.f32.mrb[0].mxu0
    %v11697 = vpop.f32.mrb[0].mxu0
    %v11698 = vadd.f32 %v11153, %v11697
    %v11699 = vpop.f32.mrb[0].mxu0
    %11700 = vmatprep.mubr.bf16.mxu0 0
    %11701 = vmatmul.mubr.bf16.gmra.mrb[0].mxu0 %v8307
    %v11702 = vpop.f32.mrb[0].mxu0
    %v11703 = vadd.f32 %v11158, %v11702
    %v11704 = vpop.f32.mrb[0].mxu0
    %v11705 = vpop.f32.mrb[0].mxu0
    %v11706 = vadd.f32 %v11161, %v11705
    %v11707 = vpop.f32.mrb[0].mxu0
    %11708 = vmatprep.mubr.bf16.mxu0 0
    %11709 = vmatmul.mubr.bf16.gmra.mrb[0].mxu0 %v8310
    %v11710 = vpop.f32.mrb[0].mxu0
    %v11711 = vadd.f32 %v11166, %v11710
    %v11712 = vpop.f32.mrb[0].mxu0
    %v11713 = vpop.f32.mrb[0].mxu0
    %v11714 = vadd.f32 %v11169, %v11713
    %v11715 = vpop.f32.mrb[0].mxu0
    %11716 = vmatprep.mubr.bf16.mxu0 0
    %11717 = vmatmul.mubr.bf16.gmra.mrb[0].mxu0 %v8313
    %v11718 = vpop.f32.mrb[0].mxu0
    %v11719 = vadd.f32 %v11174, %v11718
    %v11720 = vpop.f32.mrb[0].mxu0
    %v11721 = vpop.f32.mrb[0].mxu0
    %v11722 = vadd.f32 %v11177, %v11721
    %v11723 = vpop.f32.mrb[0].mxu0
    %11724 = vmatprep.mubr.bf16.mxu0 0
    %11725 = vmatmul.mubr.bf16.gmra.mrb[0].mxu0 %v8316
    %v11726 = vpop.f32.mrb[0].mxu0
    %v11727 = vadd.f32 %v11182, %v11726
    %v11728 = vpop.f32.mrb[0].mxu0
    %v11729 = vpop.f32.mrb[0].mxu0
    %v11730 = vadd.f32 %v11185, %v11729
    %v11731 = vpop.f32.mrb[0].mxu0
    %11732 = vmatprep.mubr.bf16.mxu0 0
    %11733 = vmatmul.mubr.bf16.gmra.mrb[0].mxu0 %v8319
    %v11734 = vpop.f32.mrb[0].mxu0
    %v11735 = vadd.f32 %v11190, %v11734
    %v11736 = vpop.f32.mrb[0].mxu0
    %v11737 = vpop.f32.mrb[0].mxu0
    %v11738 = vadd.f32 %v11193, %v11737
    %v11739 = vpop.f32.mrb[0].mxu0
    %11740 = vmatprep.mubr.bf16.mxu0 0
    %11741 = vmatmul.mubr.bf16.gmra.mrb[0].mxu0 %v8451
    %v11742 = vpop.f32.mrb[0].mxu0
    %v11743 = vadd.f32 %v11198, %v11742
    %v11744 = vpop.f32.mrb[0].mxu0
    %v11745 = vpop.f32.mrb[0].mxu0
    %v11746 = vadd.f32 %v11201, %v11745
    %v11747 = vpop.f32.mrb[0].mxu0
    %11748 = vmatprep.mubr.bf16.mxu0 0
    %11749 = vmatmul.mubr.bf16.gmra.mrb[0].mxu0 %v2198
    %v11750 = vpop.f32.mrb[0].mxu0
    %v11751 = vadd.f32 %v11206, %v11750
    %v11752 = vpop.f32.mrb[0].mxu0
    %v11753 = vpop.f32.mrb[0].mxu0
    %v11754 = vadd.f32 %v11209, %v11753
    %v11755 = vpop.f32.mrb[0].mxu0
    %11756 = vdwg.mxu0
    %v11757 = vld [vmem:[%s7] sm:$0x1]
    %v11759 = vlaneseq
    %v11760 = vshrl.u32 %v11759, 7
    %v11761 = vsub.s32 0, %v11760
    %v11762 = vrot.slane %v11757, %v11761
    %v11764 = vmul.f32 %v11247, %v11762
    %v11765 = vmul.f32 %v11250, %v11762
    %v11766 = vmul.f32 %v11255, %v11762
    %v11767 = vmul.f32 %v11258, %v11762
    %v11768 = vmul.f32 %v11263, %v11762
    %v11769 = vmul.f32 %v11266, %v11762
    %v11770 = vmul.f32 %v11271, %v11762
    %v11771 = vmul.f32 %v11274, %v11762
    %v11772 = vmul.f32 %v11279, %v11762
    %v11773 = vmul.f32 %v11282, %v11762
    %v11774 = vmul.f32 %v11287, %v11762
    %v11775 = vmul.f32 %v11290, %v11762
    %v11776 = vmul.f32 %v11295, %v11762
    %v11777 = vmul.f32 %v11298, %v11762
    %v11778 = vmul.f32 %v11303, %v11762
    %v11779 = vmul.f32 %v11306, %v11762
    %v11780 = vmul.f32 %v11311, %v11762
    %v11781 = vmul.f32 %v11314, %v11762
    %v11782 = vmul.f32 %v11319, %v11762
    %v11783 = vmul.f32 %v11322, %v11762
    %v11784 = vmul.f32 %v11327, %v11762
    %v11785 = vmul.f32 %v11330, %v11762
    %v11786 = vmul.f32 %v11335, %v11762
    %v11787 = vmul.f32 %v11338, %v11762
    %v11788 = vmul.f32 %v11343, %v11762
    %v11789 = vmul.f32 %v11346, %v11762
    %v11790 = vmul.f32 %v11351, %v11762
    %v11791 = vmul.f32 %v11354, %v11762
    %v11792 = vmul.f32 %v11359, %v11762
    %v11793 = vmul.f32 %v11362, %v11762
    %v11794 = vmul.f32 %v11367, %v11762
    %v11795 = vmul.f32 %v11370, %v11762
    %v11796 = vmul.f32 %v11375, %v11762
    %v11797 = vmul.f32 %v11378, %v11762
    %v11798 = vmul.f32 %v11383, %v11762
    %v11799 = vmul.f32 %v11386, %v11762
    %v11800 = vmul.f32 %v11391, %v11762
    %v11801 = vmul.f32 %v11394, %v11762
    %v11802 = vmul.f32 %v11399, %v11762
    %v11803 = vmul.f32 %v11402, %v11762
    %v11804 = vmul.f32 %v11407, %v11762
    %v11805 = vmul.f32 %v11410, %v11762
    %v11806 = vmul.f32 %v11415, %v11762
    %v11807 = vmul.f32 %v11418, %v11762
    %v11808 = vmul.f32 %v11423, %v11762
    %v11809 = vmul.f32 %v11426, %v11762
    %v11810 = vmul.f32 %v11431, %v11762
    %v11811 = vmul.f32 %v11434, %v11762
    %v11812 = vmul.f32 %v11439, %v11762
    %v11813 = vmul.f32 %v11442, %v11762
    %v11814 = vmul.f32 %v11447, %v11762
    %v11815 = vmul.f32 %v11450, %v11762
    %v11816 = vmul.f32 %v11455, %v11762
    %v11817 = vmul.f32 %v11458, %v11762
    %v11818 = vmul.f32 %v11463, %v11762
    %v11819 = vmul.f32 %v11466, %v11762
    %v11820 = vmul.f32 %v11471, %v11762
    %v11821 = vmul.f32 %v11474, %v11762
    %v11822 = vmul.f32 %v11479, %v11762
    %v11823 = vmul.f32 %v11482, %v11762
    %v11824 = vmul.f32 %v11487, %v11762
    %v11825 = vmul.f32 %v11490, %v11762
    %v11826 = vmul.f32 %v11495, %v11762
    %v11827 = vmul.f32 %v11498, %v11762
    %v11828 = vmul.f32 %v11503, %v11762
    %v11829 = vmul.f32 %v11506, %v11762
    %v11830 = vmul.f32 %v11511, %v11762
    %v11831 = vmul.f32 %v11514, %v11762
    %v11832 = vmul.f32 %v11519, %v11762
    %v11833 = vmul.f32 %v11522, %v11762
    %v11834 = vmul.f32 %v11527, %v11762
    %v11835 = vmul.f32 %v11530, %v11762
    %v11836 = vmul.f32 %v11535, %v11762
    %v11837 = vmul.f32 %v11538, %v11762
    %v11838 = vmul.f32 %v11543, %v11762
    %v11839 = vmul.f32 %v11546, %v11762
    %v11840 = vmul.f32 %v11551, %v11762
    %v11841 = vmul.f32 %v11554, %v11762
    %v11842 = vmul.f32 %v11559, %v11762
    %v11843 = vmul.f32 %v11562, %v11762
    %v11844 = vmul.f32 %v11567, %v11762
    %v11845 = vmul.f32 %v11570, %v11762
    %v11846 = vmul.f32 %v11575, %v11762
    %v11847 = vmul.f32 %v11578, %v11762
    %v11848 = vmul.f32 %v11583, %v11762
    %v11849 = vmul.f32 %v11586, %v11762
    %v11850 = vmul.f32 %v11591, %v11762
    %v11851 = vmul.f32 %v11594, %v11762
    %v11852 = vmul.f32 %v11599, %v11762
    %v11853 = vmul.f32 %v11602, %v11762
    %v11854 = vmul.f32 %v11607, %v11762
    %v11855 = vmul.f32 %v11610, %v11762
    %v11856 = vmul.f32 %v11615, %v11762
    %v11857 = vmul.f32 %v11618, %v11762
    %v11858 = vmul.f32 %v11623, %v11762
    %v11859 = vmul.f32 %v11626, %v11762
    %v11860 = vmul.f32 %v11631, %v11762
    %v11861 = vmul.f32 %v11634, %v11762
    %v11862 = vmul.f32 %v11639, %v11762
    %v11863 = vmul.f32 %v11642, %v11762
    %v11864 = vmul.f32 %v11647, %v11762
    %v11865 = vmul.f32 %v11650, %v11762
    %v11866 = vmul.f32 %v11655, %v11762
    %v11867 = vmul.f32 %v11658, %v11762
    %v11868 = vmul.f32 %v11663, %v11762
    %v11869 = vmul.f32 %v11666, %v11762
    %v11870 = vmul.f32 %v11671, %v11762
    %v11871 = vmul.f32 %v11674, %v11762
    %v11872 = vmul.f32 %v11679, %v11762
    %v11873 = vmul.f32 %v11682, %v11762
    %v11874 = vmul.f32 %v11687, %v11762
    %v11875 = vmul.f32 %v11690, %v11762
    %v11876 = vmul.f32 %v11695, %v11762
    %v11877 = vmul.f32 %v11698, %v11762
    %v11878 = vmul.f32 %v11703, %v11762
    %v11879 = vmul.f32 %v11706, %v11762
    %v11880 = vmul.f32 %v11711, %v11762
    %v11881 = vmul.f32 %v11714, %v11762
    %v11882 = vmul.f32 %v11719, %v11762
    %v11883 = vmul.f32 %v11722, %v11762
    %v11884 = vmul.f32 %v11727, %v11762
    %v11885 = vmul.f32 %v11730, %v11762
    %v11886 = vmul.f32 %v11735, %v11762
    %v11887 = vmul.f32 %v11738, %v11762
    %v11888 = vmul.f32 %v11743, %v11762
    %v11889 = vmul.f32 %v11746, %v11762
    %v11890 = vmul.f32 %v11751, %v11762
    %v11891 = vmul.f32 %v11754, %v11762
    %v11892 = vld [vmem:[%s8] sm:$0x1]
    %v11894 = vlaneseq
    %v11895 = vshrl.u32 %v11894, 7
    %v11896 = vsub.s32 0, %v11895
    %v11897 = vrot.slane %v11892, %v11896
    %v11899 = vadd.f32 %v11764, %v11897
    %v11900 = vadd.f32 %v11765, %v11897
    %v11901 = vadd.f32 %v11766, %v11897
    %v11902 = vadd.f32 %v11767, %v11897
    %v11903 = vadd.f32 %v11768, %v11897
    %v11904 = vadd.f32 %v11769, %v11897
    %v11905 = vadd.f32 %v11770, %v11897
    %v11906 = vadd.f32 %v11771, %v11897
    %v11907 = vadd.f32 %v11772, %v11897
    %v11908 = vadd.f32 %v11773, %v11897
    %v11909 = vadd.f32 %v11774, %v11897
    %v11910 = vadd.f32 %v11775, %v11897
    %v11911 = vadd.f32 %v11776, %v11897
    %v11912 = vadd.f32 %v11777, %v11897
    %v11913 = vadd.f32 %v11778, %v11897
    %v11914 = vadd.f32 %v11779, %v11897
    %v11915 = vadd.f32 %v11780, %v11897
    %v11916 = vadd.f32 %v11781, %v11897
    %v11917 = vadd.f32 %v11782, %v11897
    %v11918 = vadd.f32 %v11783, %v11897
    %v11919 = vadd.f32 %v11784, %v11897
    %v11920 = vadd.f32 %v11785, %v11897
    %v11921 = vadd.f32 %v11786, %v11897
    %v11922 = vadd.f32 %v11787, %v11897
    %v11923 = vadd.f32 %v11788, %v11897
    %v11924 = vadd.f32 %v11789, %v11897
    %v11925 = vadd.f32 %v11790, %v11897
    %v11926 = vadd.f32 %v11791, %v11897
    %v11927 = vadd.f32 %v11792, %v11897
    %v11928 = vadd.f32 %v11793, %v11897
    %v11929 = vadd.f32 %v11794, %v11897
    %v11930 = vadd.f32 %v11795, %v11897
    %v11931 = vadd.f32 %v11796, %v11897
    %v11932 = vadd.f32 %v11797, %v11897
    %v11933 = vadd.f32 %v11798, %v11897
    %v11934 = vadd.f32 %v11799, %v11897
    %v11935 = vadd.f32 %v11800, %v11897
    %v11936 = vadd.f32 %v11801, %v11897
    %v11937 = vadd.f32 %v11802, %v11897
    %v11938 = vadd.f32 %v11803, %v11897
    %v11939 = vadd.f32 %v11804, %v11897
    %v11940 = vadd.f32 %v11805, %v11897
    %v11941 = vadd.f32 %v11806, %v11897
    %v11942 = vadd.f32 %v11807, %v11897
    %v11943 = vadd.f32 %v11808, %v11897
    %v11944 = vadd.f32 %v11809, %v11897
    %v11945 = vadd.f32 %v11810, %v11897
    %v11946 = vadd.f32 %v11811, %v11897
    %v11947 = vadd.f32 %v11812, %v11897
    %v11948 = vadd.f32 %v11813, %v11897
    %v11949 = vadd.f32 %v11814, %v11897
    %v11950 = vadd.f32 %v11815, %v11897
    %v11951 = vadd.f32 %v11816, %v11897
    %v11952 = vadd.f32 %v11817, %v11897
    %v11953 = vadd.f32 %v11818, %v11897
    %v11954 = vadd.f32 %v11819, %v11897
    %v11955 = vadd.f32 %v11820, %v11897
    %v11956 = vadd.f32 %v11821, %v11897
    %v11957 = vadd.f32 %v11822, %v11897
    %v11958 = vadd.f32 %v11823, %v11897
    %v11959 = vadd.f32 %v11824, %v11897
    %v11960 = vadd.f32 %v11825, %v11897
    %v11961 = vadd.f32 %v11826, %v11897
    %v11962 = vadd.f32 %v11827, %v11897
    %v11963 = vadd.f32 %v11828, %v11897
    %v11964 = vadd.f32 %v11829, %v11897
    %v11965 = vadd.f32 %v11830, %v11897
    %v11966 = vadd.f32 %v11831, %v11897
    %v11967 = vadd.f32 %v11832, %v11897
    %v11968 = vadd.f32 %v11833, %v11897
    %v11969 = vadd.f32 %v11834, %v11897
    %v11970 = vadd.f32 %v11835, %v11897
    %v11971 = vadd.f32 %v11836, %v11897
    %v11972 = vadd.f32 %v11837, %v11897
    %v11973 = vadd.f32 %v11838, %v11897
    %v11974 = vadd.f32 %v11839, %v11897
    %v11975 = vadd.f32 %v11840, %v11897
    %v11976 = vadd.f32 %v11841, %v11897
    %v11977 = vadd.f32 %v11842, %v11897
    %v11978 = vadd.f32 %v11843, %v11897
    %v11979 = vadd.f32 %v11844, %v11897
    %v11980 = vadd.f32 %v11845, %v11897
    %v11981 = vadd.f32 %v11846, %v11897
    %v11982 = vadd.f32 %v11847, %v11897
    %v11983 = vadd.f32 %v11848, %v11897
    %v11984 = vadd.f32 %v11849, %v11897
    %v11985 = vadd.f32 %v11850, %v11897
    %v11986 = vadd.f32 %v11851, %v11897
    %v11987 = vadd.f32 %v11852, %v11897
    %v11988 = vadd.f32 %v11853, %v11897
    %v11989 = vadd.f32 %v11854, %v11897
    %v11990 = vadd.f32 %v11855, %v11897
    %v11991 = vadd.f32 %v11856, %v11897
    %v11992 = vadd.f32 %v11857, %v11897
    %v11993 = vadd.f32 %v11858, %v11897
    %v11994 = vadd.f32 %v11859, %v11897
    %v11995 = vadd.f32 %v11860, %v11897
    %v11996 = vadd.f32 %v11861, %v11897
    %v11997 = vadd.f32 %v11862, %v11897
    %v11998 = vadd.f32 %v11863, %v11897
    %v11999 = vadd.f32 %v11864, %v11897
    %v12000 = vadd.f32 %v11865, %v11897
    %v12001 = vadd.f32 %v11866, %v11897
    %v12002 = vadd.f32 %v11867, %v11897
    %v12003 = vadd.f32 %v11868, %v11897
    %v12004 = vadd.f32 %v11869, %v11897
    %v12005 = vadd.f32 %v11870, %v11897
    %v12006 = vadd.f32 %v11871, %v11897
    %v12007 = vadd.f32 %v11872, %v11897
    %v12008 = vadd.f32 %v11873, %v11897
    %v12009 = vadd.f32 %v11874, %v11897
    %v12010 = vadd.f32 %v11875, %v11897
    %v12011 = vadd.f32 %v11876, %v11897
    %v12012 = vadd.f32 %v11877, %v11897
    %v12013 = vadd.f32 %v11878, %v11897
    %v12014 = vadd.f32 %v11879, %v11897
    %v12015 = vadd.f32 %v11880, %v11897
    %v12016 = vadd.f32 %v11881, %v11897
    %v12017 = vadd.f32 %v11882, %v11897
    %v12018 = vadd.f32 %v11883, %v11897
    %v12019 = vadd.f32 %v11884, %v11897
    %v12020 = vadd.f32 %v11885, %v11897
    %v12021 = vadd.f32 %v11886, %v11897
    %v12022 = vadd.f32 %v11887, %v11897
    %v12023 = vadd.f32 %v11888, %v11897
    %v12024 = vadd.f32 %v11889, %v11897
    %v12025 = vadd.f32 %v11890, %v11897
    %v12026 = vadd.f32 %v11891, %v11897
    %v12027 = vadd.f32 %v11899, %v11900
    %v12028 = vadd.f32 %v12027, %v11901
    %v12029 = vadd.f32 %v12028, %v11902
    %v12030 = vadd.f32 %v12029, %v11903
    %v12031 = vadd.f32 %v12030, %v11904
    %v12032 = vadd.f32 %v12031, %v11905
    %v12033 = vadd.f32 %v12032, %v11906
    %v12034 = vadd.f32 %v12033, %v11907
    %v12035 = vadd.f32 %v12034, %v11908
    %v12036 = vadd.f32 %v12035, %v11909
    %v12037 = vadd.f32 %v12036, %v11910
    %v12038 = vadd.f32 %v12037, %v11911
    %v12039 = vadd.f32 %v12038, %v11912
    %v12040 = vadd.f32 %v12039, %v11913
    %v12041 = vadd.f32 %v12040, %v11914
    %v12042 = vadd.f32 %v12041, %v11915
    %v12043 = vadd.f32 %v12042, %v11916
    %v12044 = vadd.f32 %v12043, %v11917
    %v12045 = vadd.f32 %v12044, %v11918
    %v12046 = vadd.f32 %v12045, %v11919
    %v12047 = vadd.f32 %v12046, %v11920
    %v12048 = vadd.f32 %v12047, %v11921
    %v12049 = vadd.f32 %v12048, %v11922
    %v12050 = vadd.f32 %v12049, %v11923
    %v12051 = vadd.f32 %v12050, %v11924
    %v12052 = vadd.f32 %v12051, %v11925
    %v12053 = vadd.f32 %v12052, %v11926
    %v12054 = vadd.f32 %v12053, %v11927
    %v12055 = vadd.f32 %v12054, %v11928
    %v12056 = vadd.f32 %v12055, %v11929
    %v12057 = vadd.f32 %v12056, %v11930
    %v12058 = vrot.slane %v12057, 4
    %v12059 = vadd.f32 %v12057, %v12058
    %v12060 = vrot.slane %v12059, 2
    %v12061 = vadd.f32 %v12059, %v12060
    %v12062 = vrot.slane %v12061, 1
    %v12063 = vadd.f32 %v12061, %v12062
    %v12064 = vadd.f32 %v11931, %v11932
    %v12065 = vadd.f32 %v12064, %v11933
    %v12066 = vadd.f32 %v12065, %v11934
    %v12067 = vadd.f32 %v12066, %v11935
    %v12068 = vadd.f32 %v12067, %v11936
    %v12069 = vadd.f32 %v12068, %v11937
    %v12070 = vadd.f32 %v12069, %v11938
    %v12071 = vadd.f32 %v12070, %v11939
    %v12072 = vadd.f32 %v12071, %v11940
    %v12073 = vadd.f32 %v12072, %v11941
    %v12074 = vadd.f32 %v12073, %v11942
    %v12075 = vadd.f32 %v12074, %v11943
    %v12076 = vadd.f32 %v12075, %v11944
    %v12077 = vadd.f32 %v12076, %v11945
    %v12078 = vadd.f32 %v12077, %v11946
    %v12079 = vadd.f32 %v12078, %v11947
    %v12080 = vadd.f32 %v12079, %v11948
    %v12081 = vadd.f32 %v12080, %v11949
    %v12082 = vadd.f32 %v12081, %v11950
    %v12083 = vadd.f32 %v12082, %v11951
    %v12084 = vadd.f32 %v12083, %v11952
    %v12085 = vadd.f32 %v12084, %v11953
    %v12086 = vadd.f32 %v12085, %v11954
    %v12087 = vadd.f32 %v12086, %v11955
    %v12088 = vadd.f32 %v12087, %v11956
    %v12089 = vadd.f32 %v12088, %v11957
    %v12090 = vadd.f32 %v12089, %v11958
    %v12091 = vadd.f32 %v12090, %v11959
    %v12092 = vadd.f32 %v12091, %v11960
    %v12093 = vadd.f32 %v12092, %v11961
    %v12094 = vadd.f32 %v12093, %v11962
    %v12095 = vrot.slane %v12094, 4
    %v12096 = vadd.f32 %v12094, %v12095
    %v12097 = vrot.slane %v12096, 2
    %v12098 = vadd.f32 %v12096, %v12097
    %v12099 = vrot.slane %v12098, 1
    %v12100 = vadd.f32 %v12098, %v12099
    %v12101 = vadd.f32 %v11963, %v11964
    %v12102 = vadd.f32 %v12101, %v11965
    %v12103 = vadd.f32 %v12102, %v11966
    %v12104 = vadd.f32 %v12103, %v11967
    %v12105 = vadd.f32 %v12104, %v11968
    %v12106 = vadd.f32 %v12105, %v11969
    %v12107 = vadd.f32 %v12106, %v11970
    %v12108 = vadd.f32 %v12107, %v11971
    %v12109 = vadd.f32 %v12108, %v11972
    %v12110 = vadd.f32 %v12109, %v11973
    %v12111 = vadd.f32 %v12110, %v11974
    %v12112 = vadd.f32 %v12111, %v11975
    %v12113 = vadd.f32 %v12112, %v11976
    %v12114 = vadd.f32 %v12113, %v11977
    %v12115 = vadd.f32 %v12114, %v11978
    %v12116 = vadd.f32 %v12115, %v11979
    %v12117 = vadd.f32 %v12116, %v11980
    %v12118 = vadd.f32 %v12117, %v11981
    %v12119 = vadd.f32 %v12118, %v11982
    %v12120 = vadd.f32 %v12119, %v11983
    %v12121 = vadd.f32 %v12120, %v11984
    %v12122 = vadd.f32 %v12121, %v11985
    %v12123 = vadd.f32 %v12122, %v11986
    %v12124 = vadd.f32 %v12123, %v11987
    %v12125 = vadd.f32 %v12124, %v11988
    %v12126 = vadd.f32 %v12125, %v11989
    %v12127 = vadd.f32 %v12126, %v11990
    %v12128 = vadd.f32 %v12127, %v11991
    %v12129 = vadd.f32 %v12128, %v11992
    %v12130 = vadd.f32 %v12129, %v11993
    %v12131 = vadd.f32 %v12130, %v11994
    %v12132 = vrot.slane %v12131, 4
    %v12133 = vadd.f32 %v12131, %v12132
    %v12134 = vrot.slane %v12133, 2
    %v12135 = vadd.f32 %v12133, %v12134
    %v12136 = vrot.slane %v12135, 1
    %v12137 = vadd.f32 %v12135, %v12136
    %v12138 = vadd.f32 %v11995, %v11996
    %v12139 = vadd.f32 %v12138, %v11997
    %v12140 = vadd.f32 %v12139, %v11998
    %v12141 = vadd.f32 %v12140, %v11999
    %v12142 = vadd.f32 %v12141, %v12000
    %v12143 = vadd.f32 %v12142, %v12001
    %v12144 = vadd.f32 %v12143, %v12002
    %v12145 = vadd.f32 %v12144, %v12003
    %v12146 = vadd.f32 %v12145, %v12004
    %v12147 = vadd.f32 %v12146, %v12005
    %v12148 = vadd.f32 %v12147, %v12006
    %v12149 = vadd.f32 %v12148, %v12007
    %v12150 = vadd.f32 %v12149, %v12008
    %v12151 = vadd.f32 %v12150, %v12009
    %v12152 = vadd.f32 %v12151, %v12010
    %v12153 = vadd.f32 %v12152, %v12011
    %v12154 = vadd.f32 %v12153, %v12012
    %v12155 = vadd.f32 %v12154, %v12013
    %v12156 = vadd.f32 %v12155, %v12014
    %v12157 = vadd.f32 %v12156, %v12015
    %v12158 = vadd.f32 %v12157, %v12016
    %v12159 = vadd.f32 %v12158, %v12017
    %v12160 = vadd.f32 %v12159, %v12018
    %v12161 = vadd.f32 %v12160, %v12019
    %v12162 = vadd.f32 %v12161, %v12020
    %v12163 = vadd.f32 %v12162, %v12021
    %v12164 = vadd.f32 %v12163, %v12022
    %v12165 = vadd.f32 %v12164, %v12023
    %v12166 = vadd.f32 %v12165, %v12024
    %v12167 = vadd.f32 %v12166, %v12025
    %v12168 = vadd.f32 %v12167, %v12026
    %v12169 = vrot.slane %v12168, 4
    %v12170 = vadd.f32 %v12168, %v12169
    %v12171 = vrot.slane %v12170, 2
    %v12172 = vadd.f32 %v12170, %v12171
    %v12173 = vrot.slane %v12172, 1
    %v12174 = vadd.f32 %v12172, %v12173
    %v12175 = vrcp.pop 256.0
    %v12176 = vmul.f32 %v12063, %v12175
    %v12177 = vmul.f32 %v12100, %v12175
    %v12178 = vmul.f32 %v12137, %v12175
    %v12179 = vmul.f32 %v12174, %v12175
    %v12180 = vld [vmem:[%s11] sm:$0xff]
    %v12181 = vld [vmem:[%s11 + $0x8] sm:$0xff]
    %v12182 = vld [vmem:[%s11 + $0x10] sm:$0xff]
    %v12183 = vld [vmem:[%s11 + $0x18] sm:$0xff]
    %v12184 = vld [vmem:[%s11 + $0x20] sm:$0xff]
    %v12185 = vld [vmem:[%s11 + $0x28] sm:$0xff]
    %v12186 = vld [vmem:[%s11 + $0x30] sm:$0xff]
    %v12187 = vld [vmem:[%s11 + $0x38] sm:$0xff]
    %v12188 = vld [vmem:[%s11 + $0x40] sm:$0xff]
    %v12189 = vld [vmem:[%s11 + $0x48] sm:$0xff]
    %v12190 = vld [vmem:[%s11 + $0x50] sm:$0xff]
    %v12191 = vld [vmem:[%s11 + $0x58] sm:$0xff]
    %v12192 = vld [vmem:[%s11 + $0x60] sm:$0xff]
    %v12193 = vld [vmem:[%s11 + $0x68] sm:$0xff]
    %v12194 = vld [vmem:[%s11 + $0x70] sm:$0xff]
    %v12195 = vld [vmem:[%s11 + $0x78] sm:$0xff]
    %v12196 = vld [vmem:[%s12] sm:$0x1]
    %v12198 = vlaneseq
    %v12199 = vshrl.u32 %v12198, 7
    %v12200 = vsub.s32 0, %v12199
    %v12201 = vrot.slane %v12196, %v12200
    %vm12207 = vcmask 1041409
    %v12208 = vsel %vm12207, %v12177, %v12176
    %vm12209 = vcmask 1042434
    %v12210 = vsel %vm12209, %v12178, %v12208
    %vm12211 = vcmask 1043459
    %v12212 = vsel %vm12211, %v12179, %v12210
    %12214 = vmatprep.subr.mxu0 0.0
    %12215 = vmatpush1.msra.mxu0 %v12180
    %12216 = vmatprep.subr.mxu0 0.0
    %12217 = vmatpush1.msra.mxu0 %v12181
    %12218 = vmatprep.subr.mxu0 0.0
    %12219 = vmatpush1.msra.mxu0 %v12182
    %12220 = vmatprep.subr.mxu0 0.0
    %12221 = vmatpush1.msra.mxu0 %v12183
    %12222 = vmatprep.subr.mxu0 0.0
    %12223 = vmatpush1.msra.mxu0 %v12184
    %12224 = vmatprep.subr.mxu0 0.0
    %12225 = vmatpush1.msra.mxu0 %v12185
    %12226 = vmatprep.subr.mxu0 0.0
    %12227 = vmatpush1.msra.mxu0 %v12186
    %12228 = vmatprep.subr.mxu0 0.0
    %12229 = vmatpush1.msra.mxu0 %v12187
    %12230 = vmatprep.subr.mxu0 0.0
    %12231 = vmatpush1.msra.mxu0 %v12188
    %12232 = vmatprep.subr.mxu0 0.0
    %12233 = vmatpush1.msra.mxu0 %v12189
    %12234 = vmatprep.subr.mxu0 0.0
    %12235 = vmatpush1.msra.mxu0 %v12190
    %12236 = vmatprep.subr.mxu0 0.0
    %12237 = vmatpush1.msra.mxu0 %v12191
    %12238 = vmatprep.subr.mxu0 0.0
    %12239 = vmatpush1.msra.mxu0 %v12192
    %12240 = vmatprep.subr.mxu0 0.0
    %12241 = vmatpush1.msra.mxu0 %v12193
    %12242 = vmatprep.subr.mxu0 0.0
    %12243 = vmatpush1.msra.mxu0 %v12194
    %12244 = vmatprep.subr.mxu0 0.0
    %12245 = vmatpush1.msra.mxu0 %v12195
    %12246 = vmatprep.subr.mxu0 0.0
    %12247 = vmatpush1.msra.mxu0 0.0
    %12248 = vmatprep.subr.mxu0 0.0
    %12249 = vmatpush1.msra.mxu0 0.0
    %12250 = vmatprep.subr.mxu0 0.0
    %12251 = vmatpush1.msra.mxu0 0.0
    %12252 = vmatprep.subr.mxu0 0.0
    %12253 = vmatpush1.msra.mxu0 0.0
    %12254 = vmatprep.subr.mxu0 0.0
    %12255 = vmatpush1.msra.mxu0 0.0
    %12256 = vmatprep.subr.mxu0 0.0
    %12257 = vmatpush1.msra.mxu0 0.0
    %12258 = vmatprep.subr.mxu0 0.0
    %12259 = vmatpush1.msra.mxu0 0.0
    %12260 = vmatprep.subr.mxu0 0.0
    %12261 = vmatpush1.msra.mxu0 0.0
    %12262 = vmatprep.subr.mxu0 0.0
    %12263 = vmatpush1.msra.mxu0 0.0
    %12264 = vmatprep.subr.mxu0 0.0
    %12265 = vmatpush1.msra.mxu0 0.0
    %12266 = vmatprep.subr.mxu0 0.0
    %12267 = vmatpush1.msra.mxu0 0.0
    %12268 = vmatprep.subr.mxu0 0.0
    %12269 = vmatpush1.msra.mxu0 0.0
    %12270 = vmatprep.subr.mxu0 0.0
    %12271 = vmatpush1.msra.mxu0 0.0
    %12272 = vmatprep.subr.mxu0 0.0
    %12273 = vmatpush1.msra.mxu0 0.0
    %12274 = vmatprep.subr.mxu0 0.0
    %12275 = vmatpush1.msra.mxu0 0.0
    %12276 = vmatprep.subr.mxu0 0.0
    %12277 = vmatpush1.msra.mxu0 0.0
    %12278 = vmatprep.mubr.f32.mxu0 0.0
    %12279 = vmatmul.mubr.f32.gmra.mrb[0].mxu0 %v12212
    %v12280 = vpop.f32.mrb[0].mxu0
    %v12281 = vadd.f32 %v12201, %v12280
    %v12282 = vpop.f32.mrb[0].mxu0
    %12283 = vdwg.mxu0
    %vm12284 = vcmp.ge.f32.partialorder %v12281, 0.0
    %v12285 = vld [vmem:[#allocation3] sm:$0x1]
    %s12286 = vtos %v12285
    %v12287 = vstv %s12286
    %v12288 = vmul.f32 %v12287, %v12281
    %v12289 = vsel %vm12284, %v12281, %v12288
    %v12290 = vld [vmem:[%s13] sm:$0xff]
    %v12291 = vld [vmem:[%s14] sm:$0x1]
    %v12293 = vlaneseq
    %v12294 = vshrl.u32 %v12293, 7
    %v12295 = vsub.s32 0, %v12294
    %v12296 = vrot.slane %v12291, %v12295
    %vm12298 = vcmask 64512
    %v12300 = vsel %vm12298, %v12289, 0
    %12302 = vmatprep.subr.mxu0 0.0
    %12303 = vmatpush1.msra.mxu0 %v12290
    %12304 = vmatprep.subr.mxu0 0.0
    %12305 = vmatpush1.msra.mxu0 0.0
    %12306 = vmatprep.subr.mxu0 0.0
    %12307 = vmatpush1.msra.mxu0 0.0
    %12308 = vmatprep.subr.mxu0 0.0
    %12309 = vmatpush1.msra.mxu0 0.0
    %12310 = vmatprep.subr.mxu0 0.0
    %12311 = vmatpush1.msra.mxu0 0.0
    %12312 = vmatprep.subr.mxu0 0.0
    %12313 = vmatpush1.msra.mxu0 0.0
    %12314 = vmatprep.subr.mxu0 0.0
    %12315 = vmatpush1.msra.mxu0 0.0
    %12316 = vmatprep.subr.mxu0 0.0
    %12317 = vmatpush1.msra.mxu0 0.0
    %12318 = vmatprep.subr.mxu0 0.0
    %12319 = vmatpush1.msra.mxu0 0.0
    %12320 = vmatprep.subr.mxu0 0.0
    %12321 = vmatpush1.msra.mxu0 0.0
    %12322 = vmatprep.subr.mxu0 0.0
    %12323 = vmatpush1.msra.mxu0 0.0
    %12324 = vmatprep.subr.mxu0 0.0
    %12325 = vmatpush1.msra.mxu0 0.0
    %12326 = vmatprep.subr.mxu0 0.0
    %12327 = vmatpush1.msra.mxu0 0.0
    %12328 = vmatprep.subr.mxu0 0.0
    %12329 = vmatpush1.msra.mxu0 0.0
    %12330 = vmatprep.subr.mxu0 0.0
    %12331 = vmatpush1.msra.mxu0 0.0
    %12332 = vmatprep.subr.mxu0 0.0
    %12333 = vmatpush1.msra.mxu0 0.0
    %12334 = vmatprep.subr.mxu0 0.0
    %12335 = vmatpush1.msra.mxu0 0.0
    %12336 = vmatprep.subr.mxu0 0.0
    %12337 = vmatpush1.msra.mxu0 0.0
    %12338 = vmatprep.subr.mxu0 0.0
    %12339 = vmatpush1.msra.mxu0 0.0
    %12340 = vmatprep.subr.mxu0 0.0
    %12341 = vmatpush1.msra.mxu0 0.0
    %12342 = vmatprep.subr.mxu0 0.0
    %12343 = vmatpush1.msra.mxu0 0.0
    %12344 = vmatprep.subr.mxu0 0.0
    %12345 = vmatpush1.msra.mxu0 0.0
    %12346 = vmatprep.subr.mxu0 0.0
    %12347 = vmatpush1.msra.mxu0 0.0
    %12348 = vmatprep.subr.mxu0 0.0
    %12349 = vmatpush1.msra.mxu0 0.0
    %12350 = vmatprep.subr.mxu0 0.0
    %12351 = vmatpush1.msra.mxu0 0.0
    %12352 = vmatprep.subr.mxu0 0.0
    %12353 = vmatpush1.msra.mxu0 0.0
    %12354 = vmatprep.subr.mxu0 0.0
    %12355 = vmatpush1.msra.mxu0 0.0
    %12356 = vmatprep.subr.mxu0 0.0
    %12357 = vmatpush1.msra.mxu0 0.0
    %12358 = vmatprep.subr.mxu0 0.0
    %12359 = vmatpush1.msra.mxu0 0.0
    %12360 = vmatprep.subr.mxu0 0.0
    %12361 = vmatpush1.msra.mxu0 0.0
    %12362 = vmatprep.subr.mxu0 0.0
    %12363 = vmatpush1.msra.mxu0 0.0
    %12364 = vmatprep.subr.mxu0 0.0
    %12365 = vmatpush1.msra.mxu0 0.0
    %12366 = vmatprep.mubr.f32.mxu0 0.0
    %12367 = vmatmul.mubr.f32.gmra.mrb[0].mxu0 %v12300
    %v12368 = vpop.f32.mrb[0].mxu0
    %v12369 = vadd.f32 %v12296, %v12368
    %v12370 = vpop.f32.mrb[0].mxu0
    %12371 = vdwg.mxu0
    %v12372 = vxor.u32 %v12369, 2147483648
    %v12373 = vmul.f32 %v12372, 1.442695
    %v12374 = vpow.pop %v12373
    %v12375 = vadd.f32 %v12374, 1.0
    %v12376 = vrcp.pop %v12375
    %v12377 = vmul.f32 1.0, %v12376
    %v12380 = vunpack.c.l.s4 1966171168
    %v12381 = vunpack.c.0.s8 %v12380
    %v12382 = vlaneseq
    %v12383 = vshrl.u32 %v12382, 7
    %v12384 = vsub.s32 %v12381, %v12383
    %v12385 = vrot.slane %v12377, %v12384
    %v12386 = vcombine.high %v12385, %v12385
    %v12388 = vunpack.c.l.s4 1966171168
    %v12389 = vunpack.c.0.s8 %v12388
    %v12390 = vlaneseq
    %v12391 = vshrl.u32 %v12390, 7
    %v12392 = vsub.s32 %v12389, %v12391
    %v12393 = vrot.slane %v12385, %v12392
    %v12395 = vunpack.c.l.s4 1966171168
    %v12396 = vunpack.c.0.s8 %v12395
    %v12397 = vlaneseq
    %v12398 = vshrl.u32 %v12397, 7
    %v12399 = vsub.s32 %v12396, %v12398
    %v12400 = vrot.slane %v12386, %v12399
    %v12401 = vcombine.high %v12393, %v12393
    %v12402 = vcombine.high %v12400, %v12400
    %v12403 = vlaneseq
    %v12404 = vshrl.u32 %v12403, 7
    %v12405 = vsub.s32 0, %v12404
    %v12406 = vrot.slane %v12393, %v12405
    %v12407 = vlaneseq
    %v12408 = vshrl.u32 %v12407, 7
    %v12409 = vsub.s32 0, %v12408
    %v12410 = vrot.slane %v12400, %v12409
    %v12411 = vlaneseq
    %v12412 = vshrl.u32 %v12411, 7
    %v12413 = vsub.s32 0, %v12412
    %v12414 = vrot.slane %v12401, %v12413
    %v12415 = vlaneseq
    %v12416 = vshrl.u32 %v12415, 7
    %v12417 = vsub.s32 0, %v12416
    %v12418 = vrot.slane %v12402, %v12417
    %v12423 = vmul.f32 %v11899, %v12406
    %v12424 = vmul.f32 %v11900, %v12406
    %v12425 = vmul.f32 %v11901, %v12406
    %v12426 = vmul.f32 %v11902, %v12406
    %v12427 = vmul.f32 %v11903, %v12406
    %v12428 = vmul.f32 %v11904, %v12406
    %v12429 = vmul.f32 %v11905, %v12406
    %v12430 = vmul.f32 %v11906, %v12406
    %v12431 = vmul.f32 %v11907, %v12406
    %v12432 = vmul.f32 %v11908, %v12406
    %v12433 = vmul.f32 %v11909, %v12406
    %v12434 = vmul.f32 %v11910, %v12406
    %v12435 = vmul.f32 %v11911, %v12406
    %v12436 = vmul.f32 %v11912, %v12406
    %v12437 = vmul.f32 %v11913, %v12406
    %v12438 = vmul.f32 %v11914, %v12406
    %v12439 = vmul.f32 %v11915, %v12406
    %v12440 = vmul.f32 %v11916, %v12406
    %v12441 = vmul.f32 %v11917, %v12406
    %v12442 = vmul.f32 %v11918, %v12406
    %v12443 = vmul.f32 %v11919, %v12406
    %v12444 = vmul.f32 %v11920, %v12406
    %v12445 = vmul.f32 %v11921, %v12406
    %v12446 = vmul.f32 %v11922, %v12406
    %v12447 = vmul.f32 %v11923, %v12406
    %v12448 = vmul.f32 %v11924, %v12406
    %v12449 = vmul.f32 %v11925, %v12406
    %v12450 = vmul.f32 %v11926, %v12406
    %v12451 = vmul.f32 %v11927, %v12406
    %v12452 = vmul.f32 %v11928, %v12406
    %v12453 = vmul.f32 %v11929, %v12406
    %v12454 = vmul.f32 %v11930, %v12406
    %v12455 = vmul.f32 %v11931, %v12410
    %v12456 = vmul.f32 %v11932, %v12410
    %v12457 = vmul.f32 %v11933, %v12410
    %v12458 = vmul.f32 %v11934, %v12410
    %v12459 = vmul.f32 %v11935, %v12410
    %v12460 = vmul.f32 %v11936, %v12410
    %v12461 = vmul.f32 %v11937, %v12410
    %v12462 = vmul.f32 %v11938, %v12410
    %v12463 = vmul.f32 %v11939, %v12410
    %v12464 = vmul.f32 %v11940, %v12410
    %v12465 = vmul.f32 %v11941, %v12410
    %v12466 = vmul.f32 %v11942, %v12410
    %v12467 = vmul.f32 %v11943, %v12410
    %v12468 = vmul.f32 %v11944, %v12410
    %v12469 = vmul.f32 %v11945, %v12410
    %v12470 = vmul.f32 %v11946, %v12410
    %v12471 = vmul.f32 %v11947, %v12410
    %v12472 = vmul.f32 %v11948, %v12410
    %v12473 = vmul.f32 %v11949, %v12410
    %v12474 = vmul.f32 %v11950, %v12410
    %v12475 = vmul.f32 %v11951, %v12410
    %v12476 = vmul.f32 %v11952, %v12410
    %v12477 = vmul.f32 %v11953, %v12410
    %v12478 = vmul.f32 %v11954, %v12410
    %v12479 = vmul.f32 %v11955, %v12410
    %v12480 = vmul.f32 %v11956, %v12410
    %v12481 = vmul.f32 %v11957, %v12410
    %v12482 = vmul.f32 %v11958, %v12410
    %v12483 = vmul.f32 %v11959, %v12410
    %v12484 = vmul.f32 %v11960, %v12410
    %v12485 = vmul.f32 %v11961, %v12410
    %v12486 = vmul.f32 %v11962, %v12410
    %v12487 = vmul.f32 %v11963, %v12414
    %v12488 = vmul.f32 %v11964, %v12414
    %v12489 = vmul.f32 %v11965, %v12414
    %v12490 = vmul.f32 %v11966, %v12414
    %v12491 = vmul.f32 %v11967, %v12414
    %v12492 = vmul.f32 %v11968, %v12414
    %v12493 = vmul.f32 %v11969, %v12414
    %v12494 = vmul.f32 %v11970, %v12414
    %v12495 = vmul.f32 %v11971, %v12414
    %v12496 = vmul.f32 %v11972, %v12414
    %v12497 = vmul.f32 %v11973, %v12414
    %v12498 = vmul.f32 %v11974, %v12414
    %v12499 = vmul.f32 %v11975, %v12414
    %v12500 = vmul.f32 %v11976, %v12414
    %v12501 = vmul.f32 %v11977, %v12414
    %v12502 = vmul.f32 %v11978, %v12414
    %v12503 = vmul.f32 %v11979, %v12414
    %v12504 = vmul.f32 %v11980, %v12414
    %v12505 = vmul.f32 %v11981, %v12414
    %v12506 = vmul.f32 %v11982, %v12414
    %v12507 = vmul.f32 %v11983, %v12414
    %v12508 = vmul.f32 %v11984, %v12414
    %v12509 = vmul.f32 %v11985, %v12414
    %v12510 = vmul.f32 %v11986, %v12414
    %v12511 = vmul.f32 %v11987, %v12414
    %v12512 = vmul.f32 %v11988, %v12414
    %v12513 = vmul.f32 %v11989, %v12414
    %v12514 = vmul.f32 %v11990, %v12414
    %v12515 = vmul.f32 %v11991, %v12414
    %v12516 = vmul.f32 %v11992, %v12414
    %v12517 = vmul.f32 %v11993, %v12414
    %v12518 = vmul.f32 %v11994, %v12414
    %v12519 = vmul.f32 %v11995, %v12418
    %v12520 = vmul.f32 %v11996, %v12418
    %v12521 = vmul.f32 %v11997, %v12418
    %v12522 = vmul.f32 %v11998, %v12418
    %v12523 = vmul.f32 %v11999, %v12418
    %v12524 = vmul.f32 %v12000, %v12418
    %v12525 = vmul.f32 %v12001, %v12418
    %v12526 = vmul.f32 %v12002, %v12418
    %v12527 = vmul.f32 %v12003, %v12418
    %v12528 = vmul.f32 %v12004, %v12418
    %v12529 = vmul.f32 %v12005, %v12418
    %v12530 = vmul.f32 %v12006, %v12418
    %v12531 = vmul.f32 %v12007, %v12418
    %v12532 = vmul.f32 %v12008, %v12418
    %v12533 = vmul.f32 %v12009, %v12418
    %v12534 = vmul.f32 %v12010, %v12418
    %v12535 = vmul.f32 %v12011, %v12418
    %v12536 = vmul.f32 %v12012, %v12418
    %v12537 = vmul.f32 %v12013, %v12418
    %v12538 = vmul.f32 %v12014, %v12418
    %v12539 = vmul.f32 %v12015, %v12418
    %v12540 = vmul.f32 %v12016, %v12418
    %v12541 = vmul.f32 %v12017, %v12418
    %v12542 = vmul.f32 %v12018, %v12418
    %v12543 = vmul.f32 %v12019, %v12418
    %v12544 = vmul.f32 %v12020, %v12418
    %v12545 = vmul.f32 %v12021, %v12418
    %v12546 = vmul.f32 %v12022, %v12418
    %v12547 = vmul.f32 %v12023, %v12418
    %v12548 = vmul.f32 %v12024, %v12418
    %v12549 = vmul.f32 %v12025, %v12418
    %v12550 = vmul.f32 %v12026, %v12418
    %v12551 = vadd.f32 %v12423, %v97
    %v12552 = vadd.f32 %v12424, %v98
    %v12553 = vadd.f32 %v12425, %v99
    %v12554 = vadd.f32 %v12426, %v100
    %v12555 = vadd.f32 %v12427, %v101
    %v12556 = vadd.f32 %v12428, %v102
    %v12557 = vadd.f32 %v12429, %v103
    %v12558 = vadd.f32 %v12430, %v104
    %v12559 = vadd.f32 %v12431, %v105
    %v12560 = vadd.f32 %v12432, %v106
    %v12561 = vadd.f32 %v12433, %v107
    %v12562 = vadd.f32 %v12434, %v108
    %v12563 = vadd.f32 %v12435, %v109
    %v12564 = vadd.f32 %v12436, %v110
    %v12565 = vadd.f32 %v12437, %v111
    %v12566 = vadd.f32 %v12438, %v112
    %v12567 = vadd.f32 %v12439, %v113
    %v12568 = vadd.f32 %v12440, %v114
    %v12569 = vadd.f32 %v12441, %v115
    %v12570 = vadd.f32 %v12442, %v116
    %v12571 = vadd.f32 %v12443, %v117
    %v12572 = vadd.f32 %v12444, %v118
    %v12573 = vadd.f32 %v12445, %v119
    %v12574 = vadd.f32 %v12446, %v120
    %v12575 = vadd.f32 %v12447, %v121
    %v12576 = vadd.f32 %v12448, %v122
    %v12577 = vadd.f32 %v12449, %v123
    %v12578 = vadd.f32 %v12450, %v124
    %v12579 = vadd.f32 %v12451, %v125
    %v12580 = vadd.f32 %v12452, %v126
    %v12581 = vadd.f32 %v12453, %v127
    %v12582 = vadd.f32 %v12454, %v128
    %v12583 = vadd.f32 %v12455, %v129
    %v12584 = vadd.f32 %v12456, %v130
    %v12585 = vadd.f32 %v12457, %v131
    %v12586 = vadd.f32 %v12458, %v132
    %v12587 = vadd.f32 %v12459, %v133
    %v12588 = vadd.f32 %v12460, %v134
    %v12589 = vadd.f32 %v12461, %v135
    %v12590 = vadd.f32 %v12462, %v136
    %v12591 = vadd.f32 %v12463, %v137
    %v12592 = vadd.f32 %v12464, %v138
    %v12593 = vadd.f32 %v12465, %v139
    %v12594 = vadd.f32 %v12466, %v140
    %v12595 = vadd.f32 %v12467, %v141
    %v12596 = vadd.f32 %v12468, %v142
    %v12597 = vadd.f32 %v12469, %v143
    %v12598 = vadd.f32 %v12470, %v144
    %v12599 = vadd.f32 %v12471, %v145
    %v12600 = vadd.f32 %v12472, %v146
    %v12601 = vadd.f32 %v12473, %v147
    %v12602 = vadd.f32 %v12474, %v148
    %v12603 = vadd.f32 %v12475, %v149
    %v12604 = vadd.f32 %v12476, %v150
    %v12605 = vadd.f32 %v12477, %v151
    %v12606 = vadd.f32 %v12478, %v152
    %v12607 = vadd.f32 %v12479, %v153
    %v12608 = vadd.f32 %v12480, %v154
    %v12609 = vadd.f32 %v12481, %v155
    %v12610 = vadd.f32 %v12482, %v156
    %v12611 = vadd.f32 %v12483, %v157
    %v12612 = vadd.f32 %v12484, %v158
    %v12613 = vadd.f32 %v12485, %v159
    %v12614 = vadd.f32 %v12486, %v160
    %v12615 = vadd.f32 %v12487, %v161
    %v12616 = vadd.f32 %v12488, %v162
    %v12617 = vadd.f32 %v12489, %v163
    %v12618 = vadd.f32 %v12490, %v164
    %v12619 = vadd.f32 %v12491, %v165
    %v12620 = vadd.f32 %v12492, %v166
    %v12621 = vadd.f32 %v12493, %v167
    %v12622 = vadd.f32 %v12494, %v168
    %v12623 = vadd.f32 %v12495, %v169
    %v12624 = vadd.f32 %v12496, %v170
    %v12625 = vadd.f32 %v12497, %v171
    %v12626 = vadd.f32 %v12498, %v172
    %v12627 = vadd.f32 %v12499, %v173
    %v12628 = vadd.f32 %v12500, %v174
    %v12629 = vadd.f32 %v12501, %v175
    %v12630 = vadd.f32 %v12502, %v176
    %v12631 = vadd.f32 %v12503, %v177
    %v12632 = vadd.f32 %v12504, %v178
    %v12633 = vadd.f32 %v12505, %v179
    %v12634 = vadd.f32 %v12506, %v180
    %v12635 = vadd.f32 %v12507, %v181
    %v12636 = vadd.f32 %v12508, %v182
    %v12637 = vadd.f32 %v12509, %v183
    %v12638 = vadd.f32 %v12510, %v184
    %v12639 = vadd.f32 %v12511, %v185
    %v12640 = vadd.f32 %v12512, %v186
    %v12641 = vadd.f32 %v12513, %v187
    %v12642 = vadd.f32 %v12514, %v188
    %v12643 = vadd.f32 %v12515, %v189
    %v12644 = vadd.f32 %v12516, %v190
    %v12645 = vadd.f32 %v12517, %v191
    %v12646 = vadd.f32 %v12518, %v192
    %v12647 = vadd.f32 %v12519, %v193
    %v12648 = vadd.f32 %v12520, %v194
    %v12649 = vadd.f32 %v12521, %v195
    %v12650 = vadd.f32 %v12522, %v196
    %v12651 = vadd.f32 %v12523, %v197
    %v12652 = vadd.f32 %v12524, %v198
    %v12653 = vadd.f32 %v12525, %v199
    %v12654 = vadd.f32 %v12526, %v200
    %v12655 = vadd.f32 %v12527, %v201
    %v12656 = vadd.f32 %v12528, %v202
    %v12657 = vadd.f32 %v12529, %v203
    %v12658 = vadd.f32 %v12530, %v204
    %v12659 = vadd.f32 %v12531, %v205
    %v12660 = vadd.f32 %v12532, %v206
    %v12661 = vadd.f32 %v12533, %v207
    %v12662 = vadd.f32 %v12534, %v208
    %v12663 = vadd.f32 %v12535, %v209
    %v12664 = vadd.f32 %v12536, %v210
    %v12665 = vadd.f32 %v12537, %v211
    %v12666 = vadd.f32 %v12538, %v212
    %v12667 = vadd.f32 %v12539, %v213
    %v12668 = vadd.f32 %v12540, %v214
    %v12669 = vadd.f32 %v12541, %v215
    %v12670 = vadd.f32 %v12542, %v216
    %v12671 = vadd.f32 %v12543, %v217
    %v12672 = vadd.f32 %v12544, %v218
    %v12673 = vadd.f32 %v12545, %v219
    %v12674 = vadd.f32 %v12546, %v220
    %v12675 = vadd.f32 %v12547, %v221
    %v12676 = vadd.f32 %v12548, %v222
    %v12677 = vadd.f32 %v12549, %v223
    %v12678 = vadd.f32 %v12550, %v224
    %vm12679 = vcmp.ge.f32.partialorder %v12551, 0.0
    %vm12680 = vcmp.ge.f32.partialorder %v12552, 0.0
    %vm12681 = vcmp.ge.f32.partialorder %v12553, 0.0
    %vm12682 = vcmp.ge.f32.partialorder %v12554, 0.0
    %vm12683 = vcmp.ge.f32.partialorder %v12555, 0.0
    %vm12684 = vcmp.ge.f32.partialorder %v12556, 0.0
    %vm12685 = vcmp.ge.f32.partialorder %v12557, 0.0
    %vm12686 = vcmp.ge.f32.partialorder %v12558, 0.0
    %vm12687 = vcmp.ge.f32.partialorder %v12559, 0.0
    %vm12688 = vcmp.ge.f32.partialorder %v12560, 0.0
    %vm12689 = vcmp.ge.f32.partialorder %v12561, 0.0
    %vm12690 = vcmp.ge.f32.partialorder %v12562, 0.0
    %vm12691 = vcmp.ge.f32.partialorder %v12563, 0.0
    %vm12692 = vcmp.ge.f32.partialorder %v12564, 0.0
    %vm12693 = vcmp.ge.f32.partialorder %v12565, 0.0
    %vm12694 = vcmp.ge.f32.partialorder %v12566, 0.0
    %vm12695 = vcmp.ge.f32.partialorder %v12567, 0.0
    %vm12696 = vcmp.ge.f32.partialorder %v12568, 0.0
    %vm12697 = vcmp.ge.f32.partialorder %v12569, 0.0
    %vm12698 = vcmp.ge.f32.partialorder %v12570, 0.0
    %vm12699 = vcmp.ge.f32.partialorder %v12571, 0.0
    %vm12700 = vcmp.ge.f32.partialorder %v12572, 0.0
    %vm12701 = vcmp.ge.f32.partialorder %v12573, 0.0
    %vm12702 = vcmp.ge.f32.partialorder %v12574, 0.0
    %vm12703 = vcmp.ge.f32.partialorder %v12575, 0.0
    %vm12704 = vcmp.ge.f32.partialorder %v12576, 0.0
    %vm12705 = vcmp.ge.f32.partialorder %v12577, 0.0
    %vm12706 = vcmp.ge.f32.partialorder %v12578, 0.0
    %vm12707 = vcmp.ge.f32.partialorder %v12579, 0.0
    %vm12708 = vcmp.ge.f32.partialorder %v12580, 0.0
    %vm12709 = vcmp.ge.f32.partialorder %v12581, 0.0
    %vm12710 = vcmp.ge.f32.partialorder %v12582, 0.0
    %vm12711 = vcmp.ge.f32.partialorder %v12583, 0.0
    %vm12712 = vcmp.ge.f32.partialorder %v12584, 0.0
    %vm12713 = vcmp.ge.f32.partialorder %v12585, 0.0
    %vm12714 = vcmp.ge.f32.partialorder %v12586, 0.0
    %vm12715 = vcmp.ge.f32.partialorder %v12587, 0.0
    %vm12716 = vcmp.ge.f32.partialorder %v12588, 0.0
    %vm12717 = vcmp.ge.f32.partialorder %v12589, 0.0
    %vm12718 = vcmp.ge.f32.partialorder %v12590, 0.0
    %vm12719 = vcmp.ge.f32.partialorder %v12591, 0.0
    %vm12720 = vcmp.ge.f32.partialorder %v12592, 0.0
    %vm12721 = vcmp.ge.f32.partialorder %v12593, 0.0
    %vm12722 = vcmp.ge.f32.partialorder %v12594, 0.0
    %vm12723 = vcmp.ge.f32.partialorder %v12595, 0.0
    %vm12724 = vcmp.ge.f32.partialorder %v12596, 0.0
    %vm12725 = vcmp.ge.f32.partialorder %v12597, 0.0
    %vm12726 = vcmp.ge.f32.partialorder %v12598, 0.0
    %vm12727 = vcmp.ge.f32.partialorder %v12599, 0.0
    %vm12728 = vcmp.ge.f32.partialorder %v12600, 0.0
    %vm12729 = vcmp.ge.f32.partialorder %v12601, 0.0
    %vm12730 = vcmp.ge.f32.partialorder %v12602, 0.0
    %vm12731 = vcmp.ge.f32.partialorder %v12603, 0.0
    %vm12732 = vcmp.ge.f32.partialorder %v12604, 0.0
    %vm12733 = vcmp.ge.f32.partialorder %v12605, 0.0
    %vm12734 = vcmp.ge.f32.partialorder %v12606, 0.0
    %vm12735 = vcmp.ge.f32.partialorder %v12607, 0.0
    %vm12736 = vcmp.ge.f32.partialorder %v12608, 0.0
    %vm12737 = vcmp.ge.f32.partialorder %v12609, 0.0
    %vm12738 = vcmp.ge.f32.partialorder %v12610, 0.0
    %vm12739 = vcmp.ge.f32.partialorder %v12611, 0.0
    %vm12740 = vcmp.ge.f32.partialorder %v12612, 0.0
    %vm12741 = vcmp.ge.f32.partialorder %v12613, 0.0
    %vm12742 = vcmp.ge.f32.partialorder %v12614, 0.0
    %vm12743 = vcmp.ge.f32.partialorder %v12615, 0.0
    %vm12744 = vcmp.ge.f32.partialorder %v12616, 0.0
    %vm12745 = vcmp.ge.f32.partialorder %v12617, 0.0
    %vm12746 = vcmp.ge.f32.partialorder %v12618, 0.0
    %vm12747 = vcmp.ge.f32.partialorder %v12619, 0.0
    %vm12748 = vcmp.ge.f32.partialorder %v12620, 0.0
    %vm12749 = vcmp.ge.f32.partialorder %v12621, 0.0
    %vm12750 = vcmp.ge.f32.partialorder %v12622, 0.0
    %vm12751 = vcmp.ge.f32.partialorder %v12623, 0.0
    %vm12752 = vcmp.ge.f32.partialorder %v12624, 0.0
    %vm12753 = vcmp.ge.f32.partialorder %v12625, 0.0
    %vm12754 = vcmp.ge.f32.partialorder %v12626, 0.0
    %vm12755 = vcmp.ge.f32.partialorder %v12627, 0.0
    %vm12756 = vcmp.ge.f32.partialorder %v12628, 0.0
    %vm12757 = vcmp.ge.f32.partialorder %v12629, 0.0
    %vm12758 = vcmp.ge.f32.partialorder %v12630, 0.0
    %vm12759 = vcmp.ge.f32.partialorder %v12631, 0.0
    %vm12760 = vcmp.ge.f32.partialorder %v12632, 0.0
    %vm12761 = vcmp.ge.f32.partialorder %v12633, 0.0
    %vm12762 = vcmp.ge.f32.partialorder %v12634, 0.0
    %vm12763 = vcmp.ge.f32.partialorder %v12635, 0.0
    %vm12764 = vcmp.ge.f32.partialorder %v12636, 0.0
    %vm12765 = vcmp.ge.f32.partialorder %v12637, 0.0
    %vm12766 = vcmp.ge.f32.partialorder %v12638, 0.0
    %vm12767 = vcmp.ge.f32.partialorder %v12639, 0.0
    %vm12768 = vcmp.ge.f32.partialorder %v12640, 0.0
    %vm12769 = vcmp.ge.f32.partialorder %v12641, 0.0
    %vm12770 = vcmp.ge.f32.partialorder %v12642, 0.0
    %vm12771 = vcmp.ge.f32.partialorder %v12643, 0.0
    %vm12772 = vcmp.ge.f32.partialorder %v12644, 0.0
    %vm12773 = vcmp.ge.f32.partialorder %v12645, 0.0
    %vm12774 = vcmp.ge.f32.partialorder %v12646, 0.0
    %vm12775 = vcmp.ge.f32.partialorder %v12647, 0.0
    %vm12776 = vcmp.ge.f32.partialorder %v12648, 0.0
    %vm12777 = vcmp.ge.f32.partialorder %v12649, 0.0
    %vm12778 = vcmp.ge.f32.partialorder %v12650, 0.0
    %vm12779 = vcmp.ge.f32.partialorder %v12651, 0.0
    %vm12780 = vcmp.ge.f32.partialorder %v12652, 0.0
    %vm12781 = vcmp.ge.f32.partialorder %v12653, 0.0
    %vm12782 = vcmp.ge.f32.partialorder %v12654, 0.0
    %vm12783 = vcmp.ge.f32.partialorder %v12655, 0.0
    %vm12784 = vcmp.ge.f32.partialorder %v12656, 0.0
    %vm12785 = vcmp.ge.f32.partialorder %v12657, 0.0
    %vm12786 = vcmp.ge.f32.partialorder %v12658, 0.0
    %vm12787 = vcmp.ge.f32.partialorder %v12659, 0.0
    %vm12788 = vcmp.ge.f32.partialorder %v12660, 0.0
    %vm12789 = vcmp.ge.f32.partialorder %v12661, 0.0
    %vm12790 = vcmp.ge.f32.partialorder %v12662, 0.0
    %vm12791 = vcmp.ge.f32.partialorder %v12663, 0.0
    %vm12792 = vcmp.ge.f32.partialorder %v12664, 0.0
    %vm12793 = vcmp.ge.f32.partialorder %v12665, 0.0
    %vm12794 = vcmp.ge.f32.partialorder %v12666, 0.0
    %vm12795 = vcmp.ge.f32.partialorder %v12667, 0.0
    %vm12796 = vcmp.ge.f32.partialorder %v12668, 0.0
    %vm12797 = vcmp.ge.f32.partialorder %v12669, 0.0
    %vm12798 = vcmp.ge.f32.partialorder %v12670, 0.0
    %vm12799 = vcmp.ge.f32.partialorder %v12671, 0.0
    %vm12800 = vcmp.ge.f32.partialorder %v12672, 0.0
    %vm12801 = vcmp.ge.f32.partialorder %v12673, 0.0
    %vm12802 = vcmp.ge.f32.partialorder %v12674, 0.0
    %vm12803 = vcmp.ge.f32.partialorder %v12675, 0.0
    %vm12804 = vcmp.ge.f32.partialorder %v12676, 0.0
    %vm12805 = vcmp.ge.f32.partialorder %v12677, 0.0
    %vm12806 = vcmp.ge.f32.partialorder %v12678, 0.0
    %v12807 = vmul.f32 %v6215, %v12551
    %v12808 = vmul.f32 %v6215, %v12552
    %v12809 = vmul.f32 %v6215, %v12553
    %v12810 = vmul.f32 %v6215, %v12554
    %v12811 = vmul.f32 %v6215, %v12555
    %v12812 = vmul.f32 %v6215, %v12556
    %v12813 = vmul.f32 %v6215, %v12557
    %v12814 = vmul.f32 %v6215, %v12558
    %v12815 = vmul.f32 %v6215, %v12559
    %v12816 = vmul.f32 %v6215, %v12560
    %v12817 = vmul.f32 %v6215, %v12561
    %v12818 = vmul.f32 %v6215, %v12562
    %v12819 = vmul.f32 %v6215, %v12563
    %v12820 = vmul.f32 %v6215, %v12564
    %v12821 = vmul.f32 %v6215, %v12565
    %v12822 = vmul.f32 %v6215, %v12566
    %v12823 = vmul.f32 %v6215, %v12567
    %v12824 = vmul.f32 %v6215, %v12568
    %v12825 = vmul.f32 %v6215, %v12569
    %v12826 = vmul.f32 %v6215, %v12570
    %v12827 = vmul.f32 %v6215, %v12571
    %v12828 = vmul.f32 %v6215, %v12572
    %v12829 = vmul.f32 %v6215, %v12573
    %v12830 = vmul.f32 %v6215, %v12574
    %v12831 = vmul.f32 %v6215, %v12575
    %v12832 = vmul.f32 %v6215, %v12576
    %v12833 = vmul.f32 %v6215, %v12577
    %v12834 = vmul.f32 %v6215, %v12578
    %v12835 = vmul.f32 %v6215, %v12579
    %v12836 = vmul.f32 %v6215, %v12580
    %v12837 = vmul.f32 %v6215, %v12581
    %v12838 = vmul.f32 %v6215, %v12582
    %v12839 = vmul.f32 %v6215, %v12583
    %v12840 = vmul.f32 %v6215, %v12584
    %v12841 = vmul.f32 %v6215, %v12585
    %v12842 = vmul.f32 %v6215, %v12586
    %v12843 = vmul.f32 %v6215, %v12587
    %v12844 = vmul.f32 %v6215, %v12588
    %v12845 = vmul.f32 %v6215, %v12589
    %v12846 = vmul.f32 %v6215, %v12590
    %v12847 = vmul.f32 %v6215, %v12591
    %v12848 = vmul.f32 %v6215, %v12592
    %v12849 = vmul.f32 %v6215, %v12593
    %v12850 = vmul.f32 %v6215, %v12594
    %v12851 = vmul.f32 %v6215, %v12595
    %v12852 = vmul.f32 %v6215, %v12596
    %v12853 = vmul.f32 %v6215, %v12597
    %v12854 = vmul.f32 %v6215, %v12598
    %v12855 = vmul.f32 %v6215, %v12599
    %v12856 = vmul.f32 %v6215, %v12600
    %v12857 = vmul.f32 %v6215, %v12601
    %v12858 = vmul.f32 %v6215, %v12602
    %v12859 = vmul.f32 %v6215, %v12603
    %v12860 = vmul.f32 %v6215, %v12604
    %v12861 = vmul.f32 %v6215, %v12605
    %v12862 = vmul.f32 %v6215, %v12606
    %v12863 = vmul.f32 %v6215, %v12607
    %v12864 = vmul.f32 %v6215, %v12608
    %v12865 = vmul.f32 %v6215, %v12609
    %v12866 = vmul.f32 %v6215, %v12610
    %v12867 = vmul.f32 %v6215, %v12611
    %v12868 = vmul.f32 %v6215, %v12612
    %v12869 = vmul.f32 %v6215, %v12613
    %v12870 = vmul.f32 %v6215, %v12614
    %v12871 = vmul.f32 %v6215, %v12615
    %v12872 = vmul.f32 %v6215, %v12616
    %v12873 = vmul.f32 %v6215, %v12617
    %v12874 = vmul.f32 %v6215, %v12618
    %v12875 = vmul.f32 %v6215, %v12619
    %v12876 = vmul.f32 %v6215, %v12620
    %v12877 = vmul.f32 %v6215, %v12621
    %v12878 = vmul.f32 %v6215, %v12622
    %v12879 = vmul.f32 %v6215, %v12623
    %v12880 = vmul.f32 %v6215, %v12624
    %v12881 = vmul.f32 %v6215, %v12625
    %v12882 = vmul.f32 %v6215, %v12626
    %v12883 = vmul.f32 %v6215, %v12627
    %v12884 = vmul.f32 %v6215, %v12628
    %v12885 = vmul.f32 %v6215, %v12629
    %v12886 = vmul.f32 %v6215, %v12630
    %v12887 = vmul.f32 %v6215, %v12631
    %v12888 = vmul.f32 %v6215, %v12632
    %v12889 = vmul.f32 %v6215, %v12633
    %v12890 = vmul.f32 %v6215, %v12634
    %v12891 = vmul.f32 %v6215, %v12635
    %v12892 = vmul.f32 %v6215, %v12636
    %v12893 = vmul.f32 %v6215, %v12637
    %v12894 = vmul.f32 %v6215, %v12638
    %v12895 = vmul.f32 %v6215, %v12639
    %v12896 = vmul.f32 %v6215, %v12640
    %v12897 = vmul.f32 %v6215, %v12641
    %v12898 = vmul.f32 %v6215, %v12642
    %v12899 = vmul.f32 %v6215, %v12643
    %v12900 = vmul.f32 %v6215, %v12644
    %v12901 = vmul.f32 %v6215, %v12645
    %v12902 = vmul.f32 %v6215, %v12646
    %v12903 = vmul.f32 %v6215, %v12647
    %v12904 = vmul.f32 %v6215, %v12648
    %v12905 = vmul.f32 %v6215, %v12649
    %v12906 = vmul.f32 %v6215, %v12650
    %v12907 = vmul.f32 %v6215, %v12651
    %v12908 = vmul.f32 %v6215, %v12652
    %v12909 = vmul.f32 %v6215, %v12653
    %v12910 = vmul.f32 %v6215, %v12654
    %v12911 = vmul.f32 %v6215, %v12655
    %v12912 = vmul.f32 %v6215, %v12656
    %v12913 = vmul.f32 %v6215, %v12657
    %v12914 = vmul.f32 %v6215, %v12658
    %v12915 = vmul.f32 %v6215, %v12659
    %v12916 = vmul.f32 %v6215, %v12660
    %v12917 = vmul.f32 %v6215, %v12661
    %v12918 = vmul.f32 %v6215, %v12662
    %v12919 = vmul.f32 %v6215, %v12663
    %v12920 = vmul.f32 %v6215, %v12664
    %v12921 = vmul.f32 %v6215, %v12665
    %v12922 = vmul.f32 %v6215, %v12666
    %v12923 = vmul.f32 %v6215, %v12667
    %v12924 = vmul.f32 %v6215, %v12668
    %v12925 = vmul.f32 %v6215, %v12669
    %v12926 = vmul.f32 %v6215, %v12670
    %v12927 = vmul.f32 %v6215, %v12671
    %v12928 = vmul.f32 %v6215, %v12672
    %v12929 = vmul.f32 %v6215, %v12673
    %v12930 = vmul.f32 %v6215, %v12674
    %v12931 = vmul.f32 %v6215, %v12675
    %v12932 = vmul.f32 %v6215, %v12676
    %v12933 = vmul.f32 %v6215, %v12677
    %v12934 = vmul.f32 %v6215, %v12678
    %v12935 = vsel %vm12679, %v12551, %v12807
    %v12936 = vsel %vm12680, %v12552, %v12808
    %v12937 = vsel %vm12681, %v12553, %v12809
    %v12938 = vsel %vm12682, %v12554, %v12810
    %v12939 = vsel %vm12683, %v12555, %v12811
    %v12940 = vsel %vm12684, %v12556, %v12812
    %v12941 = vsel %vm12685, %v12557, %v12813
    %v12942 = vsel %vm12686, %v12558, %v12814
    %v12943 = vsel %vm12687, %v12559, %v12815
    %v12944 = vsel %vm12688, %v12560, %v12816
    %v12945 = vsel %vm12689, %v12561, %v12817
    %v12946 = vsel %vm12690, %v12562, %v12818
    %v12947 = vsel %vm12691, %v12563, %v12819
    %v12948 = vsel %vm12692, %v12564, %v12820
    %v12949 = vsel %vm12693, %v12565, %v12821
    %v12950 = vsel %vm12694, %v12566, %v12822
    %v12951 = vsel %vm12695, %v12567, %v12823
    %v12952 = vsel %vm12696, %v12568, %v12824
    %v12953 = vsel %vm12697, %v12569, %v12825
    %v12954 = vsel %vm12698, %v12570, %v12826
    %v12955 = vsel %vm12699, %v12571, %v12827
    %v12956 = vsel %vm12700, %v12572, %v12828
    %v12957 = vsel %vm12701, %v12573, %v12829
    %v12958 = vsel %vm12702, %v12574, %v12830
    %v12959 = vsel %vm12703, %v12575, %v12831
    %v12960 = vsel %vm12704, %v12576, %v12832
    %v12961 = vsel %vm12705, %v12577, %v12833
    %v12962 = vsel %vm12706, %v12578, %v12834
    %v12963 = vsel %vm12707, %v12579, %v12835
    %v12964 = vsel %vm12708, %v12580, %v12836
    %v12965 = vsel %vm12709, %v12581, %v12837
    %v12966 = vsel %vm12710, %v12582, %v12838
    %v12967 = vsel %vm12711, %v12583, %v12839
    %v12968 = vsel %vm12712, %v12584, %v12840
    %v12969 = vsel %vm12713, %v12585, %v12841
    %v12970 = vsel %vm12714, %v12586, %v12842
    %v12971 = vsel %vm12715, %v12587, %v12843
    %v12972 = vsel %vm12716, %v12588, %v12844
    %v12973 = vsel %vm12717, %v12589, %v12845
    %v12974 = vsel %vm12718, %v12590, %v12846
    %v12975 = vsel %vm12719, %v12591, %v12847
    %v12976 = vsel %vm12720, %v12592, %v12848
    %v12977 = vsel %vm12721, %v12593, %v12849
    %v12978 = vsel %vm12722, %v12594, %v12850
    %v12979 = vsel %vm12723, %v12595, %v12851
    %v12980 = vsel %vm12724, %v12596, %v12852
    %v12981 = vsel %vm12725, %v12597, %v12853
    %v12982 = vsel %vm12726, %v12598, %v12854
    %v12983 = vsel %vm12727, %v12599, %v12855
    %v12984 = vsel %vm12728, %v12600, %v12856
    %v12985 = vsel %vm12729, %v12601, %v12857
    %v12986 = vsel %vm12730, %v12602, %v12858
    %v12987 = vsel %vm12731, %v12603, %v12859
    %v12988 = vsel %vm12732, %v12604, %v12860
    %v12989 = vsel %vm12733, %v12605, %v12861
    %v12990 = vsel %vm12734, %v12606, %v12862
    %v12991 = vsel %vm12735, %v12607, %v12863
    %v12992 = vsel %vm12736, %v12608, %v12864
    %v12993 = vsel %vm12737, %v12609, %v12865
    %v12994 = vsel %vm12738, %v12610, %v12866
    %v12995 = vsel %vm12739, %v12611, %v12867
    %v12996 = vsel %vm12740, %v12612, %v12868
    %v12997 = vsel %vm12741, %v12613, %v12869
    %v12998 = vsel %vm12742, %v12614, %v12870
    %v12999 = vsel %vm12743, %v12615, %v12871
    %v13000 = vsel %vm12744, %v12616, %v12872
    %v13001 = vsel %vm12745, %v12617, %v12873
    %v13002 = vsel %vm12746, %v12618, %v12874
    %v13003 = vsel %vm12747, %v12619, %v12875
    %v13004 = vsel %vm12748, %v12620, %v12876
    %v13005 = vsel %vm12749, %v12621, %v12877
    %v13006 = vsel %vm12750, %v12622, %v12878
    %v13007 = vsel %vm12751, %v12623, %v12879
    %v13008 = vsel %vm12752, %v12624, %v12880
    %v13009 = vsel %vm12753, %v12625, %v12881
    %v13010 = vsel %vm12754, %v12626, %v12882
    %v13011 = vsel %vm12755, %v12627, %v12883
    %v13012 = vsel %vm12756, %v12628, %v12884
    %v13013 = vsel %vm12757, %v12629, %v12885
    %v13014 = vsel %vm12758, %v12630, %v12886
    %v13015 = vsel %vm12759, %v12631, %v12887
    %v13016 = vsel %vm12760, %v12632, %v12888
    %v13017 = vsel %vm12761, %v12633, %v12889
    %v13018 = vsel %vm12762, %v12634, %v12890
    %v13019 = vsel %vm12763, %v12635, %v12891
    %v13020 = vsel %vm12764, %v12636, %v12892
    %v13021 = vsel %vm12765, %v12637, %v12893
    %v13022 = vsel %vm12766, %v12638, %v12894
    %v13023 = vsel %vm12767, %v12639, %v12895
    %v13024 = vsel %vm12768, %v12640, %v12896
    %v13025 = vsel %vm12769, %v12641, %v12897
    %v13026 = vsel %vm12770, %v12642, %v12898
    %v13027 = vsel %vm12771, %v12643, %v12899
    %v13028 = vsel %vm12772, %v12644, %v12900
    %v13029 = vsel %vm12773, %v12645, %v12901
    %v13030 = vsel %vm12774, %v12646, %v12902
    %v13031 = vsel %vm12775, %v12647, %v12903
    %v13032 = vsel %vm12776, %v12648, %v12904
    %v13033 = vsel %vm12777, %v12649, %v12905
    %v13034 = vsel %vm12778, %v12650, %v12906
    %v13035 = vsel %vm12779, %v12651, %v12907
    %v13036 = vsel %vm12780, %v12652, %v12908
    %v13037 = vsel %vm12781, %v12653, %v12909
    %v13038 = vsel %vm12782, %v12654, %v12910
    %v13039 = vsel %vm12783, %v12655, %v12911
    %v13040 = vsel %vm12784, %v12656, %v12912
    %v13041 = vsel %vm12785, %v12657, %v12913
    %v13042 = vsel %vm12786, %v12658, %v12914
    %v13043 = vsel %vm12787, %v12659, %v12915
    %v13044 = vsel %vm12788, %v12660, %v12916
    %v13045 = vsel %vm12789, %v12661, %v12917
    %v13046 = vsel %vm12790, %v12662, %v12918
    %v13047 = vsel %vm12791, %v12663, %v12919
    %v13048 = vsel %vm12792, %v12664, %v12920
    %v13049 = vsel %vm12793, %v12665, %v12921
    %v13050 = vsel %vm12794, %v12666, %v12922
    %v13051 = vsel %vm12795, %v12667, %v12923
    %v13052 = vsel %vm12796, %v12668, %v12924
    %v13053 = vsel %vm12797, %v12669, %v12925
    %v13054 = vsel %vm12798, %v12670, %v12926
    %v13055 = vsel %vm12799, %v12671, %v12927
    %v13056 = vsel %vm12800, %v12672, %v12928
    %v13057 = vsel %vm12801, %v12673, %v12929
    %v13058 = vsel %vm12802, %v12674, %v12930
    %v13059 = vsel %vm12803, %v12675, %v12931
    %v13060 = vsel %vm12804, %v12676, %v12932
    %v13061 = vsel %vm12805, %v12677, %v12933
    %v13062 = vsel %vm12806, %v12678, %v12934
    %13063 = vst [vmem:[#allocation10] sm:$0xff] %v12935
    %13064 = vst [vmem:[#allocation10 + $0x8] sm:$0xff] %v12936
    %13065 = vst [vmem:[#allocation10 + $0x10] sm:$0xff] %v12937
    %13066 = vst [vmem:[#allocation10 + $0x18] sm:$0xff] %v12938
    %13067 = vst [vmem:[#allocation10 + $0x20] sm:$0xff] %v12939
    %13068 = vst [vmem:[#allocation10 + $0x28] sm:$0xff] %v12940
    %13069 = vst [vmem:[#allocation10 + $0x30] sm:$0xff] %v12941
    %13070 = vst [vmem:[#allocation10 + $0x38] sm:$0xff] %v12942
    %13071 = vst [vmem:[#allocation10 + $0x40] sm:$0xff] %v12943
    %13072 = vst [vmem:[#allocation10 + $0x48] sm:$0xff] %v12944
    %13073 = vst [vmem:[#allocation10 + $0x50] sm:$0xff] %v12945
    %13074 = vst [vmem:[#allocation10 + $0x58] sm:$0xff] %v12946
    %13075 = vst [vmem:[#allocation10 + $0x60] sm:$0xff] %v12947
    %13076 = vst [vmem:[#allocation10 + $0x68] sm:$0xff] %v12948
    %13077 = vst [vmem:[#allocation10 + $0x70] sm:$0xff] %v12949
    %13078 = vst [vmem:[#allocation10 + $0x78] sm:$0xff] %v12950
    %13079 = vst [vmem:[#allocation10 + $0x80] sm:$0xff] %v12951
    %13080 = vst [vmem:[#allocation10 + $0x88] sm:$0xff] %v12952
    %13081 = vst [vmem:[#allocation10 + $0x90] sm:$0xff] %v12953
    %13082 = vst [vmem:[#allocation10 + $0x98] sm:$0xff] %v12954
    %13083 = vst [vmem:[#allocation10 + $0xa0] sm:$0xff] %v12955
    %13084 = vst [vmem:[#allocation10 + $0xa8] sm:$0xff] %v12956
    %13085 = vst [vmem:[#allocation10 + $0xb0] sm:$0xff] %v12957
    %13086 = vst [vmem:[#allocation10 + $0xb8] sm:$0xff] %v12958
    %13087 = vst [vmem:[#allocation10 + $0xc0] sm:$0xff] %v12959
    %13088 = vst [vmem:[#allocation10 + $0xc8] sm:$0xff] %v12960
    %13089 = vst [vmem:[#allocation10 + $0xd0] sm:$0xff] %v12961
    %13090 = vst [vmem:[#allocation10 + $0xd8] sm:$0xff] %v12962
    %13091 = vst [vmem:[#allocation10 + $0xe0] sm:$0xff] %v12963
    %13092 = vst [vmem:[#allocation10 + $0xe8] sm:$0xff] %v12964
    %13093 = vst [vmem:[#allocation10 + $0xf0] sm:$0xff] %v12965
    %13094 = vst [vmem:[#allocation10 + $0xf8] sm:$0xff] %v12966
    %13095 = vst [vmem:[#allocation10 + $0x100] sm:$0xff] %v12967
    %13096 = vst [vmem:[#allocation10 + $0x108] sm:$0xff] %v12968
    %13097 = vst [vmem:[#allocation10 + $0x110] sm:$0xff] %v12969
    %13098 = vst [vmem:[#allocation10 + $0x118] sm:$0xff] %v12970
    %13099 = vst [vmem:[#allocation10 + $0x120] sm:$0xff] %v12971
    %13100 = vst [vmem:[#allocation10 + $0x128] sm:$0xff] %v12972
    %13101 = vst [vmem:[#allocation10 + $0x130] sm:$0xff] %v12973
    %13102 = vst [vmem:[#allocation10 + $0x138] sm:$0xff] %v12974
    %13103 = vst [vmem:[#allocation10 + $0x140] sm:$0xff] %v12975
    %13104 = vst [vmem:[#allocation10 + $0x148] sm:$0xff] %v12976
    %13105 = vst [vmem:[#allocation10 + $0x150] sm:$0xff] %v12977
    %13106 = vst [vmem:[#allocation10 + $0x158] sm:$0xff] %v12978
    %13107 = vst [vmem:[#allocation10 + $0x160] sm:$0xff] %v12979
    %13108 = vst [vmem:[#allocation10 + $0x168] sm:$0xff] %v12980
    %13109 = vst [vmem:[#allocation10 + $0x170] sm:$0xff] %v12981
    %13110 = vst [vmem:[#allocation10 + $0x178] sm:$0xff] %v12982
    %13111 = vst [vmem:[#allocation10 + $0x180] sm:$0xff] %v12983
    %13112 = vst [vmem:[#allocation10 + $0x188] sm:$0xff] %v12984
    %13113 = vst [vmem:[#allocation10 + $0x190] sm:$0xff] %v12985
    %13114 = vst [vmem:[#allocation10 + $0x198] sm:$0xff] %v12986
    %13115 = vst [vmem:[#allocation10 + $0x1a0] sm:$0xff] %v12987
    %13116 = vst [vmem:[#allocation10 + $0x1a8] sm:$0xff] %v12988
    %13117 = vst [vmem:[#allocation10 + $0x1b0] sm:$0xff] %v12989
    %13118 = vst [vmem:[#allocation10 + $0x1b8] sm:$0xff] %v12990
    %13119 = vst [vmem:[#allocation10 + $0x1c0] sm:$0xff] %v12991
    %13120 = vst [vmem:[#allocation10 + $0x1c8] sm:$0xff] %v12992
    %13121 = vst [vmem:[#allocation10 + $0x1d0] sm:$0xff] %v12993
    %13122 = vst [vmem:[#allocation10 + $0x1d8] sm:$0xff] %v12994
    %13123 = vst [vmem:[#allocation10 + $0x1e0] sm:$0xff] %v12995
    %13124 = vst [vmem:[#allocation10 + $0x1e8] sm:$0xff] %v12996
    %13125 = vst [vmem:[#allocation10 + $0x1f0] sm:$0xff] %v12997
    %13126 = vst [vmem:[#allocation10 + $0x1f8] sm:$0xff] %v12998
    %13127 = vst [vmem:[#allocation10 + $0x200] sm:$0xff] %v12999
    %13128 = vst [vmem:[#allocation10 + $0x208] sm:$0xff] %v13000
    %13129 = vst [vmem:[#allocation10 + $0x210] sm:$0xff] %v13001
    %13130 = vst [vmem:[#allocation10 + $0x218] sm:$0xff] %v13002
    %13131 = vst [vmem:[#allocation10 + $0x220] sm:$0xff] %v13003
    %13132 = vst [vmem:[#allocation10 + $0x228] sm:$0xff] %v13004
    %13133 = vst [vmem:[#allocation10 + $0x230] sm:$0xff] %v13005
    %13134 = vst [vmem:[#allocation10 + $0x238] sm:$0xff] %v13006
    %13135 = vst [vmem:[#allocation10 + $0x240] sm:$0xff] %v13007
    %13136 = vst [vmem:[#allocation10 + $0x248] sm:$0xff] %v13008
    %13137 = vst [vmem:[#allocation10 + $0x250] sm:$0xff] %v13009
    %13138 = vst [vmem:[#allocation10 + $0x258] sm:$0xff] %v13010
    %13139 = vst [vmem:[#allocation10 + $0x260] sm:$0xff] %v13011
    %13140 = vst [vmem:[#allocation10 + $0x268] sm:$0xff] %v13012
    %13141 = vst [vmem:[#allocation10 + $0x270] sm:$0xff] %v13013
    %13142 = vst [vmem:[#allocation10 + $0x278] sm:$0xff] %v13014
    %13143 = vst [vmem:[#allocation10 + $0x280] sm:$0xff] %v13015
    %13144 = vst [vmem:[#allocation10 + $0x288] sm:$0xff] %v13016
    %13145 = vst [vmem:[#allocation10 + $0x290] sm:$0xff] %v13017
    %13146 = vst [vmem:[#allocation10 + $0x298] sm:$0xff] %v13018
    %13147 = vst [vmem:[#allocation10 + $0x2a0] sm:$0xff] %v13019
    %13148 = vst [vmem:[#allocation10 + $0x2a8] sm:$0xff] %v13020
    %13149 = vst [vmem:[#allocation10 + $0x2b0] sm:$0xff] %v13021
    %13150 = vst [vmem:[#allocation10 + $0x2b8] sm:$0xff] %v13022
    %13151 = vst [vmem:[#allocation10 + $0x2c0] sm:$0xff] %v13023
    %13152 = vst [vmem:[#allocation10 + $0x2c8] sm:$0xff] %v13024
    %13153 = vst [vmem:[#allocation10 + $0x2d0] sm:$0xff] %v13025
    %13154 = vst [vmem:[#allocation10 + $0x2d8] sm:$0xff] %v13026
    %13155 = vst [vmem:[#allocation10 + $0x2e0] sm:$0xff] %v13027
    %13156 = vst [vmem:[#allocation10 + $0x2e8] sm:$0xff] %v13028
    %13157 = vst [vmem:[#allocation10 + $0x2f0] sm:$0xff] %v13029
    %13158 = vst [vmem:[#allocation10 + $0x2f8] sm:$0xff] %v13030
    %13159 = vst [vmem:[#allocation10 + $0x300] sm:$0xff] %v13031
    %13160 = vst [vmem:[#allocation10 + $0x308] sm:$0xff] %v13032
    %13161 = vst [vmem:[#allocation10 + $0x310] sm:$0xff] %v13033
    %13162 = vst [vmem:[#allocation10 + $0x318] sm:$0xff] %v13034
    %13163 = vst [vmem:[#allocation10 + $0x320] sm:$0xff] %v13035
    %13164 = vst [vmem:[#allocation10 + $0x328] sm:$0xff] %v13036
    %13165 = vst [vmem:[#allocation10 + $0x330] sm:$0xff] %v13037
    %13166 = vst [vmem:[#allocation10 + $0x338] sm:$0xff] %v13038
    %13167 = vst [vmem:[#allocation10 + $0x340] sm:$0xff] %v13039
    %13168 = vst [vmem:[#allocation10 + $0x348] sm:$0xff] %v13040
    %13169 = vst [vmem:[#allocation10 + $0x350] sm:$0xff] %v13041
    %13170 = vst [vmem:[#allocation10 + $0x358] sm:$0xff] %v13042
    %13171 = vst [vmem:[#allocation10 + $0x360] sm:$0xff] %v13043
    %13172 = vst [vmem:[#allocation10 + $0x368] sm:$0xff] %v13044
    %13173 = vst [vmem:[#allocation10 + $0x370] sm:$0xff] %v13045
    %13174 = vst [vmem:[#allocation10 + $0x378] sm:$0xff] %v13046
    %13175 = vst [vmem:[#allocation10 + $0x380] sm:$0xff] %v13047
    %13176 = vst [vmem:[#allocation10 + $0x388] sm:$0xff] %v13048
    %13177 = vst [vmem:[#allocation10 + $0x390] sm:$0xff] %v13049
    %13178 = vst [vmem:[#allocation10 + $0x398] sm:$0xff] %v13050
    %13179 = vst [vmem:[#allocation10 + $0x3a0] sm:$0xff] %v13051
    %13180 = vst [vmem:[#allocation10 + $0x3a8] sm:$0xff] %v13052
    %13181 = vst [vmem:[#allocation10 + $0x3b0] sm:$0xff] %v13053
    %13182 = vst [vmem:[#allocation10 + $0x3b8] sm:$0xff] %v13054
    %13183 = vst [vmem:[#allocation10 + $0x3c0] sm:$0xff] %v13055
    %13184 = vst [vmem:[#allocation10 + $0x3c8] sm:$0xff] %v13056
    %13185 = vst [vmem:[#allocation10 + $0x3d0] sm:$0xff] %v13057
    %13186 = vst [vmem:[#allocation10 + $0x3d8] sm:$0xff] %v13058
    %13187 = vst [vmem:[#allocation10 + $0x3e0] sm:$0xff] %v13059
    %13188 = vst [vmem:[#allocation10 + $0x3e8] sm:$0xff] %v13060
    %13189 = vst [vmem:[#allocation10 + $0x3f0] sm:$0xff] %v13061
    %13190 = vst [vmem:[#allocation10 + $0x3f8] sm:$0xff] %v13062
    // Predicated region
    $region74: #{tpu_custom_call.1} parent=1 // pred_check
      _
    $region75: #{tpu_custom_call.1} parent=1 // pred_check_branch
      %13192 = sbr.rel (0) target = $region77
    $region76: #{tpu_custom_call.1} parent=1 // pred_region
      %s13194 = ssub.s32 16384, 16384
      %13195 = vsyncadd [#allocation6], %s13194
      %s13196 = sshll.u32 [#allocation10], 4
      %s13197 = int_to_ptr.vmem [resolvable:$true] %s13196
      %13202 = dma.vmem_to_hbm [thread:$0]  %s13197, 16384, %s15, [#allocation6], 128, 128, 8
    $region77: #{tpu_custom_call.1} parent=1 // pred_fallthru
      _
    // Predicated region
    $region78: #{tpu_custom_call.1} parent=1 // pred_check
      _
    $region79: #{tpu_custom_call.1} parent=1 // pred_check_branch
      %13204 = sbr.rel (0) target = $region81
    $region80: #{tpu_custom_call.1} parent=1 // pred_region
      %13205 = dma.done [#allocation6], 16384
    $region81: #{tpu_custom_call.1} parent=1 // pred_fallthru
      _
    %13206 = vsyncpa [#allocation5], 1
    %13207 = vsyncpa [#allocation8], 1
    %13208 = vsyncpa [#allocation6], 1

</llo_original>
